<compile_context>
chip_gen: v7x
topology: tpu7x:2x2x1
jax: 0.10.0
libtpu: 0.0.40
codegen_flags: <defaults>
</compile_context>

<pallas_src>
import functools

import jax
import jax.numpy as jnp
from jax.experimental import pallas as pl
from jax.experimental.pallas import tpu as pltpu


_VMEM = pl.BlockSpec(memory_space=pltpu.MemorySpace.VMEM)


# ----------------------------------------------------------------------------
# In-kernel helpers (traced Python; operands are values living in VMEM/vregs)
# ----------------------------------------------------------------------------
def _iota_divmod(x, d):
    """Elementwise (x // d, x % d) for non-negative int32 x and static int d."""
    if d & (d - 1) == 0:                         # power of two -> shift / mask
        return x >> (d.bit_length() - 1), x & (d - 1)
    return x // d, x % d


def _down_sel(h, w):
    """bf16 (h*w, h/2*w/2) 0/1 matrix generated in-kernel from iota (no HBM):
    x_flat @ D == x[:, ::2, ::2] flattened (stride-2 spatial downsample)."""
    wo = w // 2
    p_sz, q_sz = h * w, (h // 2) * wo
    q = jax.lax.broadcasted_iota(jnp.int32, (1, q_sz), 1)
    r, c = _iota_divmod(q, wo)
    tgt = r * (2 * w) + 2 * c                    # source flat index for column q
    p = jax.lax.broadcasted_iota(jnp.int32, (p_sz, q_sz), 0)
    return jnp.where(p == tgt, 1.0, 0.0).astype(jnp.bfloat16)


def _up_sel(h, w):
    """bf16 (h*w, 2h*2w) 0/1 matrix generated in-kernel from iota:
    x_flat @ U == 2x nearest-neighbour upsample, flattened."""
    wo = 2 * w
    p_sz, q_sz = h * w, (2 * h) * wo
    q = jax.lax.broadcasted_iota(jnp.int32, (1, q_sz), 1)
    r, c = _iota_divmod(q, wo)
    tgt = (r >> 1) * w + (c >> 1)                # source coarse index for column q
    p = jax.lax.broadcasted_iota(jnp.int32, (p_sz, q_sz), 0)
    return jnp.where(p == tgt, 1.0, 0.0).astype(jnp.bfloat16)


def _col_masks(p_sz, width):
    """(1, p) validity masks for horizontal im2col tap offsets dw = -1 / +1."""
    col = jax.lax.broadcasted_iota(jnp.int32, (1, p_sz), 1)
    _, wpos = _iota_divmod(col, width)
    return {-1: wpos >= 1, 1: wpos <= width - 2}


def _shift_cols(x, s):
    """y[:, p] = x[:, p + s], zero-filled where p + s falls outside [0, P)."""
    if s == 0:
        return x
    c, p = x.shape
    pad = jnp.zeros((c, abs(s)), x.dtype)
    if s > 0:
        return jnp.concatenate([x[:, s:], pad], axis=1)
    return jnp.concatenate([pad, x[:, : p + s]], axis=1)


def _conv3x3(x, w, b, *, width, col_masks, relu=True):
    """3x3 'same' conv in (C, H*W) layout as ONE im2col bf16 MXU matmul.

    x: (Cin, P) f32 activations, P = H*W on lanes
    w: (Cout, 9*Cin) bf16 weights, tap-major / ci-minor
    b: (Cout, 1) f32 bias
    Row (dh) bounds are handled by the zero fill of _shift_cols; column (dw)
    bounds by the precomputed per-resolution lane masks.
    """
    taps = []
    for dh in (-1, 0, 1):
        for dw in (-1, 0, 1):
            t = _shift_cols(x, dh * width + dw)
            if dw != 0:
                t = jnp.where(col_masks[dw], t, 0.0)
            taps.append(t)
    patch = jnp.concatenate(taps, axis=0).astype(jnp.bfloat16)       # (9*Cin, P)
    y = jnp.dot(w, patch, preferred_element_type=jnp.float32) + b    # (Cout, P)
    return jnp.maximum(y, 0.0) if relu else y


# ----------------------------------------------------------------------------
# Fully fused U-Net kernel
# ----------------------------------------------------------------------------
def _unet_kernel(x_ref,
                 ws_ref, bs_ref, we1_ref, be1_ref, we2_ref, be2_ref,
                 wd1_ref, bd1_ref, wd2_ref, bd2_ref, wh_ref, bh_ref,
                 o_ref, *, height, width):
    f32, bf16 = jnp.float32, jnp.bfloat16
    h2, w2 = height // 2, width // 2
    h4, w4 = height // 4, width // 4

    # Per-resolution lane masks for the horizontal im2col taps (built once).
    m_full = _col_masks(height * width, width)
    m_half = _col_masks(h2 * w2, w2)
    m_quar = _col_masks(h4 * w4, w4)

    x = x_ref[...]                                                           # (3, HW)

    # --- encoder -------------------------------------------------------------
    s0 = _conv3x3(x, ws_ref[...], bs_ref[...], width=width, col_masks=m_full)   # (16, HW)
    d1 = jnp.dot(s0.astype(bf16), _down_sel(height, width),
                 preferred_element_type=f32)                                    # (16, HW/4)
    e1 = _conv3x3(d1, we1_ref[...], be1_ref[...], width=w2, col_masks=m_half)   # (32, HW/4)
    d2 = jnp.dot(e1.astype(bf16), _down_sel(h2, w2),
                 preferred_element_type=f32)                                    # (32, HW/16)
    e2 = _conv3x3(d2, we2_ref[...], be2_ref[...], width=w4, col_masks=m_quar)   # (64, HW/16)

    # --- decoder (2x nearest upsample = selection matmul, skip concat) -------
    u1 = jnp.dot(e2.astype(bf16), _up_sel(h4, w4), preferred_element_type=f32)  # (64, HW/4)
    c1 = jnp.concatenate([u1, e1], axis=0)                                      # (96, HW/4)
    x1 = _conv3x3(c1, wd1_ref[...], bd1_ref[...], width=w2, col_masks=m_half)   # (32, HW/4)

    u2 = jnp.dot(x1.astype(bf16), _up_sel(h2, w2), preferred_element_type=f32)  # (32, HW)
    c2 = jnp.concatenate([u2, s0], axis=0)                                      # (48, HW)
    x2 = _conv3x3(c2, wd2_ref[...], bd2_ref[...], width=width, col_masks=m_full)  # (16, HW)

    # --- 1x1 segmentation head -> (classes, HW), already in CHW order --------
    o_ref[...] = jnp.dot(wh_ref[...], x2.astype(bf16),
                         preferred_element_type=f32) + bh_ref[...]


# ----------------------------------------------------------------------------
# Parameter construction (deterministic, He-style init)
# ----------------------------------------------------------------------------
def _conv3x3_params(key, cin, cout):
    fan_in = 9 * cin
    w = jax.random.normal(key, (cout, 9, cin), jnp.float32) * (2.0 / fan_in) ** 0.5
    return {"w": w.reshape(cout, 9 * cin).astype(jnp.bfloat16),
            "b": jnp.zeros((cout, 1), jnp.float32)}


def _conv1x1_params(key, cin, cout):
    w = jax.random.normal(key, (cout, cin), jnp.float32) * (2.0 / cin) ** 0.5
    return {"w": w.astype(jnp.bfloat16), "b": jnp.zeros((cout, 1), jnp.float32)}


def init_params(key, in_ch=3, classes=16):
    ks = jax.random.split(key, 6)
    return {
        "stem": _conv3x3_params(ks[0], in_ch, 16),       # H,   W   -> 16 ch
        "enc1": _conv3x3_params(ks[1], 16, 32),          # H/2, W/2 -> 32 ch
        "enc2": _conv3x3_params(ks[2], 32, 64),          # H/4, W/4 -> 64 ch
        "dec1": _conv3x3_params(ks[3], 64 + 32, 32),     # up + skip(enc1)
        "dec2": _conv3x3_params(ks[4], 32 + 16, 16),     # up + skip(stem)
        "head": _conv1x1_params(ks[5], 16, classes),     # 1x1 seg head
    }


# ----------------------------------------------------------------------------
# Forward pass (mirrors segmentation.forward: HWC in -> (classes, H, W) out)
# ----------------------------------------------------------------------------
def segmentation_forward(img_hwc, params):
    height, width, _ = img_hwc.shape
    assert height % 4 == 0 and width % 4 == 0, "H, W must be divisible by 4"
    classes = params["head"]["w"].shape[0]

    # torch: img.permute(2, 0, 1).unsqueeze(0).  We flatten CHW -> (C, H*W) so
    # the spatial axis (lane-dense) is the minor dim inside the kernel.
    x = jnp.transpose(img_hwc.astype(jnp.float32), (2, 0, 1)).reshape(-1, height * width)

    kern = functools.partial(_unet_kernel, height=height, width=width)
    args = (x,
            params["stem"]["w"], params["stem"]["b"],
            params["enc1"]["w"], params["enc1"]["b"],
            params["enc2"]["w"], params["enc2"]["b"],
            params["dec1"]["w"], params["dec1"]["b"],
            params["dec2"]["w"], params["dec2"]["b"],
            params["head"]["w"], params["head"]["b"])

    out = pl.pallas_call(
        kern,
        out_shape=jax.ShapeDtypeStruct((classes, height * width), jnp.float32),
        in_specs=[_VMEM] * len(args),
        out_specs=_VMEM,
    )(*args)

    # torch: mask.squeeze(0) -> (classes, H, W).  Row-major reshape is free.
    return out.reshape(classes, height, width)


# ----------------------------------------------------------------------------
if __name__ == "__main__":
    H, W, C_IN, CLASSES = 32, 32, 3, 16

    key = jax.random.PRNGKey(0)
    k_img, k_params = jax.random.split(key)

    img = jax.random.uniform(k_img, (H, W, C_IN), dtype=jnp.float32)
    params = init_params(k_params, in_ch=C_IN, classes=CLASSES)

    fwd = jax.jit(segmentation_forward)
    mask = jax.block_until_ready(fwd(img, params))

    assert mask.shape == (CLASSES, H, W), mask.shape
    assert mask.dtype == jnp.float32
    assert bool(jnp.all(jnp.isfinite(mask)))

    print("KERNEL_OK")
</pallas_src>

<mosaic_0001>
module attributes {stable_mosaic.version = 11 : i64} {
  func.func @_unet_kernel(%arg0: memref<3x1024xf32, #tpu.memory_space<vmem>>, %arg1: memref<16x27xbf16, #tpu.memory_space<vmem>>, %arg2: memref<16x1xf32, #tpu.memory_space<vmem>>, %arg3: memref<32x144xbf16, #tpu.memory_space<vmem>>, %arg4: memref<32x1xf32, #tpu.memory_space<vmem>>, %arg5: memref<64x288xbf16, #tpu.memory_space<vmem>>, %arg6: memref<64x1xf32, #tpu.memory_space<vmem>>, %arg7: memref<32x864xbf16, #tpu.memory_space<vmem>>, %arg8: memref<32x1xf32, #tpu.memory_space<vmem>>, %arg9: memref<16x432xbf16, #tpu.memory_space<vmem>>, %arg10: memref<16x1xf32, #tpu.memory_space<vmem>>, %arg11: memref<16x16xbf16, #tpu.memory_space<vmem>>, %arg12: memref<16x1xf32, #tpu.memory_space<vmem>>, %arg13: memref<16x1024xf32, #tpu.memory_space<vmem>>) attributes {dimension_semantics = [], scalar_prefetch = 0 : i64, scratch_operands = 0 : i64, tpu.core_type = #tpu.core_type<tc>} {
    %0 = tpu.iota {dimensions = array<i32: 1>} : vector<1x1024xi32>
    %c31_i32 = arith.constant 31 : i32
    %1 = vector.broadcast %c31_i32 : i32 to vector<1x1024xi32>
    %2 = arith.andi %0, %1 : vector<1x1024xi32>
    %c1_i32 = arith.constant 1 : i32
    %3 = vector.broadcast %c1_i32 : i32 to vector<1x1024xi32>
    %4 = arith.cmpi sge, %2, %3 : vector<1x1024xi32>
    %c30_i32 = arith.constant 30 : i32
    %5 = vector.broadcast %c30_i32 : i32 to vector<1x1024xi32>
    %6 = arith.cmpi sle, %2, %5 : vector<1x1024xi32>
    %7 = tpu.iota {dimensions = array<i32: 1>} : vector<1x256xi32>
    %c15_i32 = arith.constant 15 : i32
    %8 = vector.broadcast %c15_i32 : i32 to vector<1x256xi32>
    %9 = arith.andi %7, %8 : vector<1x256xi32>
    %c1_i32_0 = arith.constant 1 : i32
    %10 = vector.broadcast %c1_i32_0 : i32 to vector<1x256xi32>
    %11 = arith.cmpi sge, %9, %10 : vector<1x256xi32>
    %c14_i32 = arith.constant 14 : i32
    %12 = vector.broadcast %c14_i32 : i32 to vector<1x256xi32>
    %13 = arith.cmpi sle, %9, %12 : vector<1x256xi32>
    %14 = tpu.iota {dimensions = array<i32: 1>} : vector<1x64xi32>
    %c7_i32 = arith.constant 7 : i32
    %15 = vector.broadcast %c7_i32 : i32 to vector<1x64xi32>
    %16 = arith.andi %14, %15 : vector<1x64xi32>
    %c1_i32_1 = arith.constant 1 : i32
    %17 = vector.broadcast %c1_i32_1 : i32 to vector<1x64xi32>
    %18 = arith.cmpi sge, %16, %17 : vector<1x64xi32>
    %c6_i32 = arith.constant 6 : i32
    %19 = vector.broadcast %c6_i32 : i32 to vector<1x64xi32>
    %20 = arith.cmpi sle, %16, %19 : vector<1x64xi32>
    %c0 = arith.constant 0 : index
    %c0_2 = arith.constant 0 : index
    %21 = vector.load %arg0[%c0, %c0_2] : memref<3x1024xf32, #tpu.memory_space<vmem>>, vector<3x1024xf32>
    %c0_3 = arith.constant 0 : index
    %c0_4 = arith.constant 0 : index
    %22 = vector.load %arg1[%c0_3, %c0_4] : memref<16x27xbf16, #tpu.memory_space<vmem>>, vector<16x27xbf16>
    %c0_5 = arith.constant 0 : index
    %c0_6 = arith.constant 0 : index
    %23 = vector.load %arg2[%c0_5, %c0_6] : memref<16x1xf32, #tpu.memory_space<vmem>>, vector<16x1xf32>
    %cst = arith.constant 0.000000e+00 : f32
    %24 = vector.broadcast %cst : f32 to vector<3x33xf32>
    %25 = vector.extract_strided_slice %21 {offsets = [0, 0], sizes = [3, 991], strides = [1, 1]} : vector<3x1024xf32> to vector<3x991xf32>
    %26 = tpu.concatenate %24, %25 in 1 : vector<3x33xf32>, vector<3x991xf32> -> vector<3x1024xf32>
    %cst_7 = arith.constant 0.000000e+00 : f32
    %27 = vector.shape_cast %4 : vector<1x1024xi1> to vector<1x1024xi1>
    %28 = vector.broadcast %27 : vector<1x1024xi1> to vector<3x1024xi1>
    %29 = vector.broadcast %cst_7 : f32 to vector<3x1024xf32>
    %30 = arith.select %28, %26, %29 : vector<3x1024xi1>, vector<3x1024xf32>
    %cst_8 = arith.constant 0.000000e+00 : f32
    %31 = vector.broadcast %cst_8 : f32 to vector<3x32xf32>
    %32 = vector.extract_strided_slice %21 {offsets = [0, 0], sizes = [3, 992], strides = [1, 1]} : vector<3x1024xf32> to vector<3x992xf32>
    %33 = tpu.concatenate %31, %32 in 1 : vector<3x32xf32>, vector<3x992xf32> -> vector<3x1024xf32>
    %cst_9 = arith.constant 0.000000e+00 : f32
    %34 = vector.broadcast %cst_9 : f32 to vector<3x31xf32>
    %35 = vector.extract_strided_slice %21 {offsets = [0, 0], sizes = [3, 993], strides = [1, 1]} : vector<3x1024xf32> to vector<3x993xf32>
    %36 = tpu.concatenate %34, %35 in 1 : vector<3x31xf32>, vector<3x993xf32> -> vector<3x1024xf32>
    %cst_10 = arith.constant 0.000000e+00 : f32
    %37 = vector.shape_cast %6 : vector<1x1024xi1> to vector<1x1024xi1>
    %38 = vector.broadcast %37 : vector<1x1024xi1> to vector<3x1024xi1>
    %39 = vector.broadcast %cst_10 : f32 to vector<3x1024xf32>
    %40 = arith.select %38, %36, %39 : vector<3x1024xi1>, vector<3x1024xf32>
    %cst_11 = arith.constant 0.000000e+00 : f32
    %41 = vector.broadcast %cst_11 : f32 to vector<3x1xf32>
    %42 = vector.extract_strided_slice %21 {offsets = [0, 0], sizes = [3, 1023], strides = [1, 1]} : vector<3x1024xf32> to vector<3x1023xf32>
    %43 = tpu.concatenate %41, %42 in 1 : vector<3x1xf32>, vector<3x1023xf32> -> vector<3x1024xf32>
    %cst_12 = arith.constant 0.000000e+00 : f32
    %44 = vector.shape_cast %4 : vector<1x1024xi1> to vector<1x1024xi1>
    %45 = vector.broadcast %44 : vector<1x1024xi1> to vector<3x1024xi1>
    %46 = vector.broadcast %cst_12 : f32 to vector<3x1024xf32>
    %47 = arith.select %45, %43, %46 : vector<3x1024xi1>, vector<3x1024xf32>
    %cst_13 = arith.constant 0.000000e+00 : f32
    %48 = vector.broadcast %cst_13 : f32 to vector<3x1xf32>
    %49 = vector.extract_strided_slice %21 {offsets = [0, 1], sizes = [3, 1023], strides = [1, 1]} : vector<3x1024xf32> to vector<3x1023xf32>
    %50 = tpu.concatenate %49, %48 in 1 : vector<3x1023xf32>, vector<3x1xf32> -> vector<3x1024xf32>
    %cst_14 = arith.constant 0.000000e+00 : f32
    %51 = vector.shape_cast %6 : vector<1x1024xi1> to vector<1x1024xi1>
    %52 = vector.broadcast %51 : vector<1x1024xi1> to vector<3x1024xi1>
    %53 = vector.broadcast %cst_14 : f32 to vector<3x1024xf32>
    %54 = arith.select %52, %50, %53 : vector<3x1024xi1>, vector<3x1024xf32>
    %cst_15 = arith.constant 0.000000e+00 : f32
    %55 = vector.broadcast %cst_15 : f32 to vector<3x31xf32>
    %56 = vector.extract_strided_slice %21 {offsets = [0, 31], sizes = [3, 993], strides = [1, 1]} : vector<3x1024xf32> to vector<3x993xf32>
    %57 = tpu.concatenate %56, %55 in 1 : vector<3x993xf32>, vector<3x31xf32> -> vector<3x1024xf32>
    %cst_16 = arith.constant 0.000000e+00 : f32
    %58 = vector.shape_cast %4 : vector<1x1024xi1> to vector<1x1024xi1>
    %59 = vector.broadcast %58 : vector<1x1024xi1> to vector<3x1024xi1>
    %60 = vector.broadcast %cst_16 : f32 to vector<3x1024xf32>
    %61 = arith.select %59, %57, %60 : vector<3x1024xi1>, vector<3x1024xf32>
    %cst_17 = arith.constant 0.000000e+00 : f32
    %62 = vector.broadcast %cst_17 : f32 to vector<3x32xf32>
    %63 = vector.extract_strided_slice %21 {offsets = [0, 32], sizes = [3, 992], strides = [1, 1]} : vector<3x1024xf32> to vector<3x992xf32>
    %64 = tpu.concatenate %63, %62 in 1 : vector<3x992xf32>, vector<3x32xf32> -> vector<3x1024xf32>
    %cst_18 = arith.constant 0.000000e+00 : f32
    %65 = vector.broadcast %cst_18 : f32 to vector<3x33xf32>
    %66 = vector.extract_strided_slice %21 {offsets = [0, 33], sizes = [3, 991], strides = [1, 1]} : vector<3x1024xf32> to vector<3x991xf32>
    %67 = tpu.concatenate %66, %65 in 1 : vector<3x991xf32>, vector<3x33xf32> -> vector<3x1024xf32>
    %cst_19 = arith.constant 0.000000e+00 : f32
    %68 = vector.shape_cast %6 : vector<1x1024xi1> to vector<1x1024xi1>
    %69 = vector.broadcast %68 : vector<1x1024xi1> to vector<3x1024xi1>
    %70 = vector.broadcast %cst_19 : f32 to vector<3x1024xf32>
    %71 = arith.select %69, %67, %70 : vector<3x1024xi1>, vector<3x1024xf32>
    %72 = tpu.concatenate %30, %33, %40, %47, %21, %54, %61, %64, %71 in 0 : vector<3x1024xf32>, vector<3x1024xf32>, vector<3x1024xf32>, vector<3x1024xf32>, vector<3x1024xf32>, vector<3x1024xf32>, vector<3x1024xf32>, vector<3x1024xf32>, vector<3x1024xf32> -> vector<27x1024xf32>
    %73 = arith.truncf %72 : vector<27x1024xf32> to vector<27x1024xbf16>
    %cst_20 = arith.constant dense<0.000000e+00> : vector<16x1024xf32>
    %74 = tpu.matmul %22, %73, %cst_20 {dimension_numbers = #tpu.dot_dimension_numbers<[1], [0], [0], [1], [0, 0, 1, 1], [], []>} : vector<16x27xbf16>, vector<27x1024xbf16>, vector<16x1024xf32> -> vector<16x1024xf32>
    %75 = vector.broadcast %23 : vector<16x1xf32> to vector<16x1024xf32>
    %76 = arith.addf %74, %75 : vector<16x1024xf32>
    %cst_21 = arith.constant 0.000000e+00 : f32
    %77 = vector.broadcast %cst_21 : f32 to vector<16x1024xf32>
    %78 = arith.maximumf %76, %77 : vector<16x1024xf32>
    %79 = arith.truncf %78 : vector<16x1024xf32> to vector<16x1024xbf16>
    %80 = tpu.iota {dimensions = array<i32: 1>} : vector<1x256xi32>
    %c4_i32 = arith.constant 4 : i32
    %81 = vector.broadcast %c4_i32 : i32 to vector<1x256xi32>
    %82 = arith.shrsi %80, %81 : vector<1x256xi32>
    %c15_i32_22 = arith.constant 15 : i32
    %83 = vector.broadcast %c15_i32_22 : i32 to vector<1x256xi32>
    %84 = arith.andi %80, %83 : vector<1x256xi32>
    %c64_i32 = arith.constant 64 : i32
    %85 = vector.broadcast %c64_i32 : i32 to vector<1x256xi32>
    %86 = arith.muli %82, %85 : vector<1x256xi32>
    %c2_i32 = arith.constant 2 : i32
    %87 = vector.broadcast %c2_i32 : i32 to vector<1x256xi32>
    %88 = arith.muli %87, %84 : vector<1x256xi32>
    %89 = arith.addi %86, %88 : vector<1x256xi32>
    %90 = tpu.iota {dimensions = array<i32: 0>} : vector<1024x256xi32>
    %91 = vector.broadcast %89 : vector<1x256xi32> to vector<1024x256xi32>
    %92 = arith.cmpi eq, %90, %91 : vector<1024x256xi32>
    %cst_23 = arith.constant 1.000000e+00 : f32
    %cst_24 = arith.constant 0.000000e+00 : f32
    %93 = vector.broadcast %cst_23 : f32 to vector<1024x256xf32>
    %94 = vector.broadcast %cst_24 : f32 to vector<1024x256xf32>
    %95 = arith.select %92, %93, %94 : vector<1024x256xi1>, vector<1024x256xf32>
    %96 = arith.truncf %95 : vector<1024x256xf32> to vector<1024x256xbf16>
    %cst_25 = arith.constant dense<0.000000e+00> : vector<16x256xf32>
    %97 = tpu.matmul %79, %96, %cst_25 {dimension_numbers = #tpu.dot_dimension_numbers<[1], [0], [0], [1], [0, 0, 1, 1], [], []>} : vector<16x1024xbf16>, vector<1024x256xbf16>, vector<16x256xf32> -> vector<16x256xf32>
    %c0_26 = arith.constant 0 : index
    %c0_27 = arith.constant 0 : index
    %98 = vector.load %arg3[%c0_26, %c0_27] : memref<32x144xbf16, #tpu.memory_space<vmem>>, vector<32x144xbf16>
    %c0_28 = arith.constant 0 : index
    %c0_29 = arith.constant 0 : index
    %99 = vector.load %arg4[%c0_28, %c0_29] : memref<32x1xf32, #tpu.memory_space<vmem>>, vector<32x1xf32>
    %cst_30 = arith.constant 0.000000e+00 : f32
    %100 = vector.broadcast %cst_30 : f32 to vector<16x17xf32>
    %101 = vector.extract_strided_slice %97 {offsets = [0, 0], sizes = [16, 239], strides = [1, 1]} : vector<16x256xf32> to vector<16x239xf32>
    %102 = tpu.concatenate %100, %101 in 1 : vector<16x17xf32>, vector<16x239xf32> -> vector<16x256xf32>
    %cst_31 = arith.constant 0.000000e+00 : f32
    %103 = vector.shape_cast %11 : vector<1x256xi1> to vector<1x256xi1>
    %104 = vector.broadcast %103 : vector<1x256xi1> to vector<16x256xi1>
    %105 = vector.broadcast %cst_31 : f32 to vector<16x256xf32>
    %106 = arith.select %104, %102, %105 : vector<16x256xi1>, vector<16x256xf32>
    %cst_32 = arith.constant 0.000000e+00 : f32
    %107 = vector.broadcast %cst_32 : f32 to vector<16x16xf32>
    %108 = vector.extract_strided_slice %97 {offsets = [0, 0], sizes = [16, 240], strides = [1, 1]} : vector<16x256xf32> to vector<16x240xf32>
    %109 = tpu.concatenate %107, %108 in 1 : vector<16x16xf32>, vector<16x240xf32> -> vector<16x256xf32>
    %cst_33 = arith.constant 0.000000e+00 : f32
    %110 = vector.broadcast %cst_33 : f32 to vector<16x15xf32>
    %111 = vector.extract_strided_slice %97 {offsets = [0, 0], sizes = [16, 241], strides = [1, 1]} : vector<16x256xf32> to vector<16x241xf32>
    %112 = tpu.concatenate %110, %111 in 1 : vector<16x15xf32>, vector<16x241xf32> -> vector<16x256xf32>
    %cst_34 = arith.constant 0.000000e+00 : f32
    %113 = vector.shape_cast %13 : vector<1x256xi1> to vector<1x256xi1>
    %114 = vector.broadcast %113 : vector<1x256xi1> to vector<16x256xi1>
    %115 = vector.broadcast %cst_34 : f32 to vector<16x256xf32>
    %116 = arith.select %114, %112, %115 : vector<16x256xi1>, vector<16x256xf32>
    %cst_35 = arith.constant 0.000000e+00 : f32
    %117 = vector.broadcast %cst_35 : f32 to vector<16x1xf32>
    %118 = vector.extract_strided_slice %97 {offsets = [0, 0], sizes = [16, 255], strides = [1, 1]} : vector<16x256xf32> to vector<16x255xf32>
    %119 = tpu.concatenate %117, %118 in 1 : vector<16x1xf32>, vector<16x255xf32> -> vector<16x256xf32>
    %cst_36 = arith.constant 0.000000e+00 : f32
    %120 = vector.shape_cast %11 : vector<1x256xi1> to vector<1x256xi1>
    %121 = vector.broadcast %120 : vector<1x256xi1> to vector<16x256xi1>
    %122 = vector.broadcast %cst_36 : f32 to vector<16x256xf32>
    %123 = arith.select %121, %119, %122 : vector<16x256xi1>, vector<16x256xf32>
    %cst_37 = arith.constant 0.000000e+00 : f32
    %124 = vector.broadcast %cst_37 : f32 to vector<16x1xf32>
    %125 = vector.extract_strided_slice %97 {offsets = [0, 1], sizes = [16, 255], strides = [1, 1]} : vector<16x256xf32> to vector<16x255xf32>
    %126 = tpu.concatenate %125, %124 in 1 : vector<16x255xf32>, vector<16x1xf32> -> vector<16x256xf32>
    %cst_38 = arith.constant 0.000000e+00 : f32
    %127 = vector.shape_cast %13 : vector<1x256xi1> to vector<1x256xi1>
    %128 = vector.broadcast %127 : vector<1x256xi1> to vector<16x256xi1>
    %129 = vector.broadcast %cst_38 : f32 to vector<16x256xf32>
    %130 = arith.select %128, %126, %129 : vector<16x256xi1>, vector<16x256xf32>
    %cst_39 = arith.constant 0.000000e+00 : f32
    %131 = vector.broadcast %cst_39 : f32 to vector<16x15xf32>
    %132 = vector.extract_strided_slice %97 {offsets = [0, 15], sizes = [16, 241], strides = [1, 1]} : vector<16x256xf32> to vector<16x241xf32>
    %133 = tpu.concatenate %132, %131 in 1 : vector<16x241xf32>, vector<16x15xf32> -> vector<16x256xf32>
    %cst_40 = arith.constant 0.000000e+00 : f32
    %134 = vector.shape_cast %11 : vector<1x256xi1> to vector<1x256xi1>
    %135 = vector.broadcast %134 : vector<1x256xi1> to vector<16x256xi1>
    %136 = vector.broadcast %cst_40 : f32 to vector<16x256xf32>
    %137 = arith.select %135, %133, %136 : vector<16x256xi1>, vector<16x256xf32>
    %cst_41 = arith.constant 0.000000e+00 : f32
    %138 = vector.broadcast %cst_41 : f32 to vector<16x16xf32>
    %139 = vector.extract_strided_slice %97 {offsets = [0, 16], sizes = [16, 240], strides = [1, 1]} : vector<16x256xf32> to vector<16x240xf32>
    %140 = tpu.concatenate %139, %138 in 1 : vector<16x240xf32>, vector<16x16xf32> -> vector<16x256xf32>
    %cst_42 = arith.constant 0.000000e+00 : f32
    %141 = vector.broadcast %cst_42 : f32 to vector<16x17xf32>
    %142 = vector.extract_strided_slice %97 {offsets = [0, 17], sizes = [16, 239], strides = [1, 1]} : vector<16x256xf32> to vector<16x239xf32>
    %143 = tpu.concatenate %142, %141 in 1 : vector<16x239xf32>, vector<16x17xf32> -> vector<16x256xf32>
    %cst_43 = arith.constant 0.000000e+00 : f32
    %144 = vector.shape_cast %13 : vector<1x256xi1> to vector<1x256xi1>
    %145 = vector.broadcast %144 : vector<1x256xi1> to vector<16x256xi1>
    %146 = vector.broadcast %cst_43 : f32 to vector<16x256xf32>
    %147 = arith.select %145, %143, %146 : vector<16x256xi1>, vector<16x256xf32>
    %148 = tpu.concatenate %106, %109, %116, %123, %97, %130, %137, %140, %147 in 0 : vector<16x256xf32>, vector<16x256xf32>, vector<16x256xf32>, vector<16x256xf32>, vector<16x256xf32>, vector<16x256xf32>, vector<16x256xf32>, vector<16x256xf32>, vector<16x256xf32> -> vector<144x256xf32>
    %149 = arith.truncf %148 : vector<144x256xf32> to vector<144x256xbf16>
    %cst_44 = arith.constant dense<0.000000e+00> : vector<32x256xf32>
    %150 = tpu.matmul %98, %149, %cst_44 {dimension_numbers = #tpu.dot_dimension_numbers<[1], [0], [0], [1], [0, 0, 1, 1], [], []>} : vector<32x144xbf16>, vector<144x256xbf16>, vector<32x256xf32> -> vector<32x256xf32>
    %151 = vector.broadcast %99 : vector<32x1xf32> to vector<32x256xf32>
    %152 = arith.addf %150, %151 : vector<32x256xf32>
    %cst_45 = arith.constant 0.000000e+00 : f32
    %153 = vector.broadcast %cst_45 : f32 to vector<32x256xf32>
    %154 = arith.maximumf %152, %153 : vector<32x256xf32>
    %155 = arith.truncf %154 : vector<32x256xf32> to vector<32x256xbf16>
    %156 = tpu.iota {dimensions = array<i32: 1>} : vector<1x64xi32>
    %c3_i32 = arith.constant 3 : i32
    %157 = vector.broadcast %c3_i32 : i32 to vector<1x64xi32>
    %158 = arith.shrsi %156, %157 : vector<1x64xi32>
    %c7_i32_46 = arith.constant 7 : i32
    %159 = vector.broadcast %c7_i32_46 : i32 to vector<1x64xi32>
    %160 = arith.andi %156, %159 : vector<1x64xi32>
    %c32_i32 = arith.constant 32 : i32
    %161 = vector.broadcast %c32_i32 : i32 to vector<1x64xi32>
    %162 = arith.muli %158, %161 : vector<1x64xi32>
    %c2_i32_47 = arith.constant 2 : i32
    %163 = vector.broadcast %c2_i32_47 : i32 to vector<1x64xi32>
    %164 = arith.muli %163, %160 : vector<1x64xi32>
    %165 = arith.addi %162, %164 : vector<1x64xi32>
    %166 = tpu.iota {dimensions = array<i32: 0>} : vector<256x64xi32>
    %167 = vector.broadcast %165 : vector<1x64xi32> to vector<256x64xi32>
    %168 = arith.cmpi eq, %166, %167 : vector<256x64xi32>
    %cst_48 = arith.constant 1.000000e+00 : f32
    %cst_49 = arith.constant 0.000000e+00 : f32
    %169 = vector.broadcast %cst_48 : f32 to vector<256x64xf32>
    %170 = vector.broadcast %cst_49 : f32 to vector<256x64xf32>
    %171 = arith.select %168, %169, %170 : vector<256x64xi1>, vector<256x64xf32>
    %172 = arith.truncf %171 : vector<256x64xf32> to vector<256x64xbf16>
    %cst_50 = arith.constant dense<0.000000e+00> : vector<32x64xf32>
    %173 = tpu.matmul %155, %172, %cst_50 {dimension_numbers = #tpu.dot_dimension_numbers<[1], [0], [0], [1], [0, 0, 1, 1], [], []>} : vector<32x256xbf16>, vector<256x64xbf16>, vector<32x64xf32> -> vector<32x64xf32>
    %c0_51 = arith.constant 0 : index
    %c0_52 = arith.constant 0 : index
    %174 = vector.load %arg5[%c0_51, %c0_52] : memref<64x288xbf16, #tpu.memory_space<vmem>>, vector<64x288xbf16>
    %c0_53 = arith.constant 0 : index
    %c0_54 = arith.constant 0 : index
    %175 = vector.load %arg6[%c0_53, %c0_54] : memref<64x1xf32, #tpu.memory_space<vmem>>, vector<64x1xf32>
    %cst_55 = arith.constant 0.000000e+00 : f32
    %176 = vector.broadcast %cst_55 : f32 to vector<32x9xf32>
    %177 = vector.extract_strided_slice %173 {offsets = [0, 0], sizes = [32, 55], strides = [1, 1]} : vector<32x64xf32> to vector<32x55xf32>
    %178 = tpu.concatenate %176, %177 in 1 : vector<32x9xf32>, vector<32x55xf32> -> vector<32x64xf32>
    %cst_56 = arith.constant 0.000000e+00 : f32
    %179 = vector.shape_cast %18 : vector<1x64xi1> to vector<1x64xi1>
    %180 = vector.broadcast %179 : vector<1x64xi1> to vector<32x64xi1>
    %181 = vector.broadcast %cst_56 : f32 to vector<32x64xf32>
    %182 = arith.select %180, %178, %181 : vector<32x64xi1>, vector<32x64xf32>
    %cst_57 = arith.constant 0.000000e+00 : f32
    %183 = vector.broadcast %cst_57 : f32 to vector<32x8xf32>
    %184 = vector.extract_strided_slice %173 {offsets = [0, 0], sizes = [32, 56], strides = [1, 1]} : vector<32x64xf32> to vector<32x56xf32>
    %185 = tpu.concatenate %183, %184 in 1 : vector<32x8xf32>, vector<32x56xf32> -> vector<32x64xf32>
    %cst_58 = arith.constant 0.000000e+00 : f32
    %186 = vector.broadcast %cst_58 : f32 to vector<32x7xf32>
    %187 = vector.extract_strided_slice %173 {offsets = [0, 0], sizes = [32, 57], strides = [1, 1]} : vector<32x64xf32> to vector<32x57xf32>
    %188 = tpu.concatenate %186, %187 in 1 : vector<32x7xf32>, vector<32x57xf32> -> vector<32x64xf32>
    %cst_59 = arith.constant 0.000000e+00 : f32
    %189 = vector.shape_cast %20 : vector<1x64xi1> to vector<1x64xi1>
    %190 = vector.broadcast %189 : vector<1x64xi1> to vector<32x64xi1>
    %191 = vector.broadcast %cst_59 : f32 to vector<32x64xf32>
    %192 = arith.select %190, %188, %191 : vector<32x64xi1>, vector<32x64xf32>
    %cst_60 = arith.constant 0.000000e+00 : f32
    %193 = vector.broadcast %cst_60 : f32 to vector<32x1xf32>
    %194 = vector.extract_strided_slice %173 {offsets = [0, 0], sizes = [32, 63], strides = [1, 1]} : vector<32x64xf32> to vector<32x63xf32>
    %195 = tpu.concatenate %193, %194 in 1 : vector<32x1xf32>, vector<32x63xf32> -> vector<32x64xf32>
    %cst_61 = arith.constant 0.000000e+00 : f32
    %196 = vector.shape_cast %18 : vector<1x64xi1> to vector<1x64xi1>
    %197 = vector.broadcast %196 : vector<1x64xi1> to vector<32x64xi1>
    %198 = vector.broadcast %cst_61 : f32 to vector<32x64xf32>
    %199 = arith.select %197, %195, %198 : vector<32x64xi1>, vector<32x64xf32>
    %cst_62 = arith.constant 0.000000e+00 : f32
    %200 = vector.broadcast %cst_62 : f32 to vector<32x1xf32>
    %201 = vector.extract_strided_slice %173 {offsets = [0, 1], sizes = [32, 63], strides = [1, 1]} : vector<32x64xf32> to vector<32x63xf32>
    %202 = tpu.concatenate %201, %200 in 1 : vector<32x63xf32>, vector<32x1xf32> -> vector<32x64xf32>
    %cst_63 = arith.constant 0.000000e+00 : f32
    %203 = vector.shape_cast %20 : vector<1x64xi1> to vector<1x64xi1>
    %204 = vector.broadcast %203 : vector<1x64xi1> to vector<32x64xi1>
    %205 = vector.broadcast %cst_63 : f32 to vector<32x64xf32>
    %206 = arith.select %204, %202, %205 : vector<32x64xi1>, vector<32x64xf32>
    %cst_64 = arith.constant 0.000000e+00 : f32
    %207 = vector.broadcast %cst_64 : f32 to vector<32x7xf32>
    %208 = vector.extract_strided_slice %173 {offsets = [0, 7], sizes = [32, 57], strides = [1, 1]} : vector<32x64xf32> to vector<32x57xf32>
    %209 = tpu.concatenate %208, %207 in 1 : vector<32x57xf32>, vector<32x7xf32> -> vector<32x64xf32>
    %cst_65 = arith.constant 0.000000e+00 : f32
    %210 = vector.shape_cast %18 : vector<1x64xi1> to vector<1x64xi1>
    %211 = vector.broadcast %210 : vector<1x64xi1> to vector<32x64xi1>
    %212 = vector.broadcast %cst_65 : f32 to vector<32x64xf32>
    %213 = arith.select %211, %209, %212 : vector<32x64xi1>, vector<32x64xf32>
    %cst_66 = arith.constant 0.000000e+00 : f32
    %214 = vector.broadcast %cst_66 : f32 to vector<32x8xf32>
    %215 = vector.extract_strided_slice %173 {offsets = [0, 8], sizes = [32, 56], strides = [1, 1]} : vector<32x64xf32> to vector<32x56xf32>
    %216 = tpu.concatenate %215, %214 in 1 : vector<32x56xf32>, vector<32x8xf32> -> vector<32x64xf32>
    %cst_67 = arith.constant 0.000000e+00 : f32
    %217 = vector.broadcast %cst_67 : f32 to vector<32x9xf32>
    %218 = vector.extract_strided_slice %173 {offsets = [0, 9], sizes = [32, 55], strides = [1, 1]} : vector<32x64xf32> to vector<32x55xf32>
    %219 = tpu.concatenate %218, %217 in 1 : vector<32x55xf32>, vector<32x9xf32> -> vector<32x64xf32>
    %cst_68 = arith.constant 0.000000e+00 : f32
    %220 = vector.shape_cast %20 : vector<1x64xi1> to vector<1x64xi1>
    %221 = vector.broadcast %220 : vector<1x64xi1> to vector<32x64xi1>
    %222 = vector.broadcast %cst_68 : f32 to vector<32x64xf32>
    %223 = arith.select %221, %219, %222 : vector<32x64xi1>, vector<32x64xf32>
    %224 = tpu.concatenate %182, %185, %192, %199, %173, %206, %213, %216, %223 in 0 : vector<32x64xf32>, vector<32x64xf32>, vector<32x64xf32>, vector<32x64xf32>, vector<32x64xf32>, vector<32x64xf32>, vector<32x64xf32>, vector<32x64xf32>, vector<32x64xf32> -> vector<288x64xf32>
    %225 = arith.truncf %224 : vector<288x64xf32> to vector<288x64xbf16>
    %cst_69 = arith.constant dense<0.000000e+00> : vector<64x64xf32>
    %226 = tpu.matmul %174, %225, %cst_69 {dimension_numbers = #tpu.dot_dimension_numbers<[1], [0], [0], [1], [0, 0, 1, 1], [], []>} : vector<64x288xbf16>, vector<288x64xbf16>, vector<64x64xf32> -> vector<64x64xf32>
    %227 = vector.broadcast %175 : vector<64x1xf32> to vector<64x64xf32>
    %228 = arith.addf %226, %227 : vector<64x64xf32>
    %cst_70 = arith.constant 0.000000e+00 : f32
    %229 = vector.broadcast %cst_70 : f32 to vector<64x64xf32>
    %230 = arith.maximumf %228, %229 : vector<64x64xf32>
    %231 = arith.truncf %230 : vector<64x64xf32> to vector<64x64xbf16>
    %232 = tpu.iota {dimensions = array<i32: 1>} : vector<1x256xi32>
    %c4_i32_71 = arith.constant 4 : i32
    %233 = vector.broadcast %c4_i32_71 : i32 to vector<1x256xi32>
    %234 = arith.shrsi %232, %233 : vector<1x256xi32>
    %c15_i32_72 = arith.constant 15 : i32
    %235 = vector.broadcast %c15_i32_72 : i32 to vector<1x256xi32>
    %236 = arith.andi %232, %235 : vector<1x256xi32>
    %c1_i32_73 = arith.constant 1 : i32
    %237 = vector.broadcast %c1_i32_73 : i32 to vector<1x256xi32>
    %238 = arith.shrsi %234, %237 : vector<1x256xi32>
    %c8_i32 = arith.constant 8 : i32
    %239 = vector.broadcast %c8_i32 : i32 to vector<1x256xi32>
    %240 = arith.muli %238, %239 : vector<1x256xi32>
    %c1_i32_74 = arith.constant 1 : i32
    %241 = vector.broadcast %c1_i32_74 : i32 to vector<1x256xi32>
    %242 = arith.shrsi %236, %241 : vector<1x256xi32>
    %243 = arith.addi %240, %242 : vector<1x256xi32>
    %244 = tpu.iota {dimensions = array<i32: 0>} : vector<64x256xi32>
    %245 = vector.broadcast %243 : vector<1x256xi32> to vector<64x256xi32>
    %246 = arith.cmpi eq, %244, %245 : vector<64x256xi32>
    %cst_75 = arith.constant 1.000000e+00 : f32
    %cst_76 = arith.constant 0.000000e+00 : f32
    %247 = vector.broadcast %cst_75 : f32 to vector<64x256xf32>
    %248 = vector.broadcast %cst_76 : f32 to vector<64x256xf32>
    %249 = arith.select %246, %247, %248 : vector<64x256xi1>, vector<64x256xf32>
    %250 = arith.truncf %249 : vector<64x256xf32> to vector<64x256xbf16>
    %cst_77 = arith.constant dense<0.000000e+00> : vector<64x256xf32>
    %251 = tpu.matmul %231, %250, %cst_77 {dimension_numbers = #tpu.dot_dimension_numbers<[1], [0], [0], [1], [0, 0, 1, 1], [], []>} : vector<64x64xbf16>, vector<64x256xbf16>, vector<64x256xf32> -> vector<64x256xf32>
    %252 = tpu.concatenate %251, %154 in 0 : vector<64x256xf32>, vector<32x256xf32> -> vector<96x256xf32>
    %c0_78 = arith.constant 0 : index
    %c0_79 = arith.constant 0 : index
    %253 = vector.load %arg7[%c0_78, %c0_79] : memref<32x864xbf16, #tpu.memory_space<vmem>>, vector<32x864xbf16>
    %c0_80 = arith.constant 0 : index
    %c0_81 = arith.constant 0 : index
    %254 = vector.load %arg8[%c0_80, %c0_81] : memref<32x1xf32, #tpu.memory_space<vmem>>, vector<32x1xf32>
    %cst_82 = arith.constant 0.000000e+00 : f32
    %255 = vector.broadcast %cst_82 : f32 to vector<96x17xf32>
    %256 = vector.extract_strided_slice %252 {offsets = [0, 0], sizes = [96, 239], strides = [1, 1]} : vector<96x256xf32> to vector<96x239xf32>
    %257 = tpu.concatenate %255, %256 in 1 : vector<96x17xf32>, vector<96x239xf32> -> vector<96x256xf32>
    %cst_83 = arith.constant 0.000000e+00 : f32
    %258 = vector.shape_cast %11 : vector<1x256xi1> to vector<1x256xi1>
    %259 = vector.broadcast %258 : vector<1x256xi1> to vector<96x256xi1>
    %260 = vector.broadcast %cst_83 : f32 to vector<96x256xf32>
    %261 = arith.select %259, %257, %260 : vector<96x256xi1>, vector<96x256xf32>
    %cst_84 = arith.constant 0.000000e+00 : f32
    %262 = vector.broadcast %cst_84 : f32 to vector<96x16xf32>
    %263 = vector.extract_strided_slice %252 {offsets = [0, 0], sizes = [96, 240], strides = [1, 1]} : vector<96x256xf32> to vector<96x240xf32>
    %264 = tpu.concatenate %262, %263 in 1 : vector<96x16xf32>, vector<96x240xf32> -> vector<96x256xf32>
    %cst_85 = arith.constant 0.000000e+00 : f32
    %265 = vector.broadcast %cst_85 : f32 to vector<96x15xf32>
    %266 = vector.extract_strided_slice %252 {offsets = [0, 0], sizes = [96, 241], strides = [1, 1]} : vector<96x256xf32> to vector<96x241xf32>
    %267 = tpu.concatenate %265, %266 in 1 : vector<96x15xf32>, vector<96x241xf32> -> vector<96x256xf32>
    %cst_86 = arith.constant 0.000000e+00 : f32
    %268 = vector.shape_cast %13 : vector<1x256xi1> to vector<1x256xi1>
    %269 = vector.broadcast %268 : vector<1x256xi1> to vector<96x256xi1>
    %270 = vector.broadcast %cst_86 : f32 to vector<96x256xf32>
    %271 = arith.select %269, %267, %270 : vector<96x256xi1>, vector<96x256xf32>
    %cst_87 = arith.constant 0.000000e+00 : f32
    %272 = vector.broadcast %cst_87 : f32 to vector<96x1xf32>
    %273 = vector.extract_strided_slice %252 {offsets = [0, 0], sizes = [96, 255], strides = [1, 1]} : vector<96x256xf32> to vector<96x255xf32>
    %274 = tpu.concatenate %272, %273 in 1 : vector<96x1xf32>, vector<96x255xf32> -> vector<96x256xf32>
    %cst_88 = arith.constant 0.000000e+00 : f32
    %275 = vector.shape_cast %11 : vector<1x256xi1> to vector<1x256xi1>
    %276 = vector.broadcast %275 : vector<1x256xi1> to vector<96x256xi1>
    %277 = vector.broadcast %cst_88 : f32 to vector<96x256xf32>
    %278 = arith.select %276, %274, %277 : vector<96x256xi1>, vector<96x256xf32>
    %cst_89 = arith.constant 0.000000e+00 : f32
    %279 = vector.broadcast %cst_89 : f32 to vector<96x1xf32>
    %280 = vector.extract_strided_slice %252 {offsets = [0, 1], sizes = [96, 255], strides = [1, 1]} : vector<96x256xf32> to vector<96x255xf32>
    %281 = tpu.concatenate %280, %279 in 1 : vector<96x255xf32>, vector<96x1xf32> -> vector<96x256xf32>
    %cst_90 = arith.constant 0.000000e+00 : f32
    %282 = vector.shape_cast %13 : vector<1x256xi1> to vector<1x256xi1>
    %283 = vector.broadcast %282 : vector<1x256xi1> to vector<96x256xi1>
    %284 = vector.broadcast %cst_90 : f32 to vector<96x256xf32>
    %285 = arith.select %283, %281, %284 : vector<96x256xi1>, vector<96x256xf32>
    %cst_91 = arith.constant 0.000000e+00 : f32
    %286 = vector.broadcast %cst_91 : f32 to vector<96x15xf32>
    %287 = vector.extract_strided_slice %252 {offsets = [0, 15], sizes = [96, 241], strides = [1, 1]} : vector<96x256xf32> to vector<96x241xf32>
    %288 = tpu.concatenate %287, %286 in 1 : vector<96x241xf32>, vector<96x15xf32> -> vector<96x256xf32>
    %cst_92 = arith.constant 0.000000e+00 : f32
    %289 = vector.shape_cast %11 : vector<1x256xi1> to vector<1x256xi1>
    %290 = vector.broadcast %289 : vector<1x256xi1> to vector<96x256xi1>
    %291 = vector.broadcast %cst_92 : f32 to vector<96x256xf32>
    %292 = arith.select %290, %288, %291 : vector<96x256xi1>, vector<96x256xf32>
    %cst_93 = arith.constant 0.000000e+00 : f32
    %293 = vector.broadcast %cst_93 : f32 to vector<96x16xf32>
    %294 = vector.extract_strided_slice %252 {offsets = [0, 16], sizes = [96, 240], strides = [1, 1]} : vector<96x256xf32> to vector<96x240xf32>
    %295 = tpu.concatenate %294, %293 in 1 : vector<96x240xf32>, vector<96x16xf32> -> vector<96x256xf32>
    %cst_94 = arith.constant 0.000000e+00 : f32
    %296 = vector.broadcast %cst_94 : f32 to vector<96x17xf32>
    %297 = vector.extract_strided_slice %252 {offsets = [0, 17], sizes = [96, 239], strides = [1, 1]} : vector<96x256xf32> to vector<96x239xf32>
    %298 = tpu.concatenate %297, %296 in 1 : vector<96x239xf32>, vector<96x17xf32> -> vector<96x256xf32>
    %cst_95 = arith.constant 0.000000e+00 : f32
    %299 = vector.shape_cast %13 : vector<1x256xi1> to vector<1x256xi1>
    %300 = vector.broadcast %299 : vector<1x256xi1> to vector<96x256xi1>
    %301 = vector.broadcast %cst_95 : f32 to vector<96x256xf32>
    %302 = arith.select %300, %298, %301 : vector<96x256xi1>, vector<96x256xf32>
    %303 = tpu.concatenate %261, %264, %271, %278, %252, %285, %292, %295, %302 in 0 : vector<96x256xf32>, vector<96x256xf32>, vector<96x256xf32>, vector<96x256xf32>, vector<96x256xf32>, vector<96x256xf32>, vector<96x256xf32>, vector<96x256xf32>, vector<96x256xf32> -> vector<864x256xf32>
    %304 = arith.truncf %303 : vector<864x256xf32> to vector<864x256xbf16>
    %cst_96 = arith.constant dense<0.000000e+00> : vector<32x256xf32>
    %305 = tpu.matmul %253, %304, %cst_96 {dimension_numbers = #tpu.dot_dimension_numbers<[1], [0], [0], [1], [0, 0, 1, 1], [], []>} : vector<32x864xbf16>, vector<864x256xbf16>, vector<32x256xf32> -> vector<32x256xf32>
    %306 = vector.broadcast %254 : vector<32x1xf32> to vector<32x256xf32>
    %307 = arith.addf %305, %306 : vector<32x256xf32>
    %cst_97 = arith.constant 0.000000e+00 : f32
    %308 = vector.broadcast %cst_97 : f32 to vector<32x256xf32>
    %309 = arith.maximumf %307, %308 : vector<32x256xf32>
    %310 = arith.truncf %309 : vector<32x256xf32> to vector<32x256xbf16>
    %311 = tpu.iota {dimensions = array<i32: 1>} : vector<1x1024xi32>
    %c5_i32 = arith.constant 5 : i32
    %312 = vector.broadcast %c5_i32 : i32 to vector<1x1024xi32>
    %313 = arith.shrsi %311, %312 : vector<1x1024xi32>
    %c31_i32_98 = arith.constant 31 : i32
    %314 = vector.broadcast %c31_i32_98 : i32 to vector<1x1024xi32>
    %315 = arith.andi %311, %314 : vector<1x1024xi32>
    %c1_i32_99 = arith.constant 1 : i32
    %316 = vector.broadcast %c1_i32_99 : i32 to vector<1x1024xi32>
    %317 = arith.shrsi %313, %316 : vector<1x1024xi32>
    %c16_i32 = arith.constant 16 : i32
    %318 = vector.broadcast %c16_i32 : i32 to vector<1x1024xi32>
    %319 = arith.muli %317, %318 : vector<1x1024xi32>
    %c1_i32_100 = arith.constant 1 : i32
    %320 = vector.broadcast %c1_i32_100 : i32 to vector<1x1024xi32>
    %321 = arith.shrsi %315, %320 : vector<1x1024xi32>
    %322 = arith.addi %319, %321 : vector<1x1024xi32>
    %323 = tpu.iota {dimensions = array<i32: 0>} : vector<256x1024xi32>
    %324 = vector.broadcast %322 : vector<1x1024xi32> to vector<256x1024xi32>
    %325 = arith.cmpi eq, %323, %324 : vector<256x1024xi32>
    %cst_101 = arith.constant 1.000000e+00 : f32
    %cst_102 = arith.constant 0.000000e+00 : f32
    %326 = vector.broadcast %cst_101 : f32 to vector<256x1024xf32>
    %327 = vector.broadcast %cst_102 : f32 to vector<256x1024xf32>
    %328 = arith.select %325, %326, %327 : vector<256x1024xi1>, vector<256x1024xf32>
    %329 = arith.truncf %328 : vector<256x1024xf32> to vector<256x1024xbf16>
    %cst_103 = arith.constant dense<0.000000e+00> : vector<32x1024xf32>
    %330 = tpu.matmul %310, %329, %cst_103 {dimension_numbers = #tpu.dot_dimension_numbers<[1], [0], [0], [1], [0, 0, 1, 1], [], []>} : vector<32x256xbf16>, vector<256x1024xbf16>, vector<32x1024xf32> -> vector<32x1024xf32>
    %331 = tpu.concatenate %330, %78 in 0 : vector<32x1024xf32>, vector<16x1024xf32> -> vector<48x1024xf32>
    %c0_104 = arith.constant 0 : index
    %c0_105 = arith.constant 0 : index
    %332 = vector.load %arg9[%c0_104, %c0_105] : memref<16x432xbf16, #tpu.memory_space<vmem>>, vector<16x432xbf16>
    %c0_106 = arith.constant 0 : index
    %c0_107 = arith.constant 0 : index
    %333 = vector.load %arg10[%c0_106, %c0_107] : memref<16x1xf32, #tpu.memory_space<vmem>>, vector<16x1xf32>
    %cst_108 = arith.constant 0.000000e+00 : f32
    %334 = vector.broadcast %cst_108 : f32 to vector<48x33xf32>
    %335 = vector.extract_strided_slice %331 {offsets = [0, 0], sizes = [48, 991], strides = [1, 1]} : vector<48x1024xf32> to vector<48x991xf32>
    %336 = tpu.concatenate %334, %335 in 1 : vector<48x33xf32>, vector<48x991xf32> -> vector<48x1024xf32>
    %cst_109 = arith.constant 0.000000e+00 : f32
    %337 = vector.shape_cast %4 : vector<1x1024xi1> to vector<1x1024xi1>
    %338 = vector.broadcast %337 : vector<1x1024xi1> to vector<48x1024xi1>
    %339 = vector.broadcast %cst_109 : f32 to vector<48x1024xf32>
    %340 = arith.select %338, %336, %339 : vector<48x1024xi1>, vector<48x1024xf32>
    %cst_110 = arith.constant 0.000000e+00 : f32
    %341 = vector.broadcast %cst_110 : f32 to vector<48x32xf32>
    %342 = vector.extract_strided_slice %331 {offsets = [0, 0], sizes = [48, 992], strides = [1, 1]} : vector<48x1024xf32> to vector<48x992xf32>
    %343 = tpu.concatenate %341, %342 in 1 : vector<48x32xf32>, vector<48x992xf32> -> vector<48x1024xf32>
    %cst_111 = arith.constant 0.000000e+00 : f32
    %344 = vector.broadcast %cst_111 : f32 to vector<48x31xf32>
    %345 = vector.extract_strided_slice %331 {offsets = [0, 0], sizes = [48, 993], strides = [1, 1]} : vector<48x1024xf32> to vector<48x993xf32>
    %346 = tpu.concatenate %344, %345 in 1 : vector<48x31xf32>, vector<48x993xf32> -> vector<48x1024xf32>
    %cst_112 = arith.constant 0.000000e+00 : f32
    %347 = vector.shape_cast %6 : vector<1x1024xi1> to vector<1x1024xi1>
    %348 = vector.broadcast %347 : vector<1x1024xi1> to vector<48x1024xi1>
    %349 = vector.broadcast %cst_112 : f32 to vector<48x1024xf32>
    %350 = arith.select %348, %346, %349 : vector<48x1024xi1>, vector<48x1024xf32>
    %cst_113 = arith.constant 0.000000e+00 : f32
    %351 = vector.broadcast %cst_113 : f32 to vector<48x1xf32>
    %352 = vector.extract_strided_slice %331 {offsets = [0, 0], sizes = [48, 1023], strides = [1, 1]} : vector<48x1024xf32> to vector<48x1023xf32>
    %353 = tpu.concatenate %351, %352 in 1 : vector<48x1xf32>, vector<48x1023xf32> -> vector<48x1024xf32>
    %cst_114 = arith.constant 0.000000e+00 : f32
    %354 = vector.shape_cast %4 : vector<1x1024xi1> to vector<1x1024xi1>
    %355 = vector.broadcast %354 : vector<1x1024xi1> to vector<48x1024xi1>
    %356 = vector.broadcast %cst_114 : f32 to vector<48x1024xf32>
    %357 = arith.select %355, %353, %356 : vector<48x1024xi1>, vector<48x1024xf32>
    %cst_115 = arith.constant 0.000000e+00 : f32
    %358 = vector.broadcast %cst_115 : f32 to vector<48x1xf32>
    %359 = vector.extract_strided_slice %331 {offsets = [0, 1], sizes = [48, 1023], strides = [1, 1]} : vector<48x1024xf32> to vector<48x1023xf32>
    %360 = tpu.concatenate %359, %358 in 1 : vector<48x1023xf32>, vector<48x1xf32> -> vector<48x1024xf32>
    %cst_116 = arith.constant 0.000000e+00 : f32
    %361 = vector.shape_cast %6 : vector<1x1024xi1> to vector<1x1024xi1>
    %362 = vector.broadcast %361 : vector<1x1024xi1> to vector<48x1024xi1>
    %363 = vector.broadcast %cst_116 : f32 to vector<48x1024xf32>
    %364 = arith.select %362, %360, %363 : vector<48x1024xi1>, vector<48x1024xf32>
    %cst_117 = arith.constant 0.000000e+00 : f32
    %365 = vector.broadcast %cst_117 : f32 to vector<48x31xf32>
    %366 = vector.extract_strided_slice %331 {offsets = [0, 31], sizes = [48, 993], strides = [1, 1]} : vector<48x1024xf32> to vector<48x993xf32>
    %367 = tpu.concatenate %366, %365 in 1 : vector<48x993xf32>, vector<48x31xf32> -> vector<48x1024xf32>
    %cst_118 = arith.constant 0.000000e+00 : f32
    %368 = vector.shape_cast %4 : vector<1x1024xi1> to vector<1x1024xi1>
    %369 = vector.broadcast %368 : vector<1x1024xi1> to vector<48x1024xi1>
    %370 = vector.broadcast %cst_118 : f32 to vector<48x1024xf32>
    %371 = arith.select %369, %367, %370 : vector<48x1024xi1>, vector<48x1024xf32>
    %cst_119 = arith.constant 0.000000e+00 : f32
    %372 = vector.broadcast %cst_119 : f32 to vector<48x32xf32>
    %373 = vector.extract_strided_slice %331 {offsets = [0, 32], sizes = [48, 992], strides = [1, 1]} : vector<48x1024xf32> to vector<48x992xf32>
    %374 = tpu.concatenate %373, %372 in 1 : vector<48x992xf32>, vector<48x32xf32> -> vector<48x1024xf32>
    %cst_120 = arith.constant 0.000000e+00 : f32
    %375 = vector.broadcast %cst_120 : f32 to vector<48x33xf32>
    %376 = vector.extract_strided_slice %331 {offsets = [0, 33], sizes = [48, 991], strides = [1, 1]} : vector<48x1024xf32> to vector<48x991xf32>
    %377 = tpu.concatenate %376, %375 in 1 : vector<48x991xf32>, vector<48x33xf32> -> vector<48x1024xf32>
    %cst_121 = arith.constant 0.000000e+00 : f32
    %378 = vector.shape_cast %6 : vector<1x1024xi1> to vector<1x1024xi1>
    %379 = vector.broadcast %378 : vector<1x1024xi1> to vector<48x1024xi1>
    %380 = vector.broadcast %cst_121 : f32 to vector<48x1024xf32>
    %381 = arith.select %379, %377, %380 : vector<48x1024xi1>, vector<48x1024xf32>
    %382 = tpu.concatenate %340, %343, %350, %357, %331, %364, %371, %374, %381 in 0 : vector<48x1024xf32>, vector<48x1024xf32>, vector<48x1024xf32>, vector<48x1024xf32>, vector<48x1024xf32>, vector<48x1024xf32>, vector<48x1024xf32>, vector<48x1024xf32>, vector<48x1024xf32> -> vector<432x1024xf32>
    %383 = arith.truncf %382 : vector<432x1024xf32> to vector<432x1024xbf16>
    %cst_122 = arith.constant dense<0.000000e+00> : vector<16x1024xf32>
    %384 = tpu.matmul %332, %383, %cst_122 {dimension_numbers = #tpu.dot_dimension_numbers<[1], [0], [0], [1], [0, 0, 1, 1], [], []>} : vector<16x432xbf16>, vector<432x1024xbf16>, vector<16x1024xf32> -> vector<16x1024xf32>
    %385 = vector.broadcast %333 : vector<16x1xf32> to vector<16x1024xf32>
    %386 = arith.addf %384, %385 : vector<16x1024xf32>
    %cst_123 = arith.constant 0.000000e+00 : f32
    %387 = vector.broadcast %cst_123 : f32 to vector<16x1024xf32>
    %388 = arith.maximumf %386, %387 : vector<16x1024xf32>
    %c0_124 = arith.constant 0 : index
    %c0_125 = arith.constant 0 : index
    %389 = vector.load %arg11[%c0_124, %c0_125] : memref<16x16xbf16, #tpu.memory_space<vmem>>, vector<16x16xbf16>
    %390 = arith.truncf %388 : vector<16x1024xf32> to vector<16x1024xbf16>
    %cst_126 = arith.constant dense<0.000000e+00> : vector<16x1024xf32>
    %391 = tpu.matmul %389, %390, %cst_126 {dimension_numbers = #tpu.dot_dimension_numbers<[1], [0], [0], [1], [0, 0, 1, 1], [], []>} : vector<16x16xbf16>, vector<16x1024xbf16>, vector<16x1024xf32> -> vector<16x1024xf32>
    %c0_127 = arith.constant 0 : index
    %c0_128 = arith.constant 0 : index
    %392 = vector.load %arg12[%c0_127, %c0_128] : memref<16x1xf32, #tpu.memory_space<vmem>>, vector<16x1xf32>
    %393 = vector.broadcast %392 : vector<16x1xf32> to vector<16x1024xf32>
    %394 = arith.addf %391, %393 : vector<16x1024xf32>
    %c0_129 = arith.constant 0 : index
    %c0_130 = arith.constant 0 : index
    %395 = vector.load %arg13[%c0_129, %c0_130] : memref<16x1024xf32, #tpu.memory_space<vmem>>, vector<16x1024xf32>
    tpu.vector_store %arg13[%c0_129, %c0_130], %394 {strides = array<i32>} : memref<16x1024xf32, #tpu.memory_space<vmem>>, vector<16x1024xf32>,
    return
  }
}

</mosaic_0001>

<llo_original>
// kernel: segmentation_forward.1
$region0: #{segmentation_forward.1}
  #allocation0 [shape = 'u32[]', space=smem, size = 0x4, offset = 0x4, fixed_abs, tag = 'smem constant byte address 0x4 - core index']
  #allocation1 [shape = 'u32[144,128]{1,0:T(1,128)}', space=vmem, size = 0x12000, scoped, tag = 'internal scratch']
  %s0 = inlined_call_operand.vmem [shape: f32[3,1024], index: 0, kind: input, shape index: {}]
  %s1 = inlined_call_operand.vmem [shape: bf16[16,27], index: 1, kind: input, shape index: {}]
  %s2 = inlined_call_operand.vmem [shape: f32[16,1], index: 2, kind: input, shape index: {}]
  %s3 = inlined_call_operand.vmem [shape: bf16[32,144], index: 3, kind: input, shape index: {}]
  %s4 = inlined_call_operand.vmem [shape: f32[32,1], index: 4, kind: input, shape index: {}]
  %s5 = inlined_call_operand.vmem [shape: bf16[64,288], index: 5, kind: input, shape index: {}]
  %s6 = inlined_call_operand.vmem [shape: f32[64,1], index: 6, kind: input, shape index: {}]
  %s7 = inlined_call_operand.vmem [shape: bf16[32,864], index: 7, kind: input, shape index: {}]
  %s8 = inlined_call_operand.vmem [shape: f32[32,1], index: 8, kind: input, shape index: {}]
  %s9 = inlined_call_operand.vmem [shape: bf16[16,432], index: 9, kind: input, shape index: {}]
  %s10 = inlined_call_operand.vmem [shape: f32[16,1], index: 10, kind: input, shape index: {}]
  %s11 = inlined_call_operand.vmem [shape: bf16[16,16], index: 11, kind: input, shape index: {}]
  %s12 = inlined_call_operand.vmem [shape: f32[16,1], index: 12, kind: input, shape index: {}]
  %s13 = inlined_call_operand.vmem [shape: f32[16,1024], index: 13, kind: output, shape index: {}]
  %s14 = sld [smem:[#allocation0]]
  $region62: #{segmentation_forward.1} parent=0
    _
  %s16 = ssub.s32 1, %s14
  %s17 = scalar_select 0, %s16, %s14
  // Predicated region
  $region2: #{segmentation_forward.1} parent=0 // pred_check
    _
  $region3: #{segmentation_forward.1} parent=0 // pred_check_branch
    %19 = sbr.rel (0) target = $region5
  $region4: #{segmentation_forward.1} parent=0 // pred_region
    _
  $region5: #{segmentation_forward.1} parent=0 // pred_fallthru
    _
  // Predicated region
  $region6: #{segmentation_forward.1} parent=0 // pred_check
    _
  $region7: #{segmentation_forward.1} parent=0 // pred_check_branch
    %21 = sbr.rel (0) target = $region9
  $region8: #{segmentation_forward.1} parent=0 // pred_region
    _
  $region9: #{segmentation_forward.1} parent=0 // pred_fallthru
    _
  // Predicated region
  $region10: #{segmentation_forward.1} parent=0 // pred_check
    _
  $region11: #{segmentation_forward.1} parent=0 // pred_check_branch
    %23 = sbr.rel (0) target = $region13
  $region12: #{segmentation_forward.1} parent=0 // pred_region
    _
  $region13: #{segmentation_forward.1} parent=0 // pred_fallthru
    _
  // Predicated region
  $region14: #{segmentation_forward.1} parent=0 // pred_check
    _
  $region15: #{segmentation_forward.1} parent=0 // pred_check_branch
    %25 = sbr.rel (0) target = $region17
  $region16: #{segmentation_forward.1} parent=0 // pred_region
    _
  $region17: #{segmentation_forward.1} parent=0 // pred_fallthru
    _
  // Predicated region
  $region18: #{segmentation_forward.1} parent=0 // pred_check
    _
  $region19: #{segmentation_forward.1} parent=0 // pred_check_branch
    %27 = sbr.rel (0) target = $region21
  $region20: #{segmentation_forward.1} parent=0 // pred_region
    _
  $region21: #{segmentation_forward.1} parent=0 // pred_fallthru
    _
  // Predicated region
  $region22: #{segmentation_forward.1} parent=0 // pred_check
    _
  $region23: #{segmentation_forward.1} parent=0 // pred_check_branch
    %29 = sbr.rel (0) target = $region25
  $region24: #{segmentation_forward.1} parent=0 // pred_region
    _
  $region25: #{segmentation_forward.1} parent=0 // pred_fallthru
    _
  // Predicated region
  $region26: #{segmentation_forward.1} parent=0 // pred_check
    _
  $region27: #{segmentation_forward.1} parent=0 // pred_check_branch
    %31 = sbr.rel (0) target = $region29
  $region28: #{segmentation_forward.1} parent=0 // pred_region
    _
  $region29: #{segmentation_forward.1} parent=0 // pred_fallthru
    _
  // Predicated region
  $region30: #{segmentation_forward.1} parent=0 // pred_check
    _
  $region31: #{segmentation_forward.1} parent=0 // pred_check_branch
    %33 = sbr.rel (0) target = $region33
  $region32: #{segmentation_forward.1} parent=0 // pred_region
    _
  $region33: #{segmentation_forward.1} parent=0 // pred_fallthru
    _
  // Predicated region
  $region34: #{segmentation_forward.1} parent=0 // pred_check
    _
  $region35: #{segmentation_forward.1} parent=0 // pred_check_branch
    %35 = sbr.rel (0) target = $region37
  $region36: #{segmentation_forward.1} parent=0 // pred_region
    _
  $region37: #{segmentation_forward.1} parent=0 // pred_fallthru
    _
  // Predicated region
  $region38: #{segmentation_forward.1} parent=0 // pred_check
    _
  $region39: #{segmentation_forward.1} parent=0 // pred_check_branch
    %37 = sbr.rel (0) target = $region41
  $region40: #{segmentation_forward.1} parent=0 // pred_region
    _
  $region41: #{segmentation_forward.1} parent=0 // pred_fallthru
    _
  // Predicated region
  $region42: #{segmentation_forward.1} parent=0 // pred_check
    _
  $region43: #{segmentation_forward.1} parent=0 // pred_check_branch
    %39 = sbr.rel (0) target = $region45
  $region44: #{segmentation_forward.1} parent=0 // pred_region
    _
  $region45: #{segmentation_forward.1} parent=0 // pred_fallthru
    _
  // Predicated region
  $region46: #{segmentation_forward.1} parent=0 // pred_check
    _
  $region47: #{segmentation_forward.1} parent=0 // pred_check_branch
    %41 = sbr.rel (0) target = $region49
  $region48: #{segmentation_forward.1} parent=0 // pred_region
    _
  $region49: #{segmentation_forward.1} parent=0 // pred_fallthru
    _
  // Predicated region
  $region50: #{segmentation_forward.1} parent=0 // pred_check
    _
  $region51: #{segmentation_forward.1} parent=0 // pred_check_branch
    %43 = sbr.rel (0) target = $region53
  $region52: #{segmentation_forward.1} parent=0 // pred_region
    _
  $region53: #{segmentation_forward.1} parent=0 // pred_fallthru
    _
  %v45 = vlaneseq
  %v46 = vand.u32 %v45, 127
  %v47 = vadd.s32 %v46, 128
  %v48 = vadd.s32 %v46, 256
  %v49 = vadd.s32 %v46, 384
  %v50 = vadd.s32 %v46, 512
  %v51 = vadd.s32 %v46, 640
  %v52 = vadd.s32 %v46, 768
  %v53 = vadd.s32 %v46, 896
  %v54 = vand.u32 %v46, 31
  %v55 = vand.u32 %v47, 31
  %v56 = vand.u32 %v48, 31
  %v57 = vand.u32 %v49, 31
  %v58 = vand.u32 %v50, 31
  %v59 = vand.u32 %v51, 31
  %v60 = vand.u32 %v52, 31
  %v61 = vand.u32 %v53, 31
  %vm62 = vcmp.ge.s32.totalorder %v54, 1
  %vm63 = vcmp.ge.s32.totalorder %v55, 1
  %vm64 = vcmp.ge.s32.totalorder %v56, 1
  %vm65 = vcmp.ge.s32.totalorder %v57, 1
  %vm66 = vcmp.ge.s32.totalorder %v58, 1
  %vm67 = vcmp.ge.s32.totalorder %v59, 1
  %vm68 = vcmp.ge.s32.totalorder %v60, 1
  %vm69 = vcmp.ge.s32.totalorder %v61, 1
  %vm70 = vcmp.le.s32.totalorder %v54, 30
  %vm71 = vcmp.le.s32.totalorder %v55, 30
  %vm72 = vcmp.le.s32.totalorder %v56, 30
  %vm73 = vcmp.le.s32.totalorder %v57, 30
  %vm74 = vcmp.le.s32.totalorder %v58, 30
  %vm75 = vcmp.le.s32.totalorder %v59, 30
  %vm76 = vcmp.le.s32.totalorder %v60, 30
  %vm77 = vcmp.le.s32.totalorder %v61, 30
  %v78 = vand.u32 %v46, 15
  %v79 = vand.u32 %v47, 15
  %vm80 = vcmp.ge.s32.totalorder %v78, 1
  %vm81 = vcmp.ge.s32.totalorder %v79, 1
  %vm82 = vcmp.le.s32.totalorder %v78, 14
  %vm83 = vcmp.le.s32.totalorder %v79, 14
  %v84 = vand.u32 %v46, 7
  %vm85 = vcmp.ge.s32.totalorder %v84, 1
  %vm86 = vcmp.le.s32.totalorder %v84, 6
  %v87 = vld [vmem:[%s0] sm:$0x77]
  %v88 = vld [vmem:[%s0 + $0x8] sm:$0x77]
  %v89 = vld [vmem:[%s0 + $0x10] sm:$0x77]
  %v90 = vld [vmem:[%s0 + $0x18] sm:$0x77]
  %v91 = vld [vmem:[%s1] sm:$0xf]
  %v92 = vld [vmem:[%s1 + $0x4] sm:$0xf]
  %v93 = vld [vmem:[%s2] sm:$0xff]
  %v94 = vld [vmem:[%s2 + $0x8] sm:$0xff]
  %v99 = vcombine.high %v87, %v87
  %v100 = vcombine.high %v88, %v88
  %v101 = vcombine.high %v89, %v89
  %v102 = vcombine.high %v90, %v90
  %103 = vrot.lane.b32.xlu0 %v87, 33
  %v104 = vpop.permute.xlu0 %103
  %105 = vrot.lane.b32.xlu0 %v99, 33
  %v106 = vpop.permute.xlu0 %105
  %107 = vrot.lane.b32.xlu0 %v88, 33
  %v108 = vpop.permute.xlu0 %107
  %109 = vrot.lane.b32.xlu0 %v100, 33
  %v110 = vpop.permute.xlu0 %109
  %111 = vrot.lane.b32.xlu0 %v89, 33
  %v112 = vpop.permute.xlu0 %111
  %113 = vrot.lane.b32.xlu0 %v101, 33
  %v114 = vpop.permute.xlu0 %113
  %115 = vrot.lane.b32.xlu0 %v90, 33
  %v116 = vpop.permute.xlu0 %115
  %117 = vrot.lane.b32.xlu0 %v102, 33
  %v118 = vpop.permute.xlu0 %117
  %vm119 = vcmask 269312
  %v120 = vsel %vm119, %v104, %v106
  %v121 = vsel %vm119, %v106, %v108
  %v122 = vsel %vm119, %v108, %v110
  %v123 = vsel %vm119, %v110, %v112
  %v124 = vsel %vm119, %v112, %v114
  %v125 = vsel %vm119, %v114, %v116
  %v126 = vsel %vm119, %v116, %v118
  %v135 = vsel %vm119, 0.0, %v104
  %v136 = vsel %vm62, 1, 0
  %v137 = vsel %vm63, 1, 0
  %v138 = vsel %vm64, 1, 0
  %v139 = vsel %vm65, 1, 0
  %v140 = vsel %vm66, 1, 0
  %v141 = vsel %vm67, 1, 0
  %v142 = vsel %vm68, 1, 0
  %v143 = vsel %vm69, 1, 0
  %vm144 = vcmp.eq.s32.totalorder %v136, 1
  %vm145 = vcmp.eq.s32.totalorder %v137, 1
  %vm146 = vcmp.eq.s32.totalorder %v138, 1
  %vm147 = vcmp.eq.s32.totalorder %v139, 1
  %vm148 = vcmp.eq.s32.totalorder %v140, 1
  %vm149 = vcmp.eq.s32.totalorder %v141, 1
  %vm150 = vcmp.eq.s32.totalorder %v142, 1
  %vm151 = vcmp.eq.s32.totalorder %v143, 1
  %v152 = vsel %vm144, %v135, 0.0
  %v153 = vsel %vm145, %v120, 0.0
  %v154 = vsel %vm146, %v121, 0.0
  %v155 = vsel %vm147, %v122, 0.0
  %v156 = vsel %vm148, %v123, 0.0
  %v157 = vsel %vm149, %v124, 0.0
  %v158 = vsel %vm150, %v125, 0.0
  %v159 = vsel %vm151, %v126, 0.0
  %160 = vrot.lane.b32.xlu0 %v87, 32
  %v161 = vpop.permute.xlu0 %160
  %162 = vrot.lane.b32.xlu0 %v99, 32
  %v163 = vpop.permute.xlu0 %162
  %164 = vrot.lane.b32.xlu0 %v88, 32
  %v165 = vpop.permute.xlu0 %164
  %166 = vrot.lane.b32.xlu0 %v100, 32
  %v167 = vpop.permute.xlu0 %166
  %168 = vrot.lane.b32.xlu0 %v89, 32
  %v169 = vpop.permute.xlu0 %168
  %170 = vrot.lane.b32.xlu0 %v101, 32
  %v171 = vpop.permute.xlu0 %170
  %172 = vrot.lane.b32.xlu0 %v90, 32
  %v173 = vpop.permute.xlu0 %172
  %174 = vrot.lane.b32.xlu0 %v102, 32
  %v175 = vpop.permute.xlu0 %174
  %vm176 = vcmask 261120
  %v177 = vsel %vm176, %v161, %v163
  %v178 = vsel %vm176, %v163, %v165
  %v179 = vsel %vm176, %v165, %v167
  %v180 = vsel %vm176, %v167, %v169
  %v181 = vsel %vm176, %v169, %v171
  %v182 = vsel %vm176, %v171, %v173
  %v183 = vsel %vm176, %v173, %v175
  %v185 = vsel %vm176, 0.0, %v161
  %186 = vrot.lane.b32.xlu0 %v87, 31
  %v187 = vpop.permute.xlu0 %186
  %188 = vrot.lane.b32.xlu0 %v99, 31
  %v189 = vpop.permute.xlu0 %188
  %190 = vrot.lane.b32.xlu0 %v88, 31
  %v191 = vpop.permute.xlu0 %190
  %192 = vrot.lane.b32.xlu0 %v100, 31
  %v193 = vpop.permute.xlu0 %192
  %194 = vrot.lane.b32.xlu0 %v89, 31
  %v195 = vpop.permute.xlu0 %194
  %196 = vrot.lane.b32.xlu0 %v101, 31
  %v197 = vpop.permute.xlu0 %196
  %198 = vrot.lane.b32.xlu0 %v90, 31
  %v199 = vpop.permute.xlu0 %198
  %200 = vrot.lane.b32.xlu0 %v102, 31
  %v201 = vpop.permute.xlu0 %200
  %vm202 = vcmask 252928
  %v203 = vsel %vm202, %v187, %v189
  %v204 = vsel %vm202, %v189, %v191
  %v205 = vsel %vm202, %v191, %v193
  %v206 = vsel %vm202, %v193, %v195
  %v207 = vsel %vm202, %v195, %v197
  %v208 = vsel %vm202, %v197, %v199
  %v209 = vsel %vm202, %v199, %v201
  %v218 = vsel %vm202, 0.0, %v187
  %v219 = vsel %vm70, 1, 0
  %v220 = vsel %vm71, 1, 0
  %v221 = vsel %vm72, 1, 0
  %v222 = vsel %vm73, 1, 0
  %v223 = vsel %vm74, 1, 0
  %v224 = vsel %vm75, 1, 0
  %v225 = vsel %vm76, 1, 0
  %v226 = vsel %vm77, 1, 0
  %vm227 = vcmp.eq.s32.totalorder %v219, 1
  %vm228 = vcmp.eq.s32.totalorder %v220, 1
  %vm229 = vcmp.eq.s32.totalorder %v221, 1
  %vm230 = vcmp.eq.s32.totalorder %v222, 1
  %vm231 = vcmp.eq.s32.totalorder %v223, 1
  %vm232 = vcmp.eq.s32.totalorder %v224, 1
  %vm233 = vcmp.eq.s32.totalorder %v225, 1
  %vm234 = vcmp.eq.s32.totalorder %v226, 1
  %v235 = vsel %vm227, %v218, 0.0
  %v236 = vsel %vm228, %v203, 0.0
  %v237 = vsel %vm229, %v204, 0.0
  %v238 = vsel %vm230, %v205, 0.0
  %v239 = vsel %vm231, %v206, 0.0
  %v240 = vsel %vm232, %v207, 0.0
  %v241 = vsel %vm233, %v208, 0.0
  %v242 = vsel %vm234, %v209, 0.0
  %243 = vrot.lane.b32.xlu0 %v87, 1
  %v244 = vpop.permute.xlu0 %243
  %245 = vrot.lane.b32.xlu0 %v99, 1
  %v246 = vpop.permute.xlu0 %245
  %247 = vrot.lane.b32.xlu0 %v88, 1
  %v248 = vpop.permute.xlu0 %247
  %249 = vrot.lane.b32.xlu0 %v100, 1
  %v250 = vpop.permute.xlu0 %249
  %251 = vrot.lane.b32.xlu0 %v89, 1
  %v252 = vpop.permute.xlu0 %251
  %253 = vrot.lane.b32.xlu0 %v101, 1
  %v254 = vpop.permute.xlu0 %253
  %255 = vrot.lane.b32.xlu0 %v90, 1
  %v256 = vpop.permute.xlu0 %255
  %257 = vrot.lane.b32.xlu0 %v102, 1
  %v258 = vpop.permute.xlu0 %257
  %vm259 = vcmask 7168
  %v260 = vsel %vm259, %v244, %v246
  %v261 = vsel %vm259, %v246, %v248
  %v262 = vsel %vm259, %v248, %v250
  %v263 = vsel %vm259, %v250, %v252
  %v264 = vsel %vm259, %v252, %v254
  %v265 = vsel %vm259, %v254, %v256
  %v266 = vsel %vm259, %v256, %v258
  %v275 = vsel %vm259, 0.0, %v244
  %v276 = vsel %vm144, %v275, 0.0
  %v277 = vsel %vm145, %v260, 0.0
  %v278 = vsel %vm146, %v261, 0.0
  %v279 = vsel %vm147, %v262, 0.0
  %v280 = vsel %vm148, %v263, 0.0
  %v281 = vsel %vm149, %v264, 0.0
  %v282 = vsel %vm150, %v265, 0.0
  %v283 = vsel %vm151, %v266, 0.0
  %284 = vrot.lane.b32.xlu0 %v87, 127
  %v285 = vpop.permute.xlu0 %284
  %286 = vrot.lane.b32.xlu0 %v99, 127
  %v287 = vpop.permute.xlu0 %286
  %288 = vrot.lane.b32.xlu0 %v88, 127
  %v289 = vpop.permute.xlu0 %288
  %290 = vrot.lane.b32.xlu0 %v100, 127
  %v291 = vpop.permute.xlu0 %290
  %292 = vrot.lane.b32.xlu0 %v89, 127
  %v293 = vpop.permute.xlu0 %292
  %294 = vrot.lane.b32.xlu0 %v101, 127
  %v295 = vpop.permute.xlu0 %294
  %296 = vrot.lane.b32.xlu0 %v90, 127
  %v297 = vpop.permute.xlu0 %296
  %298 = vrot.lane.b32.xlu0 %v102, 127
  %v299 = vpop.permute.xlu0 %298
  %vm300 = vcmask 1039360
  %v301 = vsel %vm300, %v285, %v287
  %v302 = vsel %vm300, %v287, %v289
  %v303 = vsel %vm300, %v289, %v291
  %v304 = vsel %vm300, %v291, %v293
  %v305 = vsel %vm300, %v293, %v295
  %v306 = vsel %vm300, %v295, %v297
  %v307 = vsel %vm300, %v297, %v299
  %v316 = vsel %vm300, %v299, 0.0
  %v317 = vsel %vm227, %v301, 0.0
  %v318 = vsel %vm228, %v302, 0.0
  %v319 = vsel %vm229, %v303, 0.0
  %v320 = vsel %vm230, %v304, 0.0
  %v321 = vsel %vm231, %v305, 0.0
  %v322 = vsel %vm232, %v306, 0.0
  %v323 = vsel %vm233, %v307, 0.0
  %v324 = vsel %vm234, %v316, 0.0
  %325 = vrot.lane.b32.xlu0 %v87, 97
  %v326 = vpop.permute.xlu0 %325
  %327 = vrot.lane.b32.xlu0 %v99, 97
  %v328 = vpop.permute.xlu0 %327
  %329 = vrot.lane.b32.xlu0 %v88, 97
  %v330 = vpop.permute.xlu0 %329
  %331 = vrot.lane.b32.xlu0 %v100, 97
  %v332 = vpop.permute.xlu0 %331
  %333 = vrot.lane.b32.xlu0 %v89, 97
  %v334 = vpop.permute.xlu0 %333
  %335 = vrot.lane.b32.xlu0 %v101, 97
  %v336 = vpop.permute.xlu0 %335
  %337 = vrot.lane.b32.xlu0 %v90, 97
  %v338 = vpop.permute.xlu0 %337
  %339 = vrot.lane.b32.xlu0 %v102, 97
  %v340 = vpop.permute.xlu0 %339
  %vm341 = vcmask 793600
  %v342 = vsel %vm341, %v326, %v328
  %v343 = vsel %vm341, %v328, %v330
  %v344 = vsel %vm341, %v330, %v332
  %v345 = vsel %vm341, %v332, %v334
  %v346 = vsel %vm341, %v334, %v336
  %v347 = vsel %vm341, %v336, %v338
  %v348 = vsel %vm341, %v338, %v340
  %v357 = vsel %vm341, %v340, 0.0
  %v358 = vsel %vm144, %v342, 0.0
  %v359 = vsel %vm145, %v343, 0.0
  %v360 = vsel %vm146, %v344, 0.0
  %v361 = vsel %vm147, %v345, 0.0
  %v362 = vsel %vm148, %v346, 0.0
  %v363 = vsel %vm149, %v347, 0.0
  %v364 = vsel %vm150, %v348, 0.0
  %v365 = vsel %vm151, %v357, 0.0
  %366 = vrot.lane.b32.xlu0 %v87, 96
  %v367 = vpop.permute.xlu0 %366
  %368 = vrot.lane.b32.xlu0 %v99, 96
  %v369 = vpop.permute.xlu0 %368
  %370 = vrot.lane.b32.xlu0 %v88, 96
  %v371 = vpop.permute.xlu0 %370
  %372 = vrot.lane.b32.xlu0 %v100, 96
  %v373 = vpop.permute.xlu0 %372
  %374 = vrot.lane.b32.xlu0 %v89, 96
  %v375 = vpop.permute.xlu0 %374
  %376 = vrot.lane.b32.xlu0 %v101, 96
  %v377 = vpop.permute.xlu0 %376
  %378 = vrot.lane.b32.xlu0 %v90, 96
  %v379 = vpop.permute.xlu0 %378
  %380 = vrot.lane.b32.xlu0 %v102, 96
  %v381 = vpop.permute.xlu0 %380
  %vm382 = vcmask 785408
  %v383 = vsel %vm382, %v367, %v369
  %v384 = vsel %vm382, %v369, %v371
  %v385 = vsel %vm382, %v371, %v373
  %v386 = vsel %vm382, %v373, %v375
  %v387 = vsel %vm382, %v375, %v377
  %v388 = vsel %vm382, %v377, %v379
  %v389 = vsel %vm382, %v379, %v381
  %v391 = vsel %vm382, %v381, 0.0
  %392 = vrot.lane.b32.xlu0 %v87, 95
  %v393 = vpop.permute.xlu0 %392
  %394 = vrot.lane.b32.xlu0 %v99, 95
  %v395 = vpop.permute.xlu0 %394
  %396 = vrot.lane.b32.xlu0 %v88, 95
  %v397 = vpop.permute.xlu0 %396
  %398 = vrot.lane.b32.xlu0 %v100, 95
  %v399 = vpop.permute.xlu0 %398
  %400 = vrot.lane.b32.xlu0 %v89, 95
  %v401 = vpop.permute.xlu0 %400
  %402 = vrot.lane.b32.xlu0 %v101, 95
  %v403 = vpop.permute.xlu0 %402
  %404 = vrot.lane.b32.xlu0 %v90, 95
  %v405 = vpop.permute.xlu0 %404
  %406 = vrot.lane.b32.xlu0 %v102, 95
  %v407 = vpop.permute.xlu0 %406
  %vm408 = vcmask 777216
  %v409 = vsel %vm408, %v393, %v395
  %v410 = vsel %vm408, %v395, %v397
  %v411 = vsel %vm408, %v397, %v399
  %v412 = vsel %vm408, %v399, %v401
  %v413 = vsel %vm408, %v401, %v403
  %v414 = vsel %vm408, %v403, %v405
  %v415 = vsel %vm408, %v405, %v407
  %v424 = vsel %vm408, %v407, 0.0
  %v425 = vsel %vm227, %v409, 0.0
  %v426 = vsel %vm228, %v410, 0.0
  %v427 = vsel %vm229, %v411, 0.0
  %v428 = vsel %vm230, %v412, 0.0
  %v429 = vsel %vm231, %v413, 0.0
  %v430 = vsel %vm232, %v414, 0.0
  %v431 = vsel %vm233, %v415, 0.0
  %v432 = vsel %vm234, %v424, 0.0
  %v434 = vrot.slane %v185, 5
  %v435 = vrot.slane %v177, 5
  %v436 = vrot.slane %v178, 5
  %v437 = vrot.slane %v179, 5
  %v438 = vrot.slane %v180, 5
  %v439 = vrot.slane %v181, 5
  %v440 = vrot.slane %v182, 5
  %v441 = vrot.slane %v183, 5
  %v458 = vrot.slane %v235, 2
  %v459 = vrot.slane %v236, 2
  %v460 = vrot.slane %v237, 2
  %v461 = vrot.slane %v238, 2
  %v462 = vrot.slane %v239, 2
  %v463 = vrot.slane %v240, 2
  %v464 = vrot.slane %v241, 2
  %v465 = vrot.slane %v242, 2
  %v482 = vrot.slane %v276, 7
  %v483 = vrot.slane %v277, 7
  %v484 = vrot.slane %v278, 7
  %v485 = vrot.slane %v279, 7
  %v486 = vrot.slane %v280, 7
  %v487 = vrot.slane %v281, 7
  %v488 = vrot.slane %v282, 7
  %v489 = vrot.slane %v283, 7
  %v498 = vcombine.low %v87, %v87
  %v499 = vcombine.low %v88, %v88
  %v500 = vcombine.low %v89, %v89
  %v501 = vcombine.low %v90, %v90
  %v514 = vrot.slane %v317, 1
  %v515 = vrot.slane %v318, 1
  %v516 = vrot.slane %v319, 1
  %v517 = vrot.slane %v320, 1
  %v518 = vrot.slane %v321, 1
  %v519 = vrot.slane %v322, 1
  %v520 = vrot.slane %v323, 1
  %v521 = vrot.slane %v324, 1
  %v538 = vrot.slane %v358, 6
  %v539 = vrot.slane %v359, 6
  %v540 = vrot.slane %v360, 6
  %v541 = vrot.slane %v361, 6
  %v542 = vrot.slane %v362, 6
  %v543 = vrot.slane %v363, 6
  %v544 = vrot.slane %v364, 6
  %v545 = vrot.slane %v365, 6
  %v555 = vrot.slane %v383, 3
  %v556 = vrot.slane %v384, 3
  %v557 = vrot.slane %v385, 3
  %v558 = vrot.slane %v386, 3
  %v559 = vrot.slane %v387, 3
  %v560 = vrot.slane %v388, 3
  %v561 = vrot.slane %v389, 3
  %v562 = vrot.slane %v391, 3
  %vm571 = vcmask 1042432
  %v572 = vsel %vm571, %v152, %v434
  %v573 = vsel %vm571, %v153, %v435
  %v574 = vsel %vm571, %v154, %v436
  %v575 = vsel %vm571, %v155, %v437
  %v576 = vsel %vm571, %v156, %v438
  %v577 = vsel %vm571, %v157, %v439
  %v578 = vsel %vm571, %v158, %v440
  %v579 = vsel %vm571, %v159, %v441
  %vm580 = vcmask 1045504
  %v581 = vsel %vm580, %v572, %v458
  %v582 = vsel %vm580, %v573, %v459
  %v583 = vsel %vm580, %v574, %v460
  %v584 = vsel %vm580, %v575, %v461
  %v585 = vsel %vm580, %v576, %v462
  %v586 = vsel %vm580, %v577, %v463
  %v587 = vsel %vm580, %v578, %v464
  %v588 = vsel %vm580, %v579, %v465
  %vm589 = vcmask 1040384
  %v590 = vsel %vm589, %v458, %v482
  %v591 = vsel %vm589, %v459, %v483
  %v592 = vsel %vm589, %v460, %v484
  %v593 = vsel %vm589, %v461, %v485
  %v594 = vsel %vm589, %v462, %v486
  %v595 = vsel %vm589, %v463, %v487
  %v596 = vsel %vm589, %v464, %v488
  %v597 = vsel %vm589, %v465, %v489
  %vm598 = vcmask 1043456
  %v599 = vsel %vm598, %v590, %v498
  %v600 = vsel %vm598, %v591, %v87
  %v601 = vsel %vm598, %v592, %v499
  %v602 = vsel %vm598, %v593, %v88
  %v603 = vsel %vm598, %v594, %v500
  %v604 = vsel %vm598, %v595, %v89
  %v605 = vsel %vm598, %v596, %v501
  %v606 = vsel %vm598, %v597, %v90
  %vm607 = vcmask 1046528
  %v608 = vsel %vm607, %v599, %v514
  %v609 = vsel %vm607, %v600, %v515
  %v610 = vsel %vm607, %v601, %v516
  %v611 = vsel %vm607, %v602, %v517
  %v612 = vsel %vm607, %v603, %v518
  %v613 = vsel %vm607, %v604, %v519
  %v614 = vsel %vm607, %v605, %v520
  %v615 = vsel %vm607, %v606, %v521
  %vm616 = vcmask 1041408
  %v617 = vsel %vm616, %v514, %v538
  %v618 = vsel %vm616, %v515, %v539
  %v619 = vsel %vm616, %v516, %v540
  %v620 = vsel %vm616, %v517, %v541
  %v621 = vsel %vm616, %v518, %v542
  %v622 = vsel %vm616, %v519, %v543
  %v623 = vsel %vm616, %v520, %v544
  %v624 = vsel %vm616, %v521, %v545
  %vm625 = vcmask 1044480
  %v626 = vsel %vm625, %v617, %v555
  %v627 = vsel %vm625, %v618, %v556
  %v628 = vsel %vm625, %v619, %v557
  %v629 = vsel %vm625, %v620, %v558
  %v630 = vsel %vm625, %v621, %v559
  %v631 = vsel %vm625, %v622, %v560
  %v632 = vsel %vm625, %v623, %v561
  %v633 = vsel %vm625, %v624, %v562
  %v634 = vpack.c.bf16 %v608, %v581
  %v635 = vpack.c.bf16 %v609, %v582
  %v636 = vpack.c.bf16 %v610, %v583
  %v637 = vpack.c.bf16 %v611, %v584
  %v638 = vpack.c.bf16 %v612, %v585
  %v639 = vpack.c.bf16 %v613, %v586
  %v640 = vpack.c.bf16 %v614, %v587
  %v641 = vpack.c.bf16 %v615, %v588
  %v642 = vpack.c.bf16 %v425, %v626
  %v643 = vpack.c.bf16 %v426, %v627
  %v644 = vpack.c.bf16 %v427, %v628
  %v645 = vpack.c.bf16 %v428, %v629
  %v646 = vpack.c.bf16 %v429, %v630
  %v647 = vpack.c.bf16 %v430, %v631
  %v648 = vpack.c.bf16 %v431, %v632
  %v649 = vpack.c.bf16 %v432, %v633
  %651 = vset.pattern.permute.xlu0 0
  %652 = vperm.xlu0 %651, %v93
  %v653 = vpop.permute.xlu0 %652
  %656 = vset.pattern.permute.xlu0 0
  %657 = vperm.xlu0 %656, %v94
  %v658 = vpop.permute.xlu0 %657
  %v662 = vunpack.c.l.b16 %v91
  %v663 = vunpack.c.l.b16 %v92
  %v664 = vpack.c.b16 %v663, %v662
  %vm665 = vcmask 220160
  %v667 = vsel %vm665, %v664, 0
  %v669 = vsel %vm625, 4294967295, 65535
  %v670 = vsel %vm580, %v669, 0
  %v672 = vand.u32 %v642, %v670
  %v675 = vand.u32 %v643, %v670
  %v678 = vand.u32 %v644, %v670
  %v681 = vand.u32 %v645, %v670
  %v684 = vand.u32 %v646, %v670
  %v687 = vand.u32 %v647, %v670
  %v690 = vand.u32 %v648, %v670
  %v693 = vand.u32 %v649, %v670
  %695 = vmatprep.subr.bf16.mxu0 %v635
  %696 = vmatpush1.bf16.msra.mxu0 %v634
  %697 = vmatprep.subr.bf16.mxu0 %v675
  %698 = vmatpush1.bf16.msra.mxu0 %v672
  %699 = vmatprep.subr.bf16.mxu0 0
  %700 = vmatpush1.bf16.msra.mxu0 0
  %701 = vmatprep.subr.bf16.mxu0 0
  %702 = vmatpush1.bf16.msra.mxu0 0
  %703 = vmatprep.subr.bf16.mxu0 0
  %704 = vmatpush1.bf16.msra.mxu0 0
  %705 = vmatprep.subr.bf16.mxu0 0
  %706 = vmatpush1.bf16.msra.mxu0 0
  %707 = vmatprep.subr.bf16.mxu0 0
  %708 = vmatpush1.bf16.msra.mxu0 0
  %709 = vmatprep.subr.bf16.mxu0 0
  %710 = vmatpush1.bf16.msra.mxu0 0
  %711 = vmatprep.subr.bf16.mxu0 0
  %712 = vmatpush1.bf16.msra.mxu0 0
  %713 = vmatprep.subr.bf16.mxu0 0
  %714 = vmatpush1.bf16.msra.mxu0 0
  %715 = vmatprep.subr.bf16.mxu0 0
  %716 = vmatpush1.bf16.msra.mxu0 0
  %717 = vmatprep.subr.bf16.mxu0 0
  %718 = vmatpush1.bf16.msra.mxu0 0
  %719 = vmatprep.subr.bf16.mxu0 0
  %720 = vmatpush1.bf16.msra.mxu0 0
  %721 = vmatprep.subr.bf16.mxu0 0
  %722 = vmatpush1.bf16.msra.mxu0 0
  %723 = vmatprep.subr.bf16.mxu0 0
  %724 = vmatpush1.bf16.msra.mxu0 0
  %725 = vmatprep.subr.bf16.mxu0 0
  %726 = vmatpush1.bf16.msra.mxu0 0
  %727 = vmatprep.mubr.bf16.mxu0 0
  %728 = vmatmul.mubr.bf16.gmra.mrb[0].mxu0 %v667
  %v729 = vpop.f32.mrb[0].mxu0
  %v730 = vadd.f32 %v653, %v729
  %v731 = vpop.f32.mrb[0].mxu0
  %v732 = vadd.f32 %v653, %v731
  %v733 = vpop.f32.mrb[0].mxu0
  %v734 = vadd.f32 %v658, %v733
  %v735 = vpop.f32.mrb[0].mxu0
  %v736 = vadd.f32 %v658, %v735
  %737 = vdwg.mxu0
  %738 = vmatprep.subr.bf16.mxu0 %v637
  %739 = vmatpush1.bf16.msra.mxu0 %v636
  %740 = vmatprep.subr.bf16.mxu0 %v681
  %741 = vmatpush1.bf16.msra.mxu0 %v678
  %742 = vmatprep.subr.bf16.mxu0 0
  %743 = vmatpush1.bf16.msra.mxu0 0
  %744 = vmatprep.subr.bf16.mxu0 0
  %745 = vmatpush1.bf16.msra.mxu0 0
  %746 = vmatprep.subr.bf16.mxu0 0
  %747 = vmatpush1.bf16.msra.mxu0 0
  %748 = vmatprep.subr.bf16.mxu0 0
  %749 = vmatpush1.bf16.msra.mxu0 0
  %750 = vmatprep.subr.bf16.mxu0 0
  %751 = vmatpush1.bf16.msra.mxu0 0
  %752 = vmatprep.subr.bf16.mxu0 0
  %753 = vmatpush1.bf16.msra.mxu0 0
  %754 = vmatprep.subr.bf16.mxu0 0
  %755 = vmatpush1.bf16.msra.mxu0 0
  %756 = vmatprep.subr.bf16.mxu0 0
  %757 = vmatpush1.bf16.msra.mxu0 0
  %758 = vmatprep.subr.bf16.mxu0 0
  %759 = vmatpush1.bf16.msra.mxu0 0
  %760 = vmatprep.subr.bf16.mxu0 0
  %761 = vmatpush1.bf16.msra.mxu0 0
  %762 = vmatprep.subr.bf16.mxu0 0
  %763 = vmatpush1.bf16.msra.mxu0 0
  %764 = vmatprep.subr.bf16.mxu0 0
  %765 = vmatpush1.bf16.msra.mxu0 0
  %766 = vmatprep.subr.bf16.mxu0 0
  %767 = vmatpush1.bf16.msra.mxu0 0
  %768 = vmatprep.subr.bf16.mxu0 0
  %769 = vmatpush1.bf16.msra.mxu0 0
  %770 = vmatprep.mubr.bf16.mxu0 0
  %771 = vmatmul.mubr.bf16.gmra.mrb[0].mxu0 %v667
  %v772 = vpop.f32.mrb[0].mxu0
  %v773 = vadd.f32 %v653, %v772
  %v774 = vpop.f32.mrb[0].mxu0
  %v775 = vadd.f32 %v653, %v774
  %v776 = vpop.f32.mrb[0].mxu0
  %v777 = vadd.f32 %v658, %v776
  %v778 = vpop.f32.mrb[0].mxu0
  %v779 = vadd.f32 %v658, %v778
  %780 = vdwg.mxu0
  %781 = vmatprep.subr.bf16.mxu0 %v639
  %782 = vmatpush1.bf16.msra.mxu0 %v638
  %783 = vmatprep.subr.bf16.mxu0 %v687
  %784 = vmatpush1.bf16.msra.mxu0 %v684
  %785 = vmatprep.subr.bf16.mxu0 0
  %786 = vmatpush1.bf16.msra.mxu0 0
  %787 = vmatprep.subr.bf16.mxu0 0
  %788 = vmatpush1.bf16.msra.mxu0 0
  %789 = vmatprep.subr.bf16.mxu0 0
  %790 = vmatpush1.bf16.msra.mxu0 0
  %791 = vmatprep.subr.bf16.mxu0 0
  %792 = vmatpush1.bf16.msra.mxu0 0
  %793 = vmatprep.subr.bf16.mxu0 0
  %794 = vmatpush1.bf16.msra.mxu0 0
  %795 = vmatprep.subr.bf16.mxu0 0
  %796 = vmatpush1.bf16.msra.mxu0 0
  %797 = vmatprep.subr.bf16.mxu0 0
  %798 = vmatpush1.bf16.msra.mxu0 0
  %799 = vmatprep.subr.bf16.mxu0 0
  %800 = vmatpush1.bf16.msra.mxu0 0
  %801 = vmatprep.subr.bf16.mxu0 0
  %802 = vmatpush1.bf16.msra.mxu0 0
  %803 = vmatprep.subr.bf16.mxu0 0
  %804 = vmatpush1.bf16.msra.mxu0 0
  %805 = vmatprep.subr.bf16.mxu0 0
  %806 = vmatpush1.bf16.msra.mxu0 0
  %807 = vmatprep.subr.bf16.mxu0 0
  %808 = vmatpush1.bf16.msra.mxu0 0
  %809 = vmatprep.subr.bf16.mxu0 0
  %810 = vmatpush1.bf16.msra.mxu0 0
  %811 = vmatprep.subr.bf16.mxu0 0
  %812 = vmatpush1.bf16.msra.mxu0 0
  %813 = vmatprep.mubr.bf16.mxu0 0
  %814 = vmatmul.mubr.bf16.gmra.mrb[0].mxu0 %v667
  %v815 = vpop.f32.mrb[0].mxu0
  %v816 = vadd.f32 %v653, %v815
  %v817 = vpop.f32.mrb[0].mxu0
  %v818 = vadd.f32 %v653, %v817
  %v819 = vpop.f32.mrb[0].mxu0
  %v820 = vadd.f32 %v658, %v819
  %v821 = vpop.f32.mrb[0].mxu0
  %v822 = vadd.f32 %v658, %v821
  %823 = vdwg.mxu0
  %824 = vmatprep.subr.bf16.mxu0 %v641
  %825 = vmatpush1.bf16.msra.mxu0 %v640
  %826 = vmatprep.subr.bf16.mxu0 %v693
  %827 = vmatpush1.bf16.msra.mxu0 %v690
  %828 = vmatprep.subr.bf16.mxu0 0
  %829 = vmatpush1.bf16.msra.mxu0 0
  %830 = vmatprep.subr.bf16.mxu0 0
  %831 = vmatpush1.bf16.msra.mxu0 0
  %832 = vmatprep.subr.bf16.mxu0 0
  %833 = vmatpush1.bf16.msra.mxu0 0
  %834 = vmatprep.subr.bf16.mxu0 0
  %835 = vmatpush1.bf16.msra.mxu0 0
  %836 = vmatprep.subr.bf16.mxu0 0
  %837 = vmatpush1.bf16.msra.mxu0 0
  %838 = vmatprep.subr.bf16.mxu0 0
  %839 = vmatpush1.bf16.msra.mxu0 0
  %840 = vmatprep.subr.bf16.mxu0 0
  %841 = vmatpush1.bf16.msra.mxu0 0
  %842 = vmatprep.subr.bf16.mxu0 0
  %843 = vmatpush1.bf16.msra.mxu0 0
  %844 = vmatprep.subr.bf16.mxu0 0
  %845 = vmatpush1.bf16.msra.mxu0 0
  %846 = vmatprep.subr.bf16.mxu0 0
  %847 = vmatpush1.bf16.msra.mxu0 0
  %848 = vmatprep.subr.bf16.mxu0 0
  %849 = vmatpush1.bf16.msra.mxu0 0
  %850 = vmatprep.subr.bf16.mxu0 0
  %851 = vmatpush1.bf16.msra.mxu0 0
  %852 = vmatprep.subr.bf16.mxu0 0
  %853 = vmatpush1.bf16.msra.mxu0 0
  %854 = vmatprep.subr.bf16.mxu0 0
  %855 = vmatpush1.bf16.msra.mxu0 0
  %856 = vmatprep.mubr.bf16.mxu0 0
  %857 = vmatmul.mubr.bf16.gmra.mrb[0].mxu0 %v667
  %v858 = vpop.f32.mrb[0].mxu0
  %v859 = vadd.f32 %v653, %v858
  %v860 = vpop.f32.mrb[0].mxu0
  %v861 = vadd.f32 %v653, %v860
  %v862 = vpop.f32.mrb[0].mxu0
  %v863 = vadd.f32 %v658, %v862
  %v864 = vpop.f32.mrb[0].mxu0
  %v865 = vadd.f32 %v658, %v864
  %866 = vdwg.mxu0
  %v867 = vmax.f32 %v730, 0.0
  %v868 = vmax.f32 %v732, 0.0
  %v869 = vmax.f32 %v773, 0.0
  %v870 = vmax.f32 %v775, 0.0
  %v871 = vmax.f32 %v816, 0.0
  %v872 = vmax.f32 %v818, 0.0
  %v873 = vmax.f32 %v859, 0.0
  %v874 = vmax.f32 %v861, 0.0
  %v875 = vmax.f32 %v734, 0.0
  %v876 = vmax.f32 %v736, 0.0
  %v877 = vmax.f32 %v777, 0.0
  %v878 = vmax.f32 %v779, 0.0
  %v879 = vmax.f32 %v820, 0.0
  %v880 = vmax.f32 %v822, 0.0
  %v881 = vmax.f32 %v863, 0.0
  %v882 = vmax.f32 %v865, 0.0
  %v883 = vpack.c.bf16 %v875, %v867
  %v884 = vpack.c.bf16 %v876, %v868
  %v885 = vpack.c.bf16 %v877, %v869
  %v886 = vpack.c.bf16 %v878, %v870
  %v887 = vpack.c.bf16 %v879, %v871
  %v888 = vpack.c.bf16 %v880, %v872
  %v889 = vpack.c.bf16 %v881, %v873
  %v890 = vpack.c.bf16 %v882, %v874
  %v891 = vshra.s32 %v46, 4
  %v892 = vshra.s32 %v47, 4
  %v893 = vmul.u32 %v891, 64
  %v894 = vmul.u32 %v892, 64
  %v895 = vmul.u32 %v78, 2
  %v896 = vmul.u32 %v79, 2
  %v897 = vadd.s32 %v893, %v895
  %v898 = vadd.s32 %v894, %v896
  %v899 = vlaneseq
  %v900 = vshrl.u32 %v899, 7
  %v901 = vadd.s32 %v900, 8
  %v902 = vadd.s32 %v900, 16
  %v903 = vadd.s32 %v900, 24
  %v904 = vadd.s32 %v900, 32
  %v905 = vadd.s32 %v900, 40
  %v906 = vadd.s32 %v900, 48
  %v907 = vadd.s32 %v900, 56
  %v908 = vadd.s32 %v900, 64
  %v909 = vadd.s32 %v900, 72
  %v910 = vadd.s32 %v900, 80
  %v911 = vadd.s32 %v900, 88
  %v912 = vadd.s32 %v900, 96
  %v913 = vadd.s32 %v900, 104
  %v914 = vadd.s32 %v900, 112
  %v915 = vadd.s32 %v900, 120
  %v916 = vadd.s32 %v900, 128
  %v917 = vadd.s32 %v900, 136
  %v918 = vadd.s32 %v900, 144
  %v919 = vadd.s32 %v900, 152
  %v920 = vadd.s32 %v900, 160
  %v921 = vadd.s32 %v900, 168
  %v922 = vadd.s32 %v900, 176
  %v923 = vadd.s32 %v900, 184
  %v924 = vadd.s32 %v900, 192
  %v925 = vadd.s32 %v900, 200
  %v926 = vadd.s32 %v900, 208
  %v927 = vadd.s32 %v900, 216
  %v928 = vadd.s32 %v900, 224
  %v929 = vadd.s32 %v900, 232
  %v930 = vadd.s32 %v900, 240
  %v931 = vadd.s32 %v900, 248
  %v932 = vadd.s32 %v900, 256
  %v933 = vadd.s32 %v900, 264
  %v934 = vadd.s32 %v900, 272
  %v935 = vadd.s32 %v900, 280
  %v936 = vadd.s32 %v900, 288
  %v937 = vadd.s32 %v900, 296
  %v938 = vadd.s32 %v900, 304
  %v939 = vadd.s32 %v900, 312
  %v940 = vadd.s32 %v900, 320
  %v941 = vadd.s32 %v900, 328
  %v942 = vadd.s32 %v900, 336
  %v943 = vadd.s32 %v900, 344
  %v944 = vadd.s32 %v900, 352
  %v945 = vadd.s32 %v900, 360
  %v946 = vadd.s32 %v900, 368
  %v947 = vadd.s32 %v900, 376
  %v948 = vadd.s32 %v900, 384
  %v949 = vadd.s32 %v900, 392
  %v950 = vadd.s32 %v900, 400
  %v951 = vadd.s32 %v900, 408
  %v952 = vadd.s32 %v900, 416
  %v953 = vadd.s32 %v900, 424
  %v954 = vadd.s32 %v900, 432
  %v955 = vadd.s32 %v900, 440
  %v956 = vadd.s32 %v900, 448
  %v957 = vadd.s32 %v900, 456
  %v958 = vadd.s32 %v900, 464
  %v959 = vadd.s32 %v900, 472
  %v960 = vadd.s32 %v900, 480
  %v961 = vadd.s32 %v900, 488
  %v962 = vadd.s32 %v900, 496
  %v963 = vadd.s32 %v900, 504
  %v964 = vadd.s32 %v900, 512
  %v965 = vadd.s32 %v900, 520
  %v966 = vadd.s32 %v900, 528
  %v967 = vadd.s32 %v900, 536
  %v968 = vadd.s32 %v900, 544
  %v969 = vadd.s32 %v900, 552
  %v970 = vadd.s32 %v900, 560
  %v971 = vadd.s32 %v900, 568
  %v972 = vadd.s32 %v900, 576
  %v973 = vadd.s32 %v900, 584
  %v974 = vadd.s32 %v900, 592
  %v975 = vadd.s32 %v900, 600
  %v976 = vadd.s32 %v900, 608
  %v977 = vadd.s32 %v900, 616
  %v978 = vadd.s32 %v900, 624
  %v979 = vadd.s32 %v900, 632
  %v980 = vadd.s32 %v900, 640
  %v981 = vadd.s32 %v900, 648
  %v982 = vadd.s32 %v900, 656
  %v983 = vadd.s32 %v900, 664
  %v984 = vadd.s32 %v900, 672
  %v985 = vadd.s32 %v900, 680
  %v986 = vadd.s32 %v900, 688
  %v987 = vadd.s32 %v900, 696
  %v988 = vadd.s32 %v900, 704
  %v989 = vadd.s32 %v900, 712
  %v990 = vadd.s32 %v900, 720
  %v991 = vadd.s32 %v900, 728
  %v992 = vadd.s32 %v900, 736
  %v993 = vadd.s32 %v900, 744
  %v994 = vadd.s32 %v900, 752
  %v995 = vadd.s32 %v900, 760
  %v996 = vadd.s32 %v900, 768
  %v997 = vadd.s32 %v900, 776
  %v998 = vadd.s32 %v900, 784
  %v999 = vadd.s32 %v900, 792
  %v1000 = vadd.s32 %v900, 800
  %v1001 = vadd.s32 %v900, 808
  %v1002 = vadd.s32 %v900, 816
  %v1003 = vadd.s32 %v900, 824
  %v1004 = vadd.s32 %v900, 832
  %v1005 = vadd.s32 %v900, 840
  %v1006 = vadd.s32 %v900, 848
  %v1007 = vadd.s32 %v900, 856
  %v1008 = vadd.s32 %v900, 864
  %v1009 = vadd.s32 %v900, 872
  %v1010 = vadd.s32 %v900, 880
  %v1011 = vadd.s32 %v900, 888
  %v1012 = vadd.s32 %v900, 896
  %v1013 = vadd.s32 %v900, 904
  %v1014 = vadd.s32 %v900, 912
  %v1015 = vadd.s32 %v900, 920
  %v1016 = vadd.s32 %v900, 928
  %v1017 = vadd.s32 %v900, 936
  %v1018 = vadd.s32 %v900, 944
  %v1019 = vadd.s32 %v900, 952
  %v1020 = vadd.s32 %v900, 960
  %v1021 = vadd.s32 %v900, 968
  %v1022 = vadd.s32 %v900, 976
  %v1023 = vadd.s32 %v900, 984
  %v1024 = vadd.s32 %v900, 992
  %v1025 = vadd.s32 %v900, 1000
  %v1026 = vadd.s32 %v900, 1008
  %v1027 = vadd.s32 %v900, 1016
  %vm1028 = vcmp.eq.s32.totalorder %v900, %v897
  %vm1029 = vcmp.eq.s32.totalorder %v900, %v898
  %vm1030 = vcmp.eq.s32.totalorder %v901, %v897
  %vm1031 = vcmp.eq.s32.totalorder %v901, %v898
  %vm1032 = vcmp.eq.s32.totalorder %v902, %v897
  %vm1033 = vcmp.eq.s32.totalorder %v902, %v898
  %vm1034 = vcmp.eq.s32.totalorder %v903, %v897
  %vm1035 = vcmp.eq.s32.totalorder %v903, %v898
  %vm1036 = vcmp.eq.s32.totalorder %v904, %v897
  %vm1037 = vcmp.eq.s32.totalorder %v904, %v898
  %vm1038 = vcmp.eq.s32.totalorder %v905, %v897
  %vm1039 = vcmp.eq.s32.totalorder %v905, %v898
  %vm1040 = vcmp.eq.s32.totalorder %v906, %v897
  %vm1041 = vcmp.eq.s32.totalorder %v906, %v898
  %vm1042 = vcmp.eq.s32.totalorder %v907, %v897
  %vm1043 = vcmp.eq.s32.totalorder %v907, %v898
  %vm1044 = vcmp.eq.s32.totalorder %v908, %v897
  %vm1045 = vcmp.eq.s32.totalorder %v908, %v898
  %vm1046 = vcmp.eq.s32.totalorder %v909, %v897
  %vm1047 = vcmp.eq.s32.totalorder %v909, %v898
  %vm1048 = vcmp.eq.s32.totalorder %v910, %v897
  %vm1049 = vcmp.eq.s32.totalorder %v910, %v898
  %vm1050 = vcmp.eq.s32.totalorder %v911, %v897
  %vm1051 = vcmp.eq.s32.totalorder %v911, %v898
  %vm1052 = vcmp.eq.s32.totalorder %v912, %v897
  %vm1053 = vcmp.eq.s32.totalorder %v912, %v898
  %vm1054 = vcmp.eq.s32.totalorder %v913, %v897
  %vm1055 = vcmp.eq.s32.totalorder %v913, %v898
  %vm1056 = vcmp.eq.s32.totalorder %v914, %v897
  %vm1057 = vcmp.eq.s32.totalorder %v914, %v898
  %vm1058 = vcmp.eq.s32.totalorder %v915, %v897
  %vm1059 = vcmp.eq.s32.totalorder %v915, %v898
  %vm1060 = vcmp.eq.s32.totalorder %v916, %v897
  %vm1061 = vcmp.eq.s32.totalorder %v916, %v898
  %vm1062 = vcmp.eq.s32.totalorder %v917, %v897
  %vm1063 = vcmp.eq.s32.totalorder %v917, %v898
  %vm1064 = vcmp.eq.s32.totalorder %v918, %v897
  %vm1065 = vcmp.eq.s32.totalorder %v918, %v898
  %vm1066 = vcmp.eq.s32.totalorder %v919, %v897
  %vm1067 = vcmp.eq.s32.totalorder %v919, %v898
  %vm1068 = vcmp.eq.s32.totalorder %v920, %v897
  %vm1069 = vcmp.eq.s32.totalorder %v920, %v898
  %vm1070 = vcmp.eq.s32.totalorder %v921, %v897
  %vm1071 = vcmp.eq.s32.totalorder %v921, %v898
  %vm1072 = vcmp.eq.s32.totalorder %v922, %v897
  %vm1073 = vcmp.eq.s32.totalorder %v922, %v898
  %vm1074 = vcmp.eq.s32.totalorder %v923, %v897
  %vm1075 = vcmp.eq.s32.totalorder %v923, %v898
  %vm1076 = vcmp.eq.s32.totalorder %v924, %v897
  %vm1077 = vcmp.eq.s32.totalorder %v924, %v898
  %vm1078 = vcmp.eq.s32.totalorder %v925, %v897
  %vm1079 = vcmp.eq.s32.totalorder %v925, %v898
  %vm1080 = vcmp.eq.s32.totalorder %v926, %v897
  %vm1081 = vcmp.eq.s32.totalorder %v926, %v898
  %vm1082 = vcmp.eq.s32.totalorder %v927, %v897
  %vm1083 = vcmp.eq.s32.totalorder %v927, %v898
  %vm1084 = vcmp.eq.s32.totalorder %v928, %v897
  %vm1085 = vcmp.eq.s32.totalorder %v928, %v898
  %vm1086 = vcmp.eq.s32.totalorder %v929, %v897
  %vm1087 = vcmp.eq.s32.totalorder %v929, %v898
  %vm1088 = vcmp.eq.s32.totalorder %v930, %v897
  %vm1089 = vcmp.eq.s32.totalorder %v930, %v898
  %vm1090 = vcmp.eq.s32.totalorder %v931, %v897
  %vm1091 = vcmp.eq.s32.totalorder %v931, %v898
  %vm1092 = vcmp.eq.s32.totalorder %v932, %v897
  %vm1093 = vcmp.eq.s32.totalorder %v932, %v898
  %vm1094 = vcmp.eq.s32.totalorder %v933, %v897
  %vm1095 = vcmp.eq.s32.totalorder %v933, %v898
  %vm1096 = vcmp.eq.s32.totalorder %v934, %v897
  %vm1097 = vcmp.eq.s32.totalorder %v934, %v898
  %vm1098 = vcmp.eq.s32.totalorder %v935, %v897
  %vm1099 = vcmp.eq.s32.totalorder %v935, %v898
  %vm1100 = vcmp.eq.s32.totalorder %v936, %v897
  %vm1101 = vcmp.eq.s32.totalorder %v936, %v898
  %vm1102 = vcmp.eq.s32.totalorder %v937, %v897
  %vm1103 = vcmp.eq.s32.totalorder %v937, %v898
  %vm1104 = vcmp.eq.s32.totalorder %v938, %v897
  %vm1105 = vcmp.eq.s32.totalorder %v938, %v898
  %vm1106 = vcmp.eq.s32.totalorder %v939, %v897
  %vm1107 = vcmp.eq.s32.totalorder %v939, %v898
  %vm1108 = vcmp.eq.s32.totalorder %v940, %v897
  %vm1109 = vcmp.eq.s32.totalorder %v940, %v898
  %vm1110 = vcmp.eq.s32.totalorder %v941, %v897
  %vm1111 = vcmp.eq.s32.totalorder %v941, %v898
  %vm1112 = vcmp.eq.s32.totalorder %v942, %v897
  %vm1113 = vcmp.eq.s32.totalorder %v942, %v898
  %vm1114 = vcmp.eq.s32.totalorder %v943, %v897
  %vm1115 = vcmp.eq.s32.totalorder %v943, %v898
  %vm1116 = vcmp.eq.s32.totalorder %v944, %v897
  %vm1117 = vcmp.eq.s32.totalorder %v944, %v898
  %vm1118 = vcmp.eq.s32.totalorder %v945, %v897
  %vm1119 = vcmp.eq.s32.totalorder %v945, %v898
  %vm1120 = vcmp.eq.s32.totalorder %v946, %v897
  %vm1121 = vcmp.eq.s32.totalorder %v946, %v898
  %vm1122 = vcmp.eq.s32.totalorder %v947, %v897
  %vm1123 = vcmp.eq.s32.totalorder %v947, %v898
  %vm1124 = vcmp.eq.s32.totalorder %v948, %v897
  %vm1125 = vcmp.eq.s32.totalorder %v948, %v898
  %vm1126 = vcmp.eq.s32.totalorder %v949, %v897
  %vm1127 = vcmp.eq.s32.totalorder %v949, %v898
  %vm1128 = vcmp.eq.s32.totalorder %v950, %v897
  %vm1129 = vcmp.eq.s32.totalorder %v950, %v898
  %vm1130 = vcmp.eq.s32.totalorder %v951, %v897
  %vm1131 = vcmp.eq.s32.totalorder %v951, %v898
  %vm1132 = vcmp.eq.s32.totalorder %v952, %v897
  %vm1133 = vcmp.eq.s32.totalorder %v952, %v898
  %vm1134 = vcmp.eq.s32.totalorder %v953, %v897
  %vm1135 = vcmp.eq.s32.totalorder %v953, %v898
  %vm1136 = vcmp.eq.s32.totalorder %v954, %v897
  %vm1137 = vcmp.eq.s32.totalorder %v954, %v898
  %vm1138 = vcmp.eq.s32.totalorder %v955, %v897
  %vm1139 = vcmp.eq.s32.totalorder %v955, %v898
  %vm1140 = vcmp.eq.s32.totalorder %v956, %v897
  %vm1141 = vcmp.eq.s32.totalorder %v956, %v898
  %vm1142 = vcmp.eq.s32.totalorder %v957, %v897
  %vm1143 = vcmp.eq.s32.totalorder %v957, %v898
  %vm1144 = vcmp.eq.s32.totalorder %v958, %v897
  %vm1145 = vcmp.eq.s32.totalorder %v958, %v898
  %vm1146 = vcmp.eq.s32.totalorder %v959, %v897
  %vm1147 = vcmp.eq.s32.totalorder %v959, %v898
  %vm1148 = vcmp.eq.s32.totalorder %v960, %v897
  %vm1149 = vcmp.eq.s32.totalorder %v960, %v898
  %vm1150 = vcmp.eq.s32.totalorder %v961, %v897
  %vm1151 = vcmp.eq.s32.totalorder %v961, %v898
  %vm1152 = vcmp.eq.s32.totalorder %v962, %v897
  %vm1153 = vcmp.eq.s32.totalorder %v962, %v898
  %vm1154 = vcmp.eq.s32.totalorder %v963, %v897
  %vm1155 = vcmp.eq.s32.totalorder %v963, %v898
  %vm1156 = vcmp.eq.s32.totalorder %v964, %v897
  %vm1157 = vcmp.eq.s32.totalorder %v964, %v898
  %vm1158 = vcmp.eq.s32.totalorder %v965, %v897
  %vm1159 = vcmp.eq.s32.totalorder %v965, %v898
  %vm1160 = vcmp.eq.s32.totalorder %v966, %v897
  %vm1161 = vcmp.eq.s32.totalorder %v966, %v898
  %vm1162 = vcmp.eq.s32.totalorder %v967, %v897
  %vm1163 = vcmp.eq.s32.totalorder %v967, %v898
  %vm1164 = vcmp.eq.s32.totalorder %v968, %v897
  %vm1165 = vcmp.eq.s32.totalorder %v968, %v898
  %vm1166 = vcmp.eq.s32.totalorder %v969, %v897
  %vm1167 = vcmp.eq.s32.totalorder %v969, %v898
  %vm1168 = vcmp.eq.s32.totalorder %v970, %v897
  %vm1169 = vcmp.eq.s32.totalorder %v970, %v898
  %vm1170 = vcmp.eq.s32.totalorder %v971, %v897
  %vm1171 = vcmp.eq.s32.totalorder %v971, %v898
  %vm1172 = vcmp.eq.s32.totalorder %v972, %v897
  %vm1173 = vcmp.eq.s32.totalorder %v972, %v898
  %vm1174 = vcmp.eq.s32.totalorder %v973, %v897
  %vm1175 = vcmp.eq.s32.totalorder %v973, %v898
  %vm1176 = vcmp.eq.s32.totalorder %v974, %v897
  %vm1177 = vcmp.eq.s32.totalorder %v974, %v898
  %vm1178 = vcmp.eq.s32.totalorder %v975, %v897
  %vm1179 = vcmp.eq.s32.totalorder %v975, %v898
  %vm1180 = vcmp.eq.s32.totalorder %v976, %v897
  %vm1181 = vcmp.eq.s32.totalorder %v976, %v898
  %vm1182 = vcmp.eq.s32.totalorder %v977, %v897
  %vm1183 = vcmp.eq.s32.totalorder %v977, %v898
  %vm1184 = vcmp.eq.s32.totalorder %v978, %v897
  %vm1185 = vcmp.eq.s32.totalorder %v978, %v898
  %vm1186 = vcmp.eq.s32.totalorder %v979, %v897
  %vm1187 = vcmp.eq.s32.totalorder %v979, %v898
  %vm1188 = vcmp.eq.s32.totalorder %v980, %v897
  %vm1189 = vcmp.eq.s32.totalorder %v980, %v898
  %vm1190 = vcmp.eq.s32.totalorder %v981, %v897
  %vm1191 = vcmp.eq.s32.totalorder %v981, %v898
  %vm1192 = vcmp.eq.s32.totalorder %v982, %v897
  %vm1193 = vcmp.eq.s32.totalorder %v982, %v898
  %vm1194 = vcmp.eq.s32.totalorder %v983, %v897
  %vm1195 = vcmp.eq.s32.totalorder %v983, %v898
  %vm1196 = vcmp.eq.s32.totalorder %v984, %v897
  %vm1197 = vcmp.eq.s32.totalorder %v984, %v898
  %vm1198 = vcmp.eq.s32.totalorder %v985, %v897
  %vm1199 = vcmp.eq.s32.totalorder %v985, %v898
  %vm1200 = vcmp.eq.s32.totalorder %v986, %v897
  %vm1201 = vcmp.eq.s32.totalorder %v986, %v898
  %vm1202 = vcmp.eq.s32.totalorder %v987, %v897
  %vm1203 = vcmp.eq.s32.totalorder %v987, %v898
  %vm1204 = vcmp.eq.s32.totalorder %v988, %v897
  %vm1205 = vcmp.eq.s32.totalorder %v988, %v898
  %vm1206 = vcmp.eq.s32.totalorder %v989, %v897
  %vm1207 = vcmp.eq.s32.totalorder %v989, %v898
  %vm1208 = vcmp.eq.s32.totalorder %v990, %v897
  %vm1209 = vcmp.eq.s32.totalorder %v990, %v898
  %vm1210 = vcmp.eq.s32.totalorder %v991, %v897
  %vm1211 = vcmp.eq.s32.totalorder %v991, %v898
  %vm1212 = vcmp.eq.s32.totalorder %v992, %v897
  %vm1213 = vcmp.eq.s32.totalorder %v992, %v898
  %vm1214 = vcmp.eq.s32.totalorder %v993, %v897
  %vm1215 = vcmp.eq.s32.totalorder %v993, %v898
  %vm1216 = vcmp.eq.s32.totalorder %v994, %v897
  %vm1217 = vcmp.eq.s32.totalorder %v994, %v898
  %vm1218 = vcmp.eq.s32.totalorder %v995, %v897
  %vm1219 = vcmp.eq.s32.totalorder %v995, %v898
  %vm1220 = vcmp.eq.s32.totalorder %v996, %v897
  %vm1221 = vcmp.eq.s32.totalorder %v996, %v898
  %vm1222 = vcmp.eq.s32.totalorder %v997, %v897
  %vm1223 = vcmp.eq.s32.totalorder %v997, %v898
  %vm1224 = vcmp.eq.s32.totalorder %v998, %v897
  %vm1225 = vcmp.eq.s32.totalorder %v998, %v898
  %vm1226 = vcmp.eq.s32.totalorder %v999, %v897
  %vm1227 = vcmp.eq.s32.totalorder %v999, %v898
  %vm1228 = vcmp.eq.s32.totalorder %v1000, %v897
  %vm1229 = vcmp.eq.s32.totalorder %v1000, %v898
  %vm1230 = vcmp.eq.s32.totalorder %v1001, %v897
  %vm1231 = vcmp.eq.s32.totalorder %v1001, %v898
  %vm1232 = vcmp.eq.s32.totalorder %v1002, %v897
  %vm1233 = vcmp.eq.s32.totalorder %v1002, %v898
  %vm1234 = vcmp.eq.s32.totalorder %v1003, %v897
  %vm1235 = vcmp.eq.s32.totalorder %v1003, %v898
  %vm1236 = vcmp.eq.s32.totalorder %v1004, %v897
  %vm1237 = vcmp.eq.s32.totalorder %v1004, %v898
  %vm1238 = vcmp.eq.s32.totalorder %v1005, %v897
  %vm1239 = vcmp.eq.s32.totalorder %v1005, %v898
  %vm1240 = vcmp.eq.s32.totalorder %v1006, %v897
  %vm1241 = vcmp.eq.s32.totalorder %v1006, %v898
  %vm1242 = vcmp.eq.s32.totalorder %v1007, %v897
  %vm1243 = vcmp.eq.s32.totalorder %v1007, %v898
  %vm1244 = vcmp.eq.s32.totalorder %v1008, %v897
  %vm1245 = vcmp.eq.s32.totalorder %v1008, %v898
  %vm1246 = vcmp.eq.s32.totalorder %v1009, %v897
  %vm1247 = vcmp.eq.s32.totalorder %v1009, %v898
  %vm1248 = vcmp.eq.s32.totalorder %v1010, %v897
  %vm1249 = vcmp.eq.s32.totalorder %v1010, %v898
  %vm1250 = vcmp.eq.s32.totalorder %v1011, %v897
  %vm1251 = vcmp.eq.s32.totalorder %v1011, %v898
  %vm1252 = vcmp.eq.s32.totalorder %v1012, %v897
  %vm1253 = vcmp.eq.s32.totalorder %v1012, %v898
  %vm1254 = vcmp.eq.s32.totalorder %v1013, %v897
  %vm1255 = vcmp.eq.s32.totalorder %v1013, %v898
  %vm1256 = vcmp.eq.s32.totalorder %v1014, %v897
  %vm1257 = vcmp.eq.s32.totalorder %v1014, %v898
  %vm1258 = vcmp.eq.s32.totalorder %v1015, %v897
  %vm1259 = vcmp.eq.s32.totalorder %v1015, %v898
  %vm1260 = vcmp.eq.s32.totalorder %v1016, %v897
  %vm1261 = vcmp.eq.s32.totalorder %v1016, %v898
  %vm1262 = vcmp.eq.s32.totalorder %v1017, %v897
  %vm1263 = vcmp.eq.s32.totalorder %v1017, %v898
  %vm1264 = vcmp.eq.s32.totalorder %v1018, %v897
  %vm1265 = vcmp.eq.s32.totalorder %v1018, %v898
  %vm1266 = vcmp.eq.s32.totalorder %v1019, %v897
  %vm1267 = vcmp.eq.s32.totalorder %v1019, %v898
  %vm1268 = vcmp.eq.s32.totalorder %v1020, %v897
  %vm1269 = vcmp.eq.s32.totalorder %v1020, %v898
  %vm1270 = vcmp.eq.s32.totalorder %v1021, %v897
  %vm1271 = vcmp.eq.s32.totalorder %v1021, %v898
  %vm1272 = vcmp.eq.s32.totalorder %v1022, %v897
  %vm1273 = vcmp.eq.s32.totalorder %v1022, %v898
  %vm1274 = vcmp.eq.s32.totalorder %v1023, %v897
  %vm1275 = vcmp.eq.s32.totalorder %v1023, %v898
  %vm1276 = vcmp.eq.s32.totalorder %v1024, %v897
  %vm1277 = vcmp.eq.s32.totalorder %v1024, %v898
  %vm1278 = vcmp.eq.s32.totalorder %v1025, %v897
  %vm1279 = vcmp.eq.s32.totalorder %v1025, %v898
  %vm1280 = vcmp.eq.s32.totalorder %v1026, %v897
  %vm1281 = vcmp.eq.s32.totalorder %v1026, %v898
  %vm1282 = vcmp.eq.s32.totalorder %v1027, %v897
  %vm1283 = vcmp.eq.s32.totalorder %v1027, %v898
  %v1284 = vsel %vm1028, 1.0, 0.0
  %v1285 = vsel %vm1029, 1.0, 0.0
  %v1286 = vsel %vm1030, 1.0, 0.0
  %v1287 = vsel %vm1031, 1.0, 0.0
  %v1288 = vsel %vm1032, 1.0, 0.0
  %v1289 = vsel %vm1033, 1.0, 0.0
  %v1290 = vsel %vm1034, 1.0, 0.0
  %v1291 = vsel %vm1035, 1.0, 0.0
  %v1292 = vsel %vm1036, 1.0, 0.0
  %v1293 = vsel %vm1037, 1.0, 0.0
  %v1294 = vsel %vm1038, 1.0, 0.0
  %v1295 = vsel %vm1039, 1.0, 0.0
  %v1296 = vsel %vm1040, 1.0, 0.0
  %v1297 = vsel %vm1041, 1.0, 0.0
  %v1298 = vsel %vm1042, 1.0, 0.0
  %v1299 = vsel %vm1043, 1.0, 0.0
  %v1300 = vsel %vm1044, 1.0, 0.0
  %v1301 = vsel %vm1045, 1.0, 0.0
  %v1302 = vsel %vm1046, 1.0, 0.0
  %v1303 = vsel %vm1047, 1.0, 0.0
  %v1304 = vsel %vm1048, 1.0, 0.0
  %v1305 = vsel %vm1049, 1.0, 0.0
  %v1306 = vsel %vm1050, 1.0, 0.0
  %v1307 = vsel %vm1051, 1.0, 0.0
  %v1308 = vsel %vm1052, 1.0, 0.0
  %v1309 = vsel %vm1053, 1.0, 0.0
  %v1310 = vsel %vm1054, 1.0, 0.0
  %v1311 = vsel %vm1055, 1.0, 0.0
  %v1312 = vsel %vm1056, 1.0, 0.0
  %v1313 = vsel %vm1057, 1.0, 0.0
  %v1314 = vsel %vm1058, 1.0, 0.0
  %v1315 = vsel %vm1059, 1.0, 0.0
  %v1316 = vsel %vm1060, 1.0, 0.0
  %v1317 = vsel %vm1061, 1.0, 0.0
  %v1318 = vsel %vm1062, 1.0, 0.0
  %v1319 = vsel %vm1063, 1.0, 0.0
  %v1320 = vsel %vm1064, 1.0, 0.0
  %v1321 = vsel %vm1065, 1.0, 0.0
  %v1322 = vsel %vm1066, 1.0, 0.0
  %v1323 = vsel %vm1067, 1.0, 0.0
  %v1324 = vsel %vm1068, 1.0, 0.0
  %v1325 = vsel %vm1069, 1.0, 0.0
  %v1326 = vsel %vm1070, 1.0, 0.0
  %v1327 = vsel %vm1071, 1.0, 0.0
  %v1328 = vsel %vm1072, 1.0, 0.0
  %v1329 = vsel %vm1073, 1.0, 0.0
  %v1330 = vsel %vm1074, 1.0, 0.0
  %v1331 = vsel %vm1075, 1.0, 0.0
  %v1332 = vsel %vm1076, 1.0, 0.0
  %v1333 = vsel %vm1077, 1.0, 0.0
  %v1334 = vsel %vm1078, 1.0, 0.0
  %v1335 = vsel %vm1079, 1.0, 0.0
  %v1336 = vsel %vm1080, 1.0, 0.0
  %v1337 = vsel %vm1081, 1.0, 0.0
  %v1338 = vsel %vm1082, 1.0, 0.0
  %v1339 = vsel %vm1083, 1.0, 0.0
  %v1340 = vsel %vm1084, 1.0, 0.0
  %v1341 = vsel %vm1085, 1.0, 0.0
  %v1342 = vsel %vm1086, 1.0, 0.0
  %v1343 = vsel %vm1087, 1.0, 0.0
  %v1344 = vsel %vm1088, 1.0, 0.0
  %v1345 = vsel %vm1089, 1.0, 0.0
  %v1346 = vsel %vm1090, 1.0, 0.0
  %v1347 = vsel %vm1091, 1.0, 0.0
  %v1348 = vsel %vm1092, 1.0, 0.0
  %v1349 = vsel %vm1093, 1.0, 0.0
  %v1350 = vsel %vm1094, 1.0, 0.0
  %v1351 = vsel %vm1095, 1.0, 0.0
  %v1352 = vsel %vm1096, 1.0, 0.0
  %v1353 = vsel %vm1097, 1.0, 0.0
  %v1354 = vsel %vm1098, 1.0, 0.0
  %v1355 = vsel %vm1099, 1.0, 0.0
  %v1356 = vsel %vm1100, 1.0, 0.0
  %v1357 = vsel %vm1101, 1.0, 0.0
  %v1358 = vsel %vm1102, 1.0, 0.0
  %v1359 = vsel %vm1103, 1.0, 0.0
  %v1360 = vsel %vm1104, 1.0, 0.0
  %v1361 = vsel %vm1105, 1.0, 0.0
  %v1362 = vsel %vm1106, 1.0, 0.0
  %v1363 = vsel %vm1107, 1.0, 0.0
  %v1364 = vsel %vm1108, 1.0, 0.0
  %v1365 = vsel %vm1109, 1.0, 0.0
  %v1366 = vsel %vm1110, 1.0, 0.0
  %v1367 = vsel %vm1111, 1.0, 0.0
  %v1368 = vsel %vm1112, 1.0, 0.0
  %v1369 = vsel %vm1113, 1.0, 0.0
  %v1370 = vsel %vm1114, 1.0, 0.0
  %v1371 = vsel %vm1115, 1.0, 0.0
  %v1372 = vsel %vm1116, 1.0, 0.0
  %v1373 = vsel %vm1117, 1.0, 0.0
  %v1374 = vsel %vm1118, 1.0, 0.0
  %v1375 = vsel %vm1119, 1.0, 0.0
  %v1376 = vsel %vm1120, 1.0, 0.0
  %v1377 = vsel %vm1121, 1.0, 0.0
  %v1378 = vsel %vm1122, 1.0, 0.0
  %v1379 = vsel %vm1123, 1.0, 0.0
  %v1380 = vsel %vm1124, 1.0, 0.0
  %v1381 = vsel %vm1125, 1.0, 0.0
  %v1382 = vsel %vm1126, 1.0, 0.0
  %v1383 = vsel %vm1127, 1.0, 0.0
  %v1384 = vsel %vm1128, 1.0, 0.0
  %v1385 = vsel %vm1129, 1.0, 0.0
  %v1386 = vsel %vm1130, 1.0, 0.0
  %v1387 = vsel %vm1131, 1.0, 0.0
  %v1388 = vsel %vm1132, 1.0, 0.0
  %v1389 = vsel %vm1133, 1.0, 0.0
  %v1390 = vsel %vm1134, 1.0, 0.0
  %v1391 = vsel %vm1135, 1.0, 0.0
  %v1392 = vsel %vm1136, 1.0, 0.0
  %v1393 = vsel %vm1137, 1.0, 0.0
  %v1394 = vsel %vm1138, 1.0, 0.0
  %v1395 = vsel %vm1139, 1.0, 0.0
  %v1396 = vsel %vm1140, 1.0, 0.0
  %v1397 = vsel %vm1141, 1.0, 0.0
  %v1398 = vsel %vm1142, 1.0, 0.0
  %v1399 = vsel %vm1143, 1.0, 0.0
  %v1400 = vsel %vm1144, 1.0, 0.0
  %v1401 = vsel %vm1145, 1.0, 0.0
  %v1402 = vsel %vm1146, 1.0, 0.0
  %v1403 = vsel %vm1147, 1.0, 0.0
  %v1404 = vsel %vm1148, 1.0, 0.0
  %v1405 = vsel %vm1149, 1.0, 0.0
  %v1406 = vsel %vm1150, 1.0, 0.0
  %v1407 = vsel %vm1151, 1.0, 0.0
  %v1408 = vsel %vm1152, 1.0, 0.0
  %v1409 = vsel %vm1153, 1.0, 0.0
  %v1410 = vsel %vm1154, 1.0, 0.0
  %v1411 = vsel %vm1155, 1.0, 0.0
  %v1412 = vsel %vm1156, 1.0, 0.0
  %v1413 = vsel %vm1157, 1.0, 0.0
  %v1414 = vsel %vm1158, 1.0, 0.0
  %v1415 = vsel %vm1159, 1.0, 0.0
  %v1416 = vsel %vm1160, 1.0, 0.0
  %v1417 = vsel %vm1161, 1.0, 0.0
  %v1418 = vsel %vm1162, 1.0, 0.0
  %v1419 = vsel %vm1163, 1.0, 0.0
  %v1420 = vsel %vm1164, 1.0, 0.0
  %v1421 = vsel %vm1165, 1.0, 0.0
  %v1422 = vsel %vm1166, 1.0, 0.0
  %v1423 = vsel %vm1167, 1.0, 0.0
  %v1424 = vsel %vm1168, 1.0, 0.0
  %v1425 = vsel %vm1169, 1.0, 0.0
  %v1426 = vsel %vm1170, 1.0, 0.0
  %v1427 = vsel %vm1171, 1.0, 0.0
  %v1428 = vsel %vm1172, 1.0, 0.0
  %v1429 = vsel %vm1173, 1.0, 0.0
  %v1430 = vsel %vm1174, 1.0, 0.0
  %v1431 = vsel %vm1175, 1.0, 0.0
  %v1432 = vsel %vm1176, 1.0, 0.0
  %v1433 = vsel %vm1177, 1.0, 0.0
  %v1434 = vsel %vm1178, 1.0, 0.0
  %v1435 = vsel %vm1179, 1.0, 0.0
  %v1436 = vsel %vm1180, 1.0, 0.0
  %v1437 = vsel %vm1181, 1.0, 0.0
  %v1438 = vsel %vm1182, 1.0, 0.0
  %v1439 = vsel %vm1183, 1.0, 0.0
  %v1440 = vsel %vm1184, 1.0, 0.0
  %v1441 = vsel %vm1185, 1.0, 0.0
  %v1442 = vsel %vm1186, 1.0, 0.0
  %v1443 = vsel %vm1187, 1.0, 0.0
  %v1444 = vsel %vm1188, 1.0, 0.0
  %v1445 = vsel %vm1189, 1.0, 0.0
  %v1446 = vsel %vm1190, 1.0, 0.0
  %v1447 = vsel %vm1191, 1.0, 0.0
  %v1448 = vsel %vm1192, 1.0, 0.0
  %v1449 = vsel %vm1193, 1.0, 0.0
  %v1450 = vsel %vm1194, 1.0, 0.0
  %v1451 = vsel %vm1195, 1.0, 0.0
  %v1452 = vsel %vm1196, 1.0, 0.0
  %v1453 = vsel %vm1197, 1.0, 0.0
  %v1454 = vsel %vm1198, 1.0, 0.0
  %v1455 = vsel %vm1199, 1.0, 0.0
  %v1456 = vsel %vm1200, 1.0, 0.0
  %v1457 = vsel %vm1201, 1.0, 0.0
  %v1458 = vsel %vm1202, 1.0, 0.0
  %v1459 = vsel %vm1203, 1.0, 0.0
  %v1460 = vsel %vm1204, 1.0, 0.0
  %v1461 = vsel %vm1205, 1.0, 0.0
  %v1462 = vsel %vm1206, 1.0, 0.0
  %v1463 = vsel %vm1207, 1.0, 0.0
  %v1464 = vsel %vm1208, 1.0, 0.0
  %v1465 = vsel %vm1209, 1.0, 0.0
  %v1466 = vsel %vm1210, 1.0, 0.0
  %v1467 = vsel %vm1211, 1.0, 0.0
  %v1468 = vsel %vm1212, 1.0, 0.0
  %v1469 = vsel %vm1213, 1.0, 0.0
  %v1470 = vsel %vm1214, 1.0, 0.0
  %v1471 = vsel %vm1215, 1.0, 0.0
  %v1472 = vsel %vm1216, 1.0, 0.0
  %v1473 = vsel %vm1217, 1.0, 0.0
  %v1474 = vsel %vm1218, 1.0, 0.0
  %v1475 = vsel %vm1219, 1.0, 0.0
  %v1476 = vsel %vm1220, 1.0, 0.0
  %v1477 = vsel %vm1221, 1.0, 0.0
  %v1478 = vsel %vm1222, 1.0, 0.0
  %v1479 = vsel %vm1223, 1.0, 0.0
  %v1480 = vsel %vm1224, 1.0, 0.0
  %v1481 = vsel %vm1225, 1.0, 0.0
  %v1482 = vsel %vm1226, 1.0, 0.0
  %v1483 = vsel %vm1227, 1.0, 0.0
  %v1484 = vsel %vm1228, 1.0, 0.0
  %v1485 = vsel %vm1229, 1.0, 0.0
  %v1486 = vsel %vm1230, 1.0, 0.0
  %v1487 = vsel %vm1231, 1.0, 0.0
  %v1488 = vsel %vm1232, 1.0, 0.0
  %v1489 = vsel %vm1233, 1.0, 0.0
  %v1490 = vsel %vm1234, 1.0, 0.0
  %v1491 = vsel %vm1235, 1.0, 0.0
  %v1492 = vsel %vm1236, 1.0, 0.0
  %v1493 = vsel %vm1237, 1.0, 0.0
  %v1494 = vsel %vm1238, 1.0, 0.0
  %v1495 = vsel %vm1239, 1.0, 0.0
  %v1496 = vsel %vm1240, 1.0, 0.0
  %v1497 = vsel %vm1241, 1.0, 0.0
  %v1498 = vsel %vm1242, 1.0, 0.0
  %v1499 = vsel %vm1243, 1.0, 0.0
  %v1500 = vsel %vm1244, 1.0, 0.0
  %v1501 = vsel %vm1245, 1.0, 0.0
  %v1502 = vsel %vm1246, 1.0, 0.0
  %v1503 = vsel %vm1247, 1.0, 0.0
  %v1504 = vsel %vm1248, 1.0, 0.0
  %v1505 = vsel %vm1249, 1.0, 0.0
  %v1506 = vsel %vm1250, 1.0, 0.0
  %v1507 = vsel %vm1251, 1.0, 0.0
  %v1508 = vsel %vm1252, 1.0, 0.0
  %v1509 = vsel %vm1253, 1.0, 0.0
  %v1510 = vsel %vm1254, 1.0, 0.0
  %v1511 = vsel %vm1255, 1.0, 0.0
  %v1512 = vsel %vm1256, 1.0, 0.0
  %v1513 = vsel %vm1257, 1.0, 0.0
  %v1514 = vsel %vm1258, 1.0, 0.0
  %v1515 = vsel %vm1259, 1.0, 0.0
  %v1516 = vsel %vm1260, 1.0, 0.0
  %v1517 = vsel %vm1261, 1.0, 0.0
  %v1518 = vsel %vm1262, 1.0, 0.0
  %v1519 = vsel %vm1263, 1.0, 0.0
  %v1520 = vsel %vm1264, 1.0, 0.0
  %v1521 = vsel %vm1265, 1.0, 0.0
  %v1522 = vsel %vm1266, 1.0, 0.0
  %v1523 = vsel %vm1267, 1.0, 0.0
  %v1524 = vsel %vm1268, 1.0, 0.0
  %v1525 = vsel %vm1269, 1.0, 0.0
  %v1526 = vsel %vm1270, 1.0, 0.0
  %v1527 = vsel %vm1271, 1.0, 0.0
  %v1528 = vsel %vm1272, 1.0, 0.0
  %v1529 = vsel %vm1273, 1.0, 0.0
  %v1530 = vsel %vm1274, 1.0, 0.0
  %v1531 = vsel %vm1275, 1.0, 0.0
  %v1532 = vsel %vm1276, 1.0, 0.0
  %v1533 = vsel %vm1277, 1.0, 0.0
  %v1534 = vsel %vm1278, 1.0, 0.0
  %v1535 = vsel %vm1279, 1.0, 0.0
  %v1536 = vsel %vm1280, 1.0, 0.0
  %v1537 = vsel %vm1281, 1.0, 0.0
  %v1538 = vsel %vm1282, 1.0, 0.0
  %v1539 = vsel %vm1283, 1.0, 0.0
  %v1540 = vpack.c.bf16 %v1286, %v1284
  %v1541 = vpack.c.bf16 %v1287, %v1285
  %v1542 = vpack.c.bf16 %v1290, %v1288
  %v1543 = vpack.c.bf16 %v1291, %v1289
  %v1544 = vpack.c.bf16 %v1294, %v1292
  %v1545 = vpack.c.bf16 %v1295, %v1293
  %v1546 = vpack.c.bf16 %v1298, %v1296
  %v1547 = vpack.c.bf16 %v1299, %v1297
  %v1548 = vpack.c.bf16 %v1302, %v1300
  %v1549 = vpack.c.bf16 %v1303, %v1301
  %v1550 = vpack.c.bf16 %v1306, %v1304
  %v1551 = vpack.c.bf16 %v1307, %v1305
  %v1552 = vpack.c.bf16 %v1310, %v1308
  %v1553 = vpack.c.bf16 %v1311, %v1309
  %v1554 = vpack.c.bf16 %v1314, %v1312
  %v1555 = vpack.c.bf16 %v1315, %v1313
  %v1556 = vpack.c.bf16 %v1318, %v1316
  %v1557 = vpack.c.bf16 %v1319, %v1317
  %v1558 = vpack.c.bf16 %v1322, %v1320
  %v1559 = vpack.c.bf16 %v1323, %v1321
  %v1560 = vpack.c.bf16 %v1326, %v1324
  %v1561 = vpack.c.bf16 %v1327, %v1325
  %v1562 = vpack.c.bf16 %v1330, %v1328
  %v1563 = vpack.c.bf16 %v1331, %v1329
  %v1564 = vpack.c.bf16 %v1334, %v1332
  %v1565 = vpack.c.bf16 %v1335, %v1333
  %v1566 = vpack.c.bf16 %v1338, %v1336
  %v1567 = vpack.c.bf16 %v1339, %v1337
  %v1568 = vpack.c.bf16 %v1342, %v1340
  %v1569 = vpack.c.bf16 %v1343, %v1341
  %v1570 = vpack.c.bf16 %v1346, %v1344
  %v1571 = vpack.c.bf16 %v1347, %v1345
  %v1572 = vpack.c.bf16 %v1350, %v1348
  %v1573 = vpack.c.bf16 %v1351, %v1349
  %v1574 = vpack.c.bf16 %v1354, %v1352
  %v1575 = vpack.c.bf16 %v1355, %v1353
  %v1576 = vpack.c.bf16 %v1358, %v1356
  %v1577 = vpack.c.bf16 %v1359, %v1357
  %v1578 = vpack.c.bf16 %v1362, %v1360
  %v1579 = vpack.c.bf16 %v1363, %v1361
  %v1580 = vpack.c.bf16 %v1366, %v1364
  %v1581 = vpack.c.bf16 %v1367, %v1365
  %v1582 = vpack.c.bf16 %v1370, %v1368
  %v1583 = vpack.c.bf16 %v1371, %v1369
  %v1584 = vpack.c.bf16 %v1374, %v1372
  %v1585 = vpack.c.bf16 %v1375, %v1373
  %v1586 = vpack.c.bf16 %v1378, %v1376
  %v1587 = vpack.c.bf16 %v1379, %v1377
  %v1588 = vpack.c.bf16 %v1382, %v1380
  %v1589 = vpack.c.bf16 %v1383, %v1381
  %v1590 = vpack.c.bf16 %v1386, %v1384
  %v1591 = vpack.c.bf16 %v1387, %v1385
  %v1592 = vpack.c.bf16 %v1390, %v1388
  %v1593 = vpack.c.bf16 %v1391, %v1389
  %v1594 = vpack.c.bf16 %v1394, %v1392
  %v1595 = vpack.c.bf16 %v1395, %v1393
  %v1596 = vpack.c.bf16 %v1398, %v1396
  %v1597 = vpack.c.bf16 %v1399, %v1397
  %v1598 = vpack.c.bf16 %v1402, %v1400
  %v1599 = vpack.c.bf16 %v1403, %v1401
  %v1600 = vpack.c.bf16 %v1406, %v1404
  %v1601 = vpack.c.bf16 %v1407, %v1405
  %v1602 = vpack.c.bf16 %v1410, %v1408
  %v1603 = vpack.c.bf16 %v1411, %v1409
  %v1604 = vpack.c.bf16 %v1414, %v1412
  %v1605 = vpack.c.bf16 %v1415, %v1413
  %v1606 = vpack.c.bf16 %v1418, %v1416
  %v1607 = vpack.c.bf16 %v1419, %v1417
  %v1608 = vpack.c.bf16 %v1422, %v1420
  %v1609 = vpack.c.bf16 %v1423, %v1421
  %v1610 = vpack.c.bf16 %v1426, %v1424
  %v1611 = vpack.c.bf16 %v1427, %v1425
  %v1612 = vpack.c.bf16 %v1430, %v1428
  %v1613 = vpack.c.bf16 %v1431, %v1429
  %v1614 = vpack.c.bf16 %v1434, %v1432
  %v1615 = vpack.c.bf16 %v1435, %v1433
  %v1616 = vpack.c.bf16 %v1438, %v1436
  %v1617 = vpack.c.bf16 %v1439, %v1437
  %v1618 = vpack.c.bf16 %v1442, %v1440
  %v1619 = vpack.c.bf16 %v1443, %v1441
  %v1620 = vpack.c.bf16 %v1446, %v1444
  %v1621 = vpack.c.bf16 %v1447, %v1445
  %v1622 = vpack.c.bf16 %v1450, %v1448
  %v1623 = vpack.c.bf16 %v1451, %v1449
  %v1624 = vpack.c.bf16 %v1454, %v1452
  %v1625 = vpack.c.bf16 %v1455, %v1453
  %v1626 = vpack.c.bf16 %v1458, %v1456
  %v1627 = vpack.c.bf16 %v1459, %v1457
  %v1628 = vpack.c.bf16 %v1462, %v1460
  %v1629 = vpack.c.bf16 %v1463, %v1461
  %v1630 = vpack.c.bf16 %v1466, %v1464
  %v1631 = vpack.c.bf16 %v1467, %v1465
  %v1632 = vpack.c.bf16 %v1470, %v1468
  %v1633 = vpack.c.bf16 %v1471, %v1469
  %v1634 = vpack.c.bf16 %v1474, %v1472
  %v1635 = vpack.c.bf16 %v1475, %v1473
  %v1636 = vpack.c.bf16 %v1478, %v1476
  %v1637 = vpack.c.bf16 %v1479, %v1477
  %v1638 = vpack.c.bf16 %v1482, %v1480
  %v1639 = vpack.c.bf16 %v1483, %v1481
  %v1640 = vpack.c.bf16 %v1486, %v1484
  %v1641 = vpack.c.bf16 %v1487, %v1485
  %v1642 = vpack.c.bf16 %v1490, %v1488
  %v1643 = vpack.c.bf16 %v1491, %v1489
  %v1644 = vpack.c.bf16 %v1494, %v1492
  %v1645 = vpack.c.bf16 %v1495, %v1493
  %v1646 = vpack.c.bf16 %v1498, %v1496
  %v1647 = vpack.c.bf16 %v1499, %v1497
  %v1648 = vpack.c.bf16 %v1502, %v1500
  %v1649 = vpack.c.bf16 %v1503, %v1501
  %v1650 = vpack.c.bf16 %v1506, %v1504
  %v1651 = vpack.c.bf16 %v1507, %v1505
  %v1652 = vpack.c.bf16 %v1510, %v1508
  %v1653 = vpack.c.bf16 %v1511, %v1509
  %v1654 = vpack.c.bf16 %v1514, %v1512
  %v1655 = vpack.c.bf16 %v1515, %v1513
  %v1656 = vpack.c.bf16 %v1518, %v1516
  %v1657 = vpack.c.bf16 %v1519, %v1517
  %v1658 = vpack.c.bf16 %v1522, %v1520
  %v1659 = vpack.c.bf16 %v1523, %v1521
  %v1660 = vpack.c.bf16 %v1526, %v1524
  %v1661 = vpack.c.bf16 %v1527, %v1525
  %v1662 = vpack.c.bf16 %v1530, %v1528
  %v1663 = vpack.c.bf16 %v1531, %v1529
  %v1664 = vpack.c.bf16 %v1534, %v1532
  %v1665 = vpack.c.bf16 %v1535, %v1533
  %v1666 = vpack.c.bf16 %v1538, %v1536
  %v1667 = vpack.c.bf16 %v1539, %v1537
  %1668 = vmatprep.subr.bf16.mxu0 %v1541
  %1669 = vmatpush1.bf16.msra.mxu0 %v1540
  %1670 = vmatprep.subr.bf16.mxu0 %v1543
  %1671 = vmatpush1.bf16.msra.mxu0 %v1542
  %1672 = vmatprep.subr.bf16.mxu0 %v1545
  %1673 = vmatpush1.bf16.msra.mxu0 %v1544
  %1674 = vmatprep.subr.bf16.mxu0 %v1547
  %1675 = vmatpush1.bf16.msra.mxu0 %v1546
  %1676 = vmatprep.subr.bf16.mxu0 %v1549
  %1677 = vmatpush1.bf16.msra.mxu0 %v1548
  %1678 = vmatprep.subr.bf16.mxu0 %v1551
  %1679 = vmatpush1.bf16.msra.mxu0 %v1550
  %1680 = vmatprep.subr.bf16.mxu0 %v1553
  %1681 = vmatpush1.bf16.msra.mxu0 %v1552
  %1682 = vmatprep.subr.bf16.mxu0 %v1555
  %1683 = vmatpush1.bf16.msra.mxu0 %v1554
  %1684 = vmatprep.subr.bf16.mxu0 %v1557
  %1685 = vmatpush1.bf16.msra.mxu0 %v1556
  %1686 = vmatprep.subr.bf16.mxu0 %v1559
  %1687 = vmatpush1.bf16.msra.mxu0 %v1558
  %1688 = vmatprep.subr.bf16.mxu0 %v1561
  %1689 = vmatpush1.bf16.msra.mxu0 %v1560
  %1690 = vmatprep.subr.bf16.mxu0 %v1563
  %1691 = vmatpush1.bf16.msra.mxu0 %v1562
  %1692 = vmatprep.subr.bf16.mxu0 %v1565
  %1693 = vmatpush1.bf16.msra.mxu0 %v1564
  %1694 = vmatprep.subr.bf16.mxu0 %v1567
  %1695 = vmatpush1.bf16.msra.mxu0 %v1566
  %1696 = vmatprep.subr.bf16.mxu0 %v1569
  %1697 = vmatpush1.bf16.msra.mxu0 %v1568
  %1698 = vmatprep.subr.bf16.mxu0 %v1571
  %1699 = vmatpush1.bf16.msra.mxu0 %v1570
  %1700 = vmatprep.mubr.bf16.mxu0 %v884
  %1701 = vmatmul.mubr.bf16.gmra.mrb[0].mxu0 %v883
  %v1702 = vpop.f32.mrb[0].mxu0
  %v1703 = vadd.f32 0.0, %v1702
  %v1704 = vpop.f32.mrb[0].mxu0
  %v1705 = vadd.f32 0.0, %v1704
  %v1706 = vpop.f32.mrb[0].mxu0
  %v1707 = vadd.f32 0.0, %v1706
  %v1708 = vpop.f32.mrb[0].mxu0
  %v1709 = vadd.f32 0.0, %v1708
  %1710 = vdwg.mxu0
  %1711 = vmatprep.subr.bf16.mxu0 %v1573
  %1712 = vmatpush1.bf16.msra.mxu0 %v1572
  %1713 = vmatprep.subr.bf16.mxu0 %v1575
  %1714 = vmatpush1.bf16.msra.mxu0 %v1574
  %1715 = vmatprep.subr.bf16.mxu0 %v1577
  %1716 = vmatpush1.bf16.msra.mxu0 %v1576
  %1717 = vmatprep.subr.bf16.mxu0 %v1579
  %1718 = vmatpush1.bf16.msra.mxu0 %v1578
  %1719 = vmatprep.subr.bf16.mxu0 %v1581
  %1720 = vmatpush1.bf16.msra.mxu0 %v1580
  %1721 = vmatprep.subr.bf16.mxu0 %v1583
  %1722 = vmatpush1.bf16.msra.mxu0 %v1582
  %1723 = vmatprep.subr.bf16.mxu0 %v1585
  %1724 = vmatpush1.bf16.msra.mxu0 %v1584
  %1725 = vmatprep.subr.bf16.mxu0 %v1587
  %1726 = vmatpush1.bf16.msra.mxu0 %v1586
  %1727 = vmatprep.subr.bf16.mxu0 %v1589
  %1728 = vmatpush1.bf16.msra.mxu0 %v1588
  %1729 = vmatprep.subr.bf16.mxu0 %v1591
  %1730 = vmatpush1.bf16.msra.mxu0 %v1590
  %1731 = vmatprep.subr.bf16.mxu0 %v1593
  %1732 = vmatpush1.bf16.msra.mxu0 %v1592
  %1733 = vmatprep.subr.bf16.mxu0 %v1595
  %1734 = vmatpush1.bf16.msra.mxu0 %v1594
  %1735 = vmatprep.subr.bf16.mxu0 %v1597
  %1736 = vmatpush1.bf16.msra.mxu0 %v1596
  %1737 = vmatprep.subr.bf16.mxu0 %v1599
  %1738 = vmatpush1.bf16.msra.mxu0 %v1598
  %1739 = vmatprep.subr.bf16.mxu0 %v1601
  %1740 = vmatpush1.bf16.msra.mxu0 %v1600
  %1741 = vmatprep.subr.bf16.mxu0 %v1603
  %1742 = vmatpush1.bf16.msra.mxu0 %v1602
  %1743 = vmatprep.mubr.bf16.mxu0 %v886
  %1744 = vmatmul.mubr.bf16.gmra.mrb[0].mxu0 %v885
  %v1745 = vpop.f32.mrb[0].mxu0
  %v1746 = vadd.f32 %v1703, %v1745
  %v1747 = vpop.f32.mrb[0].mxu0
  %v1748 = vadd.f32 %v1705, %v1747
  %v1749 = vpop.f32.mrb[0].mxu0
  %v1750 = vadd.f32 %v1707, %v1749
  %v1751 = vpop.f32.mrb[0].mxu0
  %v1752 = vadd.f32 %v1709, %v1751
  %1753 = vdwg.mxu0
  %1754 = vmatprep.subr.bf16.mxu0 %v1605
  %1755 = vmatpush1.bf16.msra.mxu0 %v1604
  %1756 = vmatprep.subr.bf16.mxu0 %v1607
  %1757 = vmatpush1.bf16.msra.mxu0 %v1606
  %1758 = vmatprep.subr.bf16.mxu0 %v1609
  %1759 = vmatpush1.bf16.msra.mxu0 %v1608
  %1760 = vmatprep.subr.bf16.mxu0 %v1611
  %1761 = vmatpush1.bf16.msra.mxu0 %v1610
  %1762 = vmatprep.subr.bf16.mxu0 %v1613
  %1763 = vmatpush1.bf16.msra.mxu0 %v1612
  %1764 = vmatprep.subr.bf16.mxu0 %v1615
  %1765 = vmatpush1.bf16.msra.mxu0 %v1614
  %1766 = vmatprep.subr.bf16.mxu0 %v1617
  %1767 = vmatpush1.bf16.msra.mxu0 %v1616
  %1768 = vmatprep.subr.bf16.mxu0 %v1619
  %1769 = vmatpush1.bf16.msra.mxu0 %v1618
  %1770 = vmatprep.subr.bf16.mxu0 %v1621
  %1771 = vmatpush1.bf16.msra.mxu0 %v1620
  %1772 = vmatprep.subr.bf16.mxu0 %v1623
  %1773 = vmatpush1.bf16.msra.mxu0 %v1622
  %1774 = vmatprep.subr.bf16.mxu0 %v1625
  %1775 = vmatpush1.bf16.msra.mxu0 %v1624
  %1776 = vmatprep.subr.bf16.mxu0 %v1627
  %1777 = vmatpush1.bf16.msra.mxu0 %v1626
  %1778 = vmatprep.subr.bf16.mxu0 %v1629
  %1779 = vmatpush1.bf16.msra.mxu0 %v1628
  %1780 = vmatprep.subr.bf16.mxu0 %v1631
  %1781 = vmatpush1.bf16.msra.mxu0 %v1630
  %1782 = vmatprep.subr.bf16.mxu0 %v1633
  %1783 = vmatpush1.bf16.msra.mxu0 %v1632
  %1784 = vmatprep.subr.bf16.mxu0 %v1635
  %1785 = vmatpush1.bf16.msra.mxu0 %v1634
  %1786 = vmatprep.mubr.bf16.mxu0 %v888
  %1787 = vmatmul.mubr.bf16.gmra.mrb[0].mxu0 %v887
  %v1788 = vpop.f32.mrb[0].mxu0
  %v1789 = vadd.f32 %v1746, %v1788
  %v1790 = vpop.f32.mrb[0].mxu0
  %v1791 = vadd.f32 %v1748, %v1790
  %v1792 = vpop.f32.mrb[0].mxu0
  %v1793 = vadd.f32 %v1750, %v1792
  %v1794 = vpop.f32.mrb[0].mxu0
  %v1795 = vadd.f32 %v1752, %v1794
  %1796 = vdwg.mxu0
  %1797 = vmatprep.subr.bf16.mxu0 %v1637
  %1798 = vmatpush1.bf16.msra.mxu0 %v1636
  %1799 = vmatprep.subr.bf16.mxu0 %v1639
  %1800 = vmatpush1.bf16.msra.mxu0 %v1638
  %1801 = vmatprep.subr.bf16.mxu0 %v1641
  %1802 = vmatpush1.bf16.msra.mxu0 %v1640
  %1803 = vmatprep.subr.bf16.mxu0 %v1643
  %1804 = vmatpush1.bf16.msra.mxu0 %v1642
  %1805 = vmatprep.subr.bf16.mxu0 %v1645
  %1806 = vmatpush1.bf16.msra.mxu0 %v1644
  %1807 = vmatprep.subr.bf16.mxu0 %v1647
  %1808 = vmatpush1.bf16.msra.mxu0 %v1646
  %1809 = vmatprep.subr.bf16.mxu0 %v1649
  %1810 = vmatpush1.bf16.msra.mxu0 %v1648
  %1811 = vmatprep.subr.bf16.mxu0 %v1651
  %1812 = vmatpush1.bf16.msra.mxu0 %v1650
  %1813 = vmatprep.subr.bf16.mxu0 %v1653
  %1814 = vmatpush1.bf16.msra.mxu0 %v1652
  %1815 = vmatprep.subr.bf16.mxu0 %v1655
  %1816 = vmatpush1.bf16.msra.mxu0 %v1654
  %1817 = vmatprep.subr.bf16.mxu0 %v1657
  %1818 = vmatpush1.bf16.msra.mxu0 %v1656
  %1819 = vmatprep.subr.bf16.mxu0 %v1659
  %1820 = vmatpush1.bf16.msra.mxu0 %v1658
  %1821 = vmatprep.subr.bf16.mxu0 %v1661
  %1822 = vmatpush1.bf16.msra.mxu0 %v1660
  %1823 = vmatprep.subr.bf16.mxu0 %v1663
  %1824 = vmatpush1.bf16.msra.mxu0 %v1662
  %1825 = vmatprep.subr.bf16.mxu0 %v1665
  %1826 = vmatpush1.bf16.msra.mxu0 %v1664
  %1827 = vmatprep.subr.bf16.mxu0 %v1667
  %1828 = vmatpush1.bf16.msra.mxu0 %v1666
  %1829 = vmatprep.mubr.bf16.mxu0 %v890
  %1830 = vmatmul.mubr.bf16.gmra.mrb[0].mxu0 %v889
  %v1831 = vpop.f32.mrb[0].mxu0
  %v1832 = vadd.f32 %v1789, %v1831
  %v1833 = vpop.f32.mrb[0].mxu0
  %v1834 = vadd.f32 %v1791, %v1833
  %v1835 = vpop.f32.mrb[0].mxu0
  %v1836 = vadd.f32 %v1793, %v1835
  %v1837 = vpop.f32.mrb[0].mxu0
  %v1838 = vadd.f32 %v1795, %v1837
  %1839 = vdwg.mxu0
  %v1840 = vld [vmem:[%s3] sm:$0xff]
  %v1841 = vld [vmem:[%s3 + $0x8] sm:$0xff]
  %v1842 = vld [vmem:[%s3 + $0x10] sm:$0xff]
  %v1843 = vld [vmem:[%s3 + $0x18] sm:$0xff]
  %v1844 = vld [vmem:[%s4] sm:$0xff]
  %v1845 = vld [vmem:[%s4 + $0x8] sm:$0xff]
  %v1846 = vld [vmem:[%s4 + $0x10] sm:$0xff]
  %v1847 = vld [vmem:[%s4 + $0x18] sm:$0xff]
  %1852 = vrot.lane.b32.xlu0 %v1832, 17
  %v1853 = vpop.permute.xlu0 %1852
  %1854 = vrot.lane.b32.xlu0 %v1834, 17
  %v1855 = vpop.permute.xlu0 %1854
  %1856 = vrot.lane.b32.xlu0 %v1836, 17
  %v1857 = vpop.permute.xlu0 %1856
  %1858 = vrot.lane.b32.xlu0 %v1838, 17
  %v1859 = vpop.permute.xlu0 %1858
  %vm1860 = vcmask 138240
  %v1861 = vsel %vm1860, %v1853, %v1855
  %v1862 = vsel %vm1860, %v1857, %v1859
  %v1867 = vsel %vm1860, 0.0, %v1853
  %v1868 = vsel %vm1860, 0.0, %v1857
  %v1869 = vsel %vm80, 1, 0
  %v1870 = vsel %vm81, 1, 0
  %vm1871 = vcmp.eq.s32.totalorder %v1869, 1
  %vm1872 = vcmp.eq.s32.totalorder %v1870, 1
  %v1873 = vsel %vm1871, %v1867, 0.0
  %v1874 = vsel %vm1872, %v1861, 0.0
  %v1875 = vsel %vm1871, %v1868, 0.0
  %v1876 = vsel %vm1872, %v1862, 0.0
  %1877 = vrot.lane.b32.xlu0 %v1832, 16
  %v1878 = vpop.permute.xlu0 %1877
  %1879 = vrot.lane.b32.xlu0 %v1834, 16
  %v1880 = vpop.permute.xlu0 %1879
  %1881 = vrot.lane.b32.xlu0 %v1836, 16
  %v1882 = vpop.permute.xlu0 %1881
  %1883 = vrot.lane.b32.xlu0 %v1838, 16
  %v1884 = vpop.permute.xlu0 %1883
  %vm1885 = vcmask 130048
  %v1886 = vsel %vm1885, %v1878, %v1880
  %v1887 = vsel %vm1885, %v1882, %v1884
  %v1892 = vsel %vm1885, 0.0, %v1878
  %v1893 = vsel %vm1885, 0.0, %v1882
  %1894 = vrot.lane.b32.xlu0 %v1832, 15
  %v1895 = vpop.permute.xlu0 %1894
  %1896 = vrot.lane.b32.xlu0 %v1834, 15
  %v1897 = vpop.permute.xlu0 %1896
  %1898 = vrot.lane.b32.xlu0 %v1836, 15
  %v1899 = vpop.permute.xlu0 %1898
  %1900 = vrot.lane.b32.xlu0 %v1838, 15
  %v1901 = vpop.permute.xlu0 %1900
  %vm1902 = vcmask 121856
  %v1903 = vsel %vm1902, %v1895, %v1897
  %v1904 = vsel %vm1902, %v1899, %v1901
  %v1909 = vsel %vm1902, 0.0, %v1895
  %v1910 = vsel %vm1902, 0.0, %v1899
  %v1911 = vsel %vm82, 1, 0
  %v1912 = vsel %vm83, 1, 0
  %vm1913 = vcmp.eq.s32.totalorder %v1911, 1
  %vm1914 = vcmp.eq.s32.totalorder %v1912, 1
  %v1915 = vsel %vm1913, %v1909, 0.0
  %v1916 = vsel %vm1914, %v1903, 0.0
  %v1917 = vsel %vm1913, %v1910, 0.0
  %v1918 = vsel %vm1914, %v1904, 0.0
  %1919 = vrot.lane.b32.xlu0 %v1832, 1
  %v1920 = vpop.permute.xlu0 %1919
  %1921 = vrot.lane.b32.xlu0 %v1834, 1
  %v1922 = vpop.permute.xlu0 %1921
  %1923 = vrot.lane.b32.xlu0 %v1836, 1
  %v1924 = vpop.permute.xlu0 %1923
  %1925 = vrot.lane.b32.xlu0 %v1838, 1
  %v1926 = vpop.permute.xlu0 %1925
  %v1927 = vsel %vm259, %v1920, %v1922
  %v1928 = vsel %vm259, %v1924, %v1926
  %v1933 = vsel %vm259, 0.0, %v1920
  %v1934 = vsel %vm259, 0.0, %v1924
  %v1935 = vsel %vm1871, %v1933, 0.0
  %v1936 = vsel %vm1872, %v1927, 0.0
  %v1937 = vsel %vm1871, %v1934, 0.0
  %v1938 = vsel %vm1872, %v1928, 0.0
  %1939 = vrot.lane.b32.xlu0 %v1832, 127
  %v1940 = vpop.permute.xlu0 %1939
  %1941 = vrot.lane.b32.xlu0 %v1834, 127
  %v1942 = vpop.permute.xlu0 %1941
  %1943 = vrot.lane.b32.xlu0 %v1836, 127
  %v1944 = vpop.permute.xlu0 %1943
  %1945 = vrot.lane.b32.xlu0 %v1838, 127
  %v1946 = vpop.permute.xlu0 %1945
  %v1947 = vsel %vm300, %v1940, %v1942
  %v1948 = vsel %vm300, %v1944, %v1946
  %v1953 = vsel %vm300, %v1942, 0.0
  %v1954 = vsel %vm300, %v1946, 0.0
  %v1955 = vsel %vm1913, %v1947, 0.0
  %v1956 = vsel %vm1914, %v1953, 0.0
  %v1957 = vsel %vm1913, %v1948, 0.0
  %v1958 = vsel %vm1914, %v1954, 0.0
  %1959 = vrot.lane.b32.xlu0 %v1832, 113
  %v1960 = vpop.permute.xlu0 %1959
  %1961 = vrot.lane.b32.xlu0 %v1834, 113
  %v1962 = vpop.permute.xlu0 %1961
  %1963 = vrot.lane.b32.xlu0 %v1836, 113
  %v1964 = vpop.permute.xlu0 %1963
  %1965 = vrot.lane.b32.xlu0 %v1838, 113
  %v1966 = vpop.permute.xlu0 %1965
  %vm1967 = vcmask 924672
  %v1968 = vsel %vm1967, %v1960, %v1962
  %v1969 = vsel %vm1967, %v1964, %v1966
  %v1974 = vsel %vm1967, %v1962, 0.0
  %v1975 = vsel %vm1967, %v1966, 0.0
  %v1976 = vsel %vm1871, %v1968, 0.0
  %v1977 = vsel %vm1872, %v1974, 0.0
  %v1978 = vsel %vm1871, %v1969, 0.0
  %v1979 = vsel %vm1872, %v1975, 0.0
  %1980 = vrot.lane.b32.xlu0 %v1832, 112
  %v1981 = vpop.permute.xlu0 %1980
  %1982 = vrot.lane.b32.xlu0 %v1834, 112
  %v1983 = vpop.permute.xlu0 %1982
  %1984 = vrot.lane.b32.xlu0 %v1836, 112
  %v1985 = vpop.permute.xlu0 %1984
  %1986 = vrot.lane.b32.xlu0 %v1838, 112
  %v1987 = vpop.permute.xlu0 %1986
  %vm1988 = vcmask 916480
  %v1989 = vsel %vm1988, %v1981, %v1983
  %v1990 = vsel %vm1988, %v1985, %v1987
  %v1995 = vsel %vm1988, %v1983, 0.0
  %v1996 = vsel %vm1988, %v1987, 0.0
  %1997 = vrot.lane.b32.xlu0 %v1832, 111
  %v1998 = vpop.permute.xlu0 %1997
  %1999 = vrot.lane.b32.xlu0 %v1834, 111
  %v2000 = vpop.permute.xlu0 %1999
  %2001 = vrot.lane.b32.xlu0 %v1836, 111
  %v2002 = vpop.permute.xlu0 %2001
  %2003 = vrot.lane.b32.xlu0 %v1838, 111
  %v2004 = vpop.permute.xlu0 %2003
  %vm2005 = vcmask 908288
  %v2006 = vsel %vm2005, %v1998, %v2000
  %v2007 = vsel %vm2005, %v2002, %v2004
  %v2012 = vsel %vm2005, %v2000, 0.0
  %v2013 = vsel %vm2005, %v2004, 0.0
  %v2014 = vsel %vm1913, %v2006, 0.0
  %v2015 = vsel %vm1914, %v2012, 0.0
  %v2016 = vsel %vm1913, %v2007, 0.0
  %v2017 = vsel %vm1914, %v2013, 0.0
  %v2018 = vpack.c.bf16 %v1875, %v1873
  %v2019 = vpack.c.bf16 %v1876, %v1874
  %v2020 = vpack.c.bf16 %v1893, %v1892
  %v2021 = vpack.c.bf16 %v1887, %v1886
  %v2022 = vpack.c.bf16 %v1917, %v1915
  %v2023 = vpack.c.bf16 %v1918, %v1916
  %v2024 = vpack.c.bf16 %v1937, %v1935
  %v2025 = vpack.c.bf16 %v1938, %v1936
  %v2026 = vpack.c.bf16 %v1836, %v1832
  %v2027 = vpack.c.bf16 %v1838, %v1834
  %v2028 = vpack.c.bf16 %v1957, %v1955
  %v2029 = vpack.c.bf16 %v1958, %v1956
  %v2030 = vpack.c.bf16 %v1978, %v1976
  %v2031 = vpack.c.bf16 %v1979, %v1977
  %v2032 = vpack.c.bf16 %v1990, %v1989
  %v2033 = vpack.c.bf16 %v1996, %v1995
  %v2034 = vpack.c.bf16 %v2016, %v2014
  %v2035 = vpack.c.bf16 %v2017, %v2015
  %2037 = vset.pattern.permute.xlu0 0
  %2038 = vperm.xlu0 %2037, %v1844
  %v2039 = vpop.permute.xlu0 %2038
  %2042 = vset.pattern.permute.xlu0 0
  %2043 = vperm.xlu0 %2042, %v1845
  %v2044 = vpop.permute.xlu0 %2043
  %2047 = vset.pattern.permute.xlu0 0
  %2048 = vperm.xlu0 %2047, %v1846
  %v2049 = vpop.permute.xlu0 %2048
  %2052 = vset.pattern.permute.xlu0 0
  %2053 = vperm.xlu0 %2052, %v1847
  %v2054 = vpop.permute.xlu0 %2053
  %v2060 = vunpack.c.l.b16 %v1840
  %v2061 = vunpack.c.h.b16 %v1840
  %v2062 = vunpack.c.l.b16 %v1841
  %v2063 = vunpack.c.h.b16 %v1841
  %v2064 = vunpack.c.l.b16 %v1842
  %v2065 = vunpack.c.h.b16 %v1842
  %v2066 = vunpack.c.l.b16 %v1843
  %v2067 = vunpack.c.h.b16 %v1843
  %v2068 = vpack.c.b16 %v2062, %v2060
  %v2069 = vpack.c.b16 %v2063, %v2061
  %v2070 = vpack.c.b16 %v2066, %v2064
  %v2071 = vpack.c.b16 %v2067, %v2065
  %v2075 = vsel %vm1885, %v2069, 0
  %v2078 = vsel %vm1885, %v2071, 0
  %2080 = vmatprep.subr.bf16.mxu0 %v2019
  %2081 = vmatpush1.bf16.msra.mxu0 %v2018
  %2082 = vmatprep.subr.bf16.mxu0 %v2021
  %2083 = vmatpush1.bf16.msra.mxu0 %v2020
  %2084 = vmatprep.subr.bf16.mxu0 %v2023
  %2085 = vmatpush1.bf16.msra.mxu0 %v2022
  %2086 = vmatprep.subr.bf16.mxu0 %v2025
  %2087 = vmatpush1.bf16.msra.mxu0 %v2024
  %2088 = vmatprep.subr.bf16.mxu0 %v2027
  %2089 = vmatpush1.bf16.msra.mxu0 %v2026
  %2090 = vmatprep.subr.bf16.mxu0 %v2029
  %2091 = vmatpush1.bf16.msra.mxu0 %v2028
  %2092 = vmatprep.subr.bf16.mxu0 %v2031
  %2093 = vmatpush1.bf16.msra.mxu0 %v2030
  %2094 = vmatprep.subr.bf16.mxu0 %v2033
  %2095 = vmatpush1.bf16.msra.mxu0 %v2032
  %2096 = vmatprep.subr.bf16.mxu0 %v2035
  %2097 = vmatpush1.bf16.msra.mxu0 %v2034
  %2098 = vmatprep.subr.bf16.mxu0 0
  %2099 = vmatpush1.bf16.msra.mxu0 0
  %2100 = vmatprep.subr.bf16.mxu0 0
  %2101 = vmatpush1.bf16.msra.mxu0 0
  %2102 = vmatprep.subr.bf16.mxu0 0
  %2103 = vmatpush1.bf16.msra.mxu0 0
  %2104 = vmatprep.subr.bf16.mxu0 0
  %2105 = vmatpush1.bf16.msra.mxu0 0
  %2106 = vmatprep.subr.bf16.mxu0 0
  %2107 = vmatpush1.bf16.msra.mxu0 0
  %2108 = vmatprep.subr.bf16.mxu0 0
  %2109 = vmatpush1.bf16.msra.mxu0 0
  %2110 = vmatprep.subr.bf16.mxu0 0
  %2111 = vmatpush1.bf16.msra.mxu0 0
  %2112 = vmatprep.mubr.bf16.mxu0 %v2075
  %2113 = vmatmul.mubr.bf16.gmra.mrb[0].mxu0 %v2068
  %v2114 = vpop.f32.mrb[0].mxu0
  %v2115 = vadd.f32 %v2039, %v2114
  %v2116 = vpop.f32.mrb[0].mxu0
  %v2117 = vadd.f32 %v2039, %v2116
  %v2118 = vpop.f32.mrb[0].mxu0
  %v2119 = vadd.f32 %v2044, %v2118
  %v2120 = vpop.f32.mrb[0].mxu0
  %v2121 = vadd.f32 %v2044, %v2120
  %2122 = vmatprep.mubr.bf16.mxu0 %v2078
  %2123 = vmatmul.mubr.bf16.gmra.mrb[0].mxu0 %v2070
  %v2124 = vpop.f32.mrb[0].mxu0
  %v2125 = vadd.f32 %v2049, %v2124
  %v2126 = vpop.f32.mrb[0].mxu0
  %v2127 = vadd.f32 %v2049, %v2126
  %v2128 = vpop.f32.mrb[0].mxu0
  %v2129 = vadd.f32 %v2054, %v2128
  %v2130 = vpop.f32.mrb[0].mxu0
  %v2131 = vadd.f32 %v2054, %v2130
  %2132 = vdwg.mxu0
  %v2133 = vmax.f32 %v2115, 0.0
  %v2134 = vmax.f32 %v2117, 0.0
  %v2135 = vmax.f32 %v2119, 0.0
  %v2136 = vmax.f32 %v2121, 0.0
  %v2137 = vmax.f32 %v2125, 0.0
  %v2138 = vmax.f32 %v2127, 0.0
  %v2139 = vmax.f32 %v2129, 0.0
  %v2140 = vmax.f32 %v2131, 0.0
  %v2141 = vpack.c.bf16 %v2135, %v2133
  %v2142 = vpack.c.bf16 %v2136, %v2134
  %v2143 = vpack.c.bf16 %v2139, %v2137
  %v2144 = vpack.c.bf16 %v2140, %v2138
  %v2145 = vshra.s32 %v46, 3
  %v2146 = vmul.u32 %v2145, 32
  %v2147 = vmul.u32 %v84, 2
  %v2148 = vadd.s32 %v2146, %v2147
  %vm2149 = vcmp.eq.s32.totalorder %v900, %v2148
  %vm2150 = vcmp.eq.s32.totalorder %v901, %v2148
  %vm2151 = vcmp.eq.s32.totalorder %v902, %v2148
  %vm2152 = vcmp.eq.s32.totalorder %v903, %v2148
  %vm2153 = vcmp.eq.s32.totalorder %v904, %v2148
  %vm2154 = vcmp.eq.s32.totalorder %v905, %v2148
  %vm2155 = vcmp.eq.s32.totalorder %v906, %v2148
  %vm2156 = vcmp.eq.s32.totalorder %v907, %v2148
  %vm2157 = vcmp.eq.s32.totalorder %v908, %v2148
  %vm2158 = vcmp.eq.s32.totalorder %v909, %v2148
  %vm2159 = vcmp.eq.s32.totalorder %v910, %v2148
  %vm2160 = vcmp.eq.s32.totalorder %v911, %v2148
  %vm2161 = vcmp.eq.s32.totalorder %v912, %v2148
  %vm2162 = vcmp.eq.s32.totalorder %v913, %v2148
  %vm2163 = vcmp.eq.s32.totalorder %v914, %v2148
  %vm2164 = vcmp.eq.s32.totalorder %v915, %v2148
  %vm2165 = vcmp.eq.s32.totalorder %v916, %v2148
  %vm2166 = vcmp.eq.s32.totalorder %v917, %v2148
  %vm2167 = vcmp.eq.s32.totalorder %v918, %v2148
  %vm2168 = vcmp.eq.s32.totalorder %v919, %v2148
  %vm2169 = vcmp.eq.s32.totalorder %v920, %v2148
  %vm2170 = vcmp.eq.s32.totalorder %v921, %v2148
  %vm2171 = vcmp.eq.s32.totalorder %v922, %v2148
  %vm2172 = vcmp.eq.s32.totalorder %v923, %v2148
  %vm2173 = vcmp.eq.s32.totalorder %v924, %v2148
  %vm2174 = vcmp.eq.s32.totalorder %v925, %v2148
  %vm2175 = vcmp.eq.s32.totalorder %v926, %v2148
  %vm2176 = vcmp.eq.s32.totalorder %v927, %v2148
  %vm2177 = vcmp.eq.s32.totalorder %v928, %v2148
  %vm2178 = vcmp.eq.s32.totalorder %v929, %v2148
  %vm2179 = vcmp.eq.s32.totalorder %v930, %v2148
  %vm2180 = vcmp.eq.s32.totalorder %v931, %v2148
  %v2181 = vsel %vm2149, 1.0, 0.0
  %v2182 = vsel %vm2150, 1.0, 0.0
  %v2183 = vsel %vm2151, 1.0, 0.0
  %v2184 = vsel %vm2152, 1.0, 0.0
  %v2185 = vsel %vm2153, 1.0, 0.0
  %v2186 = vsel %vm2154, 1.0, 0.0
  %v2187 = vsel %vm2155, 1.0, 0.0
  %v2188 = vsel %vm2156, 1.0, 0.0
  %v2189 = vsel %vm2157, 1.0, 0.0
  %v2190 = vsel %vm2158, 1.0, 0.0
  %v2191 = vsel %vm2159, 1.0, 0.0
  %v2192 = vsel %vm2160, 1.0, 0.0
  %v2193 = vsel %vm2161, 1.0, 0.0
  %v2194 = vsel %vm2162, 1.0, 0.0
  %v2195 = vsel %vm2163, 1.0, 0.0
  %v2196 = vsel %vm2164, 1.0, 0.0
  %v2197 = vsel %vm2165, 1.0, 0.0
  %v2198 = vsel %vm2166, 1.0, 0.0
  %v2199 = vsel %vm2167, 1.0, 0.0
  %v2200 = vsel %vm2168, 1.0, 0.0
  %v2201 = vsel %vm2169, 1.0, 0.0
  %v2202 = vsel %vm2170, 1.0, 0.0
  %v2203 = vsel %vm2171, 1.0, 0.0
  %v2204 = vsel %vm2172, 1.0, 0.0
  %v2205 = vsel %vm2173, 1.0, 0.0
  %v2206 = vsel %vm2174, 1.0, 0.0
  %v2207 = vsel %vm2175, 1.0, 0.0
  %v2208 = vsel %vm2176, 1.0, 0.0
  %v2209 = vsel %vm2177, 1.0, 0.0
  %v2210 = vsel %vm2178, 1.0, 0.0
  %v2211 = vsel %vm2179, 1.0, 0.0
  %v2212 = vsel %vm2180, 1.0, 0.0
  %v2213 = vpack.c.bf16 %v2182, %v2181
  %v2214 = vpack.c.bf16 %v2184, %v2183
  %v2215 = vpack.c.bf16 %v2186, %v2185
  %v2216 = vpack.c.bf16 %v2188, %v2187
  %v2217 = vpack.c.bf16 %v2190, %v2189
  %v2218 = vpack.c.bf16 %v2192, %v2191
  %v2219 = vpack.c.bf16 %v2194, %v2193
  %v2220 = vpack.c.bf16 %v2196, %v2195
  %v2221 = vpack.c.bf16 %v2198, %v2197
  %v2222 = vpack.c.bf16 %v2200, %v2199
  %v2223 = vpack.c.bf16 %v2202, %v2201
  %v2224 = vpack.c.bf16 %v2204, %v2203
  %v2225 = vpack.c.bf16 %v2206, %v2205
  %v2226 = vpack.c.bf16 %v2208, %v2207
  %v2227 = vpack.c.bf16 %v2210, %v2209
  %v2228 = vpack.c.bf16 %v2212, %v2211
  %2229 = vmatprep.subr.bf16.mxu0 0
  %2230 = vmatpush1.bf16.msra.mxu0 %v2213
  %2231 = vmatprep.subr.bf16.mxu0 0
  %2232 = vmatpush1.bf16.msra.mxu0 %v2214
  %2233 = vmatprep.subr.bf16.mxu0 0
  %2234 = vmatpush1.bf16.msra.mxu0 %v2215
  %2235 = vmatprep.subr.bf16.mxu0 0
  %2236 = vmatpush1.bf16.msra.mxu0 %v2216
  %2237 = vmatprep.subr.bf16.mxu0 0
  %2238 = vmatpush1.bf16.msra.mxu0 %v2217
  %2239 = vmatprep.subr.bf16.mxu0 0
  %2240 = vmatpush1.bf16.msra.mxu0 %v2218
  %2241 = vmatprep.subr.bf16.mxu0 0
  %2242 = vmatpush1.bf16.msra.mxu0 %v2219
  %2243 = vmatprep.subr.bf16.mxu0 0
  %2244 = vmatpush1.bf16.msra.mxu0 %v2220
  %2245 = vmatprep.subr.bf16.mxu0 0
  %2246 = vmatpush1.bf16.msra.mxu0 %v2221
  %2247 = vmatprep.subr.bf16.mxu0 0
  %2248 = vmatpush1.bf16.msra.mxu0 %v2222
  %2249 = vmatprep.subr.bf16.mxu0 0
  %2250 = vmatpush1.bf16.msra.mxu0 %v2223
  %2251 = vmatprep.subr.bf16.mxu0 0
  %2252 = vmatpush1.bf16.msra.mxu0 %v2224
  %2253 = vmatprep.subr.bf16.mxu0 0
  %2254 = vmatpush1.bf16.msra.mxu0 %v2225
  %2255 = vmatprep.subr.bf16.mxu0 0
  %2256 = vmatpush1.bf16.msra.mxu0 %v2226
  %2257 = vmatprep.subr.bf16.mxu0 0
  %2258 = vmatpush1.bf16.msra.mxu0 %v2227
  %2259 = vmatprep.subr.bf16.mxu0 0
  %2260 = vmatpush1.bf16.msra.mxu0 %v2228
  %2261 = vmatprep.mubr.bf16.mxu0 %v2142
  %2262 = vmatmul.mubr.bf16.gmra.mrb[0].mxu0 %v2141
  %v2263 = vpop.f32.mrb[0].mxu0
  %v2264 = vadd.f32 0.0, %v2263
  %v2265 = vpop.f32.mrb[0].mxu0
  %v2266 = vpop.f32.mrb[0].mxu0
  %v2267 = vadd.f32 0.0, %v2266
  %v2268 = vpop.f32.mrb[0].mxu0
  %2269 = vmatprep.mubr.bf16.mxu0 %v2144
  %2270 = vmatmul.mubr.bf16.gmra.mrb[0].mxu0 %v2143
  %v2271 = vpop.f32.mrb[0].mxu0
  %v2272 = vadd.f32 0.0, %v2271
  %v2273 = vpop.f32.mrb[0].mxu0
  %v2274 = vpop.f32.mrb[0].mxu0
  %v2275 = vadd.f32 0.0, %v2274
  %v2276 = vpop.f32.mrb[0].mxu0
  %2277 = vdwg.mxu0
  %v2278 = vld [vmem:[%s5] sm:$0xff]
  %v2279 = vld [vmem:[%s5 + $0x8] sm:$0xf]
  %v2280 = vld [vmem:[%s5 + $0xc] sm:$0xff]
  %v2281 = vld [vmem:[%s5 + $0x14] sm:$0xf]
  %v2282 = vld [vmem:[%s5 + $0x18] sm:$0xff]
  %v2283 = vld [vmem:[%s5 + $0x20] sm:$0xf]
  %v2284 = vld [vmem:[%s5 + $0x24] sm:$0xff]
  %v2285 = vld [vmem:[%s5 + $0x2c] sm:$0xf]
  %v2286 = vld [vmem:[%s5 + $0x30] sm:$0xff]
  %v2287 = vld [vmem:[%s5 + $0x38] sm:$0xf]
  %v2288 = vld [vmem:[%s5 + $0x3c] sm:$0xff]
  %v2289 = vld [vmem:[%s5 + $0x44] sm:$0xf]
  %v2290 = vld [vmem:[%s5 + $0x48] sm:$0xff]
  %v2291 = vld [vmem:[%s5 + $0x50] sm:$0xf]
  %v2292 = vld [vmem:[%s5 + $0x54] sm:$0xff]
  %v2293 = vld [vmem:[%s5 + $0x5c] sm:$0xf]
  %v2294 = vld [vmem:[%s6] sm:$0xff]
  %v2295 = vld [vmem:[%s6 + $0x8] sm:$0xff]
  %v2296 = vld [vmem:[%s6 + $0x10] sm:$0xff]
  %v2297 = vld [vmem:[%s6 + $0x18] sm:$0xff]
  %v2298 = vld [vmem:[%s6 + $0x20] sm:$0xff]
  %v2299 = vld [vmem:[%s6 + $0x28] sm:$0xff]
  %v2300 = vld [vmem:[%s6 + $0x30] sm:$0xff]
  %v2301 = vld [vmem:[%s6 + $0x38] sm:$0xff]
  %2306 = vrot.lane.b32.xlu0 %v2264, 9
  %v2307 = vpop.permute.xlu0 %2306
  %2308 = vrot.lane.b32.xlu0 %v2267, 9
  %v2309 = vpop.permute.xlu0 %2308
  %2310 = vrot.lane.b32.xlu0 %v2272, 9
  %v2311 = vpop.permute.xlu0 %2310
  %2312 = vrot.lane.b32.xlu0 %v2275, 9
  %v2313 = vpop.permute.xlu0 %2312
  %vm2318 = vcmask 72704
  %v2319 = vsel %vm2318, 0.0, %v2307
  %v2320 = vsel %vm2318, 0.0, %v2309
  %v2321 = vsel %vm2318, 0.0, %v2311
  %v2322 = vsel %vm2318, 0.0, %v2313
  %v2323 = vsel %vm85, 1, 0
  %vm2324 = vcmp.eq.s32.totalorder %v2323, 1
  %v2325 = vsel %vm2324, %v2319, 0.0
  %v2326 = vsel %vm2324, %v2320, 0.0
  %v2327 = vsel %vm2324, %v2321, 0.0
  %v2328 = vsel %vm2324, %v2322, 0.0
  %2329 = vrot.lane.b32.xlu0 %v2264, 8
  %v2330 = vpop.permute.xlu0 %2329
  %2331 = vrot.lane.b32.xlu0 %v2267, 8
  %v2332 = vpop.permute.xlu0 %2331
  %2333 = vrot.lane.b32.xlu0 %v2272, 8
  %v2334 = vpop.permute.xlu0 %2333
  %2335 = vrot.lane.b32.xlu0 %v2275, 8
  %v2336 = vpop.permute.xlu0 %2335
  %vm2341 = vcmask 64512
  %v2342 = vsel %vm2341, 0.0, %v2330
  %v2343 = vsel %vm2341, 0.0, %v2332
  %v2344 = vsel %vm2341, 0.0, %v2334
  %v2345 = vsel %vm2341, 0.0, %v2336
  %2346 = vrot.lane.b32.xlu0 %v2264, 7
  %v2347 = vpop.permute.xlu0 %2346
  %2348 = vrot.lane.b32.xlu0 %v2267, 7
  %v2349 = vpop.permute.xlu0 %2348
  %2350 = vrot.lane.b32.xlu0 %v2272, 7
  %v2351 = vpop.permute.xlu0 %2350
  %2352 = vrot.lane.b32.xlu0 %v2275, 7
  %v2353 = vpop.permute.xlu0 %2352
  %vm2358 = vcmask 56320
  %v2359 = vsel %vm2358, 0.0, %v2347
  %v2360 = vsel %vm2358, 0.0, %v2349
  %v2361 = vsel %vm2358, 0.0, %v2351
  %v2362 = vsel %vm2358, 0.0, %v2353
  %v2363 = vsel %vm86, 1, 0
  %vm2364 = vcmp.eq.s32.totalorder %v2363, 1
  %v2365 = vsel %vm2364, %v2359, 0.0
  %v2366 = vsel %vm2364, %v2360, 0.0
  %v2367 = vsel %vm2364, %v2361, 0.0
  %v2368 = vsel %vm2364, %v2362, 0.0
  %2369 = vrot.lane.b32.xlu0 %v2264, 1
  %v2370 = vpop.permute.xlu0 %2369
  %2371 = vrot.lane.b32.xlu0 %v2267, 1
  %v2372 = vpop.permute.xlu0 %2371
  %2373 = vrot.lane.b32.xlu0 %v2272, 1
  %v2374 = vpop.permute.xlu0 %2373
  %2375 = vrot.lane.b32.xlu0 %v2275, 1
  %v2376 = vpop.permute.xlu0 %2375
  %v2381 = vsel %vm259, 0.0, %v2370
  %v2382 = vsel %vm259, 0.0, %v2372
  %v2383 = vsel %vm259, 0.0, %v2374
  %v2384 = vsel %vm259, 0.0, %v2376
  %v2385 = vsel %vm2324, %v2381, 0.0
  %v2386 = vsel %vm2324, %v2382, 0.0
  %v2387 = vsel %vm2324, %v2383, 0.0
  %v2388 = vsel %vm2324, %v2384, 0.0
  %2389 = vrot.lane.b32.xlu0 %v2264, 127
  %v2390 = vpop.permute.xlu0 %2389
  %2391 = vrot.lane.b32.xlu0 %v2267, 127
  %v2392 = vpop.permute.xlu0 %2391
  %2393 = vrot.lane.b32.xlu0 %v2272, 127
  %v2394 = vpop.permute.xlu0 %2393
  %2395 = vrot.lane.b32.xlu0 %v2275, 127
  %v2396 = vpop.permute.xlu0 %2395
  %vm2401 = vcmask 515072
  %v2402 = vsel %vm2401, %v2390, 0.0
  %v2403 = vsel %vm2401, %v2392, 0.0
  %v2404 = vsel %vm2401, %v2394, 0.0
  %v2405 = vsel %vm2401, %v2396, 0.0
  %v2406 = vsel %vm2364, %v2402, 0.0
  %v2407 = vsel %vm2364, %v2403, 0.0
  %v2408 = vsel %vm2364, %v2404, 0.0
  %v2409 = vsel %vm2364, %v2405, 0.0
  %2410 = vrot.lane.b32.xlu0 %v2264, 121
  %v2411 = vpop.permute.xlu0 %2410
  %2412 = vrot.lane.b32.xlu0 %v2267, 121
  %v2413 = vpop.permute.xlu0 %2412
  %2414 = vrot.lane.b32.xlu0 %v2272, 121
  %v2415 = vpop.permute.xlu0 %2414
  %2416 = vrot.lane.b32.xlu0 %v2275, 121
  %v2417 = vpop.permute.xlu0 %2416
  %vm2422 = vcmask 465920
  %v2423 = vsel %vm2422, %v2411, 0.0
  %v2424 = vsel %vm2422, %v2413, 0.0
  %v2425 = vsel %vm2422, %v2415, 0.0
  %v2426 = vsel %vm2422, %v2417, 0.0
  %v2427 = vsel %vm2324, %v2423, 0.0
  %v2428 = vsel %vm2324, %v2424, 0.0
  %v2429 = vsel %vm2324, %v2425, 0.0
  %v2430 = vsel %vm2324, %v2426, 0.0
  %2431 = vrot.lane.b32.xlu0 %v2264, 120
  %v2432 = vpop.permute.xlu0 %2431
  %2433 = vrot.lane.b32.xlu0 %v2267, 120
  %v2434 = vpop.permute.xlu0 %2433
  %2435 = vrot.lane.b32.xlu0 %v2272, 120
  %v2436 = vpop.permute.xlu0 %2435
  %2437 = vrot.lane.b32.xlu0 %v2275, 120
  %v2438 = vpop.permute.xlu0 %2437
  %vm2443 = vcmask 457728
  %v2444 = vsel %vm2443, %v2432, 0.0
  %v2445 = vsel %vm2443, %v2434, 0.0
  %v2446 = vsel %vm2443, %v2436, 0.0
  %v2447 = vsel %vm2443, %v2438, 0.0
  %2448 = vrot.lane.b32.xlu0 %v2264, 119
  %v2449 = vpop.permute.xlu0 %2448
  %2450 = vrot.lane.b32.xlu0 %v2267, 119
  %v2451 = vpop.permute.xlu0 %2450
  %2452 = vrot.lane.b32.xlu0 %v2272, 119
  %v2453 = vpop.permute.xlu0 %2452
  %2454 = vrot.lane.b32.xlu0 %v2275, 119
  %v2455 = vpop.permute.xlu0 %2454
  %vm2460 = vcmask 449536
  %v2461 = vsel %vm2460, %v2449, 0.0
  %v2462 = vsel %vm2460, %v2451, 0.0
  %v2463 = vsel %vm2460, %v2453, 0.0
  %v2464 = vsel %vm2460, %v2455, 0.0
  %v2465 = vsel %vm2364, %v2461, 0.0
  %v2466 = vsel %vm2364, %v2462, 0.0
  %v2467 = vsel %vm2364, %v2463, 0.0
  %v2468 = vsel %vm2364, %v2464, 0.0
  %v2469 = vpack.c.bf16 %v2326, %v2325
  %v2470 = vpack.c.bf16 %v2328, %v2327
  %v2471 = vpack.c.bf16 %v2343, %v2342
  %v2472 = vpack.c.bf16 %v2345, %v2344
  %v2473 = vpack.c.bf16 %v2366, %v2365
  %v2474 = vpack.c.bf16 %v2368, %v2367
  %v2475 = vpack.c.bf16 %v2386, %v2385
  %v2476 = vpack.c.bf16 %v2388, %v2387
  %v2477 = vpack.c.bf16 %v2267, %v2264
  %v2478 = vpack.c.bf16 %v2275, %v2272
  %v2479 = vpack.c.bf16 %v2407, %v2406
  %v2480 = vpack.c.bf16 %v2409, %v2408
  %v2481 = vpack.c.bf16 %v2428, %v2427
  %v2482 = vpack.c.bf16 %v2430, %v2429
  %v2483 = vpack.c.bf16 %v2445, %v2444
  %v2484 = vpack.c.bf16 %v2447, %v2446
  %v2485 = vpack.c.bf16 %v2466, %v2465
  %v2486 = vpack.c.bf16 %v2468, %v2467
  %2488 = vset.pattern.permute.xlu0 0
  %2489 = vperm.xlu0 %2488, %v2294
  %v2490 = vpop.permute.xlu0 %2489
  %2493 = vset.pattern.permute.xlu0 0
  %2494 = vperm.xlu0 %2493, %v2295
  %v2495 = vpop.permute.xlu0 %2494
  %2498 = vset.pattern.permute.xlu0 0
  %2499 = vperm.xlu0 %2498, %v2296
  %v2500 = vpop.permute.xlu0 %2499
  %2503 = vset.pattern.permute.xlu0 0
  %2504 = vperm.xlu0 %2503, %v2297
  %v2505 = vpop.permute.xlu0 %2504
  %2508 = vset.pattern.permute.xlu0 0
  %2509 = vperm.xlu0 %2508, %v2298
  %v2510 = vpop.permute.xlu0 %2509
  %2513 = vset.pattern.permute.xlu0 0
  %2514 = vperm.xlu0 %2513, %v2299
  %v2515 = vpop.permute.xlu0 %2514
  %2518 = vset.pattern.permute.xlu0 0
  %2519 = vperm.xlu0 %2518, %v2300
  %v2520 = vpop.permute.xlu0 %2519
  %2523 = vset.pattern.permute.xlu0 0
  %2524 = vperm.xlu0 %2523, %v2301
  %v2525 = vpop.permute.xlu0 %2524
  %v2543 = vunpack.c.l.b16 %v2278
  %v2544 = vunpack.c.h.b16 %v2278
  %v2545 = vunpack.c.l.b16 %v2279
  %v2546 = vunpack.c.l.b16 %v2280
  %v2547 = vunpack.c.h.b16 %v2280
  %v2548 = vunpack.c.l.b16 %v2281
  %v2549 = vunpack.c.l.b16 %v2282
  %v2550 = vunpack.c.h.b16 %v2282
  %v2551 = vunpack.c.l.b16 %v2283
  %v2552 = vunpack.c.l.b16 %v2284
  %v2553 = vunpack.c.h.b16 %v2284
  %v2554 = vunpack.c.l.b16 %v2285
  %v2555 = vunpack.c.l.b16 %v2286
  %v2556 = vunpack.c.h.b16 %v2286
  %v2557 = vunpack.c.l.b16 %v2287
  %v2558 = vunpack.c.l.b16 %v2288
  %v2559 = vunpack.c.h.b16 %v2288
  %v2560 = vunpack.c.l.b16 %v2289
  %v2561 = vunpack.c.l.b16 %v2290
  %v2562 = vunpack.c.h.b16 %v2290
  %v2563 = vunpack.c.l.b16 %v2291
  %v2564 = vunpack.c.l.b16 %v2292
  %v2565 = vunpack.c.h.b16 %v2292
  %v2566 = vunpack.c.l.b16 %v2293
  %v2567 = vpack.c.b16 %v2546, %v2543
  %v2568 = vpack.c.b16 %v2547, %v2544
  %v2569 = vpack.c.b16 %v2548, %v2545
  %v2570 = vpack.c.b16 %v2552, %v2549
  %v2571 = vpack.c.b16 %v2553, %v2550
  %v2572 = vpack.c.b16 %v2554, %v2551
  %v2573 = vpack.c.b16 %v2558, %v2555
  %v2574 = vpack.c.b16 %v2559, %v2556
  %v2575 = vpack.c.b16 %v2560, %v2557
  %v2576 = vpack.c.b16 %v2564, %v2561
  %v2577 = vpack.c.b16 %v2565, %v2562
  %v2578 = vpack.c.b16 %v2566, %v2563
  %v2588 = vsel %vm176, %v2569, 0
  %v2591 = vsel %vm176, %v2572, 0
  %v2594 = vsel %vm176, %v2575, 0
  %v2597 = vsel %vm176, %v2578, 0
  %2599 = vmatprep.subr.bf16.mxu0 0
  %2600 = vmatpush1.bf16.msra.mxu0 %v2469
  %2601 = vmatprep.subr.bf16.mxu0 0
  %2602 = vmatpush1.bf16.msra.mxu0 %v2470
  %2603 = vmatprep.subr.bf16.mxu0 0
  %2604 = vmatpush1.bf16.msra.mxu0 %v2471
  %2605 = vmatprep.subr.bf16.mxu0 0
  %2606 = vmatpush1.bf16.msra.mxu0 %v2472
  %2607 = vmatprep.subr.bf16.mxu0 0
  %2608 = vmatpush1.bf16.msra.mxu0 %v2473
  %2609 = vmatprep.subr.bf16.mxu0 0
  %2610 = vmatpush1.bf16.msra.mxu0 %v2474
  %2611 = vmatprep.subr.bf16.mxu0 0
  %2612 = vmatpush1.bf16.msra.mxu0 %v2475
  %2613 = vmatprep.subr.bf16.mxu0 0
  %2614 = vmatpush1.bf16.msra.mxu0 %v2476
  %2615 = vmatprep.subr.bf16.mxu0 0
  %2616 = vmatpush1.bf16.msra.mxu0 %v2477
  %2617 = vmatprep.subr.bf16.mxu0 0
  %2618 = vmatpush1.bf16.msra.mxu0 %v2478
  %2619 = vmatprep.subr.bf16.mxu0 0
  %2620 = vmatpush1.bf16.msra.mxu0 %v2479
  %2621 = vmatprep.subr.bf16.mxu0 0
  %2622 = vmatpush1.bf16.msra.mxu0 %v2480
  %2623 = vmatprep.subr.bf16.mxu0 0
  %2624 = vmatpush1.bf16.msra.mxu0 %v2481
  %2625 = vmatprep.subr.bf16.mxu0 0
  %2626 = vmatpush1.bf16.msra.mxu0 %v2482
  %2627 = vmatprep.subr.bf16.mxu0 0
  %2628 = vmatpush1.bf16.msra.mxu0 %v2483
  %2629 = vmatprep.subr.bf16.mxu0 0
  %2630 = vmatpush1.bf16.msra.mxu0 %v2484
  %2631 = vmatprep.mubr.bf16.mxu0 %v2568
  %2632 = vmatmul.mubr.bf16.gmra.mrb[0].mxu0 %v2567
  %v2633 = vpop.f32.mrb[0].mxu0
  %v2634 = vadd.f32 %v2490, %v2633
  %v2635 = vpop.f32.mrb[0].mxu0
  %v2636 = vpop.f32.mrb[0].mxu0
  %v2637 = vadd.f32 %v2495, %v2636
  %v2638 = vpop.f32.mrb[0].mxu0
  %2639 = vmatprep.mubr.bf16.mxu0 %v2571
  %2640 = vmatmul.mubr.bf16.gmra.mrb[0].mxu0 %v2570
  %v2641 = vpop.f32.mrb[0].mxu0
  %v2642 = vadd.f32 %v2500, %v2641
  %v2643 = vpop.f32.mrb[0].mxu0
  %v2644 = vpop.f32.mrb[0].mxu0
  %v2645 = vadd.f32 %v2505, %v2644
  %v2646 = vpop.f32.mrb[0].mxu0
  %2647 = vmatprep.mubr.bf16.mxu0 %v2574
  %2648 = vmatmul.mubr.bf16.gmra.mrb[0].mxu0 %v2573
  %v2649 = vpop.f32.mrb[0].mxu0
  %v2650 = vadd.f32 %v2510, %v2649
  %v2651 = vpop.f32.mrb[0].mxu0
  %v2652 = vpop.f32.mrb[0].mxu0
  %v2653 = vadd.f32 %v2515, %v2652
  %v2654 = vpop.f32.mrb[0].mxu0
  %2655 = vmatprep.mubr.bf16.mxu0 %v2577
  %2656 = vmatmul.mubr.bf16.gmra.mrb[0].mxu0 %v2576
  %v2657 = vpop.f32.mrb[0].mxu0
  %v2658 = vadd.f32 %v2520, %v2657
  %v2659 = vpop.f32.mrb[0].mxu0
  %v2660 = vpop.f32.mrb[0].mxu0
  %v2661 = vadd.f32 %v2525, %v2660
  %v2662 = vpop.f32.mrb[0].mxu0
  %2663 = vdwg.mxu0
  %2664 = vmatprep.subr.bf16.mxu0 0
  %2665 = vmatpush1.bf16.msra.mxu0 %v2485
  %2666 = vmatprep.subr.bf16.mxu0 0
  %2667 = vmatpush1.bf16.msra.mxu0 %v2486
  %2668 = vmatprep.subr.bf16.mxu0 0
  %2669 = vmatpush1.bf16.msra.mxu0 0
  %2670 = vmatprep.subr.bf16.mxu0 0
  %2671 = vmatpush1.bf16.msra.mxu0 0
  %2672 = vmatprep.subr.bf16.mxu0 0
  %2673 = vmatpush1.bf16.msra.mxu0 0
  %2674 = vmatprep.subr.bf16.mxu0 0
  %2675 = vmatpush1.bf16.msra.mxu0 0
  %2676 = vmatprep.subr.bf16.mxu0 0
  %2677 = vmatpush1.bf16.msra.mxu0 0
  %2678 = vmatprep.subr.bf16.mxu0 0
  %2679 = vmatpush1.bf16.msra.mxu0 0
  %2680 = vmatprep.subr.bf16.mxu0 0
  %2681 = vmatpush1.bf16.msra.mxu0 0
  %2682 = vmatprep.subr.bf16.mxu0 0
  %2683 = vmatpush1.bf16.msra.mxu0 0
  %2684 = vmatprep.subr.bf16.mxu0 0
  %2685 = vmatpush1.bf16.msra.mxu0 0
  %2686 = vmatprep.subr.bf16.mxu0 0
  %2687 = vmatpush1.bf16.msra.mxu0 0
  %2688 = vmatprep.subr.bf16.mxu0 0
  %2689 = vmatpush1.bf16.msra.mxu0 0
  %2690 = vmatprep.subr.bf16.mxu0 0
  %2691 = vmatpush1.bf16.msra.mxu0 0
  %2692 = vmatprep.subr.bf16.mxu0 0
  %2693 = vmatpush1.bf16.msra.mxu0 0
  %2694 = vmatprep.subr.bf16.mxu0 0
  %2695 = vmatpush1.bf16.msra.mxu0 0
  %2696 = vmatprep.mubr.bf16.mxu0 0
  %2697 = vmatmul.mubr.bf16.gmra.mrb[0].mxu0 %v2588
  %v2698 = vpop.f32.mrb[0].mxu0
  %v2699 = vadd.f32 %v2634, %v2698
  %v2700 = vpop.f32.mrb[0].mxu0
  %v2701 = vpop.f32.mrb[0].mxu0
  %v2702 = vadd.f32 %v2637, %v2701
  %v2703 = vpop.f32.mrb[0].mxu0
  %2704 = vmatprep.mubr.bf16.mxu0 0
  %2705 = vmatmul.mubr.bf16.gmra.mrb[0].mxu0 %v2591
  %v2706 = vpop.f32.mrb[0].mxu0
  %v2707 = vadd.f32 %v2642, %v2706
  %v2708 = vpop.f32.mrb[0].mxu0
  %v2709 = vpop.f32.mrb[0].mxu0
  %v2710 = vadd.f32 %v2645, %v2709
  %v2711 = vpop.f32.mrb[0].mxu0
  %2712 = vmatprep.mubr.bf16.mxu0 0
  %2713 = vmatmul.mubr.bf16.gmra.mrb[0].mxu0 %v2594
  %v2714 = vpop.f32.mrb[0].mxu0
  %v2715 = vadd.f32 %v2650, %v2714
  %v2716 = vpop.f32.mrb[0].mxu0
  %v2717 = vpop.f32.mrb[0].mxu0
  %v2718 = vadd.f32 %v2653, %v2717
  %v2719 = vpop.f32.mrb[0].mxu0
  %2720 = vmatprep.mubr.bf16.mxu0 0
  %2721 = vmatmul.mubr.bf16.gmra.mrb[0].mxu0 %v2597
  %v2722 = vpop.f32.mrb[0].mxu0
  %v2723 = vadd.f32 %v2658, %v2722
  %v2724 = vpop.f32.mrb[0].mxu0
  %v2725 = vpop.f32.mrb[0].mxu0
  %v2726 = vadd.f32 %v2661, %v2725
  %v2727 = vpop.f32.mrb[0].mxu0
  %2728 = vdwg.mxu0
  %v2729 = vmax.f32 %v2699, 0.0
  %v2730 = vmax.f32 %v2702, 0.0
  %v2731 = vmax.f32 %v2707, 0.0
  %v2732 = vmax.f32 %v2710, 0.0
  %v2733 = vmax.f32 %v2715, 0.0
  %v2734 = vmax.f32 %v2718, 0.0
  %v2735 = vmax.f32 %v2723, 0.0
  %v2736 = vmax.f32 %v2726, 0.0
  %v2737 = vpack.c.bf16 %v2730, %v2729
  %v2738 = vpack.c.bf16 %v2732, %v2731
  %v2739 = vpack.c.bf16 %v2734, %v2733
  %v2740 = vpack.c.bf16 %v2736, %v2735
  %v2741 = vshra.s32 %v891, 1
  %v2742 = vshra.s32 %v892, 1
  %v2743 = vmul.u32 %v2741, 8
  %v2744 = vmul.u32 %v2742, 8
  %v2745 = vshra.s32 %v78, 1
  %v2746 = vshra.s32 %v79, 1
  %v2747 = vadd.s32 %v2743, %v2745
  %v2748 = vadd.s32 %v2744, %v2746
  %vm2749 = vcmp.eq.s32.totalorder %v900, %v2747
  %vm2750 = vcmp.eq.s32.totalorder %v900, %v2748
  %vm2751 = vcmp.eq.s32.totalorder %v901, %v2747
  %vm2752 = vcmp.eq.s32.totalorder %v901, %v2748
  %vm2753 = vcmp.eq.s32.totalorder %v902, %v2747
  %vm2754 = vcmp.eq.s32.totalorder %v902, %v2748
  %vm2755 = vcmp.eq.s32.totalorder %v903, %v2747
  %vm2756 = vcmp.eq.s32.totalorder %v903, %v2748
  %vm2757 = vcmp.eq.s32.totalorder %v904, %v2747
  %vm2758 = vcmp.eq.s32.totalorder %v904, %v2748
  %vm2759 = vcmp.eq.s32.totalorder %v905, %v2747
  %vm2760 = vcmp.eq.s32.totalorder %v905, %v2748
  %vm2761 = vcmp.eq.s32.totalorder %v906, %v2747
  %vm2762 = vcmp.eq.s32.totalorder %v906, %v2748
  %vm2763 = vcmp.eq.s32.totalorder %v907, %v2747
  %vm2764 = vcmp.eq.s32.totalorder %v907, %v2748
  %v2765 = vsel %vm2749, 1.0, 0.0
  %v2766 = vsel %vm2750, 1.0, 0.0
  %v2767 = vsel %vm2751, 1.0, 0.0
  %v2768 = vsel %vm2752, 1.0, 0.0
  %v2769 = vsel %vm2753, 1.0, 0.0
  %v2770 = vsel %vm2754, 1.0, 0.0
  %v2771 = vsel %vm2755, 1.0, 0.0
  %v2772 = vsel %vm2756, 1.0, 0.0
  %v2773 = vsel %vm2757, 1.0, 0.0
  %v2774 = vsel %vm2758, 1.0, 0.0
  %v2775 = vsel %vm2759, 1.0, 0.0
  %v2776 = vsel %vm2760, 1.0, 0.0
  %v2777 = vsel %vm2761, 1.0, 0.0
  %v2778 = vsel %vm2762, 1.0, 0.0
  %v2779 = vsel %vm2763, 1.0, 0.0
  %v2780 = vsel %vm2764, 1.0, 0.0
  %v2781 = vpack.c.bf16 %v2767, %v2765
  %v2782 = vpack.c.bf16 %v2768, %v2766
  %v2783 = vpack.c.bf16 %v2771, %v2769
  %v2784 = vpack.c.bf16 %v2772, %v2770
  %v2785 = vpack.c.bf16 %v2775, %v2773
  %v2786 = vpack.c.bf16 %v2776, %v2774
  %v2787 = vpack.c.bf16 %v2779, %v2777
  %v2788 = vpack.c.bf16 %v2780, %v2778
  %vm2789 = vcmask 523264
  %v2791 = vsel %vm2789, %v2737, 0
  %v2794 = vsel %vm2789, %v2738, 0
  %v2797 = vsel %vm2789, %v2739, 0
  %v2800 = vsel %vm2789, %v2740, 0
  %2802 = vmatprep.subr.bf16.mxu0 %v2782
  %2803 = vmatpush1.bf16.msra.mxu0 %v2781
  %2804 = vmatprep.subr.bf16.mxu0 %v2784
  %2805 = vmatpush1.bf16.msra.mxu0 %v2783
  %2806 = vmatprep.subr.bf16.mxu0 %v2786
  %2807 = vmatpush1.bf16.msra.mxu0 %v2785
  %2808 = vmatprep.subr.bf16.mxu0 %v2788
  %2809 = vmatpush1.bf16.msra.mxu0 %v2787
  %2810 = vmatprep.subr.bf16.mxu0 0
  %2811 = vmatpush1.bf16.msra.mxu0 0
  %2812 = vmatprep.subr.bf16.mxu0 0
  %2813 = vmatpush1.bf16.msra.mxu0 0
  %2814 = vmatprep.subr.bf16.mxu0 0
  %2815 = vmatpush1.bf16.msra.mxu0 0
  %2816 = vmatprep.subr.bf16.mxu0 0
  %2817 = vmatpush1.bf16.msra.mxu0 0
  %2818 = vmatprep.subr.bf16.mxu0 0
  %2819 = vmatpush1.bf16.msra.mxu0 0
  %2820 = vmatprep.subr.bf16.mxu0 0
  %2821 = vmatpush1.bf16.msra.mxu0 0
  %2822 = vmatprep.subr.bf16.mxu0 0
  %2823 = vmatpush1.bf16.msra.mxu0 0
  %2824 = vmatprep.subr.bf16.mxu0 0
  %2825 = vmatpush1.bf16.msra.mxu0 0
  %2826 = vmatprep.subr.bf16.mxu0 0
  %2827 = vmatpush1.bf16.msra.mxu0 0
  %2828 = vmatprep.subr.bf16.mxu0 0
  %2829 = vmatpush1.bf16.msra.mxu0 0
  %2830 = vmatprep.subr.bf16.mxu0 0
  %2831 = vmatpush1.bf16.msra.mxu0 0
  %2832 = vmatprep.subr.bf16.mxu0 0
  %2833 = vmatpush1.bf16.msra.mxu0 0
  %2834 = vmatprep.mubr.bf16.mxu0 0
  %2835 = vmatmul.mubr.bf16.gmra.mrb[0].mxu0 %v2791
  %v2836 = vpop.f32.mrb[0].mxu0
  %v2837 = vadd.f32 0.0, %v2836
  %v2838 = vpop.f32.mrb[0].mxu0
  %v2839 = vadd.f32 0.0, %v2838
  %v2840 = vpop.f32.mrb[0].mxu0
  %v2841 = vadd.f32 0.0, %v2840
  %v2842 = vpop.f32.mrb[0].mxu0
  %v2843 = vadd.f32 0.0, %v2842
  %2844 = vmatprep.mubr.bf16.mxu0 0
  %2845 = vmatmul.mubr.bf16.gmra.mrb[0].mxu0 %v2794
  %v2846 = vpop.f32.mrb[0].mxu0
  %v2847 = vadd.f32 0.0, %v2846
  %v2848 = vpop.f32.mrb[0].mxu0
  %v2849 = vadd.f32 0.0, %v2848
  %v2850 = vpop.f32.mrb[0].mxu0
  %v2851 = vadd.f32 0.0, %v2850
  %v2852 = vpop.f32.mrb[0].mxu0
  %v2853 = vadd.f32 0.0, %v2852
  %2854 = vmatprep.mubr.bf16.mxu0 0
  %2855 = vmatmul.mubr.bf16.gmra.mrb[0].mxu0 %v2797
  %v2856 = vpop.f32.mrb[0].mxu0
  %v2857 = vadd.f32 0.0, %v2856
  %v2858 = vpop.f32.mrb[0].mxu0
  %v2859 = vadd.f32 0.0, %v2858
  %v2860 = vpop.f32.mrb[0].mxu0
  %v2861 = vadd.f32 0.0, %v2860
  %v2862 = vpop.f32.mrb[0].mxu0
  %v2863 = vadd.f32 0.0, %v2862
  %2864 = vmatprep.mubr.bf16.mxu0 0
  %2865 = vmatmul.mubr.bf16.gmra.mrb[0].mxu0 %v2800
  %v2866 = vpop.f32.mrb[0].mxu0
  %v2867 = vadd.f32 0.0, %v2866
  %v2868 = vpop.f32.mrb[0].mxu0
  %v2869 = vadd.f32 0.0, %v2868
  %v2870 = vpop.f32.mrb[0].mxu0
  %v2871 = vadd.f32 0.0, %v2870
  %v2872 = vpop.f32.mrb[0].mxu0
  %v2873 = vadd.f32 0.0, %v2872
  %2874 = vdwg.mxu0
  %v2875 = vld [vmem:[%s7] sm:$0xff]
  %v2876 = vld [vmem:[%s7 + $0x8] sm:$0xff]
  %v2877 = vld [vmem:[%s7 + $0x10] sm:$0xff]
  %v2878 = vld [vmem:[%s7 + $0x18] sm:$0xf]
  %v2879 = vld [vmem:[%s7 + $0x1c] sm:$0xff]
  %v2880 = vld [vmem:[%s7 + $0x24] sm:$0xff]
  %v2881 = vld [vmem:[%s7 + $0x2c] sm:$0xff]
  %v2882 = vld [vmem:[%s7 + $0x34] sm:$0xf]
  %v2883 = vld [vmem:[%s7 + $0x38] sm:$0xff]
  %v2884 = vld [vmem:[%s7 + $0x40] sm:$0xff]
  %v2885 = vld [vmem:[%s7 + $0x48] sm:$0xff]
  %v2886 = vld [vmem:[%s7 + $0x50] sm:$0xf]
  %v2887 = vld [vmem:[%s7 + $0x54] sm:$0xff]
  %v2888 = vld [vmem:[%s7 + $0x5c] sm:$0xff]
  %v2889 = vld [vmem:[%s7 + $0x64] sm:$0xff]
  %v2890 = vld [vmem:[%s7 + $0x6c] sm:$0xf]
  %v2891 = vld [vmem:[%s8] sm:$0xff]
  %v2892 = vld [vmem:[%s8 + $0x8] sm:$0xff]
  %v2893 = vld [vmem:[%s8 + $0x10] sm:$0xff]
  %v2894 = vld [vmem:[%s8 + $0x18] sm:$0xff]
  %2919 = vrot.lane.b32.xlu0 %v2837, 17
  %v2920 = vpop.permute.xlu0 %2919
  %2921 = vrot.lane.b32.xlu0 %v2839, 17
  %v2922 = vpop.permute.xlu0 %2921
  %2923 = vrot.lane.b32.xlu0 %v2841, 17
  %v2924 = vpop.permute.xlu0 %2923
  %2925 = vrot.lane.b32.xlu0 %v2843, 17
  %v2926 = vpop.permute.xlu0 %2925
  %2927 = vrot.lane.b32.xlu0 %v2847, 17
  %v2928 = vpop.permute.xlu0 %2927
  %2929 = vrot.lane.b32.xlu0 %v2849, 17
  %v2930 = vpop.permute.xlu0 %2929
  %2931 = vrot.lane.b32.xlu0 %v2851, 17
  %v2932 = vpop.permute.xlu0 %2931
  %2933 = vrot.lane.b32.xlu0 %v2853, 17
  %v2934 = vpop.permute.xlu0 %2933
  %2935 = vrot.lane.b32.xlu0 %v2857, 17
  %v2936 = vpop.permute.xlu0 %2935
  %2937 = vrot.lane.b32.xlu0 %v2859, 17
  %v2938 = vpop.permute.xlu0 %2937
  %2939 = vrot.lane.b32.xlu0 %v2861, 17
  %v2940 = vpop.permute.xlu0 %2939
  %2941 = vrot.lane.b32.xlu0 %v2863, 17
  %v2942 = vpop.permute.xlu0 %2941
  %2943 = vrot.lane.b32.xlu0 %v2867, 17
  %v2944 = vpop.permute.xlu0 %2943
  %2945 = vrot.lane.b32.xlu0 %v2869, 17
  %v2946 = vpop.permute.xlu0 %2945
  %2947 = vrot.lane.b32.xlu0 %v2871, 17
  %v2948 = vpop.permute.xlu0 %2947
  %2949 = vrot.lane.b32.xlu0 %v2873, 17
  %v2950 = vpop.permute.xlu0 %2949
  %2951 = vrot.lane.b32.xlu0 %v2133, 17
  %v2952 = vpop.permute.xlu0 %2951
  %2953 = vrot.lane.b32.xlu0 %v2134, 17
  %v2954 = vpop.permute.xlu0 %2953
  %2955 = vrot.lane.b32.xlu0 %v2135, 17
  %v2956 = vpop.permute.xlu0 %2955
  %2957 = vrot.lane.b32.xlu0 %v2136, 17
  %v2958 = vpop.permute.xlu0 %2957
  %2959 = vrot.lane.b32.xlu0 %v2137, 17
  %v2960 = vpop.permute.xlu0 %2959
  %2961 = vrot.lane.b32.xlu0 %v2138, 17
  %v2962 = vpop.permute.xlu0 %2961
  %2963 = vrot.lane.b32.xlu0 %v2139, 17
  %v2964 = vpop.permute.xlu0 %2963
  %2965 = vrot.lane.b32.xlu0 %v2140, 17
  %v2966 = vpop.permute.xlu0 %2965
  %v2967 = vsel %vm1860, %v2920, %v2922
  %v2968 = vsel %vm1860, %v2924, %v2926
  %v2969 = vsel %vm1860, %v2928, %v2930
  %v2970 = vsel %vm1860, %v2932, %v2934
  %v2971 = vsel %vm1860, %v2936, %v2938
  %v2972 = vsel %vm1860, %v2940, %v2942
  %v2973 = vsel %vm1860, %v2944, %v2946
  %v2974 = vsel %vm1860, %v2948, %v2950
  %v2975 = vsel %vm1860, %v2952, %v2954
  %v2976 = vsel %vm1860, %v2956, %v2958
  %v2977 = vsel %vm1860, %v2960, %v2962
  %v2978 = vsel %vm1860, %v2964, %v2966
  %v3003 = vsel %vm1860, 0.0, %v2920
  %v3004 = vsel %vm1860, 0.0, %v2924
  %v3005 = vsel %vm1860, 0.0, %v2928
  %v3006 = vsel %vm1860, 0.0, %v2932
  %v3007 = vsel %vm1860, 0.0, %v2936
  %v3008 = vsel %vm1860, 0.0, %v2940
  %v3009 = vsel %vm1860, 0.0, %v2944
  %v3010 = vsel %vm1860, 0.0, %v2948
  %v3011 = vsel %vm1860, 0.0, %v2952
  %v3012 = vsel %vm1860, 0.0, %v2956
  %v3013 = vsel %vm1860, 0.0, %v2960
  %v3014 = vsel %vm1860, 0.0, %v2964
  %v3015 = vsel %vm1871, %v3003, 0.0
  %v3016 = vsel %vm1872, %v2967, 0.0
  %v3017 = vsel %vm1871, %v3004, 0.0
  %v3018 = vsel %vm1872, %v2968, 0.0
  %v3019 = vsel %vm1871, %v3005, 0.0
  %v3020 = vsel %vm1872, %v2969, 0.0
  %v3021 = vsel %vm1871, %v3006, 0.0
  %v3022 = vsel %vm1872, %v2970, 0.0
  %v3023 = vsel %vm1871, %v3007, 0.0
  %v3024 = vsel %vm1872, %v2971, 0.0
  %v3025 = vsel %vm1871, %v3008, 0.0
  %v3026 = vsel %vm1872, %v2972, 0.0
  %v3027 = vsel %vm1871, %v3009, 0.0
  %v3028 = vsel %vm1872, %v2973, 0.0
  %v3029 = vsel %vm1871, %v3010, 0.0
  %v3030 = vsel %vm1872, %v2974, 0.0
  %v3031 = vsel %vm1871, %v3011, 0.0
  %v3032 = vsel %vm1872, %v2975, 0.0
  %v3033 = vsel %vm1871, %v3012, 0.0
  %v3034 = vsel %vm1872, %v2976, 0.0
  %v3035 = vsel %vm1871, %v3013, 0.0
  %v3036 = vsel %vm1872, %v2977, 0.0
  %v3037 = vsel %vm1871, %v3014, 0.0
  %v3038 = vsel %vm1872, %v2978, 0.0
  %3039 = vrot.lane.b32.xlu0 %v2837, 16
  %v3040 = vpop.permute.xlu0 %3039
  %3041 = vrot.lane.b32.xlu0 %v2839, 16
  %v3042 = vpop.permute.xlu0 %3041
  %3043 = vrot.lane.b32.xlu0 %v2841, 16
  %v3044 = vpop.permute.xlu0 %3043
  %3045 = vrot.lane.b32.xlu0 %v2843, 16
  %v3046 = vpop.permute.xlu0 %3045
  %3047 = vrot.lane.b32.xlu0 %v2847, 16
  %v3048 = vpop.permute.xlu0 %3047
  %3049 = vrot.lane.b32.xlu0 %v2849, 16
  %v3050 = vpop.permute.xlu0 %3049
  %3051 = vrot.lane.b32.xlu0 %v2851, 16
  %v3052 = vpop.permute.xlu0 %3051
  %3053 = vrot.lane.b32.xlu0 %v2853, 16
  %v3054 = vpop.permute.xlu0 %3053
  %3055 = vrot.lane.b32.xlu0 %v2857, 16
  %v3056 = vpop.permute.xlu0 %3055
  %3057 = vrot.lane.b32.xlu0 %v2859, 16
  %v3058 = vpop.permute.xlu0 %3057
  %3059 = vrot.lane.b32.xlu0 %v2861, 16
  %v3060 = vpop.permute.xlu0 %3059
  %3061 = vrot.lane.b32.xlu0 %v2863, 16
  %v3062 = vpop.permute.xlu0 %3061
  %3063 = vrot.lane.b32.xlu0 %v2867, 16
  %v3064 = vpop.permute.xlu0 %3063
  %3065 = vrot.lane.b32.xlu0 %v2869, 16
  %v3066 = vpop.permute.xlu0 %3065
  %3067 = vrot.lane.b32.xlu0 %v2871, 16
  %v3068 = vpop.permute.xlu0 %3067
  %3069 = vrot.lane.b32.xlu0 %v2873, 16
  %v3070 = vpop.permute.xlu0 %3069
  %3071 = vrot.lane.b32.xlu0 %v2133, 16
  %v3072 = vpop.permute.xlu0 %3071
  %3073 = vrot.lane.b32.xlu0 %v2134, 16
  %v3074 = vpop.permute.xlu0 %3073
  %3075 = vrot.lane.b32.xlu0 %v2135, 16
  %v3076 = vpop.permute.xlu0 %3075
  %3077 = vrot.lane.b32.xlu0 %v2136, 16
  %v3078 = vpop.permute.xlu0 %3077
  %3079 = vrot.lane.b32.xlu0 %v2137, 16
  %v3080 = vpop.permute.xlu0 %3079
  %3081 = vrot.lane.b32.xlu0 %v2138, 16
  %v3082 = vpop.permute.xlu0 %3081
  %3083 = vrot.lane.b32.xlu0 %v2139, 16
  %v3084 = vpop.permute.xlu0 %3083
  %3085 = vrot.lane.b32.xlu0 %v2140, 16
  %v3086 = vpop.permute.xlu0 %3085
  %v3087 = vsel %vm1885, %v3040, %v3042
  %v3088 = vsel %vm1885, %v3044, %v3046
  %v3089 = vsel %vm1885, %v3048, %v3050
  %v3090 = vsel %vm1885, %v3052, %v3054
  %v3091 = vsel %vm1885, %v3056, %v3058
  %v3092 = vsel %vm1885, %v3060, %v3062
  %v3093 = vsel %vm1885, %v3064, %v3066
  %v3094 = vsel %vm1885, %v3068, %v3070
  %v3095 = vsel %vm1885, %v3072, %v3074
  %v3096 = vsel %vm1885, %v3076, %v3078
  %v3097 = vsel %vm1885, %v3080, %v3082
  %v3098 = vsel %vm1885, %v3084, %v3086
  %v3123 = vsel %vm1885, 0.0, %v3040
  %v3124 = vsel %vm1885, 0.0, %v3044
  %v3125 = vsel %vm1885, 0.0, %v3048
  %v3126 = vsel %vm1885, 0.0, %v3052
  %v3127 = vsel %vm1885, 0.0, %v3056
  %v3128 = vsel %vm1885, 0.0, %v3060
  %v3129 = vsel %vm1885, 0.0, %v3064
  %v3130 = vsel %vm1885, 0.0, %v3068
  %v3131 = vsel %vm1885, 0.0, %v3072
  %v3132 = vsel %vm1885, 0.0, %v3076
  %v3133 = vsel %vm1885, 0.0, %v3080
  %v3134 = vsel %vm1885, 0.0, %v3084
  %3135 = vrot.lane.b32.xlu0 %v2837, 15
  %v3136 = vpop.permute.xlu0 %3135
  %3137 = vrot.lane.b32.xlu0 %v2839, 15
  %v3138 = vpop.permute.xlu0 %3137
  %3139 = vrot.lane.b32.xlu0 %v2841, 15
  %v3140 = vpop.permute.xlu0 %3139
  %3141 = vrot.lane.b32.xlu0 %v2843, 15
  %v3142 = vpop.permute.xlu0 %3141
  %3143 = vrot.lane.b32.xlu0 %v2847, 15
  %v3144 = vpop.permute.xlu0 %3143
  %3145 = vrot.lane.b32.xlu0 %v2849, 15
  %v3146 = vpop.permute.xlu0 %3145
  %3147 = vrot.lane.b32.xlu0 %v2851, 15
  %v3148 = vpop.permute.xlu0 %3147
  %3149 = vrot.lane.b32.xlu0 %v2853, 15
  %v3150 = vpop.permute.xlu0 %3149
  %3151 = vrot.lane.b32.xlu0 %v2857, 15
  %v3152 = vpop.permute.xlu0 %3151
  %3153 = vrot.lane.b32.xlu0 %v2859, 15
  %v3154 = vpop.permute.xlu0 %3153
  %3155 = vrot.lane.b32.xlu0 %v2861, 15
  %v3156 = vpop.permute.xlu0 %3155
  %3157 = vrot.lane.b32.xlu0 %v2863, 15
  %v3158 = vpop.permute.xlu0 %3157
  %3159 = vrot.lane.b32.xlu0 %v2867, 15
  %v3160 = vpop.permute.xlu0 %3159
  %3161 = vrot.lane.b32.xlu0 %v2869, 15
  %v3162 = vpop.permute.xlu0 %3161
  %3163 = vrot.lane.b32.xlu0 %v2871, 15
  %v3164 = vpop.permute.xlu0 %3163
  %3165 = vrot.lane.b32.xlu0 %v2873, 15
  %v3166 = vpop.permute.xlu0 %3165
  %3167 = vrot.lane.b32.xlu0 %v2133, 15
  %v3168 = vpop.permute.xlu0 %3167
  %3169 = vrot.lane.b32.xlu0 %v2134, 15
  %v3170 = vpop.permute.xlu0 %3169
  %3171 = vrot.lane.b32.xlu0 %v2135, 15
  %v3172 = vpop.permute.xlu0 %3171
  %3173 = vrot.lane.b32.xlu0 %v2136, 15
  %v3174 = vpop.permute.xlu0 %3173
  %3175 = vrot.lane.b32.xlu0 %v2137, 15
  %v3176 = vpop.permute.xlu0 %3175
  %3177 = vrot.lane.b32.xlu0 %v2138, 15
  %v3178 = vpop.permute.xlu0 %3177
  %3179 = vrot.lane.b32.xlu0 %v2139, 15
  %v3180 = vpop.permute.xlu0 %3179
  %3181 = vrot.lane.b32.xlu0 %v2140, 15
  %v3182 = vpop.permute.xlu0 %3181
  %v3183 = vsel %vm1902, %v3136, %v3138
  %v3184 = vsel %vm1902, %v3140, %v3142
  %v3185 = vsel %vm1902, %v3144, %v3146
  %v3186 = vsel %vm1902, %v3148, %v3150
  %v3187 = vsel %vm1902, %v3152, %v3154
  %v3188 = vsel %vm1902, %v3156, %v3158
  %v3189 = vsel %vm1902, %v3160, %v3162
  %v3190 = vsel %vm1902, %v3164, %v3166
  %v3191 = vsel %vm1902, %v3168, %v3170
  %v3192 = vsel %vm1902, %v3172, %v3174
  %v3193 = vsel %vm1902, %v3176, %v3178
  %v3194 = vsel %vm1902, %v3180, %v3182
  %v3219 = vsel %vm1902, 0.0, %v3136
  %v3220 = vsel %vm1902, 0.0, %v3140
  %v3221 = vsel %vm1902, 0.0, %v3144
  %v3222 = vsel %vm1902, 0.0, %v3148
  %v3223 = vsel %vm1902, 0.0, %v3152
  %v3224 = vsel %vm1902, 0.0, %v3156
  %v3225 = vsel %vm1902, 0.0, %v3160
  %v3226 = vsel %vm1902, 0.0, %v3164
  %v3227 = vsel %vm1902, 0.0, %v3168
  %v3228 = vsel %vm1902, 0.0, %v3172
  %v3229 = vsel %vm1902, 0.0, %v3176
  %v3230 = vsel %vm1902, 0.0, %v3180
  %v3231 = vsel %vm1913, %v3219, 0.0
  %v3232 = vsel %vm1914, %v3183, 0.0
  %v3233 = vsel %vm1913, %v3220, 0.0
  %v3234 = vsel %vm1914, %v3184, 0.0
  %v3235 = vsel %vm1913, %v3221, 0.0
  %v3236 = vsel %vm1914, %v3185, 0.0
  %v3237 = vsel %vm1913, %v3222, 0.0
  %v3238 = vsel %vm1914, %v3186, 0.0
  %v3239 = vsel %vm1913, %v3223, 0.0
  %v3240 = vsel %vm1914, %v3187, 0.0
  %v3241 = vsel %vm1913, %v3224, 0.0
  %v3242 = vsel %vm1914, %v3188, 0.0
  %v3243 = vsel %vm1913, %v3225, 0.0
  %v3244 = vsel %vm1914, %v3189, 0.0
  %v3245 = vsel %vm1913, %v3226, 0.0
  %v3246 = vsel %vm1914, %v3190, 0.0
  %v3247 = vsel %vm1913, %v3227, 0.0
  %v3248 = vsel %vm1914, %v3191, 0.0
  %v3249 = vsel %vm1913, %v3228, 0.0
  %v3250 = vsel %vm1914, %v3192, 0.0
  %v3251 = vsel %vm1913, %v3229, 0.0
  %v3252 = vsel %vm1914, %v3193, 0.0
  %v3253 = vsel %vm1913, %v3230, 0.0
  %v3254 = vsel %vm1914, %v3194, 0.0
  %3255 = vrot.lane.b32.xlu0 %v2837, 1
  %v3256 = vpop.permute.xlu0 %3255
  %3257 = vrot.lane.b32.xlu0 %v2839, 1
  %v3258 = vpop.permute.xlu0 %3257
  %3259 = vrot.lane.b32.xlu0 %v2841, 1
  %v3260 = vpop.permute.xlu0 %3259
  %3261 = vrot.lane.b32.xlu0 %v2843, 1
  %v3262 = vpop.permute.xlu0 %3261
  %3263 = vrot.lane.b32.xlu0 %v2847, 1
  %v3264 = vpop.permute.xlu0 %3263
  %3265 = vrot.lane.b32.xlu0 %v2849, 1
  %v3266 = vpop.permute.xlu0 %3265
  %3267 = vrot.lane.b32.xlu0 %v2851, 1
  %v3268 = vpop.permute.xlu0 %3267
  %3269 = vrot.lane.b32.xlu0 %v2853, 1
  %v3270 = vpop.permute.xlu0 %3269
  %3271 = vrot.lane.b32.xlu0 %v2857, 1
  %v3272 = vpop.permute.xlu0 %3271
  %3273 = vrot.lane.b32.xlu0 %v2859, 1
  %v3274 = vpop.permute.xlu0 %3273
  %3275 = vrot.lane.b32.xlu0 %v2861, 1
  %v3276 = vpop.permute.xlu0 %3275
  %3277 = vrot.lane.b32.xlu0 %v2863, 1
  %v3278 = vpop.permute.xlu0 %3277
  %3279 = vrot.lane.b32.xlu0 %v2867, 1
  %v3280 = vpop.permute.xlu0 %3279
  %3281 = vrot.lane.b32.xlu0 %v2869, 1
  %v3282 = vpop.permute.xlu0 %3281
  %3283 = vrot.lane.b32.xlu0 %v2871, 1
  %v3284 = vpop.permute.xlu0 %3283
  %3285 = vrot.lane.b32.xlu0 %v2873, 1
  %v3286 = vpop.permute.xlu0 %3285
  %3287 = vrot.lane.b32.xlu0 %v2133, 1
  %v3288 = vpop.permute.xlu0 %3287
  %3289 = vrot.lane.b32.xlu0 %v2134, 1
  %v3290 = vpop.permute.xlu0 %3289
  %3291 = vrot.lane.b32.xlu0 %v2135, 1
  %v3292 = vpop.permute.xlu0 %3291
  %3293 = vrot.lane.b32.xlu0 %v2136, 1
  %v3294 = vpop.permute.xlu0 %3293
  %3295 = vrot.lane.b32.xlu0 %v2137, 1
  %v3296 = vpop.permute.xlu0 %3295
  %3297 = vrot.lane.b32.xlu0 %v2138, 1
  %v3298 = vpop.permute.xlu0 %3297
  %3299 = vrot.lane.b32.xlu0 %v2139, 1
  %v3300 = vpop.permute.xlu0 %3299
  %3301 = vrot.lane.b32.xlu0 %v2140, 1
  %v3302 = vpop.permute.xlu0 %3301
  %v3303 = vsel %vm259, %v3256, %v3258
  %v3304 = vsel %vm259, %v3260, %v3262
  %v3305 = vsel %vm259, %v3264, %v3266
  %v3306 = vsel %vm259, %v3268, %v3270
  %v3307 = vsel %vm259, %v3272, %v3274
  %v3308 = vsel %vm259, %v3276, %v3278
  %v3309 = vsel %vm259, %v3280, %v3282
  %v3310 = vsel %vm259, %v3284, %v3286
  %v3311 = vsel %vm259, %v3288, %v3290
  %v3312 = vsel %vm259, %v3292, %v3294
  %v3313 = vsel %vm259, %v3296, %v3298
  %v3314 = vsel %vm259, %v3300, %v3302
  %v3339 = vsel %vm259, 0.0, %v3256
  %v3340 = vsel %vm259, 0.0, %v3260
  %v3341 = vsel %vm259, 0.0, %v3264
  %v3342 = vsel %vm259, 0.0, %v3268
  %v3343 = vsel %vm259, 0.0, %v3272
  %v3344 = vsel %vm259, 0.0, %v3276
  %v3345 = vsel %vm259, 0.0, %v3280
  %v3346 = vsel %vm259, 0.0, %v3284
  %v3347 = vsel %vm259, 0.0, %v3288
  %v3348 = vsel %vm259, 0.0, %v3292
  %v3349 = vsel %vm259, 0.0, %v3296
  %v3350 = vsel %vm259, 0.0, %v3300
  %v3351 = vsel %vm1871, %v3339, 0.0
  %v3352 = vsel %vm1872, %v3303, 0.0
  %v3353 = vsel %vm1871, %v3340, 0.0
  %v3354 = vsel %vm1872, %v3304, 0.0
  %v3355 = vsel %vm1871, %v3341, 0.0
  %v3356 = vsel %vm1872, %v3305, 0.0
  %v3357 = vsel %vm1871, %v3342, 0.0
  %v3358 = vsel %vm1872, %v3306, 0.0
  %v3359 = vsel %vm1871, %v3343, 0.0
  %v3360 = vsel %vm1872, %v3307, 0.0
  %v3361 = vsel %vm1871, %v3344, 0.0
  %v3362 = vsel %vm1872, %v3308, 0.0
  %v3363 = vsel %vm1871, %v3345, 0.0
  %v3364 = vsel %vm1872, %v3309, 0.0
  %v3365 = vsel %vm1871, %v3346, 0.0
  %v3366 = vsel %vm1872, %v3310, 0.0
  %v3367 = vsel %vm1871, %v3347, 0.0
  %v3368 = vsel %vm1872, %v3311, 0.0
  %v3369 = vsel %vm1871, %v3348, 0.0
  %v3370 = vsel %vm1872, %v3312, 0.0
  %v3371 = vsel %vm1871, %v3349, 0.0
  %v3372 = vsel %vm1872, %v3313, 0.0
  %v3373 = vsel %vm1871, %v3350, 0.0
  %v3374 = vsel %vm1872, %v3314, 0.0
  %3375 = vrot.lane.b32.xlu0 %v2837, 127
  %v3376 = vpop.permute.xlu0 %3375
  %3377 = vrot.lane.b32.xlu0 %v2839, 127
  %v3378 = vpop.permute.xlu0 %3377
  %3379 = vrot.lane.b32.xlu0 %v2841, 127
  %v3380 = vpop.permute.xlu0 %3379
  %3381 = vrot.lane.b32.xlu0 %v2843, 127
  %v3382 = vpop.permute.xlu0 %3381
  %3383 = vrot.lane.b32.xlu0 %v2847, 127
  %v3384 = vpop.permute.xlu0 %3383
  %3385 = vrot.lane.b32.xlu0 %v2849, 127
  %v3386 = vpop.permute.xlu0 %3385
  %3387 = vrot.lane.b32.xlu0 %v2851, 127
  %v3388 = vpop.permute.xlu0 %3387
  %3389 = vrot.lane.b32.xlu0 %v2853, 127
  %v3390 = vpop.permute.xlu0 %3389
  %3391 = vrot.lane.b32.xlu0 %v2857, 127
  %v3392 = vpop.permute.xlu0 %3391
  %3393 = vrot.lane.b32.xlu0 %v2859, 127
  %v3394 = vpop.permute.xlu0 %3393
  %3395 = vrot.lane.b32.xlu0 %v2861, 127
  %v3396 = vpop.permute.xlu0 %3395
  %3397 = vrot.lane.b32.xlu0 %v2863, 127
  %v3398 = vpop.permute.xlu0 %3397
  %3399 = vrot.lane.b32.xlu0 %v2867, 127
  %v3400 = vpop.permute.xlu0 %3399
  %3401 = vrot.lane.b32.xlu0 %v2869, 127
  %v3402 = vpop.permute.xlu0 %3401
  %3403 = vrot.lane.b32.xlu0 %v2871, 127
  %v3404 = vpop.permute.xlu0 %3403
  %3405 = vrot.lane.b32.xlu0 %v2873, 127
  %v3406 = vpop.permute.xlu0 %3405
  %3407 = vrot.lane.b32.xlu0 %v2133, 127
  %v3408 = vpop.permute.xlu0 %3407
  %3409 = vrot.lane.b32.xlu0 %v2134, 127
  %v3410 = vpop.permute.xlu0 %3409
  %3411 = vrot.lane.b32.xlu0 %v2135, 127
  %v3412 = vpop.permute.xlu0 %3411
  %3413 = vrot.lane.b32.xlu0 %v2136, 127
  %v3414 = vpop.permute.xlu0 %3413
  %3415 = vrot.lane.b32.xlu0 %v2137, 127
  %v3416 = vpop.permute.xlu0 %3415
  %3417 = vrot.lane.b32.xlu0 %v2138, 127
  %v3418 = vpop.permute.xlu0 %3417
  %3419 = vrot.lane.b32.xlu0 %v2139, 127
  %v3420 = vpop.permute.xlu0 %3419
  %3421 = vrot.lane.b32.xlu0 %v2140, 127
  %v3422 = vpop.permute.xlu0 %3421
  %v3423 = vsel %vm300, %v3376, %v3378
  %v3424 = vsel %vm300, %v3380, %v3382
  %v3425 = vsel %vm300, %v3384, %v3386
  %v3426 = vsel %vm300, %v3388, %v3390
  %v3427 = vsel %vm300, %v3392, %v3394
  %v3428 = vsel %vm300, %v3396, %v3398
  %v3429 = vsel %vm300, %v3400, %v3402
  %v3430 = vsel %vm300, %v3404, %v3406
  %v3431 = vsel %vm300, %v3408, %v3410
  %v3432 = vsel %vm300, %v3412, %v3414
  %v3433 = vsel %vm300, %v3416, %v3418
  %v3434 = vsel %vm300, %v3420, %v3422
  %v3459 = vsel %vm300, %v3378, 0.0
  %v3460 = vsel %vm300, %v3382, 0.0
  %v3461 = vsel %vm300, %v3386, 0.0
  %v3462 = vsel %vm300, %v3390, 0.0
  %v3463 = vsel %vm300, %v3394, 0.0
  %v3464 = vsel %vm300, %v3398, 0.0
  %v3465 = vsel %vm300, %v3402, 0.0
  %v3466 = vsel %vm300, %v3406, 0.0
  %v3467 = vsel %vm300, %v3410, 0.0
  %v3468 = vsel %vm300, %v3414, 0.0
  %v3469 = vsel %vm300, %v3418, 0.0
  %v3470 = vsel %vm300, %v3422, 0.0
  %v3471 = vsel %vm1913, %v3423, 0.0
  %v3472 = vsel %vm1914, %v3459, 0.0
  %v3473 = vsel %vm1913, %v3424, 0.0
  %v3474 = vsel %vm1914, %v3460, 0.0
  %v3475 = vsel %vm1913, %v3425, 0.0
  %v3476 = vsel %vm1914, %v3461, 0.0
  %v3477 = vsel %vm1913, %v3426, 0.0
  %v3478 = vsel %vm1914, %v3462, 0.0
  %v3479 = vsel %vm1913, %v3427, 0.0
  %v3480 = vsel %vm1914, %v3463, 0.0
  %v3481 = vsel %vm1913, %v3428, 0.0
  %v3482 = vsel %vm1914, %v3464, 0.0
  %v3483 = vsel %vm1913, %v3429, 0.0
  %v3484 = vsel %vm1914, %v3465, 0.0
  %v3485 = vsel %vm1913, %v3430, 0.0
  %v3486 = vsel %vm1914, %v3466, 0.0
  %v3487 = vsel %vm1913, %v3431, 0.0
  %v3488 = vsel %vm1914, %v3467, 0.0
  %v3489 = vsel %vm1913, %v3432, 0.0
  %v3490 = vsel %vm1914, %v3468, 0.0
  %v3491 = vsel %vm1913, %v3433, 0.0
  %v3492 = vsel %vm1914, %v3469, 0.0
  %v3493 = vsel %vm1913, %v3434, 0.0
  %v3494 = vsel %vm1914, %v3470, 0.0
  %3495 = vrot.lane.b32.xlu0 %v2837, 113
  %v3496 = vpop.permute.xlu0 %3495
  %3497 = vrot.lane.b32.xlu0 %v2839, 113
  %v3498 = vpop.permute.xlu0 %3497
  %3499 = vrot.lane.b32.xlu0 %v2841, 113
  %v3500 = vpop.permute.xlu0 %3499
  %3501 = vrot.lane.b32.xlu0 %v2843, 113
  %v3502 = vpop.permute.xlu0 %3501
  %3503 = vrot.lane.b32.xlu0 %v2847, 113
  %v3504 = vpop.permute.xlu0 %3503
  %3505 = vrot.lane.b32.xlu0 %v2849, 113
  %v3506 = vpop.permute.xlu0 %3505
  %3507 = vrot.lane.b32.xlu0 %v2851, 113
  %v3508 = vpop.permute.xlu0 %3507
  %3509 = vrot.lane.b32.xlu0 %v2853, 113
  %v3510 = vpop.permute.xlu0 %3509
  %3511 = vrot.lane.b32.xlu0 %v2857, 113
  %v3512 = vpop.permute.xlu0 %3511
  %3513 = vrot.lane.b32.xlu0 %v2859, 113
  %v3514 = vpop.permute.xlu0 %3513
  %3515 = vrot.lane.b32.xlu0 %v2861, 113
  %v3516 = vpop.permute.xlu0 %3515
  %3517 = vrot.lane.b32.xlu0 %v2863, 113
  %v3518 = vpop.permute.xlu0 %3517
  %3519 = vrot.lane.b32.xlu0 %v2867, 113
  %v3520 = vpop.permute.xlu0 %3519
  %3521 = vrot.lane.b32.xlu0 %v2869, 113
  %v3522 = vpop.permute.xlu0 %3521
  %3523 = vrot.lane.b32.xlu0 %v2871, 113
  %v3524 = vpop.permute.xlu0 %3523
  %3525 = vrot.lane.b32.xlu0 %v2873, 113
  %v3526 = vpop.permute.xlu0 %3525
  %3527 = vrot.lane.b32.xlu0 %v2133, 113
  %v3528 = vpop.permute.xlu0 %3527
  %3529 = vrot.lane.b32.xlu0 %v2134, 113
  %v3530 = vpop.permute.xlu0 %3529
  %3531 = vrot.lane.b32.xlu0 %v2135, 113
  %v3532 = vpop.permute.xlu0 %3531
  %3533 = vrot.lane.b32.xlu0 %v2136, 113
  %v3534 = vpop.permute.xlu0 %3533
  %3535 = vrot.lane.b32.xlu0 %v2137, 113
  %v3536 = vpop.permute.xlu0 %3535
  %3537 = vrot.lane.b32.xlu0 %v2138, 113
  %v3538 = vpop.permute.xlu0 %3537
  %3539 = vrot.lane.b32.xlu0 %v2139, 113
  %v3540 = vpop.permute.xlu0 %3539
  %3541 = vrot.lane.b32.xlu0 %v2140, 113
  %v3542 = vpop.permute.xlu0 %3541
  %v3543 = vsel %vm1967, %v3496, %v3498
  %v3544 = vsel %vm1967, %v3500, %v3502
  %v3545 = vsel %vm1967, %v3504, %v3506
  %v3546 = vsel %vm1967, %v3508, %v3510
  %v3547 = vsel %vm1967, %v3512, %v3514
  %v3548 = vsel %vm1967, %v3516, %v3518
  %v3549 = vsel %vm1967, %v3520, %v3522
  %v3550 = vsel %vm1967, %v3524, %v3526
  %v3551 = vsel %vm1967, %v3528, %v3530
  %v3552 = vsel %vm1967, %v3532, %v3534
  %v3553 = vsel %vm1967, %v3536, %v3538
  %v3554 = vsel %vm1967, %v3540, %v3542
  %v3579 = vsel %vm1967, %v3498, 0.0
  %v3580 = vsel %vm1967, %v3502, 0.0
  %v3581 = vsel %vm1967, %v3506, 0.0
  %v3582 = vsel %vm1967, %v3510, 0.0
  %v3583 = vsel %vm1967, %v3514, 0.0
  %v3584 = vsel %vm1967, %v3518, 0.0
  %v3585 = vsel %vm1967, %v3522, 0.0
  %v3586 = vsel %vm1967, %v3526, 0.0
  %v3587 = vsel %vm1967, %v3530, 0.0
  %v3588 = vsel %vm1967, %v3534, 0.0
  %v3589 = vsel %vm1967, %v3538, 0.0
  %v3590 = vsel %vm1967, %v3542, 0.0
  %v3591 = vsel %vm1871, %v3543, 0.0
  %v3592 = vsel %vm1872, %v3579, 0.0
  %v3593 = vsel %vm1871, %v3544, 0.0
  %v3594 = vsel %vm1872, %v3580, 0.0
  %v3595 = vsel %vm1871, %v3545, 0.0
  %v3596 = vsel %vm1872, %v3581, 0.0
  %v3597 = vsel %vm1871, %v3546, 0.0
  %v3598 = vsel %vm1872, %v3582, 0.0
  %v3599 = vsel %vm1871, %v3547, 0.0
  %v3600 = vsel %vm1872, %v3583, 0.0
  %v3601 = vsel %vm1871, %v3548, 0.0
  %v3602 = vsel %vm1872, %v3584, 0.0
  %v3603 = vsel %vm1871, %v3549, 0.0
  %v3604 = vsel %vm1872, %v3585, 0.0
  %v3605 = vsel %vm1871, %v3550, 0.0
  %v3606 = vsel %vm1872, %v3586, 0.0
  %v3607 = vsel %vm1871, %v3551, 0.0
  %v3608 = vsel %vm1872, %v3587, 0.0
  %v3609 = vsel %vm1871, %v3552, 0.0
  %v3610 = vsel %vm1872, %v3588, 0.0
  %v3611 = vsel %vm1871, %v3553, 0.0
  %v3612 = vsel %vm1872, %v3589, 0.0
  %v3613 = vsel %vm1871, %v3554, 0.0
  %v3614 = vsel %vm1872, %v3590, 0.0
  %3615 = vrot.lane.b32.xlu0 %v2837, 112
  %v3616 = vpop.permute.xlu0 %3615
  %3617 = vrot.lane.b32.xlu0 %v2839, 112
  %v3618 = vpop.permute.xlu0 %3617
  %3619 = vrot.lane.b32.xlu0 %v2841, 112
  %v3620 = vpop.permute.xlu0 %3619
  %3621 = vrot.lane.b32.xlu0 %v2843, 112
  %v3622 = vpop.permute.xlu0 %3621
  %3623 = vrot.lane.b32.xlu0 %v2847, 112
  %v3624 = vpop.permute.xlu0 %3623
  %3625 = vrot.lane.b32.xlu0 %v2849, 112
  %v3626 = vpop.permute.xlu0 %3625
  %3627 = vrot.lane.b32.xlu0 %v2851, 112
  %v3628 = vpop.permute.xlu0 %3627
  %3629 = vrot.lane.b32.xlu0 %v2853, 112
  %v3630 = vpop.permute.xlu0 %3629
  %3631 = vrot.lane.b32.xlu0 %v2857, 112
  %v3632 = vpop.permute.xlu0 %3631
  %3633 = vrot.lane.b32.xlu0 %v2859, 112
  %v3634 = vpop.permute.xlu0 %3633
  %3635 = vrot.lane.b32.xlu0 %v2861, 112
  %v3636 = vpop.permute.xlu0 %3635
  %3637 = vrot.lane.b32.xlu0 %v2863, 112
  %v3638 = vpop.permute.xlu0 %3637
  %3639 = vrot.lane.b32.xlu0 %v2867, 112
  %v3640 = vpop.permute.xlu0 %3639
  %3641 = vrot.lane.b32.xlu0 %v2869, 112
  %v3642 = vpop.permute.xlu0 %3641
  %3643 = vrot.lane.b32.xlu0 %v2871, 112
  %v3644 = vpop.permute.xlu0 %3643
  %3645 = vrot.lane.b32.xlu0 %v2873, 112
  %v3646 = vpop.permute.xlu0 %3645
  %3647 = vrot.lane.b32.xlu0 %v2133, 112
  %v3648 = vpop.permute.xlu0 %3647
  %3649 = vrot.lane.b32.xlu0 %v2134, 112
  %v3650 = vpop.permute.xlu0 %3649
  %3651 = vrot.lane.b32.xlu0 %v2135, 112
  %v3652 = vpop.permute.xlu0 %3651
  %3653 = vrot.lane.b32.xlu0 %v2136, 112
  %v3654 = vpop.permute.xlu0 %3653
  %3655 = vrot.lane.b32.xlu0 %v2137, 112
  %v3656 = vpop.permute.xlu0 %3655
  %3657 = vrot.lane.b32.xlu0 %v2138, 112
  %v3658 = vpop.permute.xlu0 %3657
  %3659 = vrot.lane.b32.xlu0 %v2139, 112
  %v3660 = vpop.permute.xlu0 %3659
  %3661 = vrot.lane.b32.xlu0 %v2140, 112
  %v3662 = vpop.permute.xlu0 %3661
  %v3663 = vsel %vm1988, %v3616, %v3618
  %v3664 = vsel %vm1988, %v3620, %v3622
  %v3665 = vsel %vm1988, %v3624, %v3626
  %v3666 = vsel %vm1988, %v3628, %v3630
  %v3667 = vsel %vm1988, %v3632, %v3634
  %v3668 = vsel %vm1988, %v3636, %v3638
  %v3669 = vsel %vm1988, %v3640, %v3642
  %v3670 = vsel %vm1988, %v3644, %v3646
  %v3671 = vsel %vm1988, %v3648, %v3650
  %v3672 = vsel %vm1988, %v3652, %v3654
  %v3673 = vsel %vm1988, %v3656, %v3658
  %v3674 = vsel %vm1988, %v3660, %v3662
  %v3699 = vsel %vm1988, %v3618, 0.0
  %v3700 = vsel %vm1988, %v3622, 0.0
  %v3701 = vsel %vm1988, %v3626, 0.0
  %v3702 = vsel %vm1988, %v3630, 0.0
  %v3703 = vsel %vm1988, %v3634, 0.0
  %v3704 = vsel %vm1988, %v3638, 0.0
  %v3705 = vsel %vm1988, %v3642, 0.0
  %v3706 = vsel %vm1988, %v3646, 0.0
  %v3707 = vsel %vm1988, %v3650, 0.0
  %v3708 = vsel %vm1988, %v3654, 0.0
  %v3709 = vsel %vm1988, %v3658, 0.0
  %v3710 = vsel %vm1988, %v3662, 0.0
  %3711 = vrot.lane.b32.xlu0 %v2837, 111
  %v3712 = vpop.permute.xlu0 %3711
  %3713 = vrot.lane.b32.xlu0 %v2839, 111
  %v3714 = vpop.permute.xlu0 %3713
  %3715 = vrot.lane.b32.xlu0 %v2841, 111
  %v3716 = vpop.permute.xlu0 %3715
  %3717 = vrot.lane.b32.xlu0 %v2843, 111
  %v3718 = vpop.permute.xlu0 %3717
  %3719 = vrot.lane.b32.xlu0 %v2847, 111
  %v3720 = vpop.permute.xlu0 %3719
  %3721 = vrot.lane.b32.xlu0 %v2849, 111
  %v3722 = vpop.permute.xlu0 %3721
  %3723 = vrot.lane.b32.xlu0 %v2851, 111
  %v3724 = vpop.permute.xlu0 %3723
  %3725 = vrot.lane.b32.xlu0 %v2853, 111
  %v3726 = vpop.permute.xlu0 %3725
  %3727 = vrot.lane.b32.xlu0 %v2857, 111
  %v3728 = vpop.permute.xlu0 %3727
  %3729 = vrot.lane.b32.xlu0 %v2859, 111
  %v3730 = vpop.permute.xlu0 %3729
  %3731 = vrot.lane.b32.xlu0 %v2861, 111
  %v3732 = vpop.permute.xlu0 %3731
  %3733 = vrot.lane.b32.xlu0 %v2863, 111
  %v3734 = vpop.permute.xlu0 %3733
  %3735 = vrot.lane.b32.xlu0 %v2867, 111
  %v3736 = vpop.permute.xlu0 %3735
  %3737 = vrot.lane.b32.xlu0 %v2869, 111
  %v3738 = vpop.permute.xlu0 %3737
  %3739 = vrot.lane.b32.xlu0 %v2871, 111
  %v3740 = vpop.permute.xlu0 %3739
  %3741 = vrot.lane.b32.xlu0 %v2873, 111
  %v3742 = vpop.permute.xlu0 %3741
  %3743 = vrot.lane.b32.xlu0 %v2133, 111
  %v3744 = vpop.permute.xlu0 %3743
  %3745 = vrot.lane.b32.xlu0 %v2134, 111
  %v3746 = vpop.permute.xlu0 %3745
  %3747 = vrot.lane.b32.xlu0 %v2135, 111
  %v3748 = vpop.permute.xlu0 %3747
  %3749 = vrot.lane.b32.xlu0 %v2136, 111
  %v3750 = vpop.permute.xlu0 %3749
  %3751 = vrot.lane.b32.xlu0 %v2137, 111
  %v3752 = vpop.permute.xlu0 %3751
  %3753 = vrot.lane.b32.xlu0 %v2138, 111
  %v3754 = vpop.permute.xlu0 %3753
  %3755 = vrot.lane.b32.xlu0 %v2139, 111
  %v3756 = vpop.permute.xlu0 %3755
  %3757 = vrot.lane.b32.xlu0 %v2140, 111
  %v3758 = vpop.permute.xlu0 %3757
  %v3759 = vsel %vm2005, %v3712, %v3714
  %v3760 = vsel %vm2005, %v3716, %v3718
  %v3761 = vsel %vm2005, %v3720, %v3722
  %v3762 = vsel %vm2005, %v3724, %v3726
  %v3763 = vsel %vm2005, %v3728, %v3730
  %v3764 = vsel %vm2005, %v3732, %v3734
  %v3765 = vsel %vm2005, %v3736, %v3738
  %v3766 = vsel %vm2005, %v3740, %v3742
  %v3767 = vsel %vm2005, %v3744, %v3746
  %v3768 = vsel %vm2005, %v3748, %v3750
  %v3769 = vsel %vm2005, %v3752, %v3754
  %v3770 = vsel %vm2005, %v3756, %v3758
  %v3795 = vsel %vm2005, %v3714, 0.0
  %v3796 = vsel %vm2005, %v3718, 0.0
  %v3797 = vsel %vm2005, %v3722, 0.0
  %v3798 = vsel %vm2005, %v3726, 0.0
  %v3799 = vsel %vm2005, %v3730, 0.0
  %v3800 = vsel %vm2005, %v3734, 0.0
  %v3801 = vsel %vm2005, %v3738, 0.0
  %v3802 = vsel %vm2005, %v3742, 0.0
  %v3803 = vsel %vm2005, %v3746, 0.0
  %v3804 = vsel %vm2005, %v3750, 0.0
  %v3805 = vsel %vm2005, %v3754, 0.0
  %v3806 = vsel %vm2005, %v3758, 0.0
  %v3807 = vsel %vm1913, %v3759, 0.0
  %v3808 = vsel %vm1914, %v3795, 0.0
  %v3809 = vsel %vm1913, %v3760, 0.0
  %v3810 = vsel %vm1914, %v3796, 0.0
  %v3811 = vsel %vm1913, %v3761, 0.0
  %v3812 = vsel %vm1914, %v3797, 0.0
  %v3813 = vsel %vm1913, %v3762, 0.0
  %v3814 = vsel %vm1914, %v3798, 0.0
  %v3815 = vsel %vm1913, %v3763, 0.0
  %v3816 = vsel %vm1914, %v3799, 0.0
  %v3817 = vsel %vm1913, %v3764, 0.0
  %v3818 = vsel %vm1914, %v3800, 0.0
  %v3819 = vsel %vm1913, %v3765, 0.0
  %v3820 = vsel %vm1914, %v3801, 0.0
  %v3821 = vsel %vm1913, %v3766, 0.0
  %v3822 = vsel %vm1914, %v3802, 0.0
  %v3823 = vsel %vm1913, %v3767, 0.0
  %v3824 = vsel %vm1914, %v3803, 0.0
  %v3825 = vsel %vm1913, %v3768, 0.0
  %v3826 = vsel %vm1914, %v3804, 0.0
  %v3827 = vsel %vm1913, %v3769, 0.0
  %v3828 = vsel %vm1914, %v3805, 0.0
  %v3829 = vsel %vm1913, %v3770, 0.0
  %v3830 = vsel %vm1914, %v3806, 0.0
  %v3831 = vpack.c.bf16 %v3017, %v3015
  %v3832 = vpack.c.bf16 %v3018, %v3016
  %v3833 = vpack.c.bf16 %v3021, %v3019
  %v3834 = vpack.c.bf16 %v3022, %v3020
  %v3835 = vpack.c.bf16 %v3025, %v3023
  %v3836 = vpack.c.bf16 %v3026, %v3024
  %v3837 = vpack.c.bf16 %v3029, %v3027
  %v3838 = vpack.c.bf16 %v3030, %v3028
  %v3839 = vpack.c.bf16 %v3033, %v3031
  %v3840 = vpack.c.bf16 %v3034, %v3032
  %v3841 = vpack.c.bf16 %v3037, %v3035
  %v3842 = vpack.c.bf16 %v3038, %v3036
  %v3843 = vpack.c.bf16 %v3124, %v3123
  %v3844 = vpack.c.bf16 %v3088, %v3087
  %v3845 = vpack.c.bf16 %v3126, %v3125
  %v3846 = vpack.c.bf16 %v3090, %v3089
  %v3847 = vpack.c.bf16 %v3128, %v3127
  %v3848 = vpack.c.bf16 %v3092, %v3091
  %v3849 = vpack.c.bf16 %v3130, %v3129
  %v3850 = vpack.c.bf16 %v3094, %v3093
  %v3851 = vpack.c.bf16 %v3132, %v3131
  %v3852 = vpack.c.bf16 %v3096, %v3095
  %v3853 = vpack.c.bf16 %v3134, %v3133
  %v3854 = vpack.c.bf16 %v3098, %v3097
  %v3855 = vpack.c.bf16 %v3233, %v3231
  %v3856 = vpack.c.bf16 %v3234, %v3232
  %v3857 = vpack.c.bf16 %v3237, %v3235
  %v3858 = vpack.c.bf16 %v3238, %v3236
  %v3859 = vpack.c.bf16 %v3241, %v3239
  %v3860 = vpack.c.bf16 %v3242, %v3240
  %v3861 = vpack.c.bf16 %v3245, %v3243
  %v3862 = vpack.c.bf16 %v3246, %v3244
  %v3863 = vpack.c.bf16 %v3249, %v3247
  %v3864 = vpack.c.bf16 %v3250, %v3248
  %v3865 = vpack.c.bf16 %v3253, %v3251
  %v3866 = vpack.c.bf16 %v3254, %v3252
  %v3867 = vpack.c.bf16 %v3353, %v3351
  %v3868 = vpack.c.bf16 %v3354, %v3352
  %v3869 = vpack.c.bf16 %v3357, %v3355
  %v3870 = vpack.c.bf16 %v3358, %v3356
  %v3871 = vpack.c.bf16 %v3361, %v3359
  %v3872 = vpack.c.bf16 %v3362, %v3360
  %v3873 = vpack.c.bf16 %v3365, %v3363
  %v3874 = vpack.c.bf16 %v3366, %v3364
  %v3875 = vpack.c.bf16 %v3369, %v3367
  %v3876 = vpack.c.bf16 %v3370, %v3368
  %v3877 = vpack.c.bf16 %v3373, %v3371
  %v3878 = vpack.c.bf16 %v3374, %v3372
  %v3879 = vpack.c.bf16 %v2841, %v2837
  %v3880 = vpack.c.bf16 %v2843, %v2839
  %v3881 = vpack.c.bf16 %v2851, %v2847
  %v3882 = vpack.c.bf16 %v2853, %v2849
  %v3883 = vpack.c.bf16 %v2861, %v2857
  %v3884 = vpack.c.bf16 %v2863, %v2859
  %v3885 = vpack.c.bf16 %v2871, %v2867
  %v3886 = vpack.c.bf16 %v2873, %v2869
  %v3887 = vpack.c.bf16 %v3473, %v3471
  %v3888 = vpack.c.bf16 %v3474, %v3472
  %v3889 = vpack.c.bf16 %v3477, %v3475
  %v3890 = vpack.c.bf16 %v3478, %v3476
  %v3891 = vpack.c.bf16 %v3481, %v3479
  %v3892 = vpack.c.bf16 %v3482, %v3480
  %v3893 = vpack.c.bf16 %v3485, %v3483
  %v3894 = vpack.c.bf16 %v3486, %v3484
  %v3895 = vpack.c.bf16 %v3489, %v3487
  %v3896 = vpack.c.bf16 %v3490, %v3488
  %v3897 = vpack.c.bf16 %v3493, %v3491
  %v3898 = vpack.c.bf16 %v3494, %v3492
  %v3899 = vpack.c.bf16 %v3593, %v3591
  %v3900 = vpack.c.bf16 %v3594, %v3592
  %v3901 = vpack.c.bf16 %v3597, %v3595
  %v3902 = vpack.c.bf16 %v3598, %v3596
  %v3903 = vpack.c.bf16 %v3601, %v3599
  %v3904 = vpack.c.bf16 %v3602, %v3600
  %v3905 = vpack.c.bf16 %v3605, %v3603
  %v3906 = vpack.c.bf16 %v3606, %v3604
  %v3907 = vpack.c.bf16 %v3609, %v3607
  %v3908 = vpack.c.bf16 %v3610, %v3608
  %v3909 = vpack.c.bf16 %v3613, %v3611
  %v3910 = vpack.c.bf16 %v3614, %v3612
  %v3911 = vpack.c.bf16 %v3664, %v3663
  %v3912 = vpack.c.bf16 %v3700, %v3699
  %v3913 = vpack.c.bf16 %v3666, %v3665
  %v3914 = vpack.c.bf16 %v3702, %v3701
  %v3915 = vpack.c.bf16 %v3668, %v3667
  %v3916 = vpack.c.bf16 %v3704, %v3703
  %v3917 = vpack.c.bf16 %v3670, %v3669
  %v3918 = vpack.c.bf16 %v3706, %v3705
  %v3919 = vpack.c.bf16 %v3672, %v3671
  %v3920 = vpack.c.bf16 %v3708, %v3707
  %v3921 = vpack.c.bf16 %v3674, %v3673
  %v3922 = vpack.c.bf16 %v3710, %v3709
  %v3923 = vpack.c.bf16 %v3809, %v3807
  %v3924 = vpack.c.bf16 %v3810, %v3808
  %v3925 = vpack.c.bf16 %v3813, %v3811
  %v3926 = vpack.c.bf16 %v3814, %v3812
  %v3927 = vpack.c.bf16 %v3817, %v3815
  %v3928 = vpack.c.bf16 %v3818, %v3816
  %v3929 = vpack.c.bf16 %v3821, %v3819
  %v3930 = vpack.c.bf16 %v3822, %v3820
  %v3931 = vpack.c.bf16 %v3825, %v3823
  %v3932 = vpack.c.bf16 %v3826, %v3824
  %v3933 = vpack.c.bf16 %v3829, %v3827
  %v3934 = vpack.c.bf16 %v3830, %v3828
  %3936 = vset.pattern.permute.xlu0 0
  %3937 = vperm.xlu0 %3936, %v2891
  %v3938 = vpop.permute.xlu0 %3937
  %3941 = vset.pattern.permute.xlu0 0
  %3942 = vperm.xlu0 %3941, %v2892
  %v3943 = vpop.permute.xlu0 %3942
  %3946 = vset.pattern.permute.xlu0 0
  %3947 = vperm.xlu0 %3946, %v2893
  %v3948 = vpop.permute.xlu0 %3947
  %3951 = vset.pattern.permute.xlu0 0
  %3952 = vperm.xlu0 %3951, %v2894
  %v3953 = vpop.permute.xlu0 %3952
  %v3971 = vunpack.c.l.b16 %v2875
  %v3972 = vunpack.c.h.b16 %v2875
  %v3973 = vunpack.c.l.b16 %v2876
  %v3974 = vunpack.c.h.b16 %v2876
  %v3975 = vunpack.c.l.b16 %v2877
  %v3976 = vunpack.c.h.b16 %v2877
  %v3977 = vunpack.c.l.b16 %v2878
  %v3978 = vunpack.c.l.b16 %v2879
  %v3979 = vunpack.c.h.b16 %v2879
  %v3980 = vunpack.c.l.b16 %v2880
  %v3981 = vunpack.c.h.b16 %v2880
  %v3982 = vunpack.c.l.b16 %v2881
  %v3983 = vunpack.c.h.b16 %v2881
  %v3984 = vunpack.c.l.b16 %v2882
  %v3985 = vunpack.c.l.b16 %v2883
  %v3986 = vunpack.c.h.b16 %v2883
  %v3987 = vunpack.c.l.b16 %v2884
  %v3988 = vunpack.c.h.b16 %v2884
  %v3989 = vunpack.c.l.b16 %v2885
  %v3990 = vunpack.c.h.b16 %v2885
  %v3991 = vunpack.c.l.b16 %v2886
  %v3992 = vunpack.c.l.b16 %v2887
  %v3993 = vunpack.c.h.b16 %v2887
  %v3994 = vunpack.c.l.b16 %v2888
  %v3995 = vunpack.c.h.b16 %v2888
  %v3996 = vunpack.c.l.b16 %v2889
  %v3997 = vunpack.c.h.b16 %v2889
  %v3998 = vunpack.c.l.b16 %v2890
  %v3999 = vpack.c.b16 %v3978, %v3971
  %v4000 = vpack.c.b16 %v3979, %v3972
  %v4001 = vpack.c.b16 %v3980, %v3973
  %v4002 = vpack.c.b16 %v3981, %v3974
  %v4003 = vpack.c.b16 %v3982, %v3975
  %v4004 = vpack.c.b16 %v3983, %v3976
  %v4005 = vpack.c.b16 %v3984, %v3977
  %v4006 = vpack.c.b16 %v3992, %v3985
  %v4007 = vpack.c.b16 %v3993, %v3986
  %v4008 = vpack.c.b16 %v3994, %v3987
  %v4009 = vpack.c.b16 %v3995, %v3988
  %v4010 = vpack.c.b16 %v3996, %v3989
  %v4011 = vpack.c.b16 %v3997, %v3990
  %v4012 = vpack.c.b16 %v3998, %v3991
  %v4026 = vsel %vm382, %v4005, 0
  %v4029 = vsel %vm382, %v4012, 0
  %4031 = vmatprep.subr.bf16.mxu0 %v3832
  %4032 = vmatpush1.bf16.msra.mxu0 %v3831
  %4033 = vmatprep.subr.bf16.mxu0 %v3834
  %4034 = vmatpush1.bf16.msra.mxu0 %v3833
  %4035 = vmatprep.subr.bf16.mxu0 %v3836
  %4036 = vmatpush1.bf16.msra.mxu0 %v3835
  %4037 = vmatprep.subr.bf16.mxu0 %v3838
  %4038 = vmatpush1.bf16.msra.mxu0 %v3837
  %4039 = vmatprep.subr.bf16.mxu0 %v3840
  %4040 = vmatpush1.bf16.msra.mxu0 %v3839
  %4041 = vmatprep.subr.bf16.mxu0 %v3842
  %4042 = vmatpush1.bf16.msra.mxu0 %v3841
  %4043 = vmatprep.subr.bf16.mxu0 %v3844
  %4044 = vmatpush1.bf16.msra.mxu0 %v3843
  %4045 = vmatprep.subr.bf16.mxu0 %v3846
  %4046 = vmatpush1.bf16.msra.mxu0 %v3845
  %4047 = vmatprep.subr.bf16.mxu0 %v3848
  %4048 = vmatpush1.bf16.msra.mxu0 %v3847
  %4049 = vmatprep.subr.bf16.mxu0 %v3850
  %4050 = vmatpush1.bf16.msra.mxu0 %v3849
  %4051 = vmatprep.subr.bf16.mxu0 %v3852
  %4052 = vmatpush1.bf16.msra.mxu0 %v3851
  %4053 = vmatprep.subr.bf16.mxu0 %v3854
  %4054 = vmatpush1.bf16.msra.mxu0 %v3853
  %4055 = vmatprep.subr.bf16.mxu0 %v3856
  %4056 = vmatpush1.bf16.msra.mxu0 %v3855
  %4057 = vmatprep.subr.bf16.mxu0 %v3858
  %4058 = vmatpush1.bf16.msra.mxu0 %v3857
  %4059 = vmatprep.subr.bf16.mxu0 %v3860
  %4060 = vmatpush1.bf16.msra.mxu0 %v3859
  %4061 = vmatprep.subr.bf16.mxu0 %v3862
  %4062 = vmatpush1.bf16.msra.mxu0 %v3861
  %4063 = vmatprep.mubr.bf16.mxu0 %v4000
  %4064 = vmatmul.mubr.bf16.gmra.mrb[0].mxu0 %v3999
  %v4065 = vpop.f32.mrb[0].mxu0
  %v4066 = vadd.f32 %v3938, %v4065
  %v4067 = vpop.f32.mrb[0].mxu0
  %v4068 = vadd.f32 %v3938, %v4067
  %v4069 = vpop.f32.mrb[0].mxu0
  %v4070 = vadd.f32 %v3943, %v4069
  %v4071 = vpop.f32.mrb[0].mxu0
  %v4072 = vadd.f32 %v3943, %v4071
  %4073 = vmatprep.mubr.bf16.mxu0 %v4007
  %4074 = vmatmul.mubr.bf16.gmra.mrb[0].mxu0 %v4006
  %v4075 = vpop.f32.mrb[0].mxu0
  %v4076 = vadd.f32 %v3948, %v4075
  %v4077 = vpop.f32.mrb[0].mxu0
  %v4078 = vadd.f32 %v3948, %v4077
  %v4079 = vpop.f32.mrb[0].mxu0
  %v4080 = vadd.f32 %v3953, %v4079
  %v4081 = vpop.f32.mrb[0].mxu0
  %v4082 = vadd.f32 %v3953, %v4081
  %4083 = vdwg.mxu0
  %4084 = vmatprep.subr.bf16.mxu0 %v3864
  %4085 = vmatpush1.bf16.msra.mxu0 %v3863
  %4086 = vmatprep.subr.bf16.mxu0 %v3866
  %4087 = vmatpush1.bf16.msra.mxu0 %v3865
  %4088 = vmatprep.subr.bf16.mxu0 %v3868
  %4089 = vmatpush1.bf16.msra.mxu0 %v3867
  %4090 = vmatprep.subr.bf16.mxu0 %v3870
  %4091 = vmatpush1.bf16.msra.mxu0 %v3869
  %4092 = vmatprep.subr.bf16.mxu0 %v3872
  %4093 = vmatpush1.bf16.msra.mxu0 %v3871
  %4094 = vmatprep.subr.bf16.mxu0 %v3874
  %4095 = vmatpush1.bf16.msra.mxu0 %v3873
  %4096 = vmatprep.subr.bf16.mxu0 %v3876
  %4097 = vmatpush1.bf16.msra.mxu0 %v3875
  %4098 = vmatprep.subr.bf16.mxu0 %v3878
  %4099 = vmatpush1.bf16.msra.mxu0 %v3877
  %4100 = vmatprep.subr.bf16.mxu0 %v3880
  %4101 = vmatpush1.bf16.msra.mxu0 %v3879
  %4102 = vmatprep.subr.bf16.mxu0 %v3882
  %4103 = vmatpush1.bf16.msra.mxu0 %v3881
  %4104 = vmatprep.subr.bf16.mxu0 %v3884
  %4105 = vmatpush1.bf16.msra.mxu0 %v3883
  %4106 = vmatprep.subr.bf16.mxu0 %v3886
  %4107 = vmatpush1.bf16.msra.mxu0 %v3885
  %4108 = vmatprep.subr.bf16.mxu0 %v2142
  %4109 = vmatpush1.bf16.msra.mxu0 %v2141
  %4110 = vmatprep.subr.bf16.mxu0 %v2144
  %4111 = vmatpush1.bf16.msra.mxu0 %v2143
  %4112 = vmatprep.subr.bf16.mxu0 %v3888
  %4113 = vmatpush1.bf16.msra.mxu0 %v3887
  %4114 = vmatprep.subr.bf16.mxu0 %v3890
  %4115 = vmatpush1.bf16.msra.mxu0 %v3889
  %4116 = vmatprep.mubr.bf16.mxu0 %v4002
  %4117 = vmatmul.mubr.bf16.gmra.mrb[0].mxu0 %v4001
  %v4118 = vpop.f32.mrb[0].mxu0
  %v4119 = vadd.f32 %v4066, %v4118
  %v4120 = vpop.f32.mrb[0].mxu0
  %v4121 = vadd.f32 %v4068, %v4120
  %v4122 = vpop.f32.mrb[0].mxu0
  %v4123 = vadd.f32 %v4070, %v4122
  %v4124 = vpop.f32.mrb[0].mxu0
  %v4125 = vadd.f32 %v4072, %v4124
  %4126 = vmatprep.mubr.bf16.mxu0 %v4009
  %4127 = vmatmul.mubr.bf16.gmra.mrb[0].mxu0 %v4008
  %v4128 = vpop.f32.mrb[0].mxu0
  %v4129 = vadd.f32 %v4076, %v4128
  %v4130 = vpop.f32.mrb[0].mxu0
  %v4131 = vadd.f32 %v4078, %v4130
  %v4132 = vpop.f32.mrb[0].mxu0
  %v4133 = vadd.f32 %v4080, %v4132
  %v4134 = vpop.f32.mrb[0].mxu0
  %v4135 = vadd.f32 %v4082, %v4134
  %4136 = vdwg.mxu0
  %4137 = vmatprep.subr.bf16.mxu0 %v3892
  %4138 = vmatpush1.bf16.msra.mxu0 %v3891
  %4139 = vmatprep.subr.bf16.mxu0 %v3894
  %4140 = vmatpush1.bf16.msra.mxu0 %v3893
  %4141 = vmatprep.subr.bf16.mxu0 %v3896
  %4142 = vmatpush1.bf16.msra.mxu0 %v3895
  %4143 = vmatprep.subr.bf16.mxu0 %v3898
  %4144 = vmatpush1.bf16.msra.mxu0 %v3897
  %4145 = vmatprep.subr.bf16.mxu0 %v3900
  %4146 = vmatpush1.bf16.msra.mxu0 %v3899
  %4147 = vmatprep.subr.bf16.mxu0 %v3902
  %4148 = vmatpush1.bf16.msra.mxu0 %v3901
  %4149 = vmatprep.subr.bf16.mxu0 %v3904
  %4150 = vmatpush1.bf16.msra.mxu0 %v3903
  %4151 = vmatprep.subr.bf16.mxu0 %v3906
  %4152 = vmatpush1.bf16.msra.mxu0 %v3905
  %4153 = vmatprep.subr.bf16.mxu0 %v3908
  %4154 = vmatpush1.bf16.msra.mxu0 %v3907
  %4155 = vmatprep.subr.bf16.mxu0 %v3910
  %4156 = vmatpush1.bf16.msra.mxu0 %v3909
  %4157 = vmatprep.subr.bf16.mxu0 %v3912
  %4158 = vmatpush1.bf16.msra.mxu0 %v3911
  %4159 = vmatprep.subr.bf16.mxu0 %v3914
  %4160 = vmatpush1.bf16.msra.mxu0 %v3913
  %4161 = vmatprep.subr.bf16.mxu0 %v3916
  %4162 = vmatpush1.bf16.msra.mxu0 %v3915
  %4163 = vmatprep.subr.bf16.mxu0 %v3918
  %4164 = vmatpush1.bf16.msra.mxu0 %v3917
  %4165 = vmatprep.subr.bf16.mxu0 %v3920
  %4166 = vmatpush1.bf16.msra.mxu0 %v3919
  %4167 = vmatprep.subr.bf16.mxu0 %v3922
  %4168 = vmatpush1.bf16.msra.mxu0 %v3921
  %4169 = vmatprep.mubr.bf16.mxu0 %v4004
  %4170 = vmatmul.mubr.bf16.gmra.mrb[0].mxu0 %v4003
  %v4171 = vpop.f32.mrb[0].mxu0
  %v4172 = vadd.f32 %v4119, %v4171
  %v4173 = vpop.f32.mrb[0].mxu0
  %v4174 = vadd.f32 %v4121, %v4173
  %v4175 = vpop.f32.mrb[0].mxu0
  %v4176 = vadd.f32 %v4123, %v4175
  %v4177 = vpop.f32.mrb[0].mxu0
  %v4178 = vadd.f32 %v4125, %v4177
  %4179 = vmatprep.mubr.bf16.mxu0 %v4011
  %4180 = vmatmul.mubr.bf16.gmra.mrb[0].mxu0 %v4010
  %v4181 = vpop.f32.mrb[0].mxu0
  %v4182 = vadd.f32 %v4129, %v4181
  %v4183 = vpop.f32.mrb[0].mxu0
  %v4184 = vadd.f32 %v4131, %v4183
  %v4185 = vpop.f32.mrb[0].mxu0
  %v4186 = vadd.f32 %v4133, %v4185
  %v4187 = vpop.f32.mrb[0].mxu0
  %v4188 = vadd.f32 %v4135, %v4187
  %4189 = vdwg.mxu0
  %4190 = vmatprep.subr.bf16.mxu0 %v3924
  %4191 = vmatpush1.bf16.msra.mxu0 %v3923
  %4192 = vmatprep.subr.bf16.mxu0 %v3926
  %4193 = vmatpush1.bf16.msra.mxu0 %v3925
  %4194 = vmatprep.subr.bf16.mxu0 %v3928
  %4195 = vmatpush1.bf16.msra.mxu0 %v3927
  %4196 = vmatprep.subr.bf16.mxu0 %v3930
  %4197 = vmatpush1.bf16.msra.mxu0 %v3929
  %4198 = vmatprep.subr.bf16.mxu0 %v3932
  %4199 = vmatpush1.bf16.msra.mxu0 %v3931
  %4200 = vmatprep.subr.bf16.mxu0 %v3934
  %4201 = vmatpush1.bf16.msra.mxu0 %v3933
  %4202 = vmatprep.subr.bf16.mxu0 0
  %4203 = vmatpush1.bf16.msra.mxu0 0
  %4204 = vmatprep.subr.bf16.mxu0 0
  %4205 = vmatpush1.bf16.msra.mxu0 0
  %4206 = vmatprep.subr.bf16.mxu0 0
  %4207 = vmatpush1.bf16.msra.mxu0 0
  %4208 = vmatprep.subr.bf16.mxu0 0
  %4209 = vmatpush1.bf16.msra.mxu0 0
  %4210 = vmatprep.subr.bf16.mxu0 0
  %4211 = vmatpush1.bf16.msra.mxu0 0
  %4212 = vmatprep.subr.bf16.mxu0 0
  %4213 = vmatpush1.bf16.msra.mxu0 0
  %4214 = vmatprep.subr.bf16.mxu0 0
  %4215 = vmatpush1.bf16.msra.mxu0 0
  %4216 = vmatprep.subr.bf16.mxu0 0
  %4217 = vmatpush1.bf16.msra.mxu0 0
  %4218 = vmatprep.subr.bf16.mxu0 0
  %4219 = vmatpush1.bf16.msra.mxu0 0
  %4220 = vmatprep.subr.bf16.mxu0 0
  %4221 = vmatpush1.bf16.msra.mxu0 0
  %4222 = vmatprep.mubr.bf16.mxu0 0
  %4223 = vmatmul.mubr.bf16.gmra.mrb[0].mxu0 %v4026
  %v4224 = vpop.f32.mrb[0].mxu0
  %v4225 = vadd.f32 %v4172, %v4224
  %v4226 = vpop.f32.mrb[0].mxu0
  %v4227 = vadd.f32 %v4174, %v4226
  %v4228 = vpop.f32.mrb[0].mxu0
  %v4229 = vadd.f32 %v4176, %v4228
  %v4230 = vpop.f32.mrb[0].mxu0
  %v4231 = vadd.f32 %v4178, %v4230
  %4232 = vmatprep.mubr.bf16.mxu0 0
  %4233 = vmatmul.mubr.bf16.gmra.mrb[0].mxu0 %v4029
  %v4234 = vpop.f32.mrb[0].mxu0
  %v4235 = vadd.f32 %v4182, %v4234
  %v4236 = vpop.f32.mrb[0].mxu0
  %v4237 = vadd.f32 %v4184, %v4236
  %v4238 = vpop.f32.mrb[0].mxu0
  %v4239 = vadd.f32 %v4186, %v4238
  %v4240 = vpop.f32.mrb[0].mxu0
  %v4241 = vadd.f32 %v4188, %v4240
  %4242 = vdwg.mxu0
  %v4243 = vmax.f32 %v4225, 0.0
  %v4244 = vmax.f32 %v4227, 0.0
  %v4245 = vmax.f32 %v4229, 0.0
  %v4246 = vmax.f32 %v4231, 0.0
  %v4247 = vmax.f32 %v4235, 0.0
  %v4248 = vmax.f32 %v4237, 0.0
  %v4249 = vmax.f32 %v4239, 0.0
  %v4250 = vmax.f32 %v4241, 0.0
  %v4251 = vpack.c.bf16 %v4245, %v4243
  %v4252 = vpack.c.bf16 %v4246, %v4244
  %v4253 = vpack.c.bf16 %v4249, %v4247
  %v4254 = vpack.c.bf16 %v4250, %v4248
  %v4255 = vshra.s32 %v46, 5
  %v4256 = vshra.s32 %v47, 5
  %v4257 = vshra.s32 %v48, 5
  %v4258 = vshra.s32 %v49, 5
  %v4259 = vshra.s32 %v50, 5
  %v4260 = vshra.s32 %v51, 5
  %v4261 = vshra.s32 %v52, 5
  %v4262 = vshra.s32 %v53, 5
  %v4263 = vshra.s32 %v4255, 1
  %v4264 = vshra.s32 %v4256, 1
  %v4265 = vshra.s32 %v4257, 1
  %v4266 = vshra.s32 %v4258, 1
  %v4267 = vshra.s32 %v4259, 1
  %v4268 = vshra.s32 %v4260, 1
  %v4269 = vshra.s32 %v4261, 1
  %v4270 = vshra.s32 %v4262, 1
  %v4271 = vmul.u32 %v4263, 16
  %v4272 = vmul.u32 %v4264, 16
  %v4273 = vmul.u32 %v4265, 16
  %v4274 = vmul.u32 %v4266, 16
  %v4275 = vmul.u32 %v4267, 16
  %v4276 = vmul.u32 %v4268, 16
  %v4277 = vmul.u32 %v4269, 16
  %v4278 = vmul.u32 %v4270, 16
  %v4279 = vshra.s32 %v54, 1
  %v4280 = vshra.s32 %v55, 1
  %v4281 = vshra.s32 %v56, 1
  %v4282 = vshra.s32 %v57, 1
  %v4283 = vshra.s32 %v58, 1
  %v4284 = vshra.s32 %v59, 1
  %v4285 = vshra.s32 %v60, 1
  %v4286 = vshra.s32 %v61, 1
  %v4287 = vadd.s32 %v4271, %v4279
  %v4288 = vadd.s32 %v4272, %v4280
  %v4289 = vadd.s32 %v4273, %v4281
  %v4290 = vadd.s32 %v4274, %v4282
  %v4291 = vadd.s32 %v4275, %v4283
  %v4292 = vadd.s32 %v4276, %v4284
  %v4293 = vadd.s32 %v4277, %v4285
  %v4294 = vadd.s32 %v4278, %v4286
  %vm4295 = vcmp.eq.s32.totalorder %v900, %v4287
  %vm4296 = vcmp.eq.s32.totalorder %v900, %v4288
  %vm4297 = vcmp.eq.s32.totalorder %v900, %v4289
  %vm4298 = vcmp.eq.s32.totalorder %v900, %v4290
  %vm4299 = vcmp.eq.s32.totalorder %v900, %v4291
  %vm4300 = vcmp.eq.s32.totalorder %v900, %v4292
  %vm4301 = vcmp.eq.s32.totalorder %v900, %v4293
  %vm4302 = vcmp.eq.s32.totalorder %v900, %v4294
  %vm4303 = vcmp.eq.s32.totalorder %v901, %v4287
  %vm4304 = vcmp.eq.s32.totalorder %v901, %v4288
  %vm4305 = vcmp.eq.s32.totalorder %v901, %v4289
  %vm4306 = vcmp.eq.s32.totalorder %v901, %v4290
  %vm4307 = vcmp.eq.s32.totalorder %v901, %v4291
  %vm4308 = vcmp.eq.s32.totalorder %v901, %v4292
  %vm4309 = vcmp.eq.s32.totalorder %v901, %v4293
  %vm4310 = vcmp.eq.s32.totalorder %v901, %v4294
  %vm4311 = vcmp.eq.s32.totalorder %v902, %v4287
  %vm4312 = vcmp.eq.s32.totalorder %v902, %v4288
  %vm4313 = vcmp.eq.s32.totalorder %v902, %v4289
  %vm4314 = vcmp.eq.s32.totalorder %v902, %v4290
  %vm4315 = vcmp.eq.s32.totalorder %v902, %v4291
  %vm4316 = vcmp.eq.s32.totalorder %v902, %v4292
  %vm4317 = vcmp.eq.s32.totalorder %v902, %v4293
  %vm4318 = vcmp.eq.s32.totalorder %v902, %v4294
  %vm4319 = vcmp.eq.s32.totalorder %v903, %v4287
  %vm4320 = vcmp.eq.s32.totalorder %v903, %v4288
  %vm4321 = vcmp.eq.s32.totalorder %v903, %v4289
  %vm4322 = vcmp.eq.s32.totalorder %v903, %v4290
  %vm4323 = vcmp.eq.s32.totalorder %v903, %v4291
  %vm4324 = vcmp.eq.s32.totalorder %v903, %v4292
  %vm4325 = vcmp.eq.s32.totalorder %v903, %v4293
  %vm4326 = vcmp.eq.s32.totalorder %v903, %v4294
  %vm4327 = vcmp.eq.s32.totalorder %v904, %v4287
  %vm4328 = vcmp.eq.s32.totalorder %v904, %v4288
  %vm4329 = vcmp.eq.s32.totalorder %v904, %v4289
  %vm4330 = vcmp.eq.s32.totalorder %v904, %v4290
  %vm4331 = vcmp.eq.s32.totalorder %v904, %v4291
  %vm4332 = vcmp.eq.s32.totalorder %v904, %v4292
  %vm4333 = vcmp.eq.s32.totalorder %v904, %v4293
  %vm4334 = vcmp.eq.s32.totalorder %v904, %v4294
  %vm4335 = vcmp.eq.s32.totalorder %v905, %v4287
  %vm4336 = vcmp.eq.s32.totalorder %v905, %v4288
  %vm4337 = vcmp.eq.s32.totalorder %v905, %v4289
  %vm4338 = vcmp.eq.s32.totalorder %v905, %v4290
  %vm4339 = vcmp.eq.s32.totalorder %v905, %v4291
  %vm4340 = vcmp.eq.s32.totalorder %v905, %v4292
  %vm4341 = vcmp.eq.s32.totalorder %v905, %v4293
  %vm4342 = vcmp.eq.s32.totalorder %v905, %v4294
  %vm4343 = vcmp.eq.s32.totalorder %v906, %v4287
  %vm4344 = vcmp.eq.s32.totalorder %v906, %v4288
  %vm4345 = vcmp.eq.s32.totalorder %v906, %v4289
  %vm4346 = vcmp.eq.s32.totalorder %v906, %v4290
  %vm4347 = vcmp.eq.s32.totalorder %v906, %v4291
  %vm4348 = vcmp.eq.s32.totalorder %v906, %v4292
  %vm4349 = vcmp.eq.s32.totalorder %v906, %v4293
  %vm4350 = vcmp.eq.s32.totalorder %v906, %v4294
  %vm4351 = vcmp.eq.s32.totalorder %v907, %v4287
  %vm4352 = vcmp.eq.s32.totalorder %v907, %v4288
  %vm4353 = vcmp.eq.s32.totalorder %v907, %v4289
  %vm4354 = vcmp.eq.s32.totalorder %v907, %v4290
  %vm4355 = vcmp.eq.s32.totalorder %v907, %v4291
  %vm4356 = vcmp.eq.s32.totalorder %v907, %v4292
  %vm4357 = vcmp.eq.s32.totalorder %v907, %v4293
  %vm4358 = vcmp.eq.s32.totalorder %v907, %v4294
  %vm4359 = vcmp.eq.s32.totalorder %v908, %v4287
  %vm4360 = vcmp.eq.s32.totalorder %v908, %v4288
  %vm4361 = vcmp.eq.s32.totalorder %v908, %v4289
  %vm4362 = vcmp.eq.s32.totalorder %v908, %v4290
  %vm4363 = vcmp.eq.s32.totalorder %v908, %v4291
  %vm4364 = vcmp.eq.s32.totalorder %v908, %v4292
  %vm4365 = vcmp.eq.s32.totalorder %v908, %v4293
  %vm4366 = vcmp.eq.s32.totalorder %v908, %v4294
  %vm4367 = vcmp.eq.s32.totalorder %v909, %v4287
  %vm4368 = vcmp.eq.s32.totalorder %v909, %v4288
  %vm4369 = vcmp.eq.s32.totalorder %v909, %v4289
  %vm4370 = vcmp.eq.s32.totalorder %v909, %v4290
  %vm4371 = vcmp.eq.s32.totalorder %v909, %v4291
  %vm4372 = vcmp.eq.s32.totalorder %v909, %v4292
  %vm4373 = vcmp.eq.s32.totalorder %v909, %v4293
  %vm4374 = vcmp.eq.s32.totalorder %v909, %v4294
  %vm4375 = vcmp.eq.s32.totalorder %v910, %v4287
  %vm4376 = vcmp.eq.s32.totalorder %v910, %v4288
  %vm4377 = vcmp.eq.s32.totalorder %v910, %v4289
  %vm4378 = vcmp.eq.s32.totalorder %v910, %v4290
  %vm4379 = vcmp.eq.s32.totalorder %v910, %v4291
  %vm4380 = vcmp.eq.s32.totalorder %v910, %v4292
  %vm4381 = vcmp.eq.s32.totalorder %v910, %v4293
  %vm4382 = vcmp.eq.s32.totalorder %v910, %v4294
  %vm4383 = vcmp.eq.s32.totalorder %v911, %v4287
  %vm4384 = vcmp.eq.s32.totalorder %v911, %v4288
  %vm4385 = vcmp.eq.s32.totalorder %v911, %v4289
  %vm4386 = vcmp.eq.s32.totalorder %v911, %v4290
  %vm4387 = vcmp.eq.s32.totalorder %v911, %v4291
  %vm4388 = vcmp.eq.s32.totalorder %v911, %v4292
  %vm4389 = vcmp.eq.s32.totalorder %v911, %v4293
  %vm4390 = vcmp.eq.s32.totalorder %v911, %v4294
  %vm4391 = vcmp.eq.s32.totalorder %v912, %v4287
  %vm4392 = vcmp.eq.s32.totalorder %v912, %v4288
  %vm4393 = vcmp.eq.s32.totalorder %v912, %v4289
  %vm4394 = vcmp.eq.s32.totalorder %v912, %v4290
  %vm4395 = vcmp.eq.s32.totalorder %v912, %v4291
  %vm4396 = vcmp.eq.s32.totalorder %v912, %v4292
  %vm4397 = vcmp.eq.s32.totalorder %v912, %v4293
  %vm4398 = vcmp.eq.s32.totalorder %v912, %v4294
  %vm4399 = vcmp.eq.s32.totalorder %v913, %v4287
  %vm4400 = vcmp.eq.s32.totalorder %v913, %v4288
  %vm4401 = vcmp.eq.s32.totalorder %v913, %v4289
  %vm4402 = vcmp.eq.s32.totalorder %v913, %v4290
  %vm4403 = vcmp.eq.s32.totalorder %v913, %v4291
  %vm4404 = vcmp.eq.s32.totalorder %v913, %v4292
  %vm4405 = vcmp.eq.s32.totalorder %v913, %v4293
  %vm4406 = vcmp.eq.s32.totalorder %v913, %v4294
  %vm4407 = vcmp.eq.s32.totalorder %v914, %v4287
  %vm4408 = vcmp.eq.s32.totalorder %v914, %v4288
  %vm4409 = vcmp.eq.s32.totalorder %v914, %v4289
  %vm4410 = vcmp.eq.s32.totalorder %v914, %v4290
  %vm4411 = vcmp.eq.s32.totalorder %v914, %v4291
  %vm4412 = vcmp.eq.s32.totalorder %v914, %v4292
  %vm4413 = vcmp.eq.s32.totalorder %v914, %v4293
  %vm4414 = vcmp.eq.s32.totalorder %v914, %v4294
  %vm4415 = vcmp.eq.s32.totalorder %v915, %v4287
  %vm4416 = vcmp.eq.s32.totalorder %v915, %v4288
  %vm4417 = vcmp.eq.s32.totalorder %v915, %v4289
  %vm4418 = vcmp.eq.s32.totalorder %v915, %v4290
  %vm4419 = vcmp.eq.s32.totalorder %v915, %v4291
  %vm4420 = vcmp.eq.s32.totalorder %v915, %v4292
  %vm4421 = vcmp.eq.s32.totalorder %v915, %v4293
  %vm4422 = vcmp.eq.s32.totalorder %v915, %v4294
  %vm4423 = vcmp.eq.s32.totalorder %v916, %v4287
  %vm4424 = vcmp.eq.s32.totalorder %v916, %v4288
  %vm4425 = vcmp.eq.s32.totalorder %v916, %v4289
  %vm4426 = vcmp.eq.s32.totalorder %v916, %v4290
  %vm4427 = vcmp.eq.s32.totalorder %v916, %v4291
  %vm4428 = vcmp.eq.s32.totalorder %v916, %v4292
  %vm4429 = vcmp.eq.s32.totalorder %v916, %v4293
  %vm4430 = vcmp.eq.s32.totalorder %v916, %v4294
  %vm4431 = vcmp.eq.s32.totalorder %v917, %v4287
  %vm4432 = vcmp.eq.s32.totalorder %v917, %v4288
  %vm4433 = vcmp.eq.s32.totalorder %v917, %v4289
  %vm4434 = vcmp.eq.s32.totalorder %v917, %v4290
  %vm4435 = vcmp.eq.s32.totalorder %v917, %v4291
  %vm4436 = vcmp.eq.s32.totalorder %v917, %v4292
  %vm4437 = vcmp.eq.s32.totalorder %v917, %v4293
  %vm4438 = vcmp.eq.s32.totalorder %v917, %v4294
  %vm4439 = vcmp.eq.s32.totalorder %v918, %v4287
  %vm4440 = vcmp.eq.s32.totalorder %v918, %v4288
  %vm4441 = vcmp.eq.s32.totalorder %v918, %v4289
  %vm4442 = vcmp.eq.s32.totalorder %v918, %v4290
  %vm4443 = vcmp.eq.s32.totalorder %v918, %v4291
  %vm4444 = vcmp.eq.s32.totalorder %v918, %v4292
  %vm4445 = vcmp.eq.s32.totalorder %v918, %v4293
  %vm4446 = vcmp.eq.s32.totalorder %v918, %v4294
  %vm4447 = vcmp.eq.s32.totalorder %v919, %v4287
  %vm4448 = vcmp.eq.s32.totalorder %v919, %v4288
  %vm4449 = vcmp.eq.s32.totalorder %v919, %v4289
  %vm4450 = vcmp.eq.s32.totalorder %v919, %v4290
  %vm4451 = vcmp.eq.s32.totalorder %v919, %v4291
  %vm4452 = vcmp.eq.s32.totalorder %v919, %v4292
  %vm4453 = vcmp.eq.s32.totalorder %v919, %v4293
  %vm4454 = vcmp.eq.s32.totalorder %v919, %v4294
  %vm4455 = vcmp.eq.s32.totalorder %v920, %v4287
  %vm4456 = vcmp.eq.s32.totalorder %v920, %v4288
  %vm4457 = vcmp.eq.s32.totalorder %v920, %v4289
  %vm4458 = vcmp.eq.s32.totalorder %v920, %v4290
  %vm4459 = vcmp.eq.s32.totalorder %v920, %v4291
  %vm4460 = vcmp.eq.s32.totalorder %v920, %v4292
  %vm4461 = vcmp.eq.s32.totalorder %v920, %v4293
  %vm4462 = vcmp.eq.s32.totalorder %v920, %v4294
  %vm4463 = vcmp.eq.s32.totalorder %v921, %v4287
  %vm4464 = vcmp.eq.s32.totalorder %v921, %v4288
  %vm4465 = vcmp.eq.s32.totalorder %v921, %v4289
  %vm4466 = vcmp.eq.s32.totalorder %v921, %v4290
  %vm4467 = vcmp.eq.s32.totalorder %v921, %v4291
  %vm4468 = vcmp.eq.s32.totalorder %v921, %v4292
  %vm4469 = vcmp.eq.s32.totalorder %v921, %v4293
  %vm4470 = vcmp.eq.s32.totalorder %v921, %v4294
  %vm4471 = vcmp.eq.s32.totalorder %v922, %v4287
  %vm4472 = vcmp.eq.s32.totalorder %v922, %v4288
  %vm4473 = vcmp.eq.s32.totalorder %v922, %v4289
  %vm4474 = vcmp.eq.s32.totalorder %v922, %v4290
  %vm4475 = vcmp.eq.s32.totalorder %v922, %v4291
  %vm4476 = vcmp.eq.s32.totalorder %v922, %v4292
  %vm4477 = vcmp.eq.s32.totalorder %v922, %v4293
  %vm4478 = vcmp.eq.s32.totalorder %v922, %v4294
  %vm4479 = vcmp.eq.s32.totalorder %v923, %v4287
  %vm4480 = vcmp.eq.s32.totalorder %v923, %v4288
  %vm4481 = vcmp.eq.s32.totalorder %v923, %v4289
  %vm4482 = vcmp.eq.s32.totalorder %v923, %v4290
  %vm4483 = vcmp.eq.s32.totalorder %v923, %v4291
  %vm4484 = vcmp.eq.s32.totalorder %v923, %v4292
  %vm4485 = vcmp.eq.s32.totalorder %v923, %v4293
  %vm4486 = vcmp.eq.s32.totalorder %v923, %v4294
  %vm4487 = vcmp.eq.s32.totalorder %v924, %v4287
  %vm4488 = vcmp.eq.s32.totalorder %v924, %v4288
  %vm4489 = vcmp.eq.s32.totalorder %v924, %v4289
  %vm4490 = vcmp.eq.s32.totalorder %v924, %v4290
  %vm4491 = vcmp.eq.s32.totalorder %v924, %v4291
  %vm4492 = vcmp.eq.s32.totalorder %v924, %v4292
  %vm4493 = vcmp.eq.s32.totalorder %v924, %v4293
  %vm4494 = vcmp.eq.s32.totalorder %v924, %v4294
  %vm4495 = vcmp.eq.s32.totalorder %v925, %v4287
  %vm4496 = vcmp.eq.s32.totalorder %v925, %v4288
  %vm4497 = vcmp.eq.s32.totalorder %v925, %v4289
  %vm4498 = vcmp.eq.s32.totalorder %v925, %v4290
  %vm4499 = vcmp.eq.s32.totalorder %v925, %v4291
  %vm4500 = vcmp.eq.s32.totalorder %v925, %v4292
  %vm4501 = vcmp.eq.s32.totalorder %v925, %v4293
  %vm4502 = vcmp.eq.s32.totalorder %v925, %v4294
  %vm4503 = vcmp.eq.s32.totalorder %v926, %v4287
  %vm4504 = vcmp.eq.s32.totalorder %v926, %v4288
  %vm4505 = vcmp.eq.s32.totalorder %v926, %v4289
  %vm4506 = vcmp.eq.s32.totalorder %v926, %v4290
  %vm4507 = vcmp.eq.s32.totalorder %v926, %v4291
  %vm4508 = vcmp.eq.s32.totalorder %v926, %v4292
  %vm4509 = vcmp.eq.s32.totalorder %v926, %v4293
  %vm4510 = vcmp.eq.s32.totalorder %v926, %v4294
  %vm4511 = vcmp.eq.s32.totalorder %v927, %v4287
  %vm4512 = vcmp.eq.s32.totalorder %v927, %v4288
  %vm4513 = vcmp.eq.s32.totalorder %v927, %v4289
  %vm4514 = vcmp.eq.s32.totalorder %v927, %v4290
  %vm4515 = vcmp.eq.s32.totalorder %v927, %v4291
  %vm4516 = vcmp.eq.s32.totalorder %v927, %v4292
  %vm4517 = vcmp.eq.s32.totalorder %v927, %v4293
  %vm4518 = vcmp.eq.s32.totalorder %v927, %v4294
  %vm4519 = vcmp.eq.s32.totalorder %v928, %v4287
  %vm4520 = vcmp.eq.s32.totalorder %v928, %v4288
  %vm4521 = vcmp.eq.s32.totalorder %v928, %v4289
  %vm4522 = vcmp.eq.s32.totalorder %v928, %v4290
  %vm4523 = vcmp.eq.s32.totalorder %v928, %v4291
  %vm4524 = vcmp.eq.s32.totalorder %v928, %v4292
  %vm4525 = vcmp.eq.s32.totalorder %v928, %v4293
  %vm4526 = vcmp.eq.s32.totalorder %v928, %v4294
  %vm4527 = vcmp.eq.s32.totalorder %v929, %v4287
  %vm4528 = vcmp.eq.s32.totalorder %v929, %v4288
  %vm4529 = vcmp.eq.s32.totalorder %v929, %v4289
  %vm4530 = vcmp.eq.s32.totalorder %v929, %v4290
  %vm4531 = vcmp.eq.s32.totalorder %v929, %v4291
  %vm4532 = vcmp.eq.s32.totalorder %v929, %v4292
  %vm4533 = vcmp.eq.s32.totalorder %v929, %v4293
  %vm4534 = vcmp.eq.s32.totalorder %v929, %v4294
  %vm4535 = vcmp.eq.s32.totalorder %v930, %v4287
  %vm4536 = vcmp.eq.s32.totalorder %v930, %v4288
  %vm4537 = vcmp.eq.s32.totalorder %v930, %v4289
  %vm4538 = vcmp.eq.s32.totalorder %v930, %v4290
  %vm4539 = vcmp.eq.s32.totalorder %v930, %v4291
  %vm4540 = vcmp.eq.s32.totalorder %v930, %v4292
  %vm4541 = vcmp.eq.s32.totalorder %v930, %v4293
  %vm4542 = vcmp.eq.s32.totalorder %v930, %v4294
  %vm4543 = vcmp.eq.s32.totalorder %v931, %v4287
  %vm4544 = vcmp.eq.s32.totalorder %v931, %v4288
  %vm4545 = vcmp.eq.s32.totalorder %v931, %v4289
  %vm4546 = vcmp.eq.s32.totalorder %v931, %v4290
  %vm4547 = vcmp.eq.s32.totalorder %v931, %v4291
  %vm4548 = vcmp.eq.s32.totalorder %v931, %v4292
  %vm4549 = vcmp.eq.s32.totalorder %v931, %v4293
  %vm4550 = vcmp.eq.s32.totalorder %v931, %v4294
  %v4551 = vsel %vm4295, 1.0, 0.0
  %v4552 = vsel %vm4296, 1.0, 0.0
  %v4553 = vsel %vm4297, 1.0, 0.0
  %v4554 = vsel %vm4298, 1.0, 0.0
  %v4555 = vsel %vm4299, 1.0, 0.0
  %v4556 = vsel %vm4300, 1.0, 0.0
  %v4557 = vsel %vm4301, 1.0, 0.0
  %v4558 = vsel %vm4302, 1.0, 0.0
  %v4559 = vsel %vm4303, 1.0, 0.0
  %v4560 = vsel %vm4304, 1.0, 0.0
  %v4561 = vsel %vm4305, 1.0, 0.0
  %v4562 = vsel %vm4306, 1.0, 0.0
  %v4563 = vsel %vm4307, 1.0, 0.0
  %v4564 = vsel %vm4308, 1.0, 0.0
  %v4565 = vsel %vm4309, 1.0, 0.0
  %v4566 = vsel %vm4310, 1.0, 0.0
  %v4567 = vsel %vm4311, 1.0, 0.0
  %v4568 = vsel %vm4312, 1.0, 0.0
  %v4569 = vsel %vm4313, 1.0, 0.0
  %v4570 = vsel %vm4314, 1.0, 0.0
  %v4571 = vsel %vm4315, 1.0, 0.0
  %v4572 = vsel %vm4316, 1.0, 0.0
  %v4573 = vsel %vm4317, 1.0, 0.0
  %v4574 = vsel %vm4318, 1.0, 0.0
  %v4575 = vsel %vm4319, 1.0, 0.0
  %v4576 = vsel %vm4320, 1.0, 0.0
  %v4577 = vsel %vm4321, 1.0, 0.0
  %v4578 = vsel %vm4322, 1.0, 0.0
  %v4579 = vsel %vm4323, 1.0, 0.0
  %v4580 = vsel %vm4324, 1.0, 0.0
  %v4581 = vsel %vm4325, 1.0, 0.0
  %v4582 = vsel %vm4326, 1.0, 0.0
  %v4583 = vsel %vm4327, 1.0, 0.0
  %v4584 = vsel %vm4328, 1.0, 0.0
  %v4585 = vsel %vm4329, 1.0, 0.0
  %v4586 = vsel %vm4330, 1.0, 0.0
  %v4587 = vsel %vm4331, 1.0, 0.0
  %v4588 = vsel %vm4332, 1.0, 0.0
  %v4589 = vsel %vm4333, 1.0, 0.0
  %v4590 = vsel %vm4334, 1.0, 0.0
  %v4591 = vsel %vm4335, 1.0, 0.0
  %v4592 = vsel %vm4336, 1.0, 0.0
  %v4593 = vsel %vm4337, 1.0, 0.0
  %v4594 = vsel %vm4338, 1.0, 0.0
  %v4595 = vsel %vm4339, 1.0, 0.0
  %v4596 = vsel %vm4340, 1.0, 0.0
  %v4597 = vsel %vm4341, 1.0, 0.0
  %v4598 = vsel %vm4342, 1.0, 0.0
  %v4599 = vsel %vm4343, 1.0, 0.0
  %v4600 = vsel %vm4344, 1.0, 0.0
  %v4601 = vsel %vm4345, 1.0, 0.0
  %v4602 = vsel %vm4346, 1.0, 0.0
  %v4603 = vsel %vm4347, 1.0, 0.0
  %v4604 = vsel %vm4348, 1.0, 0.0
  %v4605 = vsel %vm4349, 1.0, 0.0
  %v4606 = vsel %vm4350, 1.0, 0.0
  %v4607 = vsel %vm4351, 1.0, 0.0
  %v4608 = vsel %vm4352, 1.0, 0.0
  %v4609 = vsel %vm4353, 1.0, 0.0
  %v4610 = vsel %vm4354, 1.0, 0.0
  %v4611 = vsel %vm4355, 1.0, 0.0
  %v4612 = vsel %vm4356, 1.0, 0.0
  %v4613 = vsel %vm4357, 1.0, 0.0
  %v4614 = vsel %vm4358, 1.0, 0.0
  %v4615 = vsel %vm4359, 1.0, 0.0
  %v4616 = vsel %vm4360, 1.0, 0.0
  %v4617 = vsel %vm4361, 1.0, 0.0
  %v4618 = vsel %vm4362, 1.0, 0.0
  %v4619 = vsel %vm4363, 1.0, 0.0
  %v4620 = vsel %vm4364, 1.0, 0.0
  %v4621 = vsel %vm4365, 1.0, 0.0
  %v4622 = vsel %vm4366, 1.0, 0.0
  %v4623 = vsel %vm4367, 1.0, 0.0
  %v4624 = vsel %vm4368, 1.0, 0.0
  %v4625 = vsel %vm4369, 1.0, 0.0
  %v4626 = vsel %vm4370, 1.0, 0.0
  %v4627 = vsel %vm4371, 1.0, 0.0
  %v4628 = vsel %vm4372, 1.0, 0.0
  %v4629 = vsel %vm4373, 1.0, 0.0
  %v4630 = vsel %vm4374, 1.0, 0.0
  %v4631 = vsel %vm4375, 1.0, 0.0
  %v4632 = vsel %vm4376, 1.0, 0.0
  %v4633 = vsel %vm4377, 1.0, 0.0
  %v4634 = vsel %vm4378, 1.0, 0.0
  %v4635 = vsel %vm4379, 1.0, 0.0
  %v4636 = vsel %vm4380, 1.0, 0.0
  %v4637 = vsel %vm4381, 1.0, 0.0
  %v4638 = vsel %vm4382, 1.0, 0.0
  %v4639 = vsel %vm4383, 1.0, 0.0
  %v4640 = vsel %vm4384, 1.0, 0.0
  %v4641 = vsel %vm4385, 1.0, 0.0
  %v4642 = vsel %vm4386, 1.0, 0.0
  %v4643 = vsel %vm4387, 1.0, 0.0
  %v4644 = vsel %vm4388, 1.0, 0.0
  %v4645 = vsel %vm4389, 1.0, 0.0
  %v4646 = vsel %vm4390, 1.0, 0.0
  %v4647 = vsel %vm4391, 1.0, 0.0
  %v4648 = vsel %vm4392, 1.0, 0.0
  %v4649 = vsel %vm4393, 1.0, 0.0
  %v4650 = vsel %vm4394, 1.0, 0.0
  %v4651 = vsel %vm4395, 1.0, 0.0
  %v4652 = vsel %vm4396, 1.0, 0.0
  %v4653 = vsel %vm4397, 1.0, 0.0
  %v4654 = vsel %vm4398, 1.0, 0.0
  %v4655 = vsel %vm4399, 1.0, 0.0
  %v4656 = vsel %vm4400, 1.0, 0.0
  %v4657 = vsel %vm4401, 1.0, 0.0
  %v4658 = vsel %vm4402, 1.0, 0.0
  %v4659 = vsel %vm4403, 1.0, 0.0
  %v4660 = vsel %vm4404, 1.0, 0.0
  %v4661 = vsel %vm4405, 1.0, 0.0
  %v4662 = vsel %vm4406, 1.0, 0.0
  %v4663 = vsel %vm4407, 1.0, 0.0
  %v4664 = vsel %vm4408, 1.0, 0.0
  %v4665 = vsel %vm4409, 1.0, 0.0
  %v4666 = vsel %vm4410, 1.0, 0.0
  %v4667 = vsel %vm4411, 1.0, 0.0
  %v4668 = vsel %vm4412, 1.0, 0.0
  %v4669 = vsel %vm4413, 1.0, 0.0
  %v4670 = vsel %vm4414, 1.0, 0.0
  %v4671 = vsel %vm4415, 1.0, 0.0
  %v4672 = vsel %vm4416, 1.0, 0.0
  %v4673 = vsel %vm4417, 1.0, 0.0
  %v4674 = vsel %vm4418, 1.0, 0.0
  %v4675 = vsel %vm4419, 1.0, 0.0
  %v4676 = vsel %vm4420, 1.0, 0.0
  %v4677 = vsel %vm4421, 1.0, 0.0
  %v4678 = vsel %vm4422, 1.0, 0.0
  %v4679 = vsel %vm4423, 1.0, 0.0
  %v4680 = vsel %vm4424, 1.0, 0.0
  %v4681 = vsel %vm4425, 1.0, 0.0
  %v4682 = vsel %vm4426, 1.0, 0.0
  %v4683 = vsel %vm4427, 1.0, 0.0
  %v4684 = vsel %vm4428, 1.0, 0.0
  %v4685 = vsel %vm4429, 1.0, 0.0
  %v4686 = vsel %vm4430, 1.0, 0.0
  %v4687 = vsel %vm4431, 1.0, 0.0
  %v4688 = vsel %vm4432, 1.0, 0.0
  %v4689 = vsel %vm4433, 1.0, 0.0
  %v4690 = vsel %vm4434, 1.0, 0.0
  %v4691 = vsel %vm4435, 1.0, 0.0
  %v4692 = vsel %vm4436, 1.0, 0.0
  %v4693 = vsel %vm4437, 1.0, 0.0
  %v4694 = vsel %vm4438, 1.0, 0.0
  %v4695 = vsel %vm4439, 1.0, 0.0
  %v4696 = vsel %vm4440, 1.0, 0.0
  %v4697 = vsel %vm4441, 1.0, 0.0
  %v4698 = vsel %vm4442, 1.0, 0.0
  %v4699 = vsel %vm4443, 1.0, 0.0
  %v4700 = vsel %vm4444, 1.0, 0.0
  %v4701 = vsel %vm4445, 1.0, 0.0
  %v4702 = vsel %vm4446, 1.0, 0.0
  %v4703 = vsel %vm4447, 1.0, 0.0
  %v4704 = vsel %vm4448, 1.0, 0.0
  %v4705 = vsel %vm4449, 1.0, 0.0
  %v4706 = vsel %vm4450, 1.0, 0.0
  %v4707 = vsel %vm4451, 1.0, 0.0
  %v4708 = vsel %vm4452, 1.0, 0.0
  %v4709 = vsel %vm4453, 1.0, 0.0
  %v4710 = vsel %vm4454, 1.0, 0.0
  %v4711 = vsel %vm4455, 1.0, 0.0
  %v4712 = vsel %vm4456, 1.0, 0.0
  %v4713 = vsel %vm4457, 1.0, 0.0
  %v4714 = vsel %vm4458, 1.0, 0.0
  %v4715 = vsel %vm4459, 1.0, 0.0
  %v4716 = vsel %vm4460, 1.0, 0.0
  %v4717 = vsel %vm4461, 1.0, 0.0
  %v4718 = vsel %vm4462, 1.0, 0.0
  %v4719 = vsel %vm4463, 1.0, 0.0
  %v4720 = vsel %vm4464, 1.0, 0.0
  %v4721 = vsel %vm4465, 1.0, 0.0
  %v4722 = vsel %vm4466, 1.0, 0.0
  %v4723 = vsel %vm4467, 1.0, 0.0
  %v4724 = vsel %vm4468, 1.0, 0.0
  %v4725 = vsel %vm4469, 1.0, 0.0
  %v4726 = vsel %vm4470, 1.0, 0.0
  %v4727 = vsel %vm4471, 1.0, 0.0
  %v4728 = vsel %vm4472, 1.0, 0.0
  %v4729 = vsel %vm4473, 1.0, 0.0
  %v4730 = vsel %vm4474, 1.0, 0.0
  %v4731 = vsel %vm4475, 1.0, 0.0
  %v4732 = vsel %vm4476, 1.0, 0.0
  %v4733 = vsel %vm4477, 1.0, 0.0
  %v4734 = vsel %vm4478, 1.0, 0.0
  %v4735 = vsel %vm4479, 1.0, 0.0
  %v4736 = vsel %vm4480, 1.0, 0.0
  %v4737 = vsel %vm4481, 1.0, 0.0
  %v4738 = vsel %vm4482, 1.0, 0.0
  %v4739 = vsel %vm4483, 1.0, 0.0
  %v4740 = vsel %vm4484, 1.0, 0.0
  %v4741 = vsel %vm4485, 1.0, 0.0
  %v4742 = vsel %vm4486, 1.0, 0.0
  %v4743 = vsel %vm4487, 1.0, 0.0
  %v4744 = vsel %vm4488, 1.0, 0.0
  %v4745 = vsel %vm4489, 1.0, 0.0
  %v4746 = vsel %vm4490, 1.0, 0.0
  %v4747 = vsel %vm4491, 1.0, 0.0
  %v4748 = vsel %vm4492, 1.0, 0.0
  %v4749 = vsel %vm4493, 1.0, 0.0
  %v4750 = vsel %vm4494, 1.0, 0.0
  %v4751 = vsel %vm4495, 1.0, 0.0
  %v4752 = vsel %vm4496, 1.0, 0.0
  %v4753 = vsel %vm4497, 1.0, 0.0
  %v4754 = vsel %vm4498, 1.0, 0.0
  %v4755 = vsel %vm4499, 1.0, 0.0
  %v4756 = vsel %vm4500, 1.0, 0.0
  %v4757 = vsel %vm4501, 1.0, 0.0
  %v4758 = vsel %vm4502, 1.0, 0.0
  %v4759 = vsel %vm4503, 1.0, 0.0
  %v4760 = vsel %vm4504, 1.0, 0.0
  %v4761 = vsel %vm4505, 1.0, 0.0
  %v4762 = vsel %vm4506, 1.0, 0.0
  %v4763 = vsel %vm4507, 1.0, 0.0
  %v4764 = vsel %vm4508, 1.0, 0.0
  %v4765 = vsel %vm4509, 1.0, 0.0
  %v4766 = vsel %vm4510, 1.0, 0.0
  %v4767 = vsel %vm4511, 1.0, 0.0
  %v4768 = vsel %vm4512, 1.0, 0.0
  %v4769 = vsel %vm4513, 1.0, 0.0
  %v4770 = vsel %vm4514, 1.0, 0.0
  %v4771 = vsel %vm4515, 1.0, 0.0
  %v4772 = vsel %vm4516, 1.0, 0.0
  %v4773 = vsel %vm4517, 1.0, 0.0
  %v4774 = vsel %vm4518, 1.0, 0.0
  %v4775 = vsel %vm4519, 1.0, 0.0
  %v4776 = vsel %vm4520, 1.0, 0.0
  %v4777 = vsel %vm4521, 1.0, 0.0
  %v4778 = vsel %vm4522, 1.0, 0.0
  %v4779 = vsel %vm4523, 1.0, 0.0
  %v4780 = vsel %vm4524, 1.0, 0.0
  %v4781 = vsel %vm4525, 1.0, 0.0
  %v4782 = vsel %vm4526, 1.0, 0.0
  %v4783 = vsel %vm4527, 1.0, 0.0
  %v4784 = vsel %vm4528, 1.0, 0.0
  %v4785 = vsel %vm4529, 1.0, 0.0
  %v4786 = vsel %vm4530, 1.0, 0.0
  %v4787 = vsel %vm4531, 1.0, 0.0
  %v4788 = vsel %vm4532, 1.0, 0.0
  %v4789 = vsel %vm4533, 1.0, 0.0
  %v4790 = vsel %vm4534, 1.0, 0.0
  %v4791 = vsel %vm4535, 1.0, 0.0
  %v4792 = vsel %vm4536, 1.0, 0.0
  %v4793 = vsel %vm4537, 1.0, 0.0
  %v4794 = vsel %vm4538, 1.0, 0.0
  %v4795 = vsel %vm4539, 1.0, 0.0
  %v4796 = vsel %vm4540, 1.0, 0.0
  %v4797 = vsel %vm4541, 1.0, 0.0
  %v4798 = vsel %vm4542, 1.0, 0.0
  %v4799 = vsel %vm4543, 1.0, 0.0
  %v4800 = vsel %vm4544, 1.0, 0.0
  %v4801 = vsel %vm4545, 1.0, 0.0
  %v4802 = vsel %vm4546, 1.0, 0.0
  %v4803 = vsel %vm4547, 1.0, 0.0
  %v4804 = vsel %vm4548, 1.0, 0.0
  %v4805 = vsel %vm4549, 1.0, 0.0
  %v4806 = vsel %vm4550, 1.0, 0.0
  %v4807 = vpack.c.bf16 %v4559, %v4551
  %v4808 = vpack.c.bf16 %v4560, %v4552
  %v4809 = vpack.c.bf16 %v4561, %v4553
  %v4810 = vpack.c.bf16 %v4562, %v4554
  %v4811 = vpack.c.bf16 %v4563, %v4555
  %v4812 = vpack.c.bf16 %v4564, %v4556
  %v4813 = vpack.c.bf16 %v4565, %v4557
  %v4814 = vpack.c.bf16 %v4566, %v4558
  %v4815 = vpack.c.bf16 %v4575, %v4567
  %v4816 = vpack.c.bf16 %v4576, %v4568
  %v4817 = vpack.c.bf16 %v4577, %v4569
  %v4818 = vpack.c.bf16 %v4578, %v4570
  %v4819 = vpack.c.bf16 %v4579, %v4571
  %v4820 = vpack.c.bf16 %v4580, %v4572
  %v4821 = vpack.c.bf16 %v4581, %v4573
  %v4822 = vpack.c.bf16 %v4582, %v4574
  %v4823 = vpack.c.bf16 %v4591, %v4583
  %v4824 = vpack.c.bf16 %v4592, %v4584
  %v4825 = vpack.c.bf16 %v4593, %v4585
  %v4826 = vpack.c.bf16 %v4594, %v4586
  %v4827 = vpack.c.bf16 %v4595, %v4587
  %v4828 = vpack.c.bf16 %v4596, %v4588
  %v4829 = vpack.c.bf16 %v4597, %v4589
  %v4830 = vpack.c.bf16 %v4598, %v4590
  %v4831 = vpack.c.bf16 %v4607, %v4599
  %v4832 = vpack.c.bf16 %v4608, %v4600
  %v4833 = vpack.c.bf16 %v4609, %v4601
  %v4834 = vpack.c.bf16 %v4610, %v4602
  %v4835 = vpack.c.bf16 %v4611, %v4603
  %v4836 = vpack.c.bf16 %v4612, %v4604
  %v4837 = vpack.c.bf16 %v4613, %v4605
  %v4838 = vpack.c.bf16 %v4614, %v4606
  %v4839 = vpack.c.bf16 %v4623, %v4615
  %v4840 = vpack.c.bf16 %v4624, %v4616
  %v4841 = vpack.c.bf16 %v4625, %v4617
  %v4842 = vpack.c.bf16 %v4626, %v4618
  %v4843 = vpack.c.bf16 %v4627, %v4619
  %v4844 = vpack.c.bf16 %v4628, %v4620
  %v4845 = vpack.c.bf16 %v4629, %v4621
  %v4846 = vpack.c.bf16 %v4630, %v4622
  %v4847 = vpack.c.bf16 %v4639, %v4631
  %v4848 = vpack.c.bf16 %v4640, %v4632
  %v4849 = vpack.c.bf16 %v4641, %v4633
  %v4850 = vpack.c.bf16 %v4642, %v4634
  %v4851 = vpack.c.bf16 %v4643, %v4635
  %v4852 = vpack.c.bf16 %v4644, %v4636
  %v4853 = vpack.c.bf16 %v4645, %v4637
  %v4854 = vpack.c.bf16 %v4646, %v4638
  %v4855 = vpack.c.bf16 %v4655, %v4647
  %v4856 = vpack.c.bf16 %v4656, %v4648
  %v4857 = vpack.c.bf16 %v4657, %v4649
  %v4858 = vpack.c.bf16 %v4658, %v4650
  %v4859 = vpack.c.bf16 %v4659, %v4651
  %v4860 = vpack.c.bf16 %v4660, %v4652
  %v4861 = vpack.c.bf16 %v4661, %v4653
  %v4862 = vpack.c.bf16 %v4662, %v4654
  %v4863 = vpack.c.bf16 %v4671, %v4663
  %v4864 = vpack.c.bf16 %v4672, %v4664
  %v4865 = vpack.c.bf16 %v4673, %v4665
  %v4866 = vpack.c.bf16 %v4674, %v4666
  %v4867 = vpack.c.bf16 %v4675, %v4667
  %v4868 = vpack.c.bf16 %v4676, %v4668
  %v4869 = vpack.c.bf16 %v4677, %v4669
  %v4870 = vpack.c.bf16 %v4678, %v4670
  %v4871 = vpack.c.bf16 %v4687, %v4679
  %v4872 = vpack.c.bf16 %v4688, %v4680
  %v4873 = vpack.c.bf16 %v4689, %v4681
  %v4874 = vpack.c.bf16 %v4690, %v4682
  %v4875 = vpack.c.bf16 %v4691, %v4683
  %v4876 = vpack.c.bf16 %v4692, %v4684
  %v4877 = vpack.c.bf16 %v4693, %v4685
  %v4878 = vpack.c.bf16 %v4694, %v4686
  %v4879 = vpack.c.bf16 %v4703, %v4695
  %v4880 = vpack.c.bf16 %v4704, %v4696
  %v4881 = vpack.c.bf16 %v4705, %v4697
  %v4882 = vpack.c.bf16 %v4706, %v4698
  %v4883 = vpack.c.bf16 %v4707, %v4699
  %v4884 = vpack.c.bf16 %v4708, %v4700
  %v4885 = vpack.c.bf16 %v4709, %v4701
  %v4886 = vpack.c.bf16 %v4710, %v4702
  %v4887 = vpack.c.bf16 %v4719, %v4711
  %v4888 = vpack.c.bf16 %v4720, %v4712
  %v4889 = vpack.c.bf16 %v4721, %v4713
  %v4890 = vpack.c.bf16 %v4722, %v4714
  %v4891 = vpack.c.bf16 %v4723, %v4715
  %v4892 = vpack.c.bf16 %v4724, %v4716
  %v4893 = vpack.c.bf16 %v4725, %v4717
  %v4894 = vpack.c.bf16 %v4726, %v4718
  %v4895 = vpack.c.bf16 %v4735, %v4727
  %v4896 = vpack.c.bf16 %v4736, %v4728
  %v4897 = vpack.c.bf16 %v4737, %v4729
  %v4898 = vpack.c.bf16 %v4738, %v4730
  %v4899 = vpack.c.bf16 %v4739, %v4731
  %v4900 = vpack.c.bf16 %v4740, %v4732
  %v4901 = vpack.c.bf16 %v4741, %v4733
  %v4902 = vpack.c.bf16 %v4742, %v4734
  %v4903 = vpack.c.bf16 %v4751, %v4743
  %v4904 = vpack.c.bf16 %v4752, %v4744
  %v4905 = vpack.c.bf16 %v4753, %v4745
  %v4906 = vpack.c.bf16 %v4754, %v4746
  %v4907 = vpack.c.bf16 %v4755, %v4747
  %v4908 = vpack.c.bf16 %v4756, %v4748
  %v4909 = vpack.c.bf16 %v4757, %v4749
  %v4910 = vpack.c.bf16 %v4758, %v4750
  %v4911 = vpack.c.bf16 %v4767, %v4759
  %v4912 = vpack.c.bf16 %v4768, %v4760
  %v4913 = vpack.c.bf16 %v4769, %v4761
  %v4914 = vpack.c.bf16 %v4770, %v4762
  %v4915 = vpack.c.bf16 %v4771, %v4763
  %v4916 = vpack.c.bf16 %v4772, %v4764
  %v4917 = vpack.c.bf16 %v4773, %v4765
  %v4918 = vpack.c.bf16 %v4774, %v4766
  %v4919 = vpack.c.bf16 %v4783, %v4775
  %v4920 = vpack.c.bf16 %v4784, %v4776
  %v4921 = vpack.c.bf16 %v4785, %v4777
  %v4922 = vpack.c.bf16 %v4786, %v4778
  %v4923 = vpack.c.bf16 %v4787, %v4779
  %v4924 = vpack.c.bf16 %v4788, %v4780
  %v4925 = vpack.c.bf16 %v4789, %v4781
  %v4926 = vpack.c.bf16 %v4790, %v4782
  %v4927 = vpack.c.bf16 %v4799, %v4791
  %v4928 = vpack.c.bf16 %v4800, %v4792
  %v4929 = vpack.c.bf16 %v4801, %v4793
  %v4930 = vpack.c.bf16 %v4802, %v4794
  %v4931 = vpack.c.bf16 %v4803, %v4795
  %v4932 = vpack.c.bf16 %v4804, %v4796
  %v4933 = vpack.c.bf16 %v4805, %v4797
  %v4934 = vpack.c.bf16 %v4806, %v4798
  %4935 = vmatprep.subr.bf16.mxu0 %v4808
  %4936 = vmatpush1.bf16.msra.mxu0 %v4807
  %4937 = vmatprep.subr.bf16.mxu0 %v4816
  %4938 = vmatpush1.bf16.msra.mxu0 %v4815
  %4939 = vmatprep.subr.bf16.mxu0 %v4824
  %4940 = vmatpush1.bf16.msra.mxu0 %v4823
  %4941 = vmatprep.subr.bf16.mxu0 %v4832
  %4942 = vmatpush1.bf16.msra.mxu0 %v4831
  %4943 = vmatprep.subr.bf16.mxu0 %v4840
  %4944 = vmatpush1.bf16.msra.mxu0 %v4839
  %4945 = vmatprep.subr.bf16.mxu0 %v4848
  %4946 = vmatpush1.bf16.msra.mxu0 %v4847
  %4947 = vmatprep.subr.bf16.mxu0 %v4856
  %4948 = vmatpush1.bf16.msra.mxu0 %v4855
  %4949 = vmatprep.subr.bf16.mxu0 %v4864
  %4950 = vmatpush1.bf16.msra.mxu0 %v4863
  %4951 = vmatprep.subr.bf16.mxu0 %v4872
  %4952 = vmatpush1.bf16.msra.mxu0 %v4871
  %4953 = vmatprep.subr.bf16.mxu0 %v4880
  %4954 = vmatpush1.bf16.msra.mxu0 %v4879
  %4955 = vmatprep.subr.bf16.mxu0 %v4888
  %4956 = vmatpush1.bf16.msra.mxu0 %v4887
  %4957 = vmatprep.subr.bf16.mxu0 %v4896
  %4958 = vmatpush1.bf16.msra.mxu0 %v4895
  %4959 = vmatprep.subr.bf16.mxu0 %v4904
  %4960 = vmatpush1.bf16.msra.mxu0 %v4903
  %4961 = vmatprep.subr.bf16.mxu0 %v4912
  %4962 = vmatpush1.bf16.msra.mxu0 %v4911
  %4963 = vmatprep.subr.bf16.mxu0 %v4920
  %4964 = vmatpush1.bf16.msra.mxu0 %v4919
  %4965 = vmatprep.subr.bf16.mxu0 %v4928
  %4966 = vmatpush1.bf16.msra.mxu0 %v4927
  %4967 = vmatprep.mubr.bf16.mxu0 %v4252
  %4968 = vmatmul.mubr.bf16.gmra.mrb[0].mxu0 %v4251
  %v4969 = vpop.f32.mrb[0].mxu0
  %v4970 = vadd.f32 0.0, %v4969
  %v4971 = vpop.f32.mrb[0].mxu0
  %v4972 = vadd.f32 0.0, %v4971
  %v4973 = vpop.f32.mrb[0].mxu0
  %v4974 = vadd.f32 0.0, %v4973
  %v4975 = vpop.f32.mrb[0].mxu0
  %v4976 = vadd.f32 0.0, %v4975
  %4977 = vmatprep.mubr.bf16.mxu0 %v4254
  %4978 = vmatmul.mubr.bf16.gmra.mrb[0].mxu0 %v4253
  %v4979 = vpop.f32.mrb[0].mxu0
  %v4980 = vadd.f32 0.0, %v4979
  %v4981 = vpop.f32.mrb[0].mxu0
  %v4982 = vadd.f32 0.0, %v4981
  %v4983 = vpop.f32.mrb[0].mxu0
  %v4984 = vadd.f32 0.0, %v4983
  %v4985 = vpop.f32.mrb[0].mxu0
  %v4986 = vadd.f32 0.0, %v4985
  %4987 = vdwg.mxu0
  %4988 = vmatprep.subr.bf16.mxu0 %v4810
  %4989 = vmatpush1.bf16.msra.mxu0 %v4809
  %4990 = vmatprep.subr.bf16.mxu0 %v4818
  %4991 = vmatpush1.bf16.msra.mxu0 %v4817
  %4992 = vmatprep.subr.bf16.mxu0 %v4826
  %4993 = vmatpush1.bf16.msra.mxu0 %v4825
  %4994 = vmatprep.subr.bf16.mxu0 %v4834
  %4995 = vmatpush1.bf16.msra.mxu0 %v4833
  %4996 = vmatprep.subr.bf16.mxu0 %v4842
  %4997 = vmatpush1.bf16.msra.mxu0 %v4841
  %4998 = vmatprep.subr.bf16.mxu0 %v4850
  %4999 = vmatpush1.bf16.msra.mxu0 %v4849
  %5000 = vmatprep.subr.bf16.mxu0 %v4858
  %5001 = vmatpush1.bf16.msra.mxu0 %v4857
  %5002 = vmatprep.subr.bf16.mxu0 %v4866
  %5003 = vmatpush1.bf16.msra.mxu0 %v4865
  %5004 = vmatprep.subr.bf16.mxu0 %v4874
  %5005 = vmatpush1.bf16.msra.mxu0 %v4873
  %5006 = vmatprep.subr.bf16.mxu0 %v4882
  %5007 = vmatpush1.bf16.msra.mxu0 %v4881
  %5008 = vmatprep.subr.bf16.mxu0 %v4890
  %5009 = vmatpush1.bf16.msra.mxu0 %v4889
  %5010 = vmatprep.subr.bf16.mxu0 %v4898
  %5011 = vmatpush1.bf16.msra.mxu0 %v4897
  %5012 = vmatprep.subr.bf16.mxu0 %v4906
  %5013 = vmatpush1.bf16.msra.mxu0 %v4905
  %5014 = vmatprep.subr.bf16.mxu0 %v4914
  %5015 = vmatpush1.bf16.msra.mxu0 %v4913
  %5016 = vmatprep.subr.bf16.mxu0 %v4922
  %5017 = vmatpush1.bf16.msra.mxu0 %v4921
  %5018 = vmatprep.subr.bf16.mxu0 %v4930
  %5019 = vmatpush1.bf16.msra.mxu0 %v4929
  %5020 = vmatprep.mubr.bf16.mxu0 %v4252
  %5021 = vmatmul.mubr.bf16.gmra.mrb[0].mxu0 %v4251
  %v5022 = vpop.f32.mrb[0].mxu0
  %v5023 = vadd.f32 0.0, %v5022
  %v5024 = vpop.f32.mrb[0].mxu0
  %v5025 = vadd.f32 0.0, %v5024
  %v5026 = vpop.f32.mrb[0].mxu0
  %v5027 = vadd.f32 0.0, %v5026
  %v5028 = vpop.f32.mrb[0].mxu0
  %v5029 = vadd.f32 0.0, %v5028
  %5030 = vmatprep.mubr.bf16.mxu0 %v4254
  %5031 = vmatmul.mubr.bf16.gmra.mrb[0].mxu0 %v4253
  %v5032 = vpop.f32.mrb[0].mxu0
  %v5033 = vadd.f32 0.0, %v5032
  %v5034 = vpop.f32.mrb[0].mxu0
  %v5035 = vadd.f32 0.0, %v5034
  %v5036 = vpop.f32.mrb[0].mxu0
  %v5037 = vadd.f32 0.0, %v5036
  %v5038 = vpop.f32.mrb[0].mxu0
  %v5039 = vadd.f32 0.0, %v5038
  %5040 = vdwg.mxu0
  %5041 = vmatprep.subr.bf16.mxu0 %v4812
  %5042 = vmatpush1.bf16.msra.mxu0 %v4811
  %5043 = vmatprep.subr.bf16.mxu0 %v4820
  %5044 = vmatpush1.bf16.msra.mxu0 %v4819
  %5045 = vmatprep.subr.bf16.mxu0 %v4828
  %5046 = vmatpush1.bf16.msra.mxu0 %v4827
  %5047 = vmatprep.subr.bf16.mxu0 %v4836
  %5048 = vmatpush1.bf16.msra.mxu0 %v4835
  %5049 = vmatprep.subr.bf16.mxu0 %v4844
  %5050 = vmatpush1.bf16.msra.mxu0 %v4843
  %5051 = vmatprep.subr.bf16.mxu0 %v4852
  %5052 = vmatpush1.bf16.msra.mxu0 %v4851
  %5053 = vmatprep.subr.bf16.mxu0 %v4860
  %5054 = vmatpush1.bf16.msra.mxu0 %v4859
  %5055 = vmatprep.subr.bf16.mxu0 %v4868
  %5056 = vmatpush1.bf16.msra.mxu0 %v4867
  %5057 = vmatprep.subr.bf16.mxu0 %v4876
  %5058 = vmatpush1.bf16.msra.mxu0 %v4875
  %5059 = vmatprep.subr.bf16.mxu0 %v4884
  %5060 = vmatpush1.bf16.msra.mxu0 %v4883
  %5061 = vmatprep.subr.bf16.mxu0 %v4892
  %5062 = vmatpush1.bf16.msra.mxu0 %v4891
  %5063 = vmatprep.subr.bf16.mxu0 %v4900
  %5064 = vmatpush1.bf16.msra.mxu0 %v4899
  %5065 = vmatprep.subr.bf16.mxu0 %v4908
  %5066 = vmatpush1.bf16.msra.mxu0 %v4907
  %5067 = vmatprep.subr.bf16.mxu0 %v4916
  %5068 = vmatpush1.bf16.msra.mxu0 %v4915
  %5069 = vmatprep.subr.bf16.mxu0 %v4924
  %5070 = vmatpush1.bf16.msra.mxu0 %v4923
  %5071 = vmatprep.subr.bf16.mxu0 %v4932
  %5072 = vmatpush1.bf16.msra.mxu0 %v4931
  %5073 = vmatprep.mubr.bf16.mxu0 %v4252
  %5074 = vmatmul.mubr.bf16.gmra.mrb[0].mxu0 %v4251
  %v5075 = vpop.f32.mrb[0].mxu0
  %v5076 = vadd.f32 0.0, %v5075
  %v5077 = vpop.f32.mrb[0].mxu0
  %v5078 = vadd.f32 0.0, %v5077
  %v5079 = vpop.f32.mrb[0].mxu0
  %v5080 = vadd.f32 0.0, %v5079
  %v5081 = vpop.f32.mrb[0].mxu0
  %v5082 = vadd.f32 0.0, %v5081
  %5083 = vmatprep.mubr.bf16.mxu0 %v4254
  %5084 = vmatmul.mubr.bf16.gmra.mrb[0].mxu0 %v4253
  %v5085 = vpop.f32.mrb[0].mxu0
  %v5086 = vadd.f32 0.0, %v5085
  %v5087 = vpop.f32.mrb[0].mxu0
  %v5088 = vadd.f32 0.0, %v5087
  %v5089 = vpop.f32.mrb[0].mxu0
  %v5090 = vadd.f32 0.0, %v5089
  %v5091 = vpop.f32.mrb[0].mxu0
  %v5092 = vadd.f32 0.0, %v5091
  %5093 = vdwg.mxu0
  %5094 = vmatprep.subr.bf16.mxu0 %v4814
  %5095 = vmatpush1.bf16.msra.mxu0 %v4813
  %5096 = vmatprep.subr.bf16.mxu0 %v4822
  %5097 = vmatpush1.bf16.msra.mxu0 %v4821
  %5098 = vmatprep.subr.bf16.mxu0 %v4830
  %5099 = vmatpush1.bf16.msra.mxu0 %v4829
  %5100 = vmatprep.subr.bf16.mxu0 %v4838
  %5101 = vmatpush1.bf16.msra.mxu0 %v4837
  %5102 = vmatprep.subr.bf16.mxu0 %v4846
  %5103 = vmatpush1.bf16.msra.mxu0 %v4845
  %5104 = vmatprep.subr.bf16.mxu0 %v4854
  %5105 = vmatpush1.bf16.msra.mxu0 %v4853
  %5106 = vmatprep.subr.bf16.mxu0 %v4862
  %5107 = vmatpush1.bf16.msra.mxu0 %v4861
  %5108 = vmatprep.subr.bf16.mxu0 %v4870
  %5109 = vmatpush1.bf16.msra.mxu0 %v4869
  %5110 = vmatprep.subr.bf16.mxu0 %v4878
  %5111 = vmatpush1.bf16.msra.mxu0 %v4877
  %5112 = vmatprep.subr.bf16.mxu0 %v4886
  %5113 = vmatpush1.bf16.msra.mxu0 %v4885
  %5114 = vmatprep.subr.bf16.mxu0 %v4894
  %5115 = vmatpush1.bf16.msra.mxu0 %v4893
  %5116 = vmatprep.subr.bf16.mxu0 %v4902
  %5117 = vmatpush1.bf16.msra.mxu0 %v4901
  %5118 = vmatprep.subr.bf16.mxu0 %v4910
  %5119 = vmatpush1.bf16.msra.mxu0 %v4909
  %5120 = vmatprep.subr.bf16.mxu0 %v4918
  %5121 = vmatpush1.bf16.msra.mxu0 %v4917
  %5122 = vmatprep.subr.bf16.mxu0 %v4926
  %5123 = vmatpush1.bf16.msra.mxu0 %v4925
  %5124 = vmatprep.subr.bf16.mxu0 %v4934
  %5125 = vmatpush1.bf16.msra.mxu0 %v4933
  %5126 = vmatprep.mubr.bf16.mxu0 %v4252
  %5127 = vmatmul.mubr.bf16.gmra.mrb[0].mxu0 %v4251
  %v5128 = vpop.f32.mrb[0].mxu0
  %v5129 = vadd.f32 0.0, %v5128
  %v5130 = vpop.f32.mrb[0].mxu0
  %v5131 = vadd.f32 0.0, %v5130
  %v5132 = vpop.f32.mrb[0].mxu0
  %v5133 = vadd.f32 0.0, %v5132
  %v5134 = vpop.f32.mrb[0].mxu0
  %v5135 = vadd.f32 0.0, %v5134
  %5136 = vmatprep.mubr.bf16.mxu0 %v4254
  %5137 = vmatmul.mubr.bf16.gmra.mrb[0].mxu0 %v4253
  %v5138 = vpop.f32.mrb[0].mxu0
  %v5139 = vadd.f32 0.0, %v5138
  %v5140 = vpop.f32.mrb[0].mxu0
  %v5141 = vadd.f32 0.0, %v5140
  %v5142 = vpop.f32.mrb[0].mxu0
  %v5143 = vadd.f32 0.0, %v5142
  %v5144 = vpop.f32.mrb[0].mxu0
  %v5145 = vadd.f32 0.0, %v5144
  %5146 = vdwg.mxu0
  %v5147 = vld [vmem:[%s9] sm:$0xff]
  %v5148 = vld [vmem:[%s9 + $0x8] sm:$0xff]
  %v5149 = vld [vmem:[%s9 + $0x10] sm:$0xff]
  %v5150 = vld [vmem:[%s9 + $0x18] sm:$0xff]
  %v5151 = vld [vmem:[%s10] sm:$0xff]
  %v5152 = vld [vmem:[%s10 + $0x8] sm:$0xff]
  %5201 = vrot.lane.b32.xlu0 %v4970, 33
  %v5202 = vpop.permute.xlu0 %5201
  %5203 = vrot.lane.b32.xlu0 %v4972, 33
  %v5204 = vpop.permute.xlu0 %5203
  %5205 = vrot.lane.b32.xlu0 %v5023, 33
  %v5206 = vpop.permute.xlu0 %5205
  %5207 = vrot.lane.b32.xlu0 %v5025, 33
  %v5208 = vpop.permute.xlu0 %5207
  %5209 = vrot.lane.b32.xlu0 %v5076, 33
  %v5210 = vpop.permute.xlu0 %5209
  %5211 = vrot.lane.b32.xlu0 %v5078, 33
  %v5212 = vpop.permute.xlu0 %5211
  %5213 = vrot.lane.b32.xlu0 %v5129, 33
  %v5214 = vpop.permute.xlu0 %5213
  %5215 = vrot.lane.b32.xlu0 %v5131, 33
  %v5216 = vpop.permute.xlu0 %5215
  %5217 = vrot.lane.b32.xlu0 %v4974, 33
  %v5218 = vpop.permute.xlu0 %5217
  %5219 = vrot.lane.b32.xlu0 %v4976, 33
  %v5220 = vpop.permute.xlu0 %5219
  %5221 = vrot.lane.b32.xlu0 %v5027, 33
  %v5222 = vpop.permute.xlu0 %5221
  %5223 = vrot.lane.b32.xlu0 %v5029, 33
  %v5224 = vpop.permute.xlu0 %5223
  %5225 = vrot.lane.b32.xlu0 %v5080, 33
  %v5226 = vpop.permute.xlu0 %5225
  %5227 = vrot.lane.b32.xlu0 %v5082, 33
  %v5228 = vpop.permute.xlu0 %5227
  %5229 = vrot.lane.b32.xlu0 %v5133, 33
  %v5230 = vpop.permute.xlu0 %5229
  %5231 = vrot.lane.b32.xlu0 %v5135, 33
  %v5232 = vpop.permute.xlu0 %5231
  %5233 = vrot.lane.b32.xlu0 %v4980, 33
  %v5234 = vpop.permute.xlu0 %5233
  %5235 = vrot.lane.b32.xlu0 %v4982, 33
  %v5236 = vpop.permute.xlu0 %5235
  %5237 = vrot.lane.b32.xlu0 %v5033, 33
  %v5238 = vpop.permute.xlu0 %5237
  %5239 = vrot.lane.b32.xlu0 %v5035, 33
  %v5240 = vpop.permute.xlu0 %5239
  %5241 = vrot.lane.b32.xlu0 %v5086, 33
  %v5242 = vpop.permute.xlu0 %5241
  %5243 = vrot.lane.b32.xlu0 %v5088, 33
  %v5244 = vpop.permute.xlu0 %5243
  %5245 = vrot.lane.b32.xlu0 %v5139, 33
  %v5246 = vpop.permute.xlu0 %5245
  %5247 = vrot.lane.b32.xlu0 %v5141, 33
  %v5248 = vpop.permute.xlu0 %5247
  %5249 = vrot.lane.b32.xlu0 %v4984, 33
  %v5250 = vpop.permute.xlu0 %5249
  %5251 = vrot.lane.b32.xlu0 %v4986, 33
  %v5252 = vpop.permute.xlu0 %5251
  %5253 = vrot.lane.b32.xlu0 %v5037, 33
  %v5254 = vpop.permute.xlu0 %5253
  %5255 = vrot.lane.b32.xlu0 %v5039, 33
  %v5256 = vpop.permute.xlu0 %5255
  %5257 = vrot.lane.b32.xlu0 %v5090, 33
  %v5258 = vpop.permute.xlu0 %5257
  %5259 = vrot.lane.b32.xlu0 %v5092, 33
  %v5260 = vpop.permute.xlu0 %5259
  %5261 = vrot.lane.b32.xlu0 %v5143, 33
  %v5262 = vpop.permute.xlu0 %5261
  %5263 = vrot.lane.b32.xlu0 %v5145, 33
  %v5264 = vpop.permute.xlu0 %5263
  %5265 = vrot.lane.b32.xlu0 %v867, 33
  %v5266 = vpop.permute.xlu0 %5265
  %5267 = vrot.lane.b32.xlu0 %v868, 33
  %v5268 = vpop.permute.xlu0 %5267
  %5269 = vrot.lane.b32.xlu0 %v869, 33
  %v5270 = vpop.permute.xlu0 %5269
  %5271 = vrot.lane.b32.xlu0 %v870, 33
  %v5272 = vpop.permute.xlu0 %5271
  %5273 = vrot.lane.b32.xlu0 %v871, 33
  %v5274 = vpop.permute.xlu0 %5273
  %5275 = vrot.lane.b32.xlu0 %v872, 33
  %v5276 = vpop.permute.xlu0 %5275
  %5277 = vrot.lane.b32.xlu0 %v873, 33
  %v5278 = vpop.permute.xlu0 %5277
  %5279 = vrot.lane.b32.xlu0 %v874, 33
  %v5280 = vpop.permute.xlu0 %5279
  %5281 = vrot.lane.b32.xlu0 %v875, 33
  %v5282 = vpop.permute.xlu0 %5281
  %5283 = vrot.lane.b32.xlu0 %v876, 33
  %v5284 = vpop.permute.xlu0 %5283
  %5285 = vrot.lane.b32.xlu0 %v877, 33
  %v5286 = vpop.permute.xlu0 %5285
  %5287 = vrot.lane.b32.xlu0 %v878, 33
  %v5288 = vpop.permute.xlu0 %5287
  %5289 = vrot.lane.b32.xlu0 %v879, 33
  %v5290 = vpop.permute.xlu0 %5289
  %5291 = vrot.lane.b32.xlu0 %v880, 33
  %v5292 = vpop.permute.xlu0 %5291
  %5293 = vrot.lane.b32.xlu0 %v881, 33
  %v5294 = vpop.permute.xlu0 %5293
  %5295 = vrot.lane.b32.xlu0 %v882, 33
  %v5296 = vpop.permute.xlu0 %5295
  %v5297 = vsel %vm119, %v5202, %v5204
  %v5298 = vsel %vm119, %v5204, %v5206
  %v5299 = vsel %vm119, %v5206, %v5208
  %v5300 = vsel %vm119, %v5208, %v5210
  %v5301 = vsel %vm119, %v5210, %v5212
  %v5302 = vsel %vm119, %v5212, %v5214
  %v5303 = vsel %vm119, %v5214, %v5216
  %v5304 = vsel %vm119, %v5218, %v5220
  %v5305 = vsel %vm119, %v5220, %v5222
  %v5306 = vsel %vm119, %v5222, %v5224
  %v5307 = vsel %vm119, %v5224, %v5226
  %v5308 = vsel %vm119, %v5226, %v5228
  %v5309 = vsel %vm119, %v5228, %v5230
  %v5310 = vsel %vm119, %v5230, %v5232
  %v5311 = vsel %vm119, %v5234, %v5236
  %v5312 = vsel %vm119, %v5236, %v5238
  %v5313 = vsel %vm119, %v5238, %v5240
  %v5314 = vsel %vm119, %v5240, %v5242
  %v5315 = vsel %vm119, %v5242, %v5244
  %v5316 = vsel %vm119, %v5244, %v5246
  %v5317 = vsel %vm119, %v5246, %v5248
  %v5318 = vsel %vm119, %v5250, %v5252
  %v5319 = vsel %vm119, %v5252, %v5254
  %v5320 = vsel %vm119, %v5254, %v5256
  %v5321 = vsel %vm119, %v5256, %v5258
  %v5322 = vsel %vm119, %v5258, %v5260
  %v5323 = vsel %vm119, %v5260, %v5262
  %v5324 = vsel %vm119, %v5262, %v5264
  %v5325 = vsel %vm119, %v5266, %v5268
  %v5326 = vsel %vm119, %v5268, %v5270
  %v5327 = vsel %vm119, %v5270, %v5272
  %v5328 = vsel %vm119, %v5272, %v5274
  %v5329 = vsel %vm119, %v5274, %v5276
  %v5330 = vsel %vm119, %v5276, %v5278
  %v5331 = vsel %vm119, %v5278, %v5280
  %v5332 = vsel %vm119, %v5282, %v5284
  %v5333 = vsel %vm119, %v5284, %v5286
  %v5334 = vsel %vm119, %v5286, %v5288
  %v5335 = vsel %vm119, %v5288, %v5290
  %v5336 = vsel %vm119, %v5290, %v5292
  %v5337 = vsel %vm119, %v5292, %v5294
  %v5338 = vsel %vm119, %v5294, %v5296
  %v5387 = vsel %vm119, 0.0, %v5202
  %v5388 = vsel %vm119, 0.0, %v5218
  %v5389 = vsel %vm119, 0.0, %v5234
  %v5390 = vsel %vm119, 0.0, %v5250
  %v5391 = vsel %vm119, 0.0, %v5266
  %v5392 = vsel %vm119, 0.0, %v5282
  %v5393 = vsel %vm144, %v5387, 0.0
  %v5394 = vsel %vm145, %v5297, 0.0
  %v5395 = vsel %vm146, %v5298, 0.0
  %v5396 = vsel %vm147, %v5299, 0.0
  %v5397 = vsel %vm148, %v5300, 0.0
  %v5398 = vsel %vm149, %v5301, 0.0
  %v5399 = vsel %vm150, %v5302, 0.0
  %v5400 = vsel %vm151, %v5303, 0.0
  %v5401 = vsel %vm144, %v5388, 0.0
  %v5402 = vsel %vm145, %v5304, 0.0
  %v5403 = vsel %vm146, %v5305, 0.0
  %v5404 = vsel %vm147, %v5306, 0.0
  %v5405 = vsel %vm148, %v5307, 0.0
  %v5406 = vsel %vm149, %v5308, 0.0
  %v5407 = vsel %vm150, %v5309, 0.0
  %v5408 = vsel %vm151, %v5310, 0.0
  %v5409 = vsel %vm144, %v5389, 0.0
  %v5410 = vsel %vm145, %v5311, 0.0
  %v5411 = vsel %vm146, %v5312, 0.0
  %v5412 = vsel %vm147, %v5313, 0.0
  %v5413 = vsel %vm148, %v5314, 0.0
  %v5414 = vsel %vm149, %v5315, 0.0
  %v5415 = vsel %vm150, %v5316, 0.0
  %v5416 = vsel %vm151, %v5317, 0.0
  %v5417 = vsel %vm144, %v5390, 0.0
  %v5418 = vsel %vm145, %v5318, 0.0
  %v5419 = vsel %vm146, %v5319, 0.0
  %v5420 = vsel %vm147, %v5320, 0.0
  %v5421 = vsel %vm148, %v5321, 0.0
  %v5422 = vsel %vm149, %v5322, 0.0
  %v5423 = vsel %vm150, %v5323, 0.0
  %v5424 = vsel %vm151, %v5324, 0.0
  %v5425 = vsel %vm144, %v5391, 0.0
  %v5426 = vsel %vm145, %v5325, 0.0
  %v5427 = vsel %vm146, %v5326, 0.0
  %v5428 = vsel %vm147, %v5327, 0.0
  %v5429 = vsel %vm148, %v5328, 0.0
  %v5430 = vsel %vm149, %v5329, 0.0
  %v5431 = vsel %vm150, %v5330, 0.0
  %v5432 = vsel %vm151, %v5331, 0.0
  %v5433 = vsel %vm144, %v5392, 0.0
  %v5434 = vsel %vm145, %v5332, 0.0
  %v5435 = vsel %vm146, %v5333, 0.0
  %v5436 = vsel %vm147, %v5334, 0.0
  %v5437 = vsel %vm148, %v5335, 0.0
  %v5438 = vsel %vm149, %v5336, 0.0
  %v5439 = vsel %vm150, %v5337, 0.0
  %v5440 = vsel %vm151, %v5338, 0.0
  %5441 = vrot.lane.b32.xlu0 %v4970, 32
  %v5442 = vpop.permute.xlu0 %5441
  %5443 = vrot.lane.b32.xlu0 %v4972, 32
  %v5444 = vpop.permute.xlu0 %5443
  %5445 = vrot.lane.b32.xlu0 %v5023, 32
  %v5446 = vpop.permute.xlu0 %5445
  %5447 = vrot.lane.b32.xlu0 %v5025, 32
  %v5448 = vpop.permute.xlu0 %5447
  %5449 = vrot.lane.b32.xlu0 %v5076, 32
  %v5450 = vpop.permute.xlu0 %5449
  %5451 = vrot.lane.b32.xlu0 %v5078, 32
  %v5452 = vpop.permute.xlu0 %5451
  %5453 = vrot.lane.b32.xlu0 %v5129, 32
  %v5454 = vpop.permute.xlu0 %5453
  %5455 = vrot.lane.b32.xlu0 %v5131, 32
  %v5456 = vpop.permute.xlu0 %5455
  %5457 = vrot.lane.b32.xlu0 %v4974, 32
  %v5458 = vpop.permute.xlu0 %5457
  %5459 = vrot.lane.b32.xlu0 %v4976, 32
  %v5460 = vpop.permute.xlu0 %5459
  %5461 = vrot.lane.b32.xlu0 %v5027, 32
  %v5462 = vpop.permute.xlu0 %5461
  %5463 = vrot.lane.b32.xlu0 %v5029, 32
  %v5464 = vpop.permute.xlu0 %5463
  %5465 = vrot.lane.b32.xlu0 %v5080, 32
  %v5466 = vpop.permute.xlu0 %5465
  %5467 = vrot.lane.b32.xlu0 %v5082, 32
  %v5468 = vpop.permute.xlu0 %5467
  %5469 = vrot.lane.b32.xlu0 %v5133, 32
  %v5470 = vpop.permute.xlu0 %5469
  %5471 = vrot.lane.b32.xlu0 %v5135, 32
  %v5472 = vpop.permute.xlu0 %5471
  %5473 = vrot.lane.b32.xlu0 %v4980, 32
  %v5474 = vpop.permute.xlu0 %5473
  %5475 = vrot.lane.b32.xlu0 %v4982, 32
  %v5476 = vpop.permute.xlu0 %5475
  %5477 = vrot.lane.b32.xlu0 %v5033, 32
  %v5478 = vpop.permute.xlu0 %5477
  %5479 = vrot.lane.b32.xlu0 %v5035, 32
  %v5480 = vpop.permute.xlu0 %5479
  %5481 = vrot.lane.b32.xlu0 %v5086, 32
  %v5482 = vpop.permute.xlu0 %5481
  %5483 = vrot.lane.b32.xlu0 %v5088, 32
  %v5484 = vpop.permute.xlu0 %5483
  %5485 = vrot.lane.b32.xlu0 %v5139, 32
  %v5486 = vpop.permute.xlu0 %5485
  %5487 = vrot.lane.b32.xlu0 %v5141, 32
  %v5488 = vpop.permute.xlu0 %5487
  %5489 = vrot.lane.b32.xlu0 %v4984, 32
  %v5490 = vpop.permute.xlu0 %5489
  %5491 = vrot.lane.b32.xlu0 %v4986, 32
  %v5492 = vpop.permute.xlu0 %5491
  %5493 = vrot.lane.b32.xlu0 %v5037, 32
  %v5494 = vpop.permute.xlu0 %5493
  %5495 = vrot.lane.b32.xlu0 %v5039, 32
  %v5496 = vpop.permute.xlu0 %5495
  %5497 = vrot.lane.b32.xlu0 %v5090, 32
  %v5498 = vpop.permute.xlu0 %5497
  %5499 = vrot.lane.b32.xlu0 %v5092, 32
  %v5500 = vpop.permute.xlu0 %5499
  %5501 = vrot.lane.b32.xlu0 %v5143, 32
  %v5502 = vpop.permute.xlu0 %5501
  %5503 = vrot.lane.b32.xlu0 %v5145, 32
  %v5504 = vpop.permute.xlu0 %5503
  %5505 = vrot.lane.b32.xlu0 %v867, 32
  %v5506 = vpop.permute.xlu0 %5505
  %5507 = vrot.lane.b32.xlu0 %v868, 32
  %v5508 = vpop.permute.xlu0 %5507
  %5509 = vrot.lane.b32.xlu0 %v869, 32
  %v5510 = vpop.permute.xlu0 %5509
  %5511 = vrot.lane.b32.xlu0 %v870, 32
  %v5512 = vpop.permute.xlu0 %5511
  %5513 = vrot.lane.b32.xlu0 %v871, 32
  %v5514 = vpop.permute.xlu0 %5513
  %5515 = vrot.lane.b32.xlu0 %v872, 32
  %v5516 = vpop.permute.xlu0 %5515
  %5517 = vrot.lane.b32.xlu0 %v873, 32
  %v5518 = vpop.permute.xlu0 %5517
  %5519 = vrot.lane.b32.xlu0 %v874, 32
  %v5520 = vpop.permute.xlu0 %5519
  %5521 = vrot.lane.b32.xlu0 %v875, 32
  %v5522 = vpop.permute.xlu0 %5521
  %5523 = vrot.lane.b32.xlu0 %v876, 32
  %v5524 = vpop.permute.xlu0 %5523
  %5525 = vrot.lane.b32.xlu0 %v877, 32
  %v5526 = vpop.permute.xlu0 %5525
  %5527 = vrot.lane.b32.xlu0 %v878, 32
  %v5528 = vpop.permute.xlu0 %5527
  %5529 = vrot.lane.b32.xlu0 %v879, 32
  %v5530 = vpop.permute.xlu0 %5529
  %5531 = vrot.lane.b32.xlu0 %v880, 32
  %v5532 = vpop.permute.xlu0 %5531
  %5533 = vrot.lane.b32.xlu0 %v881, 32
  %v5534 = vpop.permute.xlu0 %5533
  %5535 = vrot.lane.b32.xlu0 %v882, 32
  %v5536 = vpop.permute.xlu0 %5535
  %v5537 = vsel %vm176, %v5442, %v5444
  %v5538 = vsel %vm176, %v5444, %v5446
  %v5539 = vsel %vm176, %v5446, %v5448
  %v5540 = vsel %vm176, %v5448, %v5450
  %v5541 = vsel %vm176, %v5450, %v5452
  %v5542 = vsel %vm176, %v5452, %v5454
  %v5543 = vsel %vm176, %v5454, %v5456
  %v5544 = vsel %vm176, %v5458, %v5460
  %v5545 = vsel %vm176, %v5460, %v5462
  %v5546 = vsel %vm176, %v5462, %v5464
  %v5547 = vsel %vm176, %v5464, %v5466
  %v5548 = vsel %vm176, %v5466, %v5468
  %v5549 = vsel %vm176, %v5468, %v5470
  %v5550 = vsel %vm176, %v5470, %v5472
  %v5551 = vsel %vm176, %v5474, %v5476
  %v5552 = vsel %vm176, %v5476, %v5478
  %v5553 = vsel %vm176, %v5478, %v5480
  %v5554 = vsel %vm176, %v5480, %v5482
  %v5555 = vsel %vm176, %v5482, %v5484
  %v5556 = vsel %vm176, %v5484, %v5486
  %v5557 = vsel %vm176, %v5486, %v5488
  %v5558 = vsel %vm176, %v5490, %v5492
  %v5559 = vsel %vm176, %v5492, %v5494
  %v5560 = vsel %vm176, %v5494, %v5496
  %v5561 = vsel %vm176, %v5496, %v5498
  %v5562 = vsel %vm176, %v5498, %v5500
  %v5563 = vsel %vm176, %v5500, %v5502
  %v5564 = vsel %vm176, %v5502, %v5504
  %v5565 = vsel %vm176, %v5506, %v5508
  %v5566 = vsel %vm176, %v5508, %v5510
  %v5567 = vsel %vm176, %v5510, %v5512
  %v5568 = vsel %vm176, %v5512, %v5514
  %v5569 = vsel %vm176, %v5514, %v5516
  %v5570 = vsel %vm176, %v5516, %v5518
  %v5571 = vsel %vm176, %v5518, %v5520
  %v5572 = vsel %vm176, %v5522, %v5524
  %v5573 = vsel %vm176, %v5524, %v5526
  %v5574 = vsel %vm176, %v5526, %v5528
  %v5575 = vsel %vm176, %v5528, %v5530
  %v5576 = vsel %vm176, %v5530, %v5532
  %v5577 = vsel %vm176, %v5532, %v5534
  %v5578 = vsel %vm176, %v5534, %v5536
  %v5627 = vsel %vm176, 0.0, %v5442
  %v5628 = vsel %vm176, 0.0, %v5458
  %v5629 = vsel %vm176, 0.0, %v5474
  %v5630 = vsel %vm176, 0.0, %v5490
  %v5631 = vsel %vm176, 0.0, %v5506
  %v5632 = vsel %vm176, 0.0, %v5522
  %5633 = vrot.lane.b32.xlu0 %v4970, 31
  %v5634 = vpop.permute.xlu0 %5633
  %5635 = vrot.lane.b32.xlu0 %v4972, 31
  %v5636 = vpop.permute.xlu0 %5635
  %5637 = vrot.lane.b32.xlu0 %v5023, 31
  %v5638 = vpop.permute.xlu0 %5637
  %5639 = vrot.lane.b32.xlu0 %v5025, 31
  %v5640 = vpop.permute.xlu0 %5639
  %5641 = vrot.lane.b32.xlu0 %v5076, 31
  %v5642 = vpop.permute.xlu0 %5641
  %5643 = vrot.lane.b32.xlu0 %v5078, 31
  %v5644 = vpop.permute.xlu0 %5643
  %5645 = vrot.lane.b32.xlu0 %v5129, 31
  %v5646 = vpop.permute.xlu0 %5645
  %5647 = vrot.lane.b32.xlu0 %v5131, 31
  %v5648 = vpop.permute.xlu0 %5647
  %5649 = vrot.lane.b32.xlu0 %v4974, 31
  %v5650 = vpop.permute.xlu0 %5649
  %5651 = vrot.lane.b32.xlu0 %v4976, 31
  %v5652 = vpop.permute.xlu0 %5651
  %5653 = vrot.lane.b32.xlu0 %v5027, 31
  %v5654 = vpop.permute.xlu0 %5653
  %5655 = vrot.lane.b32.xlu0 %v5029, 31
  %v5656 = vpop.permute.xlu0 %5655
  %5657 = vrot.lane.b32.xlu0 %v5080, 31
  %v5658 = vpop.permute.xlu0 %5657
  %5659 = vrot.lane.b32.xlu0 %v5082, 31
  %v5660 = vpop.permute.xlu0 %5659
  %5661 = vrot.lane.b32.xlu0 %v5133, 31
  %v5662 = vpop.permute.xlu0 %5661
  %5663 = vrot.lane.b32.xlu0 %v5135, 31
  %v5664 = vpop.permute.xlu0 %5663
  %5665 = vrot.lane.b32.xlu0 %v4980, 31
  %v5666 = vpop.permute.xlu0 %5665
  %5667 = vrot.lane.b32.xlu0 %v4982, 31
  %v5668 = vpop.permute.xlu0 %5667
  %5669 = vrot.lane.b32.xlu0 %v5033, 31
  %v5670 = vpop.permute.xlu0 %5669
  %5671 = vrot.lane.b32.xlu0 %v5035, 31
  %v5672 = vpop.permute.xlu0 %5671
  %5673 = vrot.lane.b32.xlu0 %v5086, 31
  %v5674 = vpop.permute.xlu0 %5673
  %5675 = vrot.lane.b32.xlu0 %v5088, 31
  %v5676 = vpop.permute.xlu0 %5675
  %5677 = vrot.lane.b32.xlu0 %v5139, 31
  %v5678 = vpop.permute.xlu0 %5677
  %5679 = vrot.lane.b32.xlu0 %v5141, 31
  %v5680 = vpop.permute.xlu0 %5679
  %5681 = vrot.lane.b32.xlu0 %v4984, 31
  %v5682 = vpop.permute.xlu0 %5681
  %5683 = vrot.lane.b32.xlu0 %v4986, 31
  %v5684 = vpop.permute.xlu0 %5683
  %5685 = vrot.lane.b32.xlu0 %v5037, 31
  %v5686 = vpop.permute.xlu0 %5685
  %5687 = vrot.lane.b32.xlu0 %v5039, 31
  %v5688 = vpop.permute.xlu0 %5687
  %5689 = vrot.lane.b32.xlu0 %v5090, 31
  %v5690 = vpop.permute.xlu0 %5689
  %5691 = vrot.lane.b32.xlu0 %v5092, 31
  %v5692 = vpop.permute.xlu0 %5691
  %5693 = vrot.lane.b32.xlu0 %v5143, 31
  %v5694 = vpop.permute.xlu0 %5693
  %5695 = vrot.lane.b32.xlu0 %v5145, 31
  %v5696 = vpop.permute.xlu0 %5695
  %5697 = vrot.lane.b32.xlu0 %v867, 31
  %v5698 = vpop.permute.xlu0 %5697
  %5699 = vrot.lane.b32.xlu0 %v868, 31
  %v5700 = vpop.permute.xlu0 %5699
  %5701 = vrot.lane.b32.xlu0 %v869, 31
  %v5702 = vpop.permute.xlu0 %5701
  %5703 = vrot.lane.b32.xlu0 %v870, 31
  %v5704 = vpop.permute.xlu0 %5703
  %5705 = vrot.lane.b32.xlu0 %v871, 31
  %v5706 = vpop.permute.xlu0 %5705
  %5707 = vrot.lane.b32.xlu0 %v872, 31
  %v5708 = vpop.permute.xlu0 %5707
  %5709 = vrot.lane.b32.xlu0 %v873, 31
  %v5710 = vpop.permute.xlu0 %5709
  %5711 = vrot.lane.b32.xlu0 %v874, 31
  %v5712 = vpop.permute.xlu0 %5711
  %5713 = vrot.lane.b32.xlu0 %v875, 31
  %v5714 = vpop.permute.xlu0 %5713
  %5715 = vrot.lane.b32.xlu0 %v876, 31
  %v5716 = vpop.permute.xlu0 %5715
  %5717 = vrot.lane.b32.xlu0 %v877, 31
  %v5718 = vpop.permute.xlu0 %5717
  %5719 = vrot.lane.b32.xlu0 %v878, 31
  %v5720 = vpop.permute.xlu0 %5719
  %5721 = vrot.lane.b32.xlu0 %v879, 31
  %v5722 = vpop.permute.xlu0 %5721
  %5723 = vrot.lane.b32.xlu0 %v880, 31
  %v5724 = vpop.permute.xlu0 %5723
  %5725 = vrot.lane.b32.xlu0 %v881, 31
  %v5726 = vpop.permute.xlu0 %5725
  %5727 = vrot.lane.b32.xlu0 %v882, 31
  %v5728 = vpop.permute.xlu0 %5727
  %v5729 = vsel %vm202, %v5634, %v5636
  %v5730 = vsel %vm202, %v5636, %v5638
  %v5731 = vsel %vm202, %v5638, %v5640
  %v5732 = vsel %vm202, %v5640, %v5642
  %v5733 = vsel %vm202, %v5642, %v5644
  %v5734 = vsel %vm202, %v5644, %v5646
  %v5735 = vsel %vm202, %v5646, %v5648
  %v5736 = vsel %vm202, %v5650, %v5652
  %v5737 = vsel %vm202, %v5652, %v5654
  %v5738 = vsel %vm202, %v5654, %v5656
  %v5739 = vsel %vm202, %v5656, %v5658
  %v5740 = vsel %vm202, %v5658, %v5660
  %v5741 = vsel %vm202, %v5660, %v5662
  %v5742 = vsel %vm202, %v5662, %v5664
  %v5743 = vsel %vm202, %v5666, %v5668
  %v5744 = vsel %vm202, %v5668, %v5670
  %v5745 = vsel %vm202, %v5670, %v5672
  %v5746 = vsel %vm202, %v5672, %v5674
  %v5747 = vsel %vm202, %v5674, %v5676
  %v5748 = vsel %vm202, %v5676, %v5678
  %v5749 = vsel %vm202, %v5678, %v5680
  %v5750 = vsel %vm202, %v5682, %v5684
  %v5751 = vsel %vm202, %v5684, %v5686
  %v5752 = vsel %vm202, %v5686, %v5688
  %v5753 = vsel %vm202, %v5688, %v5690
  %v5754 = vsel %vm202, %v5690, %v5692
  %v5755 = vsel %vm202, %v5692, %v5694
  %v5756 = vsel %vm202, %v5694, %v5696
  %v5757 = vsel %vm202, %v5698, %v5700
  %v5758 = vsel %vm202, %v5700, %v5702
  %v5759 = vsel %vm202, %v5702, %v5704
  %v5760 = vsel %vm202, %v5704, %v5706
  %v5761 = vsel %vm202, %v5706, %v5708
  %v5762 = vsel %vm202, %v5708, %v5710
  %v5763 = vsel %vm202, %v5710, %v5712
  %v5764 = vsel %vm202, %v5714, %v5716
  %v5765 = vsel %vm202, %v5716, %v5718
  %v5766 = vsel %vm202, %v5718, %v5720
  %v5767 = vsel %vm202, %v5720, %v5722
  %v5768 = vsel %vm202, %v5722, %v5724
  %v5769 = vsel %vm202, %v5724, %v5726
  %v5770 = vsel %vm202, %v5726, %v5728
  %v5819 = vsel %vm202, 0.0, %v5634
  %v5820 = vsel %vm202, 0.0, %v5650
  %v5821 = vsel %vm202, 0.0, %v5666
  %v5822 = vsel %vm202, 0.0, %v5682
  %v5823 = vsel %vm202, 0.0, %v5698
  %v5824 = vsel %vm202, 0.0, %v5714
  %v5825 = vsel %vm227, %v5819, 0.0
  %v5826 = vsel %vm228, %v5729, 0.0
  %v5827 = vsel %vm229, %v5730, 0.0
  %v5828 = vsel %vm230, %v5731, 0.0
  %v5829 = vsel %vm231, %v5732, 0.0
  %v5830 = vsel %vm232, %v5733, 0.0
  %v5831 = vsel %vm233, %v5734, 0.0
  %v5832 = vsel %vm234, %v5735, 0.0
  %v5833 = vsel %vm227, %v5820, 0.0
  %v5834 = vsel %vm228, %v5736, 0.0
  %v5835 = vsel %vm229, %v5737, 0.0
  %v5836 = vsel %vm230, %v5738, 0.0
  %v5837 = vsel %vm231, %v5739, 0.0
  %v5838 = vsel %vm232, %v5740, 0.0
  %v5839 = vsel %vm233, %v5741, 0.0
  %v5840 = vsel %vm234, %v5742, 0.0
  %v5841 = vsel %vm227, %v5821, 0.0
  %v5842 = vsel %vm228, %v5743, 0.0
  %v5843 = vsel %vm229, %v5744, 0.0
  %v5844 = vsel %vm230, %v5745, 0.0
  %v5845 = vsel %vm231, %v5746, 0.0
  %v5846 = vsel %vm232, %v5747, 0.0
  %v5847 = vsel %vm233, %v5748, 0.0
  %v5848 = vsel %vm234, %v5749, 0.0
  %v5849 = vsel %vm227, %v5822, 0.0
  %v5850 = vsel %vm228, %v5750, 0.0
  %v5851 = vsel %vm229, %v5751, 0.0
  %v5852 = vsel %vm230, %v5752, 0.0
  %v5853 = vsel %vm231, %v5753, 0.0
  %v5854 = vsel %vm232, %v5754, 0.0
  %v5855 = vsel %vm233, %v5755, 0.0
  %v5856 = vsel %vm234, %v5756, 0.0
  %v5857 = vsel %vm227, %v5823, 0.0
  %v5858 = vsel %vm228, %v5757, 0.0
  %v5859 = vsel %vm229, %v5758, 0.0
  %v5860 = vsel %vm230, %v5759, 0.0
  %v5861 = vsel %vm231, %v5760, 0.0
  %v5862 = vsel %vm232, %v5761, 0.0
  %v5863 = vsel %vm233, %v5762, 0.0
  %v5864 = vsel %vm234, %v5763, 0.0
  %v5865 = vsel %vm227, %v5824, 0.0
  %v5866 = vsel %vm228, %v5764, 0.0
  %v5867 = vsel %vm229, %v5765, 0.0
  %v5868 = vsel %vm230, %v5766, 0.0
  %v5869 = vsel %vm231, %v5767, 0.0
  %v5870 = vsel %vm232, %v5768, 0.0
  %v5871 = vsel %vm233, %v5769, 0.0
  %v5872 = vsel %vm234, %v5770, 0.0
  %5873 = vrot.lane.b32.xlu0 %v4970, 1
  %v5874 = vpop.permute.xlu0 %5873
  %5875 = vrot.lane.b32.xlu0 %v4972, 1
  %v5876 = vpop.permute.xlu0 %5875
  %5877 = vrot.lane.b32.xlu0 %v5023, 1
  %v5878 = vpop.permute.xlu0 %5877
  %5879 = vrot.lane.b32.xlu0 %v5025, 1
  %v5880 = vpop.permute.xlu0 %5879
  %5881 = vrot.lane.b32.xlu0 %v5076, 1
  %v5882 = vpop.permute.xlu0 %5881
  %5883 = vrot.lane.b32.xlu0 %v5078, 1
  %v5884 = vpop.permute.xlu0 %5883
  %5885 = vrot.lane.b32.xlu0 %v5129, 1
  %v5886 = vpop.permute.xlu0 %5885
  %5887 = vrot.lane.b32.xlu0 %v5131, 1
  %v5888 = vpop.permute.xlu0 %5887
  %5889 = vrot.lane.b32.xlu0 %v4974, 1
  %v5890 = vpop.permute.xlu0 %5889
  %5891 = vrot.lane.b32.xlu0 %v4976, 1
  %v5892 = vpop.permute.xlu0 %5891
  %5893 = vrot.lane.b32.xlu0 %v5027, 1
  %v5894 = vpop.permute.xlu0 %5893
  %5895 = vrot.lane.b32.xlu0 %v5029, 1
  %v5896 = vpop.permute.xlu0 %5895
  %5897 = vrot.lane.b32.xlu0 %v5080, 1
  %v5898 = vpop.permute.xlu0 %5897
  %5899 = vrot.lane.b32.xlu0 %v5082, 1
  %v5900 = vpop.permute.xlu0 %5899
  %5901 = vrot.lane.b32.xlu0 %v5133, 1
  %v5902 = vpop.permute.xlu0 %5901
  %5903 = vrot.lane.b32.xlu0 %v5135, 1
  %v5904 = vpop.permute.xlu0 %5903
  %5905 = vrot.lane.b32.xlu0 %v4980, 1
  %v5906 = vpop.permute.xlu0 %5905
  %5907 = vrot.lane.b32.xlu0 %v4982, 1
  %v5908 = vpop.permute.xlu0 %5907
  %5909 = vrot.lane.b32.xlu0 %v5033, 1
  %v5910 = vpop.permute.xlu0 %5909
  %5911 = vrot.lane.b32.xlu0 %v5035, 1
  %v5912 = vpop.permute.xlu0 %5911
  %5913 = vrot.lane.b32.xlu0 %v5086, 1
  %v5914 = vpop.permute.xlu0 %5913
  %5915 = vrot.lane.b32.xlu0 %v5088, 1
  %v5916 = vpop.permute.xlu0 %5915
  %5917 = vrot.lane.b32.xlu0 %v5139, 1
  %v5918 = vpop.permute.xlu0 %5917
  %5919 = vrot.lane.b32.xlu0 %v5141, 1
  %v5920 = vpop.permute.xlu0 %5919
  %5921 = vrot.lane.b32.xlu0 %v4984, 1
  %v5922 = vpop.permute.xlu0 %5921
  %5923 = vrot.lane.b32.xlu0 %v4986, 1
  %v5924 = vpop.permute.xlu0 %5923
  %5925 = vrot.lane.b32.xlu0 %v5037, 1
  %v5926 = vpop.permute.xlu0 %5925
  %5927 = vrot.lane.b32.xlu0 %v5039, 1
  %v5928 = vpop.permute.xlu0 %5927
  %5929 = vrot.lane.b32.xlu0 %v5090, 1
  %v5930 = vpop.permute.xlu0 %5929
  %5931 = vrot.lane.b32.xlu0 %v5092, 1
  %v5932 = vpop.permute.xlu0 %5931
  %5933 = vrot.lane.b32.xlu0 %v5143, 1
  %v5934 = vpop.permute.xlu0 %5933
  %5935 = vrot.lane.b32.xlu0 %v5145, 1
  %v5936 = vpop.permute.xlu0 %5935
  %5937 = vrot.lane.b32.xlu0 %v867, 1
  %v5938 = vpop.permute.xlu0 %5937
  %5939 = vrot.lane.b32.xlu0 %v868, 1
  %v5940 = vpop.permute.xlu0 %5939
  %5941 = vrot.lane.b32.xlu0 %v869, 1
  %v5942 = vpop.permute.xlu0 %5941
  %5943 = vrot.lane.b32.xlu0 %v870, 1
  %v5944 = vpop.permute.xlu0 %5943
  %5945 = vrot.lane.b32.xlu0 %v871, 1
  %v5946 = vpop.permute.xlu0 %5945
  %5947 = vrot.lane.b32.xlu0 %v872, 1
  %v5948 = vpop.permute.xlu0 %5947
  %5949 = vrot.lane.b32.xlu0 %v873, 1
  %v5950 = vpop.permute.xlu0 %5949
  %5951 = vrot.lane.b32.xlu0 %v874, 1
  %v5952 = vpop.permute.xlu0 %5951
  %5953 = vrot.lane.b32.xlu0 %v875, 1
  %v5954 = vpop.permute.xlu0 %5953
  %5955 = vrot.lane.b32.xlu0 %v876, 1
  %v5956 = vpop.permute.xlu0 %5955
  %5957 = vrot.lane.b32.xlu0 %v877, 1
  %v5958 = vpop.permute.xlu0 %5957
  %5959 = vrot.lane.b32.xlu0 %v878, 1
  %v5960 = vpop.permute.xlu0 %5959
  %5961 = vrot.lane.b32.xlu0 %v879, 1
  %v5962 = vpop.permute.xlu0 %5961
  %5963 = vrot.lane.b32.xlu0 %v880, 1
  %v5964 = vpop.permute.xlu0 %5963
  %5965 = vrot.lane.b32.xlu0 %v881, 1
  %v5966 = vpop.permute.xlu0 %5965
  %5967 = vrot.lane.b32.xlu0 %v882, 1
  %v5968 = vpop.permute.xlu0 %5967
  %v5969 = vsel %vm259, %v5874, %v5876
  %v5970 = vsel %vm259, %v5876, %v5878
  %v5971 = vsel %vm259, %v5878, %v5880
  %v5972 = vsel %vm259, %v5880, %v5882
  %v5973 = vsel %vm259, %v5882, %v5884
  %v5974 = vsel %vm259, %v5884, %v5886
  %v5975 = vsel %vm259, %v5886, %v5888
  %v5976 = vsel %vm259, %v5890, %v5892
  %v5977 = vsel %vm259, %v5892, %v5894
  %v5978 = vsel %vm259, %v5894, %v5896
  %v5979 = vsel %vm259, %v5896, %v5898
  %v5980 = vsel %vm259, %v5898, %v5900
  %v5981 = vsel %vm259, %v5900, %v5902
  %v5982 = vsel %vm259, %v5902, %v5904
  %v5983 = vsel %vm259, %v5906, %v5908
  %v5984 = vsel %vm259, %v5908, %v5910
  %v5985 = vsel %vm259, %v5910, %v5912
  %v5986 = vsel %vm259, %v5912, %v5914
  %v5987 = vsel %vm259, %v5914, %v5916
  %v5988 = vsel %vm259, %v5916, %v5918
  %v5989 = vsel %vm259, %v5918, %v5920
  %v5990 = vsel %vm259, %v5922, %v5924
  %v5991 = vsel %vm259, %v5924, %v5926
  %v5992 = vsel %vm259, %v5926, %v5928
  %v5993 = vsel %vm259, %v5928, %v5930
  %v5994 = vsel %vm259, %v5930, %v5932
  %v5995 = vsel %vm259, %v5932, %v5934
  %v5996 = vsel %vm259, %v5934, %v5936
  %v5997 = vsel %vm259, %v5938, %v5940
  %v5998 = vsel %vm259, %v5940, %v5942
  %v5999 = vsel %vm259, %v5942, %v5944
  %v6000 = vsel %vm259, %v5944, %v5946
  %v6001 = vsel %vm259, %v5946, %v5948
  %v6002 = vsel %vm259, %v5948, %v5950
  %v6003 = vsel %vm259, %v5950, %v5952
  %v6004 = vsel %vm259, %v5954, %v5956
  %v6005 = vsel %vm259, %v5956, %v5958
  %v6006 = vsel %vm259, %v5958, %v5960
  %v6007 = vsel %vm259, %v5960, %v5962
  %v6008 = vsel %vm259, %v5962, %v5964
  %v6009 = vsel %vm259, %v5964, %v5966
  %v6010 = vsel %vm259, %v5966, %v5968
  %v6059 = vsel %vm259, 0.0, %v5874
  %v6060 = vsel %vm259, 0.0, %v5890
  %v6061 = vsel %vm259, 0.0, %v5906
  %v6062 = vsel %vm259, 0.0, %v5922
  %v6063 = vsel %vm259, 0.0, %v5938
  %v6064 = vsel %vm259, 0.0, %v5954
  %v6065 = vsel %vm144, %v6059, 0.0
  %v6066 = vsel %vm145, %v5969, 0.0
  %v6067 = vsel %vm146, %v5970, 0.0
  %v6068 = vsel %vm147, %v5971, 0.0
  %v6069 = vsel %vm148, %v5972, 0.0
  %v6070 = vsel %vm149, %v5973, 0.0
  %v6071 = vsel %vm150, %v5974, 0.0
  %v6072 = vsel %vm151, %v5975, 0.0
  %v6073 = vsel %vm144, %v6060, 0.0
  %v6074 = vsel %vm145, %v5976, 0.0
  %v6075 = vsel %vm146, %v5977, 0.0
  %v6076 = vsel %vm147, %v5978, 0.0
  %v6077 = vsel %vm148, %v5979, 0.0
  %v6078 = vsel %vm149, %v5980, 0.0
  %v6079 = vsel %vm150, %v5981, 0.0
  %v6080 = vsel %vm151, %v5982, 0.0
  %v6081 = vsel %vm144, %v6061, 0.0
  %v6082 = vsel %vm145, %v5983, 0.0
  %v6083 = vsel %vm146, %v5984, 0.0
  %v6084 = vsel %vm147, %v5985, 0.0
  %v6085 = vsel %vm148, %v5986, 0.0
  %v6086 = vsel %vm149, %v5987, 0.0
  %v6087 = vsel %vm150, %v5988, 0.0
  %v6088 = vsel %vm151, %v5989, 0.0
  %v6089 = vsel %vm144, %v6062, 0.0
  %v6090 = vsel %vm145, %v5990, 0.0
  %v6091 = vsel %vm146, %v5991, 0.0
  %v6092 = vsel %vm147, %v5992, 0.0
  %v6093 = vsel %vm148, %v5993, 0.0
  %v6094 = vsel %vm149, %v5994, 0.0
  %v6095 = vsel %vm150, %v5995, 0.0
  %v6096 = vsel %vm151, %v5996, 0.0
  %v6097 = vsel %vm144, %v6063, 0.0
  %v6098 = vsel %vm145, %v5997, 0.0
  %v6099 = vsel %vm146, %v5998, 0.0
  %v6100 = vsel %vm147, %v5999, 0.0
  %v6101 = vsel %vm148, %v6000, 0.0
  %v6102 = vsel %vm149, %v6001, 0.0
  %v6103 = vsel %vm150, %v6002, 0.0
  %v6104 = vsel %vm151, %v6003, 0.0
  %v6105 = vsel %vm144, %v6064, 0.0
  %v6106 = vsel %vm145, %v6004, 0.0
  %v6107 = vsel %vm146, %v6005, 0.0
  %v6108 = vsel %vm147, %v6006, 0.0
  %v6109 = vsel %vm148, %v6007, 0.0
  %v6110 = vsel %vm149, %v6008, 0.0
  %v6111 = vsel %vm150, %v6009, 0.0
  %v6112 = vsel %vm151, %v6010, 0.0
  %6113 = vrot.lane.b32.xlu0 %v4970, 127
  %v6114 = vpop.permute.xlu0 %6113
  %6115 = vrot.lane.b32.xlu0 %v4972, 127
  %v6116 = vpop.permute.xlu0 %6115
  %6117 = vrot.lane.b32.xlu0 %v5023, 127
  %v6118 = vpop.permute.xlu0 %6117
  %6119 = vrot.lane.b32.xlu0 %v5025, 127
  %v6120 = vpop.permute.xlu0 %6119
  %6121 = vrot.lane.b32.xlu0 %v5076, 127
  %v6122 = vpop.permute.xlu0 %6121
  %6123 = vrot.lane.b32.xlu0 %v5078, 127
  %v6124 = vpop.permute.xlu0 %6123
  %6125 = vrot.lane.b32.xlu0 %v5129, 127
  %v6126 = vpop.permute.xlu0 %6125
  %6127 = vrot.lane.b32.xlu0 %v5131, 127
  %v6128 = vpop.permute.xlu0 %6127
  %6129 = vrot.lane.b32.xlu0 %v4974, 127
  %v6130 = vpop.permute.xlu0 %6129
  %6131 = vrot.lane.b32.xlu0 %v4976, 127
  %v6132 = vpop.permute.xlu0 %6131
  %6133 = vrot.lane.b32.xlu0 %v5027, 127
  %v6134 = vpop.permute.xlu0 %6133
  %6135 = vrot.lane.b32.xlu0 %v5029, 127
  %v6136 = vpop.permute.xlu0 %6135
  %6137 = vrot.lane.b32.xlu0 %v5080, 127
  %v6138 = vpop.permute.xlu0 %6137
  %6139 = vrot.lane.b32.xlu0 %v5082, 127
  %v6140 = vpop.permute.xlu0 %6139
  %6141 = vrot.lane.b32.xlu0 %v5133, 127
  %v6142 = vpop.permute.xlu0 %6141
  %6143 = vrot.lane.b32.xlu0 %v5135, 127
  %v6144 = vpop.permute.xlu0 %6143
  %6145 = vrot.lane.b32.xlu0 %v4980, 127
  %v6146 = vpop.permute.xlu0 %6145
  %6147 = vrot.lane.b32.xlu0 %v4982, 127
  %v6148 = vpop.permute.xlu0 %6147
  %6149 = vrot.lane.b32.xlu0 %v5033, 127
  %v6150 = vpop.permute.xlu0 %6149
  %6151 = vrot.lane.b32.xlu0 %v5035, 127
  %v6152 = vpop.permute.xlu0 %6151
  %6153 = vrot.lane.b32.xlu0 %v5086, 127
  %v6154 = vpop.permute.xlu0 %6153
  %6155 = vrot.lane.b32.xlu0 %v5088, 127
  %v6156 = vpop.permute.xlu0 %6155
  %6157 = vrot.lane.b32.xlu0 %v5139, 127
  %v6158 = vpop.permute.xlu0 %6157
  %6159 = vrot.lane.b32.xlu0 %v5141, 127
  %v6160 = vpop.permute.xlu0 %6159
  %6161 = vrot.lane.b32.xlu0 %v4984, 127
  %v6162 = vpop.permute.xlu0 %6161
  %6163 = vrot.lane.b32.xlu0 %v4986, 127
  %v6164 = vpop.permute.xlu0 %6163
  %6165 = vrot.lane.b32.xlu0 %v5037, 127
  %v6166 = vpop.permute.xlu0 %6165
  %6167 = vrot.lane.b32.xlu0 %v5039, 127
  %v6168 = vpop.permute.xlu0 %6167
  %6169 = vrot.lane.b32.xlu0 %v5090, 127
  %v6170 = vpop.permute.xlu0 %6169
  %6171 = vrot.lane.b32.xlu0 %v5092, 127
  %v6172 = vpop.permute.xlu0 %6171
  %6173 = vrot.lane.b32.xlu0 %v5143, 127
  %v6174 = vpop.permute.xlu0 %6173
  %6175 = vrot.lane.b32.xlu0 %v5145, 127
  %v6176 = vpop.permute.xlu0 %6175
  %6177 = vrot.lane.b32.xlu0 %v867, 127
  %v6178 = vpop.permute.xlu0 %6177
  %6179 = vrot.lane.b32.xlu0 %v868, 127
  %v6180 = vpop.permute.xlu0 %6179
  %6181 = vrot.lane.b32.xlu0 %v869, 127
  %v6182 = vpop.permute.xlu0 %6181
  %6183 = vrot.lane.b32.xlu0 %v870, 127
  %v6184 = vpop.permute.xlu0 %6183
  %6185 = vrot.lane.b32.xlu0 %v871, 127
  %v6186 = vpop.permute.xlu0 %6185
  %6187 = vrot.lane.b32.xlu0 %v872, 127
  %v6188 = vpop.permute.xlu0 %6187
  %6189 = vrot.lane.b32.xlu0 %v873, 127
  %v6190 = vpop.permute.xlu0 %6189
  %6191 = vrot.lane.b32.xlu0 %v874, 127
  %v6192 = vpop.permute.xlu0 %6191
  %6193 = vrot.lane.b32.xlu0 %v875, 127
  %v6194 = vpop.permute.xlu0 %6193
  %6195 = vrot.lane.b32.xlu0 %v876, 127
  %v6196 = vpop.permute.xlu0 %6195
  %6197 = vrot.lane.b32.xlu0 %v877, 127
  %v6198 = vpop.permute.xlu0 %6197
  %6199 = vrot.lane.b32.xlu0 %v878, 127
  %v6200 = vpop.permute.xlu0 %6199
  %6201 = vrot.lane.b32.xlu0 %v879, 127
  %v6202 = vpop.permute.xlu0 %6201
  %6203 = vrot.lane.b32.xlu0 %v880, 127
  %v6204 = vpop.permute.xlu0 %6203
  %6205 = vrot.lane.b32.xlu0 %v881, 127
  %v6206 = vpop.permute.xlu0 %6205
  %6207 = vrot.lane.b32.xlu0 %v882, 127
  %v6208 = vpop.permute.xlu0 %6207
  %v6209 = vsel %vm300, %v6114, %v6116
  %v6210 = vsel %vm300, %v6116, %v6118
  %v6211 = vsel %vm300, %v6118, %v6120
  %v6212 = vsel %vm300, %v6120, %v6122
  %v6213 = vsel %vm300, %v6122, %v6124
  %v6214 = vsel %vm300, %v6124, %v6126
  %v6215 = vsel %vm300, %v6126, %v6128
  %v6216 = vsel %vm300, %v6130, %v6132
  %v6217 = vsel %vm300, %v6132, %v6134
  %v6218 = vsel %vm300, %v6134, %v6136
  %v6219 = vsel %vm300, %v6136, %v6138
  %v6220 = vsel %vm300, %v6138, %v6140
  %v6221 = vsel %vm300, %v6140, %v6142
  %v6222 = vsel %vm300, %v6142, %v6144
  %v6223 = vsel %vm300, %v6146, %v6148
  %v6224 = vsel %vm300, %v6148, %v6150
  %v6225 = vsel %vm300, %v6150, %v6152
  %v6226 = vsel %vm300, %v6152, %v6154
  %v6227 = vsel %vm300, %v6154, %v6156
  %v6228 = vsel %vm300, %v6156, %v6158
  %v6229 = vsel %vm300, %v6158, %v6160
  %v6230 = vsel %vm300, %v6162, %v6164
  %v6231 = vsel %vm300, %v6164, %v6166
  %v6232 = vsel %vm300, %v6166, %v6168
  %v6233 = vsel %vm300, %v6168, %v6170
  %v6234 = vsel %vm300, %v6170, %v6172
  %v6235 = vsel %vm300, %v6172, %v6174
  %v6236 = vsel %vm300, %v6174, %v6176
  %v6237 = vsel %vm300, %v6178, %v6180
  %v6238 = vsel %vm300, %v6180, %v6182
  %v6239 = vsel %vm300, %v6182, %v6184
  %v6240 = vsel %vm300, %v6184, %v6186
  %v6241 = vsel %vm300, %v6186, %v6188
  %v6242 = vsel %vm300, %v6188, %v6190
  %v6243 = vsel %vm300, %v6190, %v6192
  %v6244 = vsel %vm300, %v6194, %v6196
  %v6245 = vsel %vm300, %v6196, %v6198
  %v6246 = vsel %vm300, %v6198, %v6200
  %v6247 = vsel %vm300, %v6200, %v6202
  %v6248 = vsel %vm300, %v6202, %v6204
  %v6249 = vsel %vm300, %v6204, %v6206
  %v6250 = vsel %vm300, %v6206, %v6208
  %v6299 = vsel %vm300, %v6128, 0.0
  %v6300 = vsel %vm300, %v6144, 0.0
  %v6301 = vsel %vm300, %v6160, 0.0
  %v6302 = vsel %vm300, %v6176, 0.0
  %v6303 = vsel %vm300, %v6192, 0.0
  %v6304 = vsel %vm300, %v6208, 0.0
  %v6305 = vsel %vm227, %v6209, 0.0
  %v6306 = vsel %vm228, %v6210, 0.0
  %v6307 = vsel %vm229, %v6211, 0.0
  %v6308 = vsel %vm230, %v6212, 0.0
  %v6309 = vsel %vm231, %v6213, 0.0
  %v6310 = vsel %vm232, %v6214, 0.0
  %v6311 = vsel %vm233, %v6215, 0.0
  %v6312 = vsel %vm234, %v6299, 0.0
  %v6313 = vsel %vm227, %v6216, 0.0
  %v6314 = vsel %vm228, %v6217, 0.0
  %v6315 = vsel %vm229, %v6218, 0.0
  %v6316 = vsel %vm230, %v6219, 0.0
  %v6317 = vsel %vm231, %v6220, 0.0
  %v6318 = vsel %vm232, %v6221, 0.0
  %v6319 = vsel %vm233, %v6222, 0.0
  %v6320 = vsel %vm234, %v6300, 0.0
  %v6321 = vsel %vm227, %v6223, 0.0
  %v6322 = vsel %vm228, %v6224, 0.0
  %v6323 = vsel %vm229, %v6225, 0.0
  %v6324 = vsel %vm230, %v6226, 0.0
  %v6325 = vsel %vm231, %v6227, 0.0
  %v6326 = vsel %vm232, %v6228, 0.0
  %v6327 = vsel %vm233, %v6229, 0.0
  %v6328 = vsel %vm234, %v6301, 0.0
  %v6329 = vsel %vm227, %v6230, 0.0
  %v6330 = vsel %vm228, %v6231, 0.0
  %v6331 = vsel %vm229, %v6232, 0.0
  %v6332 = vsel %vm230, %v6233, 0.0
  %v6333 = vsel %vm231, %v6234, 0.0
  %v6334 = vsel %vm232, %v6235, 0.0
  %v6335 = vsel %vm233, %v6236, 0.0
  %v6336 = vsel %vm234, %v6302, 0.0
  %v6337 = vsel %vm227, %v6237, 0.0
  %v6338 = vsel %vm228, %v6238, 0.0
  %v6339 = vsel %vm229, %v6239, 0.0
  %v6340 = vsel %vm230, %v6240, 0.0
  %v6341 = vsel %vm231, %v6241, 0.0
  %v6342 = vsel %vm232, %v6242, 0.0
  %v6343 = vsel %vm233, %v6243, 0.0
  %v6344 = vsel %vm234, %v6303, 0.0
  %v6345 = vsel %vm227, %v6244, 0.0
  %v6346 = vsel %vm228, %v6245, 0.0
  %v6347 = vsel %vm229, %v6246, 0.0
  %v6348 = vsel %vm230, %v6247, 0.0
  %v6349 = vsel %vm231, %v6248, 0.0
  %v6350 = vsel %vm232, %v6249, 0.0
  %v6351 = vsel %vm233, %v6250, 0.0
  %v6352 = vsel %vm234, %v6304, 0.0
  %6353 = vrot.lane.b32.xlu0 %v4970, 97
  %v6354 = vpop.permute.xlu0 %6353
  %6355 = vrot.lane.b32.xlu0 %v4972, 97
  %v6356 = vpop.permute.xlu0 %6355
  %6357 = vrot.lane.b32.xlu0 %v5023, 97
  %v6358 = vpop.permute.xlu0 %6357
  %6359 = vrot.lane.b32.xlu0 %v5025, 97
  %v6360 = vpop.permute.xlu0 %6359
  %6361 = vrot.lane.b32.xlu0 %v5076, 97
  %v6362 = vpop.permute.xlu0 %6361
  %6363 = vrot.lane.b32.xlu0 %v5078, 97
  %v6364 = vpop.permute.xlu0 %6363
  %6365 = vrot.lane.b32.xlu0 %v5129, 97
  %v6366 = vpop.permute.xlu0 %6365
  %6367 = vrot.lane.b32.xlu0 %v5131, 97
  %v6368 = vpop.permute.xlu0 %6367
  %6369 = vrot.lane.b32.xlu0 %v4974, 97
  %v6370 = vpop.permute.xlu0 %6369
  %6371 = vrot.lane.b32.xlu0 %v4976, 97
  %v6372 = vpop.permute.xlu0 %6371
  %6373 = vrot.lane.b32.xlu0 %v5027, 97
  %v6374 = vpop.permute.xlu0 %6373
  %6375 = vrot.lane.b32.xlu0 %v5029, 97
  %v6376 = vpop.permute.xlu0 %6375
  %6377 = vrot.lane.b32.xlu0 %v5080, 97
  %v6378 = vpop.permute.xlu0 %6377
  %6379 = vrot.lane.b32.xlu0 %v5082, 97
  %v6380 = vpop.permute.xlu0 %6379
  %6381 = vrot.lane.b32.xlu0 %v5133, 97
  %v6382 = vpop.permute.xlu0 %6381
  %6383 = vrot.lane.b32.xlu0 %v5135, 97
  %v6384 = vpop.permute.xlu0 %6383
  %6385 = vrot.lane.b32.xlu0 %v4980, 97
  %v6386 = vpop.permute.xlu0 %6385
  %6387 = vrot.lane.b32.xlu0 %v4982, 97
  %v6388 = vpop.permute.xlu0 %6387
  %6389 = vrot.lane.b32.xlu0 %v5033, 97
  %v6390 = vpop.permute.xlu0 %6389
  %6391 = vrot.lane.b32.xlu0 %v5035, 97
  %v6392 = vpop.permute.xlu0 %6391
  %6393 = vrot.lane.b32.xlu0 %v5086, 97
  %v6394 = vpop.permute.xlu0 %6393
  %6395 = vrot.lane.b32.xlu0 %v5088, 97
  %v6396 = vpop.permute.xlu0 %6395
  %6397 = vrot.lane.b32.xlu0 %v5139, 97
  %v6398 = vpop.permute.xlu0 %6397
  %6399 = vrot.lane.b32.xlu0 %v5141, 97
  %v6400 = vpop.permute.xlu0 %6399
  %6401 = vrot.lane.b32.xlu0 %v4984, 97
  %v6402 = vpop.permute.xlu0 %6401
  %6403 = vrot.lane.b32.xlu0 %v4986, 97
  %v6404 = vpop.permute.xlu0 %6403
  %6405 = vrot.lane.b32.xlu0 %v5037, 97
  %v6406 = vpop.permute.xlu0 %6405
  %6407 = vrot.lane.b32.xlu0 %v5039, 97
  %v6408 = vpop.permute.xlu0 %6407
  %6409 = vrot.lane.b32.xlu0 %v5090, 97
  %v6410 = vpop.permute.xlu0 %6409
  %6411 = vrot.lane.b32.xlu0 %v5092, 97
  %v6412 = vpop.permute.xlu0 %6411
  %6413 = vrot.lane.b32.xlu0 %v5143, 97
  %v6414 = vpop.permute.xlu0 %6413
  %6415 = vrot.lane.b32.xlu0 %v5145, 97
  %v6416 = vpop.permute.xlu0 %6415
  %6417 = vrot.lane.b32.xlu0 %v867, 97
  %v6418 = vpop.permute.xlu0 %6417
  %6419 = vrot.lane.b32.xlu0 %v868, 97
  %v6420 = vpop.permute.xlu0 %6419
  %6421 = vrot.lane.b32.xlu0 %v869, 97
  %v6422 = vpop.permute.xlu0 %6421
  %6423 = vrot.lane.b32.xlu0 %v870, 97
  %v6424 = vpop.permute.xlu0 %6423
  %6425 = vrot.lane.b32.xlu0 %v871, 97
  %v6426 = vpop.permute.xlu0 %6425
  %6427 = vrot.lane.b32.xlu0 %v872, 97
  %v6428 = vpop.permute.xlu0 %6427
  %6429 = vrot.lane.b32.xlu0 %v873, 97
  %v6430 = vpop.permute.xlu0 %6429
  %6431 = vrot.lane.b32.xlu0 %v874, 97
  %v6432 = vpop.permute.xlu0 %6431
  %6433 = vrot.lane.b32.xlu0 %v875, 97
  %v6434 = vpop.permute.xlu0 %6433
  %6435 = vrot.lane.b32.xlu0 %v876, 97
  %v6436 = vpop.permute.xlu0 %6435
  %6437 = vrot.lane.b32.xlu0 %v877, 97
  %v6438 = vpop.permute.xlu0 %6437
  %6439 = vrot.lane.b32.xlu0 %v878, 97
  %v6440 = vpop.permute.xlu0 %6439
  %6441 = vrot.lane.b32.xlu0 %v879, 97
  %v6442 = vpop.permute.xlu0 %6441
  %6443 = vrot.lane.b32.xlu0 %v880, 97
  %v6444 = vpop.permute.xlu0 %6443
  %6445 = vrot.lane.b32.xlu0 %v881, 97
  %v6446 = vpop.permute.xlu0 %6445
  %6447 = vrot.lane.b32.xlu0 %v882, 97
  %v6448 = vpop.permute.xlu0 %6447
  %v6449 = vsel %vm341, %v6354, %v6356
  %v6450 = vsel %vm341, %v6356, %v6358
  %v6451 = vsel %vm341, %v6358, %v6360
  %v6452 = vsel %vm341, %v6360, %v6362
  %v6453 = vsel %vm341, %v6362, %v6364
  %v6454 = vsel %vm341, %v6364, %v6366
  %v6455 = vsel %vm341, %v6366, %v6368
  %v6456 = vsel %vm341, %v6370, %v6372
  %v6457 = vsel %vm341, %v6372, %v6374
  %v6458 = vsel %vm341, %v6374, %v6376
  %v6459 = vsel %vm341, %v6376, %v6378
  %v6460 = vsel %vm341, %v6378, %v6380
  %v6461 = vsel %vm341, %v6380, %v6382
  %v6462 = vsel %vm341, %v6382, %v6384
  %v6463 = vsel %vm341, %v6386, %v6388
  %v6464 = vsel %vm341, %v6388, %v6390
  %v6465 = vsel %vm341, %v6390, %v6392
  %v6466 = vsel %vm341, %v6392, %v6394
  %v6467 = vsel %vm341, %v6394, %v6396
  %v6468 = vsel %vm341, %v6396, %v6398
  %v6469 = vsel %vm341, %v6398, %v6400
  %v6470 = vsel %vm341, %v6402, %v6404
  %v6471 = vsel %vm341, %v6404, %v6406
  %v6472 = vsel %vm341, %v6406, %v6408
  %v6473 = vsel %vm341, %v6408, %v6410
  %v6474 = vsel %vm341, %v6410, %v6412
  %v6475 = vsel %vm341, %v6412, %v6414
  %v6476 = vsel %vm341, %v6414, %v6416
  %v6477 = vsel %vm341, %v6418, %v6420
  %v6478 = vsel %vm341, %v6420, %v6422
  %v6479 = vsel %vm341, %v6422, %v6424
  %v6480 = vsel %vm341, %v6424, %v6426
  %v6481 = vsel %vm341, %v6426, %v6428
  %v6482 = vsel %vm341, %v6428, %v6430
  %v6483 = vsel %vm341, %v6430, %v6432
  %v6484 = vsel %vm341, %v6434, %v6436
  %v6485 = vsel %vm341, %v6436, %v6438
  %v6486 = vsel %vm341, %v6438, %v6440
  %v6487 = vsel %vm341, %v6440, %v6442
  %v6488 = vsel %vm341, %v6442, %v6444
  %v6489 = vsel %vm341, %v6444, %v6446
  %v6490 = vsel %vm341, %v6446, %v6448
  %v6539 = vsel %vm341, %v6368, 0.0
  %v6540 = vsel %vm341, %v6384, 0.0
  %v6541 = vsel %vm341, %v6400, 0.0
  %v6542 = vsel %vm341, %v6416, 0.0
  %v6543 = vsel %vm341, %v6432, 0.0
  %v6544 = vsel %vm341, %v6448, 0.0
  %v6545 = vsel %vm144, %v6449, 0.0
  %v6546 = vsel %vm145, %v6450, 0.0
  %v6547 = vsel %vm146, %v6451, 0.0
  %v6548 = vsel %vm147, %v6452, 0.0
  %v6549 = vsel %vm148, %v6453, 0.0
  %v6550 = vsel %vm149, %v6454, 0.0
  %v6551 = vsel %vm150, %v6455, 0.0
  %v6552 = vsel %vm151, %v6539, 0.0
  %v6553 = vsel %vm144, %v6456, 0.0
  %v6554 = vsel %vm145, %v6457, 0.0
  %v6555 = vsel %vm146, %v6458, 0.0
  %v6556 = vsel %vm147, %v6459, 0.0
  %v6557 = vsel %vm148, %v6460, 0.0
  %v6558 = vsel %vm149, %v6461, 0.0
  %v6559 = vsel %vm150, %v6462, 0.0
  %v6560 = vsel %vm151, %v6540, 0.0
  %v6561 = vsel %vm144, %v6463, 0.0
  %v6562 = vsel %vm145, %v6464, 0.0
  %v6563 = vsel %vm146, %v6465, 0.0
  %v6564 = vsel %vm147, %v6466, 0.0
  %v6565 = vsel %vm148, %v6467, 0.0
  %v6566 = vsel %vm149, %v6468, 0.0
  %v6567 = vsel %vm150, %v6469, 0.0
  %v6568 = vsel %vm151, %v6541, 0.0
  %v6569 = vsel %vm144, %v6470, 0.0
  %v6570 = vsel %vm145, %v6471, 0.0
  %v6571 = vsel %vm146, %v6472, 0.0
  %v6572 = vsel %vm147, %v6473, 0.0
  %v6573 = vsel %vm148, %v6474, 0.0
  %v6574 = vsel %vm149, %v6475, 0.0
  %v6575 = vsel %vm150, %v6476, 0.0
  %v6576 = vsel %vm151, %v6542, 0.0
  %v6577 = vsel %vm144, %v6477, 0.0
  %v6578 = vsel %vm145, %v6478, 0.0
  %v6579 = vsel %vm146, %v6479, 0.0
  %v6580 = vsel %vm147, %v6480, 0.0
  %v6581 = vsel %vm148, %v6481, 0.0
  %v6582 = vsel %vm149, %v6482, 0.0
  %v6583 = vsel %vm150, %v6483, 0.0
  %v6584 = vsel %vm151, %v6543, 0.0
  %v6585 = vsel %vm144, %v6484, 0.0
  %v6586 = vsel %vm145, %v6485, 0.0
  %v6587 = vsel %vm146, %v6486, 0.0
  %v6588 = vsel %vm147, %v6487, 0.0
  %v6589 = vsel %vm148, %v6488, 0.0
  %v6590 = vsel %vm149, %v6489, 0.0
  %v6591 = vsel %vm150, %v6490, 0.0
  %v6592 = vsel %vm151, %v6544, 0.0
  %6593 = vrot.lane.b32.xlu0 %v4970, 96
  %v6594 = vpop.permute.xlu0 %6593
  %6595 = vrot.lane.b32.xlu0 %v4972, 96
  %v6596 = vpop.permute.xlu0 %6595
  %6597 = vrot.lane.b32.xlu0 %v5023, 96
  %v6598 = vpop.permute.xlu0 %6597
  %6599 = vrot.lane.b32.xlu0 %v5025, 96
  %v6600 = vpop.permute.xlu0 %6599
  %6601 = vrot.lane.b32.xlu0 %v5076, 96
  %v6602 = vpop.permute.xlu0 %6601
  %6603 = vrot.lane.b32.xlu0 %v5078, 96
  %v6604 = vpop.permute.xlu0 %6603
  %6605 = vrot.lane.b32.xlu0 %v5129, 96
  %v6606 = vpop.permute.xlu0 %6605
  %6607 = vrot.lane.b32.xlu0 %v5131, 96
  %v6608 = vpop.permute.xlu0 %6607
  %6609 = vrot.lane.b32.xlu0 %v4974, 96
  %v6610 = vpop.permute.xlu0 %6609
  %6611 = vrot.lane.b32.xlu0 %v4976, 96
  %v6612 = vpop.permute.xlu0 %6611
  %6613 = vrot.lane.b32.xlu0 %v5027, 96
  %v6614 = vpop.permute.xlu0 %6613
  %6615 = vrot.lane.b32.xlu0 %v5029, 96
  %v6616 = vpop.permute.xlu0 %6615
  %6617 = vrot.lane.b32.xlu0 %v5080, 96
  %v6618 = vpop.permute.xlu0 %6617
  %6619 = vrot.lane.b32.xlu0 %v5082, 96
  %v6620 = vpop.permute.xlu0 %6619
  %6621 = vrot.lane.b32.xlu0 %v5133, 96
  %v6622 = vpop.permute.xlu0 %6621
  %6623 = vrot.lane.b32.xlu0 %v5135, 96
  %v6624 = vpop.permute.xlu0 %6623
  %6625 = vrot.lane.b32.xlu0 %v4980, 96
  %v6626 = vpop.permute.xlu0 %6625
  %6627 = vrot.lane.b32.xlu0 %v4982, 96
  %v6628 = vpop.permute.xlu0 %6627
  %6629 = vrot.lane.b32.xlu0 %v5033, 96
  %v6630 = vpop.permute.xlu0 %6629
  %6631 = vrot.lane.b32.xlu0 %v5035, 96
  %v6632 = vpop.permute.xlu0 %6631
  %6633 = vrot.lane.b32.xlu0 %v5086, 96
  %v6634 = vpop.permute.xlu0 %6633
  %6635 = vrot.lane.b32.xlu0 %v5088, 96
  %v6636 = vpop.permute.xlu0 %6635
  %6637 = vrot.lane.b32.xlu0 %v5139, 96
  %v6638 = vpop.permute.xlu0 %6637
  %6639 = vrot.lane.b32.xlu0 %v5141, 96
  %v6640 = vpop.permute.xlu0 %6639
  %6641 = vrot.lane.b32.xlu0 %v4984, 96
  %v6642 = vpop.permute.xlu0 %6641
  %6643 = vrot.lane.b32.xlu0 %v4986, 96
  %v6644 = vpop.permute.xlu0 %6643
  %6645 = vrot.lane.b32.xlu0 %v5037, 96
  %v6646 = vpop.permute.xlu0 %6645
  %6647 = vrot.lane.b32.xlu0 %v5039, 96
  %v6648 = vpop.permute.xlu0 %6647
  %6649 = vrot.lane.b32.xlu0 %v5090, 96
  %v6650 = vpop.permute.xlu0 %6649
  %6651 = vrot.lane.b32.xlu0 %v5092, 96
  %v6652 = vpop.permute.xlu0 %6651
  %6653 = vrot.lane.b32.xlu0 %v5143, 96
  %v6654 = vpop.permute.xlu0 %6653
  %6655 = vrot.lane.b32.xlu0 %v5145, 96
  %v6656 = vpop.permute.xlu0 %6655
  %6657 = vrot.lane.b32.xlu0 %v867, 96
  %v6658 = vpop.permute.xlu0 %6657
  %6659 = vrot.lane.b32.xlu0 %v868, 96
  %v6660 = vpop.permute.xlu0 %6659
  %6661 = vrot.lane.b32.xlu0 %v869, 96
  %v6662 = vpop.permute.xlu0 %6661
  %6663 = vrot.lane.b32.xlu0 %v870, 96
  %v6664 = vpop.permute.xlu0 %6663
  %6665 = vrot.lane.b32.xlu0 %v871, 96
  %v6666 = vpop.permute.xlu0 %6665
  %6667 = vrot.lane.b32.xlu0 %v872, 96
  %v6668 = vpop.permute.xlu0 %6667
  %6669 = vrot.lane.b32.xlu0 %v873, 96
  %v6670 = vpop.permute.xlu0 %6669
  %6671 = vrot.lane.b32.xlu0 %v874, 96
  %v6672 = vpop.permute.xlu0 %6671
  %6673 = vrot.lane.b32.xlu0 %v875, 96
  %v6674 = vpop.permute.xlu0 %6673
  %6675 = vrot.lane.b32.xlu0 %v876, 96
  %v6676 = vpop.permute.xlu0 %6675
  %6677 = vrot.lane.b32.xlu0 %v877, 96
  %v6678 = vpop.permute.xlu0 %6677
  %6679 = vrot.lane.b32.xlu0 %v878, 96
  %v6680 = vpop.permute.xlu0 %6679
  %6681 = vrot.lane.b32.xlu0 %v879, 96
  %v6682 = vpop.permute.xlu0 %6681
  %6683 = vrot.lane.b32.xlu0 %v880, 96
  %v6684 = vpop.permute.xlu0 %6683
  %6685 = vrot.lane.b32.xlu0 %v881, 96
  %v6686 = vpop.permute.xlu0 %6685
  %6687 = vrot.lane.b32.xlu0 %v882, 96
  %v6688 = vpop.permute.xlu0 %6687
  %v6689 = vsel %vm382, %v6594, %v6596
  %v6690 = vsel %vm382, %v6596, %v6598
  %v6691 = vsel %vm382, %v6598, %v6600
  %v6692 = vsel %vm382, %v6600, %v6602
  %v6693 = vsel %vm382, %v6602, %v6604
  %v6694 = vsel %vm382, %v6604, %v6606
  %v6695 = vsel %vm382, %v6606, %v6608
  %v6696 = vsel %vm382, %v6610, %v6612
  %v6697 = vsel %vm382, %v6612, %v6614
  %v6698 = vsel %vm382, %v6614, %v6616
  %v6699 = vsel %vm382, %v6616, %v6618
  %v6700 = vsel %vm382, %v6618, %v6620
  %v6701 = vsel %vm382, %v6620, %v6622
  %v6702 = vsel %vm382, %v6622, %v6624
  %v6703 = vsel %vm382, %v6626, %v6628
  %v6704 = vsel %vm382, %v6628, %v6630
  %v6705 = vsel %vm382, %v6630, %v6632
  %v6706 = vsel %vm382, %v6632, %v6634
  %v6707 = vsel %vm382, %v6634, %v6636
  %v6708 = vsel %vm382, %v6636, %v6638
  %v6709 = vsel %vm382, %v6638, %v6640
  %v6710 = vsel %vm382, %v6642, %v6644
  %v6711 = vsel %vm382, %v6644, %v6646
  %v6712 = vsel %vm382, %v6646, %v6648
  %v6713 = vsel %vm382, %v6648, %v6650
  %v6714 = vsel %vm382, %v6650, %v6652
  %v6715 = vsel %vm382, %v6652, %v6654
  %v6716 = vsel %vm382, %v6654, %v6656
  %v6717 = vsel %vm382, %v6658, %v6660
  %v6718 = vsel %vm382, %v6660, %v6662
  %v6719 = vsel %vm382, %v6662, %v6664
  %v6720 = vsel %vm382, %v6664, %v6666
  %v6721 = vsel %vm382, %v6666, %v6668
  %v6722 = vsel %vm382, %v6668, %v6670
  %v6723 = vsel %vm382, %v6670, %v6672
  %v6724 = vsel %vm382, %v6674, %v6676
  %v6725 = vsel %vm382, %v6676, %v6678
  %v6726 = vsel %vm382, %v6678, %v6680
  %v6727 = vsel %vm382, %v6680, %v6682
  %v6728 = vsel %vm382, %v6682, %v6684
  %v6729 = vsel %vm382, %v6684, %v6686
  %v6730 = vsel %vm382, %v6686, %v6688
  %v6779 = vsel %vm382, %v6608, 0.0
  %v6780 = vsel %vm382, %v6624, 0.0
  %v6781 = vsel %vm382, %v6640, 0.0
  %v6782 = vsel %vm382, %v6656, 0.0
  %v6783 = vsel %vm382, %v6672, 0.0
  %v6784 = vsel %vm382, %v6688, 0.0
  %6785 = vrot.lane.b32.xlu0 %v4970, 95
  %v6786 = vpop.permute.xlu0 %6785
  %6787 = vrot.lane.b32.xlu0 %v4972, 95
  %v6788 = vpop.permute.xlu0 %6787
  %6789 = vrot.lane.b32.xlu0 %v5023, 95
  %v6790 = vpop.permute.xlu0 %6789
  %6791 = vrot.lane.b32.xlu0 %v5025, 95
  %v6792 = vpop.permute.xlu0 %6791
  %6793 = vrot.lane.b32.xlu0 %v5076, 95
  %v6794 = vpop.permute.xlu0 %6793
  %6795 = vrot.lane.b32.xlu0 %v5078, 95
  %v6796 = vpop.permute.xlu0 %6795
  %6797 = vrot.lane.b32.xlu0 %v5129, 95
  %v6798 = vpop.permute.xlu0 %6797
  %6799 = vrot.lane.b32.xlu0 %v5131, 95
  %v6800 = vpop.permute.xlu0 %6799
  %6801 = vrot.lane.b32.xlu0 %v4974, 95
  %v6802 = vpop.permute.xlu0 %6801
  %6803 = vrot.lane.b32.xlu0 %v4976, 95
  %v6804 = vpop.permute.xlu0 %6803
  %6805 = vrot.lane.b32.xlu0 %v5027, 95
  %v6806 = vpop.permute.xlu0 %6805
  %6807 = vrot.lane.b32.xlu0 %v5029, 95
  %v6808 = vpop.permute.xlu0 %6807
  %6809 = vrot.lane.b32.xlu0 %v5080, 95
  %v6810 = vpop.permute.xlu0 %6809
  %6811 = vrot.lane.b32.xlu0 %v5082, 95
  %v6812 = vpop.permute.xlu0 %6811
  %6813 = vrot.lane.b32.xlu0 %v5133, 95
  %v6814 = vpop.permute.xlu0 %6813
  %6815 = vrot.lane.b32.xlu0 %v5135, 95
  %v6816 = vpop.permute.xlu0 %6815
  %6817 = vrot.lane.b32.xlu0 %v4980, 95
  %v6818 = vpop.permute.xlu0 %6817
  %6819 = vrot.lane.b32.xlu0 %v4982, 95
  %v6820 = vpop.permute.xlu0 %6819
  %6821 = vrot.lane.b32.xlu0 %v5033, 95
  %v6822 = vpop.permute.xlu0 %6821
  %6823 = vrot.lane.b32.xlu0 %v5035, 95
  %v6824 = vpop.permute.xlu0 %6823
  %6825 = vrot.lane.b32.xlu0 %v5086, 95
  %v6826 = vpop.permute.xlu0 %6825
  %6827 = vrot.lane.b32.xlu0 %v5088, 95
  %v6828 = vpop.permute.xlu0 %6827
  %6829 = vrot.lane.b32.xlu0 %v5139, 95
  %v6830 = vpop.permute.xlu0 %6829
  %6831 = vrot.lane.b32.xlu0 %v5141, 95
  %v6832 = vpop.permute.xlu0 %6831
  %6833 = vrot.lane.b32.xlu0 %v4984, 95
  %v6834 = vpop.permute.xlu0 %6833
  %6835 = vrot.lane.b32.xlu0 %v4986, 95
  %v6836 = vpop.permute.xlu0 %6835
  %6837 = vrot.lane.b32.xlu0 %v5037, 95
  %v6838 = vpop.permute.xlu0 %6837
  %6839 = vrot.lane.b32.xlu0 %v5039, 95
  %v6840 = vpop.permute.xlu0 %6839
  %6841 = vrot.lane.b32.xlu0 %v5090, 95
  %v6842 = vpop.permute.xlu0 %6841
  %6843 = vrot.lane.b32.xlu0 %v5092, 95
  %v6844 = vpop.permute.xlu0 %6843
  %6845 = vrot.lane.b32.xlu0 %v5143, 95
  %v6846 = vpop.permute.xlu0 %6845
  %6847 = vrot.lane.b32.xlu0 %v5145, 95
  %v6848 = vpop.permute.xlu0 %6847
  %6849 = vrot.lane.b32.xlu0 %v867, 95
  %v6850 = vpop.permute.xlu0 %6849
  %6851 = vrot.lane.b32.xlu0 %v868, 95
  %v6852 = vpop.permute.xlu0 %6851
  %6853 = vrot.lane.b32.xlu0 %v869, 95
  %v6854 = vpop.permute.xlu0 %6853
  %6855 = vrot.lane.b32.xlu0 %v870, 95
  %v6856 = vpop.permute.xlu0 %6855
  %6857 = vrot.lane.b32.xlu0 %v871, 95
  %v6858 = vpop.permute.xlu0 %6857
  %6859 = vrot.lane.b32.xlu0 %v872, 95
  %v6860 = vpop.permute.xlu0 %6859
  %6861 = vrot.lane.b32.xlu0 %v873, 95
  %v6862 = vpop.permute.xlu0 %6861
  %6863 = vrot.lane.b32.xlu0 %v874, 95
  %v6864 = vpop.permute.xlu0 %6863
  %6865 = vrot.lane.b32.xlu0 %v875, 95
  %v6866 = vpop.permute.xlu0 %6865
  %6867 = vrot.lane.b32.xlu0 %v876, 95
  %v6868 = vpop.permute.xlu0 %6867
  %6869 = vrot.lane.b32.xlu0 %v877, 95
  %v6870 = vpop.permute.xlu0 %6869
  %6871 = vrot.lane.b32.xlu0 %v878, 95
  %v6872 = vpop.permute.xlu0 %6871
  %6873 = vrot.lane.b32.xlu0 %v879, 95
  %v6874 = vpop.permute.xlu0 %6873
  %6875 = vrot.lane.b32.xlu0 %v880, 95
  %v6876 = vpop.permute.xlu0 %6875
  %6877 = vrot.lane.b32.xlu0 %v881, 95
  %v6878 = vpop.permute.xlu0 %6877
  %6879 = vrot.lane.b32.xlu0 %v882, 95
  %v6880 = vpop.permute.xlu0 %6879
  %v6881 = vsel %vm408, %v6786, %v6788
  %v6882 = vsel %vm408, %v6788, %v6790
  %v6883 = vsel %vm408, %v6790, %v6792
  %v6884 = vsel %vm408, %v6792, %v6794
  %v6885 = vsel %vm408, %v6794, %v6796
  %v6886 = vsel %vm408, %v6796, %v6798
  %v6887 = vsel %vm408, %v6798, %v6800
  %v6888 = vsel %vm408, %v6802, %v6804
  %v6889 = vsel %vm408, %v6804, %v6806
  %v6890 = vsel %vm408, %v6806, %v6808
  %v6891 = vsel %vm408, %v6808, %v6810
  %v6892 = vsel %vm408, %v6810, %v6812
  %v6893 = vsel %vm408, %v6812, %v6814
  %v6894 = vsel %vm408, %v6814, %v6816
  %v6895 = vsel %vm408, %v6818, %v6820
  %v6896 = vsel %vm408, %v6820, %v6822
  %v6897 = vsel %vm408, %v6822, %v6824
  %v6898 = vsel %vm408, %v6824, %v6826
  %v6899 = vsel %vm408, %v6826, %v6828
  %v6900 = vsel %vm408, %v6828, %v6830
  %v6901 = vsel %vm408, %v6830, %v6832
  %v6902 = vsel %vm408, %v6834, %v6836
  %v6903 = vsel %vm408, %v6836, %v6838
  %v6904 = vsel %vm408, %v6838, %v6840
  %v6905 = vsel %vm408, %v6840, %v6842
  %v6906 = vsel %vm408, %v6842, %v6844
  %v6907 = vsel %vm408, %v6844, %v6846
  %v6908 = vsel %vm408, %v6846, %v6848
  %v6909 = vsel %vm408, %v6850, %v6852
  %v6910 = vsel %vm408, %v6852, %v6854
  %v6911 = vsel %vm408, %v6854, %v6856
  %v6912 = vsel %vm408, %v6856, %v6858
  %v6913 = vsel %vm408, %v6858, %v6860
  %v6914 = vsel %vm408, %v6860, %v6862
  %v6915 = vsel %vm408, %v6862, %v6864
  %v6916 = vsel %vm408, %v6866, %v6868
  %v6917 = vsel %vm408, %v6868, %v6870
  %v6918 = vsel %vm408, %v6870, %v6872
  %v6919 = vsel %vm408, %v6872, %v6874
  %v6920 = vsel %vm408, %v6874, %v6876
  %v6921 = vsel %vm408, %v6876, %v6878
  %v6922 = vsel %vm408, %v6878, %v6880
  %v6971 = vsel %vm408, %v6800, 0.0
  %v6972 = vsel %vm408, %v6816, 0.0
  %v6973 = vsel %vm408, %v6832, 0.0
  %v6974 = vsel %vm408, %v6848, 0.0
  %v6975 = vsel %vm408, %v6864, 0.0
  %v6976 = vsel %vm408, %v6880, 0.0
  %v6977 = vsel %vm227, %v6881, 0.0
  %v6978 = vsel %vm228, %v6882, 0.0
  %v6979 = vsel %vm229, %v6883, 0.0
  %v6980 = vsel %vm230, %v6884, 0.0
  %v6981 = vsel %vm231, %v6885, 0.0
  %v6982 = vsel %vm232, %v6886, 0.0
  %v6983 = vsel %vm233, %v6887, 0.0
  %v6984 = vsel %vm234, %v6971, 0.0
  %v6985 = vsel %vm227, %v6888, 0.0
  %v6986 = vsel %vm228, %v6889, 0.0
  %v6987 = vsel %vm229, %v6890, 0.0
  %v6988 = vsel %vm230, %v6891, 0.0
  %v6989 = vsel %vm231, %v6892, 0.0
  %v6990 = vsel %vm232, %v6893, 0.0
  %v6991 = vsel %vm233, %v6894, 0.0
  %v6992 = vsel %vm234, %v6972, 0.0
  %v6993 = vsel %vm227, %v6895, 0.0
  %v6994 = vsel %vm228, %v6896, 0.0
  %v6995 = vsel %vm229, %v6897, 0.0
  %v6996 = vsel %vm230, %v6898, 0.0
  %v6997 = vsel %vm231, %v6899, 0.0
  %v6998 = vsel %vm232, %v6900, 0.0
  %v6999 = vsel %vm233, %v6901, 0.0
  %v7000 = vsel %vm234, %v6973, 0.0
  %v7001 = vsel %vm227, %v6902, 0.0
  %v7002 = vsel %vm228, %v6903, 0.0
  %v7003 = vsel %vm229, %v6904, 0.0
  %v7004 = vsel %vm230, %v6905, 0.0
  %v7005 = vsel %vm231, %v6906, 0.0
  %v7006 = vsel %vm232, %v6907, 0.0
  %v7007 = vsel %vm233, %v6908, 0.0
  %v7008 = vsel %vm234, %v6974, 0.0
  %v7009 = vsel %vm227, %v6909, 0.0
  %v7010 = vsel %vm228, %v6910, 0.0
  %v7011 = vsel %vm229, %v6911, 0.0
  %v7012 = vsel %vm230, %v6912, 0.0
  %v7013 = vsel %vm231, %v6913, 0.0
  %v7014 = vsel %vm232, %v6914, 0.0
  %v7015 = vsel %vm233, %v6915, 0.0
  %v7016 = vsel %vm234, %v6975, 0.0
  %v7017 = vsel %vm227, %v6916, 0.0
  %v7018 = vsel %vm228, %v6917, 0.0
  %v7019 = vsel %vm229, %v6918, 0.0
  %v7020 = vsel %vm230, %v6919, 0.0
  %v7021 = vsel %vm231, %v6920, 0.0
  %v7022 = vsel %vm232, %v6921, 0.0
  %v7023 = vsel %vm233, %v6922, 0.0
  %v7024 = vsel %vm234, %v6976, 0.0
  %v7025 = vpack.c.bf16 %v5401, %v5393
  %v7026 = vpack.c.bf16 %v5402, %v5394
  %v7027 = vpack.c.bf16 %v5403, %v5395
  %v7028 = vpack.c.bf16 %v5404, %v5396
  %v7029 = vpack.c.bf16 %v5405, %v5397
  %v7030 = vpack.c.bf16 %v5406, %v5398
  %v7031 = vpack.c.bf16 %v5407, %v5399
  %v7032 = vpack.c.bf16 %v5408, %v5400
  %v7033 = vpack.c.bf16 %v5417, %v5409
  %v7034 = vpack.c.bf16 %v5418, %v5410
  %v7035 = vpack.c.bf16 %v5419, %v5411
  %v7036 = vpack.c.bf16 %v5420, %v5412
  %v7037 = vpack.c.bf16 %v5421, %v5413
  %v7038 = vpack.c.bf16 %v5422, %v5414
  %v7039 = vpack.c.bf16 %v5423, %v5415
  %v7040 = vpack.c.bf16 %v5424, %v5416
  %v7041 = vpack.c.bf16 %v5433, %v5425
  %v7042 = vpack.c.bf16 %v5434, %v5426
  %v7043 = vpack.c.bf16 %v5435, %v5427
  %v7044 = vpack.c.bf16 %v5436, %v5428
  %v7045 = vpack.c.bf16 %v5437, %v5429
  %v7046 = vpack.c.bf16 %v5438, %v5430
  %v7047 = vpack.c.bf16 %v5439, %v5431
  %v7048 = vpack.c.bf16 %v5440, %v5432
  %v7049 = vpack.c.bf16 %v5628, %v5627
  %v7050 = vpack.c.bf16 %v5544, %v5537
  %v7051 = vpack.c.bf16 %v5545, %v5538
  %v7052 = vpack.c.bf16 %v5546, %v5539
  %v7053 = vpack.c.bf16 %v5547, %v5540
  %v7054 = vpack.c.bf16 %v5548, %v5541
  %v7055 = vpack.c.bf16 %v5549, %v5542
  %v7056 = vpack.c.bf16 %v5550, %v5543
  %v7057 = vpack.c.bf16 %v5630, %v5629
  %v7058 = vpack.c.bf16 %v5558, %v5551
  %v7059 = vpack.c.bf16 %v5559, %v5552
  %v7060 = vpack.c.bf16 %v5560, %v5553
  %v7061 = vpack.c.bf16 %v5561, %v5554
  %v7062 = vpack.c.bf16 %v5562, %v5555
  %v7063 = vpack.c.bf16 %v5563, %v5556
  %v7064 = vpack.c.bf16 %v5564, %v5557
  %v7065 = vpack.c.bf16 %v5632, %v5631
  %v7066 = vpack.c.bf16 %v5572, %v5565
  %v7067 = vpack.c.bf16 %v5573, %v5566
  %v7068 = vpack.c.bf16 %v5574, %v5567
  %v7069 = vpack.c.bf16 %v5575, %v5568
  %v7070 = vpack.c.bf16 %v5576, %v5569
  %v7071 = vpack.c.bf16 %v5577, %v5570
  %v7072 = vpack.c.bf16 %v5578, %v5571
  %v7073 = vpack.c.bf16 %v5833, %v5825
  %v7074 = vpack.c.bf16 %v5834, %v5826
  %v7075 = vpack.c.bf16 %v5835, %v5827
  %v7076 = vpack.c.bf16 %v5836, %v5828
  %v7077 = vpack.c.bf16 %v5837, %v5829
  %v7078 = vpack.c.bf16 %v5838, %v5830
  %v7079 = vpack.c.bf16 %v5839, %v5831
  %v7080 = vpack.c.bf16 %v5840, %v5832
  %v7081 = vpack.c.bf16 %v5849, %v5841
  %v7082 = vpack.c.bf16 %v5850, %v5842
  %v7083 = vpack.c.bf16 %v5851, %v5843
  %v7084 = vpack.c.bf16 %v5852, %v5844
  %v7085 = vpack.c.bf16 %v5853, %v5845
  %v7086 = vpack.c.bf16 %v5854, %v5846
  %v7087 = vpack.c.bf16 %v5855, %v5847
  %v7088 = vpack.c.bf16 %v5856, %v5848
  %v7089 = vpack.c.bf16 %v5865, %v5857
  %v7090 = vpack.c.bf16 %v5866, %v5858
  %v7091 = vpack.c.bf16 %v5867, %v5859
  %v7092 = vpack.c.bf16 %v5868, %v5860
  %v7093 = vpack.c.bf16 %v5869, %v5861
  %v7094 = vpack.c.bf16 %v5870, %v5862
  %v7095 = vpack.c.bf16 %v5871, %v5863
  %v7096 = vpack.c.bf16 %v5872, %v5864
  %v7097 = vpack.c.bf16 %v6073, %v6065
  %v7098 = vpack.c.bf16 %v6074, %v6066
  %v7099 = vpack.c.bf16 %v6075, %v6067
  %v7100 = vpack.c.bf16 %v6076, %v6068
  %v7101 = vpack.c.bf16 %v6077, %v6069
  %v7102 = vpack.c.bf16 %v6078, %v6070
  %v7103 = vpack.c.bf16 %v6079, %v6071
  %v7104 = vpack.c.bf16 %v6080, %v6072
  %v7105 = vpack.c.bf16 %v6089, %v6081
  %v7106 = vpack.c.bf16 %v6090, %v6082
  %v7107 = vpack.c.bf16 %v6091, %v6083
  %v7108 = vpack.c.bf16 %v6092, %v6084
  %v7109 = vpack.c.bf16 %v6093, %v6085
  %v7110 = vpack.c.bf16 %v6094, %v6086
  %v7111 = vpack.c.bf16 %v6095, %v6087
  %v7112 = vpack.c.bf16 %v6096, %v6088
  %v7113 = vpack.c.bf16 %v6105, %v6097
  %v7114 = vpack.c.bf16 %v6106, %v6098
  %v7115 = vpack.c.bf16 %v6107, %v6099
  %v7116 = vpack.c.bf16 %v6108, %v6100
  %v7117 = vpack.c.bf16 %v6109, %v6101
  %v7118 = vpack.c.bf16 %v6110, %v6102
  %v7119 = vpack.c.bf16 %v6111, %v6103
  %v7120 = vpack.c.bf16 %v6112, %v6104
  %v7121 = vpack.c.bf16 %v4974, %v4970
  %v7122 = vpack.c.bf16 %v4976, %v4972
  %v7123 = vpack.c.bf16 %v5027, %v5023
  %v7124 = vpack.c.bf16 %v5029, %v5025
  %v7125 = vpack.c.bf16 %v5080, %v5076
  %v7126 = vpack.c.bf16 %v5082, %v5078
  %v7127 = vpack.c.bf16 %v5133, %v5129
  %v7128 = vpack.c.bf16 %v5135, %v5131
  %v7129 = vpack.c.bf16 %v4984, %v4980
  %v7130 = vpack.c.bf16 %v4986, %v4982
  %v7131 = vpack.c.bf16 %v5037, %v5033
  %v7132 = vpack.c.bf16 %v5039, %v5035
  %v7133 = vpack.c.bf16 %v5090, %v5086
  %v7134 = vpack.c.bf16 %v5092, %v5088
  %v7135 = vpack.c.bf16 %v5143, %v5139
  %v7136 = vpack.c.bf16 %v5145, %v5141
  %v7137 = vpack.c.bf16 %v6313, %v6305
  %v7138 = vpack.c.bf16 %v6314, %v6306
  %v7139 = vpack.c.bf16 %v6315, %v6307
  %v7140 = vpack.c.bf16 %v6316, %v6308
  %v7141 = vpack.c.bf16 %v6317, %v6309
  %v7142 = vpack.c.bf16 %v6318, %v6310
  %v7143 = vpack.c.bf16 %v6319, %v6311
  %v7144 = vpack.c.bf16 %v6320, %v6312
  %v7145 = vpack.c.bf16 %v6329, %v6321
  %v7146 = vpack.c.bf16 %v6330, %v6322
  %v7147 = vpack.c.bf16 %v6331, %v6323
  %v7148 = vpack.c.bf16 %v6332, %v6324
  %v7149 = vpack.c.bf16 %v6333, %v6325
  %v7150 = vpack.c.bf16 %v6334, %v6326
  %v7151 = vpack.c.bf16 %v6335, %v6327
  %v7152 = vpack.c.bf16 %v6336, %v6328
  %v7153 = vpack.c.bf16 %v6345, %v6337
  %v7154 = vpack.c.bf16 %v6346, %v6338
  %v7155 = vpack.c.bf16 %v6347, %v6339
  %v7156 = vpack.c.bf16 %v6348, %v6340
  %v7157 = vpack.c.bf16 %v6349, %v6341
  %v7158 = vpack.c.bf16 %v6350, %v6342
  %v7159 = vpack.c.bf16 %v6351, %v6343
  %v7160 = vpack.c.bf16 %v6352, %v6344
  %v7161 = vpack.c.bf16 %v6553, %v6545
  %v7162 = vpack.c.bf16 %v6554, %v6546
  %v7163 = vpack.c.bf16 %v6555, %v6547
  %v7164 = vpack.c.bf16 %v6556, %v6548
  %v7165 = vpack.c.bf16 %v6557, %v6549
  %v7166 = vpack.c.bf16 %v6558, %v6550
  %v7167 = vpack.c.bf16 %v6559, %v6551
  %v7168 = vpack.c.bf16 %v6560, %v6552
  %v7169 = vpack.c.bf16 %v6569, %v6561
  %v7170 = vpack.c.bf16 %v6570, %v6562
  %v7171 = vpack.c.bf16 %v6571, %v6563
  %v7172 = vpack.c.bf16 %v6572, %v6564
  %v7173 = vpack.c.bf16 %v6573, %v6565
  %v7174 = vpack.c.bf16 %v6574, %v6566
  %v7175 = vpack.c.bf16 %v6575, %v6567
  %v7176 = vpack.c.bf16 %v6576, %v6568
  %v7177 = vpack.c.bf16 %v6585, %v6577
  %v7178 = vpack.c.bf16 %v6586, %v6578
  %v7179 = vpack.c.bf16 %v6587, %v6579
  %v7180 = vpack.c.bf16 %v6588, %v6580
  %v7181 = vpack.c.bf16 %v6589, %v6581
  %v7182 = vpack.c.bf16 %v6590, %v6582
  %v7183 = vpack.c.bf16 %v6591, %v6583
  %v7184 = vpack.c.bf16 %v6592, %v6584
  %v7185 = vpack.c.bf16 %v6696, %v6689
  %v7186 = vpack.c.bf16 %v6697, %v6690
  %v7187 = vpack.c.bf16 %v6698, %v6691
  %v7188 = vpack.c.bf16 %v6699, %v6692
  %v7189 = vpack.c.bf16 %v6700, %v6693
  %v7190 = vpack.c.bf16 %v6701, %v6694
  %v7191 = vpack.c.bf16 %v6702, %v6695
  %v7192 = vpack.c.bf16 %v6780, %v6779
  %v7193 = vpack.c.bf16 %v6710, %v6703
  %v7194 = vpack.c.bf16 %v6711, %v6704
  %v7195 = vpack.c.bf16 %v6712, %v6705
  %v7196 = vpack.c.bf16 %v6713, %v6706
  %v7197 = vpack.c.bf16 %v6714, %v6707
  %v7198 = vpack.c.bf16 %v6715, %v6708
  %v7199 = vpack.c.bf16 %v6716, %v6709
  %v7200 = vpack.c.bf16 %v6782, %v6781
  %v7201 = vpack.c.bf16 %v6724, %v6717
  %v7202 = vpack.c.bf16 %v6725, %v6718
  %v7203 = vpack.c.bf16 %v6726, %v6719
  %v7204 = vpack.c.bf16 %v6727, %v6720
  %v7205 = vpack.c.bf16 %v6728, %v6721
  %v7206 = vpack.c.bf16 %v6729, %v6722
  %v7207 = vpack.c.bf16 %v6730, %v6723
  %v7208 = vpack.c.bf16 %v6784, %v6783
  %v7209 = vpack.c.bf16 %v6985, %v6977
  %v7210 = vpack.c.bf16 %v6986, %v6978
  %v7211 = vpack.c.bf16 %v6987, %v6979
  %v7212 = vpack.c.bf16 %v6988, %v6980
  %v7213 = vpack.c.bf16 %v6989, %v6981
  %v7214 = vpack.c.bf16 %v6990, %v6982
  %v7215 = vpack.c.bf16 %v6991, %v6983
  %v7216 = vpack.c.bf16 %v6992, %v6984
  %v7217 = vpack.c.bf16 %v7001, %v6993
  %v7218 = vpack.c.bf16 %v7002, %v6994
  %v7219 = vpack.c.bf16 %v7003, %v6995
  %v7220 = vpack.c.bf16 %v7004, %v6996
  %v7221 = vpack.c.bf16 %v7005, %v6997
  %v7222 = vpack.c.bf16 %v7006, %v6998
  %v7223 = vpack.c.bf16 %v7007, %v6999
  %v7224 = vpack.c.bf16 %v7008, %v7000
  %v7225 = vpack.c.bf16 %v7017, %v7009
  %v7226 = vpack.c.bf16 %v7018, %v7010
  %v7227 = vpack.c.bf16 %v7019, %v7011
  %v7228 = vpack.c.bf16 %v7020, %v7012
  %v7229 = vpack.c.bf16 %v7021, %v7013
  %v7230 = vpack.c.bf16 %v7022, %v7014
  %v7231 = vpack.c.bf16 %v7023, %v7015
  %v7232 = vpack.c.bf16 %v7024, %v7016
  %7234 = vset.pattern.permute.xlu0 0
  %7235 = vperm.xlu0 %7234, %v5151
  %v7236 = vpop.permute.xlu0 %7235
  %7239 = vset.pattern.permute.xlu0 0
  %7240 = vperm.xlu0 %7239, %v5152
  %v7241 = vpop.permute.xlu0 %7240
  %v7247 = vunpack.c.l.b16 %v5147
  %v7248 = vunpack.c.h.b16 %v5147
  %v7249 = vunpack.c.l.b16 %v5148
  %v7250 = vunpack.c.h.b16 %v5148
  %v7251 = vunpack.c.l.b16 %v5149
  %v7252 = vunpack.c.h.b16 %v5149
  %v7253 = vunpack.c.l.b16 %v5150
  %v7254 = vunpack.c.h.b16 %v5150
  %v7255 = vpack.c.b16 %v7251, %v7247
  %v7256 = vpack.c.b16 %v7252, %v7248
  %v7257 = vpack.c.b16 %v7253, %v7249
  %v7258 = vpack.c.b16 %v7254, %v7250
  %vm7262 = vcmask 392192
  %v7264 = vsel %vm7262, %v7258, 0
  %7266 = vmatprep.subr.bf16.mxu0 %v7026
  %7267 = vmatpush1.bf16.msra.mxu0 %v7025
  %7268 = vmatprep.subr.bf16.mxu0 %v7034
  %7269 = vmatpush1.bf16.msra.mxu0 %v7033
  %7270 = vmatprep.subr.bf16.mxu0 %v7042
  %7271 = vmatpush1.bf16.msra.mxu0 %v7041
  %7272 = vmatprep.subr.bf16.mxu0 %v7050
  %7273 = vmatpush1.bf16.msra.mxu0 %v7049
  %7274 = vmatprep.subr.bf16.mxu0 %v7058
  %7275 = vmatpush1.bf16.msra.mxu0 %v7057
  %7276 = vmatprep.subr.bf16.mxu0 %v7066
  %7277 = vmatpush1.bf16.msra.mxu0 %v7065
  %7278 = vmatprep.subr.bf16.mxu0 %v7074
  %7279 = vmatpush1.bf16.msra.mxu0 %v7073
  %7280 = vmatprep.subr.bf16.mxu0 %v7082
  %7281 = vmatpush1.bf16.msra.mxu0 %v7081
  %7282 = vmatprep.subr.bf16.mxu0 %v7090
  %7283 = vmatpush1.bf16.msra.mxu0 %v7089
  %7284 = vmatprep.subr.bf16.mxu0 %v7098
  %7285 = vmatpush1.bf16.msra.mxu0 %v7097
  %7286 = vmatprep.subr.bf16.mxu0 %v7106
  %7287 = vmatpush1.bf16.msra.mxu0 %v7105
  %7288 = vmatprep.subr.bf16.mxu0 %v7114
  %7289 = vmatpush1.bf16.msra.mxu0 %v7113
  %7290 = vmatprep.subr.bf16.mxu0 %v7122
  %7291 = vmatpush1.bf16.msra.mxu0 %v7121
  %7292 = vmatprep.subr.bf16.mxu0 %v7130
  %7293 = vmatpush1.bf16.msra.mxu0 %v7129
  %7294 = vmatprep.subr.bf16.mxu0 %v884
  %7295 = vmatpush1.bf16.msra.mxu0 %v883
  %7296 = vmatprep.subr.bf16.mxu0 %v7138
  %7297 = vmatpush1.bf16.msra.mxu0 %v7137
  %7298 = vmatprep.mubr.bf16.mxu0 %v7256
  %7299 = vmatmul.mubr.bf16.gmra.mrb[0].mxu0 %v7255
  %v7300 = vpop.f32.mrb[0].mxu0
  %v7301 = vadd.f32 %v7236, %v7300
  %v7302 = vpop.f32.mrb[0].mxu0
  %v7303 = vadd.f32 %v7236, %v7302
  %v7304 = vpop.f32.mrb[0].mxu0
  %v7305 = vadd.f32 %v7241, %v7304
  %v7306 = vpop.f32.mrb[0].mxu0
  %v7307 = vadd.f32 %v7241, %v7306
  %7308 = vdwg.mxu0
  %7309 = vmatprep.subr.bf16.mxu0 %v7146
  %7310 = vmatpush1.bf16.msra.mxu0 %v7145
  %7311 = vmatprep.subr.bf16.mxu0 %v7154
  %7312 = vmatpush1.bf16.msra.mxu0 %v7153
  %7313 = vmatprep.subr.bf16.mxu0 %v7162
  %7314 = vmatpush1.bf16.msra.mxu0 %v7161
  %7315 = vmatprep.subr.bf16.mxu0 %v7170
  %7316 = vmatpush1.bf16.msra.mxu0 %v7169
  %7317 = vmatprep.subr.bf16.mxu0 %v7178
  %7318 = vmatpush1.bf16.msra.mxu0 %v7177
  %7319 = vmatprep.subr.bf16.mxu0 %v7186
  %7320 = vmatpush1.bf16.msra.mxu0 %v7185
  %7321 = vmatprep.subr.bf16.mxu0 %v7194
  %7322 = vmatpush1.bf16.msra.mxu0 %v7193
  %7323 = vmatprep.subr.bf16.mxu0 %v7202
  %7324 = vmatpush1.bf16.msra.mxu0 %v7201
  %7325 = vmatprep.subr.bf16.mxu0 %v7210
  %7326 = vmatpush1.bf16.msra.mxu0 %v7209
  %7327 = vmatprep.subr.bf16.mxu0 %v7218
  %7328 = vmatpush1.bf16.msra.mxu0 %v7217
  %7329 = vmatprep.subr.bf16.mxu0 %v7226
  %7330 = vmatpush1.bf16.msra.mxu0 %v7225
  %7331 = vmatprep.subr.bf16.mxu0 0
  %7332 = vmatpush1.bf16.msra.mxu0 0
  %7333 = vmatprep.subr.bf16.mxu0 0
  %7334 = vmatpush1.bf16.msra.mxu0 0
  %7335 = vmatprep.subr.bf16.mxu0 0
  %7336 = vmatpush1.bf16.msra.mxu0 0
  %7337 = vmatprep.subr.bf16.mxu0 0
  %7338 = vmatpush1.bf16.msra.mxu0 0
  %7339 = vmatprep.subr.bf16.mxu0 0
  %7340 = vmatpush1.bf16.msra.mxu0 0
  %7341 = vmatprep.mubr.bf16.mxu0 %v7264
  %7342 = vmatmul.mubr.bf16.gmra.mrb[0].mxu0 %v7257
  %v7343 = vpop.f32.mrb[0].mxu0
  %v7344 = vadd.f32 %v7301, %v7343
  %v7345 = vpop.f32.mrb[0].mxu0
  %v7346 = vadd.f32 %v7303, %v7345
  %v7347 = vpop.f32.mrb[0].mxu0
  %v7348 = vadd.f32 %v7305, %v7347
  %v7349 = vpop.f32.mrb[0].mxu0
  %v7350 = vadd.f32 %v7307, %v7349
  %7351 = vdwg.mxu0
  %7352 = vmatprep.subr.bf16.mxu0 %v7028
  %7353 = vmatpush1.bf16.msra.mxu0 %v7027
  %7354 = vmatprep.subr.bf16.mxu0 %v7036
  %7355 = vmatpush1.bf16.msra.mxu0 %v7035
  %7356 = vmatprep.subr.bf16.mxu0 %v7044
  %7357 = vmatpush1.bf16.msra.mxu0 %v7043
  %7358 = vmatprep.subr.bf16.mxu0 %v7052
  %7359 = vmatpush1.bf16.msra.mxu0 %v7051
  %7360 = vmatprep.subr.bf16.mxu0 %v7060
  %7361 = vmatpush1.bf16.msra.mxu0 %v7059
  %7362 = vmatprep.subr.bf16.mxu0 %v7068
  %7363 = vmatpush1.bf16.msra.mxu0 %v7067
  %7364 = vmatprep.subr.bf16.mxu0 %v7076
  %7365 = vmatpush1.bf16.msra.mxu0 %v7075
  %7366 = vmatprep.subr.bf16.mxu0 %v7084
  %7367 = vmatpush1.bf16.msra.mxu0 %v7083
  %7368 = vmatprep.subr.bf16.mxu0 %v7092
  %7369 = vmatpush1.bf16.msra.mxu0 %v7091
  %7370 = vmatprep.subr.bf16.mxu0 %v7100
  %7371 = vmatpush1.bf16.msra.mxu0 %v7099
  %7372 = vmatprep.subr.bf16.mxu0 %v7108
  %7373 = vmatpush1.bf16.msra.mxu0 %v7107
  %7374 = vmatprep.subr.bf16.mxu0 %v7116
  %7375 = vmatpush1.bf16.msra.mxu0 %v7115
  %7376 = vmatprep.subr.bf16.mxu0 %v7124
  %7377 = vmatpush1.bf16.msra.mxu0 %v7123
  %7378 = vmatprep.subr.bf16.mxu0 %v7132
  %7379 = vmatpush1.bf16.msra.mxu0 %v7131
  %7380 = vmatprep.subr.bf16.mxu0 %v886
  %7381 = vmatpush1.bf16.msra.mxu0 %v885
  %7382 = vmatprep.subr.bf16.mxu0 %v7140
  %7383 = vmatpush1.bf16.msra.mxu0 %v7139
  %7384 = vmatprep.mubr.bf16.mxu0 %v7256
  %7385 = vmatmul.mubr.bf16.gmra.mrb[0].mxu0 %v7255
  %v7386 = vpop.f32.mrb[0].mxu0
  %v7387 = vadd.f32 %v7236, %v7386
  %v7388 = vpop.f32.mrb[0].mxu0
  %v7389 = vadd.f32 %v7236, %v7388
  %v7390 = vpop.f32.mrb[0].mxu0
  %v7391 = vadd.f32 %v7241, %v7390
  %v7392 = vpop.f32.mrb[0].mxu0
  %v7393 = vadd.f32 %v7241, %v7392
  %7394 = vdwg.mxu0
  %7395 = vmatprep.subr.bf16.mxu0 %v7148
  %7396 = vmatpush1.bf16.msra.mxu0 %v7147
  %7397 = vmatprep.subr.bf16.mxu0 %v7156
  %7398 = vmatpush1.bf16.msra.mxu0 %v7155
  %7399 = vmatprep.subr.bf16.mxu0 %v7164
  %7400 = vmatpush1.bf16.msra.mxu0 %v7163
  %7401 = vmatprep.subr.bf16.mxu0 %v7172
  %7402 = vmatpush1.bf16.msra.mxu0 %v7171
  %7403 = vmatprep.subr.bf16.mxu0 %v7180
  %7404 = vmatpush1.bf16.msra.mxu0 %v7179
  %7405 = vmatprep.subr.bf16.mxu0 %v7188
  %7406 = vmatpush1.bf16.msra.mxu0 %v7187
  %7407 = vmatprep.subr.bf16.mxu0 %v7196
  %7408 = vmatpush1.bf16.msra.mxu0 %v7195
  %7409 = vmatprep.subr.bf16.mxu0 %v7204
  %7410 = vmatpush1.bf16.msra.mxu0 %v7203
  %7411 = vmatprep.subr.bf16.mxu0 %v7212
  %7412 = vmatpush1.bf16.msra.mxu0 %v7211
  %7413 = vmatprep.subr.bf16.mxu0 %v7220
  %7414 = vmatpush1.bf16.msra.mxu0 %v7219
  %7415 = vmatprep.subr.bf16.mxu0 %v7228
  %7416 = vmatpush1.bf16.msra.mxu0 %v7227
  %7417 = vmatprep.subr.bf16.mxu0 0
  %7418 = vmatpush1.bf16.msra.mxu0 0
  %7419 = vmatprep.subr.bf16.mxu0 0
  %7420 = vmatpush1.bf16.msra.mxu0 0
  %7421 = vmatprep.subr.bf16.mxu0 0
  %7422 = vmatpush1.bf16.msra.mxu0 0
  %7423 = vmatprep.subr.bf16.mxu0 0
  %7424 = vmatpush1.bf16.msra.mxu0 0
  %7425 = vmatprep.subr.bf16.mxu0 0
  %7426 = vmatpush1.bf16.msra.mxu0 0
  %7427 = vmatprep.mubr.bf16.mxu0 %v7264
  %7428 = vmatmul.mubr.bf16.gmra.mrb[0].mxu0 %v7257
  %v7429 = vpop.f32.mrb[0].mxu0
  %v7430 = vadd.f32 %v7387, %v7429
  %v7431 = vpop.f32.mrb[0].mxu0
  %v7432 = vadd.f32 %v7389, %v7431
  %v7433 = vpop.f32.mrb[0].mxu0
  %v7434 = vadd.f32 %v7391, %v7433
  %v7435 = vpop.f32.mrb[0].mxu0
  %v7436 = vadd.f32 %v7393, %v7435
  %7437 = vdwg.mxu0
  %7438 = vmatprep.subr.bf16.mxu0 %v7030
  %7439 = vmatpush1.bf16.msra.mxu0 %v7029
  %7440 = vmatprep.subr.bf16.mxu0 %v7038
  %7441 = vmatpush1.bf16.msra.mxu0 %v7037
  %7442 = vmatprep.subr.bf16.mxu0 %v7046
  %7443 = vmatpush1.bf16.msra.mxu0 %v7045
  %7444 = vmatprep.subr.bf16.mxu0 %v7054
  %7445 = vmatpush1.bf16.msra.mxu0 %v7053
  %7446 = vmatprep.subr.bf16.mxu0 %v7062
  %7447 = vmatpush1.bf16.msra.mxu0 %v7061
  %7448 = vmatprep.subr.bf16.mxu0 %v7070
  %7449 = vmatpush1.bf16.msra.mxu0 %v7069
  %7450 = vmatprep.subr.bf16.mxu0 %v7078
  %7451 = vmatpush1.bf16.msra.mxu0 %v7077
  %7452 = vmatprep.subr.bf16.mxu0 %v7086
  %7453 = vmatpush1.bf16.msra.mxu0 %v7085
  %7454 = vmatprep.subr.bf16.mxu0 %v7094
  %7455 = vmatpush1.bf16.msra.mxu0 %v7093
  %7456 = vmatprep.subr.bf16.mxu0 %v7102
  %7457 = vmatpush1.bf16.msra.mxu0 %v7101
  %7458 = vmatprep.subr.bf16.mxu0 %v7110
  %7459 = vmatpush1.bf16.msra.mxu0 %v7109
  %7460 = vmatprep.subr.bf16.mxu0 %v7118
  %7461 = vmatpush1.bf16.msra.mxu0 %v7117
  %7462 = vmatprep.subr.bf16.mxu0 %v7126
  %7463 = vmatpush1.bf16.msra.mxu0 %v7125
  %7464 = vmatprep.subr.bf16.mxu0 %v7134
  %7465 = vmatpush1.bf16.msra.mxu0 %v7133
  %7466 = vmatprep.subr.bf16.mxu0 %v888
  %7467 = vmatpush1.bf16.msra.mxu0 %v887
  %7468 = vmatprep.subr.bf16.mxu0 %v7142
  %7469 = vmatpush1.bf16.msra.mxu0 %v7141
  %7470 = vmatprep.mubr.bf16.mxu0 %v7256
  %7471 = vmatmul.mubr.bf16.gmra.mrb[0].mxu0 %v7255
  %v7472 = vpop.f32.mrb[0].mxu0
  %v7473 = vadd.f32 %v7236, %v7472
  %v7474 = vpop.f32.mrb[0].mxu0
  %v7475 = vadd.f32 %v7236, %v7474
  %v7476 = vpop.f32.mrb[0].mxu0
  %v7477 = vadd.f32 %v7241, %v7476
  %v7478 = vpop.f32.mrb[0].mxu0
  %v7479 = vadd.f32 %v7241, %v7478
  %7480 = vdwg.mxu0
  %7481 = vmatprep.subr.bf16.mxu0 %v7150
  %7482 = vmatpush1.bf16.msra.mxu0 %v7149
  %7483 = vmatprep.subr.bf16.mxu0 %v7158
  %7484 = vmatpush1.bf16.msra.mxu0 %v7157
  %7485 = vmatprep.subr.bf16.mxu0 %v7166
  %7486 = vmatpush1.bf16.msra.mxu0 %v7165
  %7487 = vmatprep.subr.bf16.mxu0 %v7174
  %7488 = vmatpush1.bf16.msra.mxu0 %v7173
  %7489 = vmatprep.subr.bf16.mxu0 %v7182
  %7490 = vmatpush1.bf16.msra.mxu0 %v7181
  %7491 = vmatprep.subr.bf16.mxu0 %v7190
  %7492 = vmatpush1.bf16.msra.mxu0 %v7189
  %7493 = vmatprep.subr.bf16.mxu0 %v7198
  %7494 = vmatpush1.bf16.msra.mxu0 %v7197
  %7495 = vmatprep.subr.bf16.mxu0 %v7206
  %7496 = vmatpush1.bf16.msra.mxu0 %v7205
  %7497 = vmatprep.subr.bf16.mxu0 %v7214
  %7498 = vmatpush1.bf16.msra.mxu0 %v7213
  %7499 = vmatprep.subr.bf16.mxu0 %v7222
  %7500 = vmatpush1.bf16.msra.mxu0 %v7221
  %7501 = vmatprep.subr.bf16.mxu0 %v7230
  %7502 = vmatpush1.bf16.msra.mxu0 %v7229
  %7503 = vmatprep.subr.bf16.mxu0 0
  %7504 = vmatpush1.bf16.msra.mxu0 0
  %7505 = vmatprep.subr.bf16.mxu0 0
  %7506 = vmatpush1.bf16.msra.mxu0 0
  %7507 = vmatprep.subr.bf16.mxu0 0
  %7508 = vmatpush1.bf16.msra.mxu0 0
  %7509 = vmatprep.subr.bf16.mxu0 0
  %7510 = vmatpush1.bf16.msra.mxu0 0
  %7511 = vmatprep.subr.bf16.mxu0 0
  %7512 = vmatpush1.bf16.msra.mxu0 0
  %7513 = vmatprep.mubr.bf16.mxu0 %v7264
  %7514 = vmatmul.mubr.bf16.gmra.mrb[0].mxu0 %v7257
  %v7515 = vpop.f32.mrb[0].mxu0
  %v7516 = vadd.f32 %v7473, %v7515
  %v7517 = vpop.f32.mrb[0].mxu0
  %v7518 = vadd.f32 %v7475, %v7517
  %v7519 = vpop.f32.mrb[0].mxu0
  %v7520 = vadd.f32 %v7477, %v7519
  %v7521 = vpop.f32.mrb[0].mxu0
  %v7522 = vadd.f32 %v7479, %v7521
  %7523 = vdwg.mxu0
  %7524 = vmatprep.subr.bf16.mxu0 %v7032
  %7525 = vmatpush1.bf16.msra.mxu0 %v7031
  %7526 = vmatprep.subr.bf16.mxu0 %v7040
  %7527 = vmatpush1.bf16.msra.mxu0 %v7039
  %7528 = vmatprep.subr.bf16.mxu0 %v7048
  %7529 = vmatpush1.bf16.msra.mxu0 %v7047
  %7530 = vmatprep.subr.bf16.mxu0 %v7056
  %7531 = vmatpush1.bf16.msra.mxu0 %v7055
  %7532 = vmatprep.subr.bf16.mxu0 %v7064
  %7533 = vmatpush1.bf16.msra.mxu0 %v7063
  %7534 = vmatprep.subr.bf16.mxu0 %v7072
  %7535 = vmatpush1.bf16.msra.mxu0 %v7071
  %7536 = vmatprep.subr.bf16.mxu0 %v7080
  %7537 = vmatpush1.bf16.msra.mxu0 %v7079
  %7538 = vmatprep.subr.bf16.mxu0 %v7088
  %7539 = vmatpush1.bf16.msra.mxu0 %v7087
  %7540 = vmatprep.subr.bf16.mxu0 %v7096
  %7541 = vmatpush1.bf16.msra.mxu0 %v7095
  %7542 = vmatprep.subr.bf16.mxu0 %v7104
  %7543 = vmatpush1.bf16.msra.mxu0 %v7103
  %7544 = vmatprep.subr.bf16.mxu0 %v7112
  %7545 = vmatpush1.bf16.msra.mxu0 %v7111
  %7546 = vmatprep.subr.bf16.mxu0 %v7120
  %7547 = vmatpush1.bf16.msra.mxu0 %v7119
  %7548 = vmatprep.subr.bf16.mxu0 %v7128
  %7549 = vmatpush1.bf16.msra.mxu0 %v7127
  %7550 = vmatprep.subr.bf16.mxu0 %v7136
  %7551 = vmatpush1.bf16.msra.mxu0 %v7135
  %7552 = vmatprep.subr.bf16.mxu0 %v890
  %7553 = vmatpush1.bf16.msra.mxu0 %v889
  %7554 = vmatprep.subr.bf16.mxu0 %v7144
  %7555 = vmatpush1.bf16.msra.mxu0 %v7143
  %7556 = vmatprep.mubr.bf16.mxu0 %v7256
  %7557 = vmatmul.mubr.bf16.gmra.mrb[0].mxu0 %v7255
  %v7558 = vpop.f32.mrb[0].mxu0
  %v7559 = vadd.f32 %v7236, %v7558
  %v7560 = vpop.f32.mrb[0].mxu0
  %v7561 = vadd.f32 %v7236, %v7560
  %v7562 = vpop.f32.mrb[0].mxu0
  %v7563 = vadd.f32 %v7241, %v7562
  %v7564 = vpop.f32.mrb[0].mxu0
  %v7565 = vadd.f32 %v7241, %v7564
  %7566 = vdwg.mxu0
  %7567 = vmatprep.subr.bf16.mxu0 %v7152
  %7568 = vmatpush1.bf16.msra.mxu0 %v7151
  %7569 = vmatprep.subr.bf16.mxu0 %v7160
  %7570 = vmatpush1.bf16.msra.mxu0 %v7159
  %7571 = vmatprep.subr.bf16.mxu0 %v7168
  %7572 = vmatpush1.bf16.msra.mxu0 %v7167
  %7573 = vmatprep.subr.bf16.mxu0 %v7176
  %7574 = vmatpush1.bf16.msra.mxu0 %v7175
  %7575 = vmatprep.subr.bf16.mxu0 %v7184
  %7576 = vmatpush1.bf16.msra.mxu0 %v7183
  %7577 = vmatprep.subr.bf16.mxu0 %v7192
  %7578 = vmatpush1.bf16.msra.mxu0 %v7191
  %7579 = vmatprep.subr.bf16.mxu0 %v7200
  %7580 = vmatpush1.bf16.msra.mxu0 %v7199
  %7581 = vmatprep.subr.bf16.mxu0 %v7208
  %7582 = vmatpush1.bf16.msra.mxu0 %v7207
  %7583 = vmatprep.subr.bf16.mxu0 %v7216
  %7584 = vmatpush1.bf16.msra.mxu0 %v7215
  %7585 = vmatprep.subr.bf16.mxu0 %v7224
  %7586 = vmatpush1.bf16.msra.mxu0 %v7223
  %7587 = vmatprep.subr.bf16.mxu0 %v7232
  %7588 = vmatpush1.bf16.msra.mxu0 %v7231
  %7589 = vmatprep.subr.bf16.mxu0 0
  %7590 = vmatpush1.bf16.msra.mxu0 0
  %7591 = vmatprep.subr.bf16.mxu0 0
  %7592 = vmatpush1.bf16.msra.mxu0 0
  %7593 = vmatprep.subr.bf16.mxu0 0
  %7594 = vmatpush1.bf16.msra.mxu0 0
  %7595 = vmatprep.subr.bf16.mxu0 0
  %7596 = vmatpush1.bf16.msra.mxu0 0
  %7597 = vmatprep.subr.bf16.mxu0 0
  %7598 = vmatpush1.bf16.msra.mxu0 0
  %7599 = vmatprep.mubr.bf16.mxu0 %v7264
  %7600 = vmatmul.mubr.bf16.gmra.mrb[0].mxu0 %v7257
  %v7601 = vpop.f32.mrb[0].mxu0
  %v7602 = vadd.f32 %v7559, %v7601
  %v7603 = vpop.f32.mrb[0].mxu0
  %v7604 = vadd.f32 %v7561, %v7603
  %v7605 = vpop.f32.mrb[0].mxu0
  %v7606 = vadd.f32 %v7563, %v7605
  %v7607 = vpop.f32.mrb[0].mxu0
  %v7608 = vadd.f32 %v7565, %v7607
  %7609 = vdwg.mxu0
  %v7610 = vmax.f32 %v7344, 0.0
  %v7611 = vmax.f32 %v7346, 0.0
  %v7612 = vmax.f32 %v7430, 0.0
  %v7613 = vmax.f32 %v7432, 0.0
  %v7614 = vmax.f32 %v7516, 0.0
  %v7615 = vmax.f32 %v7518, 0.0
  %v7616 = vmax.f32 %v7602, 0.0
  %v7617 = vmax.f32 %v7604, 0.0
  %v7618 = vmax.f32 %v7348, 0.0
  %v7619 = vmax.f32 %v7350, 0.0
  %v7620 = vmax.f32 %v7434, 0.0
  %v7621 = vmax.f32 %v7436, 0.0
  %v7622 = vmax.f32 %v7520, 0.0
  %v7623 = vmax.f32 %v7522, 0.0
  %v7624 = vmax.f32 %v7606, 0.0
  %v7625 = vmax.f32 %v7608, 0.0
  %v7626 = vld [vmem:[%s11] sm:$0xf]
  %v7627 = vld [vmem:[%s11 + $0x4] sm:$0xf]
  %v7628 = vpack.c.bf16 %v7618, %v7610
  %v7629 = vpack.c.bf16 %v7619, %v7611
  %v7630 = vpack.c.bf16 %v7620, %v7612
  %v7631 = vpack.c.bf16 %v7621, %v7613
  %v7632 = vpack.c.bf16 %v7622, %v7614
  %v7633 = vpack.c.bf16 %v7623, %v7615
  %v7634 = vpack.c.bf16 %v7624, %v7616
  %v7635 = vpack.c.bf16 %v7625, %v7617
  %v7636 = vld [vmem:[%s12] sm:$0xff]
  %v7637 = vld [vmem:[%s12 + $0x8] sm:$0xff]
  %7639 = vset.pattern.permute.xlu0 0
  %7640 = vperm.xlu0 %7639, %v7636
  %v7641 = vpop.permute.xlu0 %7640
  %7644 = vset.pattern.permute.xlu0 0
  %7645 = vperm.xlu0 %7644, %v7637
  %v7646 = vpop.permute.xlu0 %7645
  %v7650 = vunpack.c.l.b16 %v7626
  %v7651 = vunpack.c.l.b16 %v7627
  %v7652 = vpack.c.b16 %v7651, %v7650
  %v7654 = vsel %vm1885, %v7652, 0
  %7656 = vmatprep.subr.bf16.mxu0 %v7629
  %7657 = vmatpush1.bf16.msra.mxu0 %v7628
  %7658 = vmatprep.subr.bf16.mxu0 0
  %7659 = vmatpush1.bf16.msra.mxu0 0
  %7660 = vmatprep.subr.bf16.mxu0 0
  %7661 = vmatpush1.bf16.msra.mxu0 0
  %7662 = vmatprep.subr.bf16.mxu0 0
  %7663 = vmatpush1.bf16.msra.mxu0 0
  %7664 = vmatprep.subr.bf16.mxu0 0
  %7665 = vmatpush1.bf16.msra.mxu0 0
  %7666 = vmatprep.subr.bf16.mxu0 0
  %7667 = vmatpush1.bf16.msra.mxu0 0
  %7668 = vmatprep.subr.bf16.mxu0 0
  %7669 = vmatpush1.bf16.msra.mxu0 0
  %7670 = vmatprep.subr.bf16.mxu0 0
  %7671 = vmatpush1.bf16.msra.mxu0 0
  %7672 = vmatprep.subr.bf16.mxu0 0
  %7673 = vmatpush1.bf16.msra.mxu0 0
  %7674 = vmatprep.subr.bf16.mxu0 0
  %7675 = vmatpush1.bf16.msra.mxu0 0
  %7676 = vmatprep.subr.bf16.mxu0 0
  %7677 = vmatpush1.bf16.msra.mxu0 0
  %7678 = vmatprep.subr.bf16.mxu0 0
  %7679 = vmatpush1.bf16.msra.mxu0 0
  %7680 = vmatprep.subr.bf16.mxu0 0
  %7681 = vmatpush1.bf16.msra.mxu0 0
  %7682 = vmatprep.subr.bf16.mxu0 0
  %7683 = vmatpush1.bf16.msra.mxu0 0
  %7684 = vmatprep.subr.bf16.mxu0 0
  %7685 = vmatpush1.bf16.msra.mxu0 0
  %7686 = vmatprep.subr.bf16.mxu0 0
  %7687 = vmatpush1.bf16.msra.mxu0 0
  %7688 = vmatprep.mubr.bf16.mxu0 0
  %7689 = vmatmul.mubr.bf16.gmra.mrb[0].mxu0 %v7654
  %v7690 = vpop.f32.mrb[0].mxu0
  %v7691 = vadd.f32 %v7641, %v7690
  %v7692 = vpop.f32.mrb[0].mxu0
  %v7693 = vadd.f32 %v7641, %v7692
  %v7694 = vpop.f32.mrb[0].mxu0
  %v7695 = vadd.f32 %v7646, %v7694
  %v7696 = vpop.f32.mrb[0].mxu0
  %v7697 = vadd.f32 %v7646, %v7696
  %7698 = vdwg.mxu0
  %7699 = vmatprep.subr.bf16.mxu0 %v7631
  %7700 = vmatpush1.bf16.msra.mxu0 %v7630
  %7701 = vmatprep.subr.bf16.mxu0 0
  %7702 = vmatpush1.bf16.msra.mxu0 0
  %7703 = vmatprep.subr.bf16.mxu0 0
  %7704 = vmatpush1.bf16.msra.mxu0 0
  %7705 = vmatprep.subr.bf16.mxu0 0
  %7706 = vmatpush1.bf16.msra.mxu0 0
  %7707 = vmatprep.subr.bf16.mxu0 0
  %7708 = vmatpush1.bf16.msra.mxu0 0
  %7709 = vmatprep.subr.bf16.mxu0 0
  %7710 = vmatpush1.bf16.msra.mxu0 0
  %7711 = vmatprep.subr.bf16.mxu0 0
  %7712 = vmatpush1.bf16.msra.mxu0 0
  %7713 = vmatprep.subr.bf16.mxu0 0
  %7714 = vmatpush1.bf16.msra.mxu0 0
  %7715 = vmatprep.subr.bf16.mxu0 0
  %7716 = vmatpush1.bf16.msra.mxu0 0
  %7717 = vmatprep.subr.bf16.mxu0 0
  %7718 = vmatpush1.bf16.msra.mxu0 0
  %7719 = vmatprep.subr.bf16.mxu0 0
  %7720 = vmatpush1.bf16.msra.mxu0 0
  %7721 = vmatprep.subr.bf16.mxu0 0
  %7722 = vmatpush1.bf16.msra.mxu0 0
  %7723 = vmatprep.subr.bf16.mxu0 0
  %7724 = vmatpush1.bf16.msra.mxu0 0
  %7725 = vmatprep.subr.bf16.mxu0 0
  %7726 = vmatpush1.bf16.msra.mxu0 0
  %7727 = vmatprep.subr.bf16.mxu0 0
  %7728 = vmatpush1.bf16.msra.mxu0 0
  %7729 = vmatprep.subr.bf16.mxu0 0
  %7730 = vmatpush1.bf16.msra.mxu0 0
  %7731 = vmatprep.mubr.bf16.mxu0 0
  %7732 = vmatmul.mubr.bf16.gmra.mrb[0].mxu0 %v7654
  %v7733 = vpop.f32.mrb[0].mxu0
  %v7734 = vadd.f32 %v7641, %v7733
  %v7735 = vpop.f32.mrb[0].mxu0
  %v7736 = vadd.f32 %v7641, %v7735
  %v7737 = vpop.f32.mrb[0].mxu0
  %v7738 = vadd.f32 %v7646, %v7737
  %v7739 = vpop.f32.mrb[0].mxu0
  %v7740 = vadd.f32 %v7646, %v7739
  %7741 = vdwg.mxu0
  %7742 = vmatprep.subr.bf16.mxu0 %v7633
  %7743 = vmatpush1.bf16.msra.mxu0 %v7632
  %7744 = vmatprep.subr.bf16.mxu0 0
  %7745 = vmatpush1.bf16.msra.mxu0 0
  %7746 = vmatprep.subr.bf16.mxu0 0
  %7747 = vmatpush1.bf16.msra.mxu0 0
  %7748 = vmatprep.subr.bf16.mxu0 0
  %7749 = vmatpush1.bf16.msra.mxu0 0
  %7750 = vmatprep.subr.bf16.mxu0 0
  %7751 = vmatpush1.bf16.msra.mxu0 0
  %7752 = vmatprep.subr.bf16.mxu0 0
  %7753 = vmatpush1.bf16.msra.mxu0 0
  %7754 = vmatprep.subr.bf16.mxu0 0
  %7755 = vmatpush1.bf16.msra.mxu0 0
  %7756 = vmatprep.subr.bf16.mxu0 0
  %7757 = vmatpush1.bf16.msra.mxu0 0
  %7758 = vmatprep.subr.bf16.mxu0 0
  %7759 = vmatpush1.bf16.msra.mxu0 0
  %7760 = vmatprep.subr.bf16.mxu0 0
  %7761 = vmatpush1.bf16.msra.mxu0 0
  %7762 = vmatprep.subr.bf16.mxu0 0
  %7763 = vmatpush1.bf16.msra.mxu0 0
  %7764 = vmatprep.subr.bf16.mxu0 0
  %7765 = vmatpush1.bf16.msra.mxu0 0
  %7766 = vmatprep.subr.bf16.mxu0 0
  %7767 = vmatpush1.bf16.msra.mxu0 0
  %7768 = vmatprep.subr.bf16.mxu0 0
  %7769 = vmatpush1.bf16.msra.mxu0 0
  %7770 = vmatprep.subr.bf16.mxu0 0
  %7771 = vmatpush1.bf16.msra.mxu0 0
  %7772 = vmatprep.subr.bf16.mxu0 0
  %7773 = vmatpush1.bf16.msra.mxu0 0
  %7774 = vmatprep.mubr.bf16.mxu0 0
  %7775 = vmatmul.mubr.bf16.gmra.mrb[0].mxu0 %v7654
  %v7776 = vpop.f32.mrb[0].mxu0
  %v7777 = vadd.f32 %v7641, %v7776
  %v7778 = vpop.f32.mrb[0].mxu0
  %v7779 = vadd.f32 %v7641, %v7778
  %v7780 = vpop.f32.mrb[0].mxu0
  %v7781 = vadd.f32 %v7646, %v7780
  %v7782 = vpop.f32.mrb[0].mxu0
  %v7783 = vadd.f32 %v7646, %v7782
  %7784 = vdwg.mxu0
  %7785 = vmatprep.subr.bf16.mxu0 %v7635
  %7786 = vmatpush1.bf16.msra.mxu0 %v7634
  %7787 = vmatprep.subr.bf16.mxu0 0
  %7788 = vmatpush1.bf16.msra.mxu0 0
  %7789 = vmatprep.subr.bf16.mxu0 0
  %7790 = vmatpush1.bf16.msra.mxu0 0
  %7791 = vmatprep.subr.bf16.mxu0 0
  %7792 = vmatpush1.bf16.msra.mxu0 0
  %7793 = vmatprep.subr.bf16.mxu0 0
  %7794 = vmatpush1.bf16.msra.mxu0 0
  %7795 = vmatprep.subr.bf16.mxu0 0
  %7796 = vmatpush1.bf16.msra.mxu0 0
  %7797 = vmatprep.subr.bf16.mxu0 0
  %7798 = vmatpush1.bf16.msra.mxu0 0
  %7799 = vmatprep.subr.bf16.mxu0 0
  %7800 = vmatpush1.bf16.msra.mxu0 0
  %7801 = vmatprep.subr.bf16.mxu0 0
  %7802 = vmatpush1.bf16.msra.mxu0 0
  %7803 = vmatprep.subr.bf16.mxu0 0
  %7804 = vmatpush1.bf16.msra.mxu0 0
  %7805 = vmatprep.subr.bf16.mxu0 0
  %7806 = vmatpush1.bf16.msra.mxu0 0
  %7807 = vmatprep.subr.bf16.mxu0 0
  %7808 = vmatpush1.bf16.msra.mxu0 0
  %7809 = vmatprep.subr.bf16.mxu0 0
  %7810 = vmatpush1.bf16.msra.mxu0 0
  %7811 = vmatprep.subr.bf16.mxu0 0
  %7812 = vmatpush1.bf16.msra.mxu0 0
  %7813 = vmatprep.subr.bf16.mxu0 0
  %7814 = vmatpush1.bf16.msra.mxu0 0
  %7815 = vmatprep.subr.bf16.mxu0 0
  %7816 = vmatpush1.bf16.msra.mxu0 0
  %7817 = vmatprep.mubr.bf16.mxu0 0
  %7818 = vmatmul.mubr.bf16.gmra.mrb[0].mxu0 %v7654
  %v7819 = vpop.f32.mrb[0].mxu0
  %v7820 = vadd.f32 %v7641, %v7819
  %v7821 = vpop.f32.mrb[0].mxu0
  %v7822 = vadd.f32 %v7641, %v7821
  %v7823 = vpop.f32.mrb[0].mxu0
  %v7824 = vadd.f32 %v7646, %v7823
  %v7825 = vpop.f32.mrb[0].mxu0
  %v7826 = vadd.f32 %v7646, %v7825
  %7827 = vdwg.mxu0
  %7828 = vst [vmem:[%s13] sm:$0xff] %v7691
  %7829 = vst [vmem:[%s13 + $0x8] sm:$0xff] %v7693
  %7830 = vst [vmem:[%s13 + $0x10] sm:$0xff] %v7734
  %7831 = vst [vmem:[%s13 + $0x18] sm:$0xff] %v7736
  %7832 = vst [vmem:[%s13 + $0x20] sm:$0xff] %v7777
  %7833 = vst [vmem:[%s13 + $0x28] sm:$0xff] %v7779
  %7834 = vst [vmem:[%s13 + $0x30] sm:$0xff] %v7820
  %7835 = vst [vmem:[%s13 + $0x38] sm:$0xff] %v7822
  %7836 = vst [vmem:[%s13 + $0x40] sm:$0xff] %v7695
  %7837 = vst [vmem:[%s13 + $0x48] sm:$0xff] %v7697
  %7838 = vst [vmem:[%s13 + $0x50] sm:$0xff] %v7738
  %7839 = vst [vmem:[%s13 + $0x58] sm:$0xff] %v7740
  %7840 = vst [vmem:[%s13 + $0x60] sm:$0xff] %v7781
  %7841 = vst [vmem:[%s13 + $0x68] sm:$0xff] %v7783
  %7842 = vst [vmem:[%s13 + $0x70] sm:$0xff] %v7824
  %7843 = vst [vmem:[%s13 + $0x78] sm:$0xff] %v7826
  // Predicated region
  $region54: #{segmentation_forward.1} parent=0 // pred_check
    _
  $region55: #{segmentation_forward.1} parent=0 // pred_check_branch
    %7845 = sbr.rel (0) target = $region57
  $region56: #{segmentation_forward.1} parent=0 // pred_region
    _
  $region57: #{segmentation_forward.1} parent=0 // pred_fallthru
    _
  // Predicated region
  $region58: #{segmentation_forward.1} parent=0 // pred_check
    _
  $region59: #{segmentation_forward.1} parent=0 // pred_check_branch
    %7847 = sbr.rel (0) target = $region61
  $region60: #{segmentation_forward.1} parent=0 // pred_region
    _
  $region61: #{segmentation_forward.1} parent=0 // pred_fallthru
    _

</llo_original>
